<compile_context>
chip_gen: v7x
topology: tpu7x:2x2x1
jax: 0.10.0
libtpu: 0.0.40
codegen_flags: <defaults>
</compile_context>

<pallas_src>
import functools

import jax
import jax.numpy as jnp
from jax.experimental import pallas as pl
from jax.experimental.pallas import tpu as pltpu

EPS = 1e-5
LANES = 128


def _round_up(x, m):
    return (x + m - 1) // m * m


def _conv_accumulate(x_ref, w_ref, L, W):
    """3x3 conv over one flat padded image as 9 shifted MXU matmuls (f32 accumulate).

    x_ref: ((H+2)*(W+2), Cin) bf16 -- spatially padded image, rows flattened.
    w_ref: (9, Cin, COUT_PAD) bf16 -- fused 3x3 kernel, tap-major.
    Returns z: (L, COUT_PAD) f32 over the contiguous flat range that covers every
    valid output pixel (pad columns inside the range are masked / sliced off later).
    """
    acc = None
    for k in range(9):                                # statically unrolled taps
        dh, dw = divmod(k, 3)
        off = dh * (W + 2) + dw                       # static shift into the padded image
        xs = x_ref[off:off + L, :]                    # (L, Cin) bf16
        p = jnp.dot(xs, w_ref[k], preferred_element_type=jnp.float32)
        acc = p if acc is None else acc + p
    return acc


def _conv_stats_kernel(x_ref, w_ref, mask_ref, sum_ref, ssq_ref, *, L, W):
    # Phase 1: conv + masked per-image channel sums / sums-of-squares (f32).
    z = _conv_accumulate(x_ref, w_ref, L, W)          # (L, CP) f32
    zm = z * mask_ref[...]                            # zero out spatial-pad columns
    sum_ref[...] = jnp.sum(zm, axis=0, keepdims=True)
    ssq_ref[...] = jnp.sum(zm * z, axis=0, keepdims=True)


def _conv_bn_relu_kernel(x_ref, w_ref, scale_ref, shift_ref, o_ref, *, L, W):
    # Phase 2: recompute conv, apply folded BatchNorm + ReLU, lane-dense store.
    z = _conv_accumulate(x_ref, w_ref, L, W)          # (L, CP) f32
    y = z * scale_ref[...] + shift_ref[...]
    o_ref[...] = jnp.maximum(y, 0.0)


def skeleton_block_forward(x_nchw, w3x3, w3x1, w1x3, gamma, beta):
    N, Cin, H, W = x_nchw.shape
    Cout = w3x3.shape[0]
    CP = _round_up(Cout, LANES)           # lane-dense compute / store width
    PPIX = (H + 2) * (W + 2)              # flat length of one spatially padded image
    L = H * (W + 2) - 2                   # contiguous flat range covering all valid pixels

    # --- fuse the three conv kernels into one 3x3 kernel (exact), then bf16 for MXU ---
    wc = w3x3
    wc = wc.at[:, :, :, 1].add(w3x1[:, :, :, 0])      # 3x1 -> center column of 3x3
    wc = wc.at[:, :, 1, :].add(w1x3[:, :, 0, :])      # 1x3 -> center row of 3x3
    # (Cout, Cin, 3, 3) -> (3, 3, Cin, Cout) -> (9, Cin, Cout) -> pad Cout -> bf16
    wk = jnp.transpose(wc, (2, 3, 1, 0)).reshape(9, Cin, Cout)
    wk = jnp.pad(wk, ((0, 0), (0, 0), (0, CP - Cout))).astype(jnp.bfloat16)

    # --- NCHW -> flat padded NHWC rows (1x input bytes in bf16, no im2col blowup) ---
    x_nhwc = jnp.transpose(x_nchw, (0, 2, 3, 1))
    xpad = jnp.pad(x_nhwc, ((0, 0), (1, 1), (1, 1), (0, 0)))
    xflat = xpad.reshape(N, PPIX, Cin).astype(jnp.bfloat16)

    # Validity mask over the computed flat range: drop the 2 spatial-pad columns per
    # padded row so they don't pollute the BatchNorm statistics.
    col = (jnp.arange(L) + 1) % (W + 2)               # = (flat_index mod (W+2)) + 1 mod ...
    mask = ((col >= 1) & (col <= W)).astype(jnp.float32).reshape(L, 1)

    cparams = pltpu.CompilerParams(
        dimension_semantics=("parallel",),            # no cross-step carry -> megacore-able
        vmem_limit_bytes=32 * 1024 * 1024,
    )

    x_spec = pl.BlockSpec((None, PPIX, Cin), lambda i: (i, 0, 0))
    w_spec = pl.BlockSpec((9, Cin, CP), lambda i: (0, 0, 0))
    mask_spec = pl.BlockSpec((L, 1), lambda i: (0, 0))
    vec_spec = pl.BlockSpec((1, CP), lambda i: (0, 0))
    stat_spec = pl.BlockSpec((None, 1, CP), lambda i: (i, 0, 0))

    # --- phase 1: conv + per-image partial BN statistics (grid parallel over N) ---
    sums, ssqs = pl.pallas_call(
        functools.partial(_conv_stats_kernel, L=L, W=W),
        grid=(N,),
        in_specs=[x_spec, w_spec, mask_spec],
        out_specs=[stat_spec, stat_spec],
        out_shape=[jax.ShapeDtypeStruct((N, 1, CP), jnp.float32),
                   jax.ShapeDtypeStruct((N, 1, CP), jnp.float32)],
        compiler_params=cparams,
    )(xflat, wk, mask)

    # --- tiny cross-image reduction + fold BN into per-channel scale/shift (XLA glue) ---
    count = N * H * W
    mean = jnp.sum(sums[:, 0, :], axis=0) / count
    var = jnp.sum(ssqs[:, 0, :], axis=0) / count - mean * mean
    inv = jax.lax.rsqrt(var + EPS)
    gpad = jnp.pad(gamma.astype(jnp.float32), (0, CP - Cout))
    bpad = jnp.pad(beta.astype(jnp.float32), (0, CP - Cout))
    scale = (gpad * inv).reshape(1, CP)               # gamma / sqrt(var + eps)
    shift = (bpad - mean * gpad * inv).reshape(1, CP)

    # --- phase 2: recompute conv, apply folded BN + ReLU, lane-dense (128) stores ---
    out_pad = pl.pallas_call(
        functools.partial(_conv_bn_relu_kernel, L=L, W=W),
        grid=(N,),
        in_specs=[x_spec, w_spec, vec_spec, vec_spec],
        out_specs=pl.BlockSpec((None, L, CP), lambda i: (i, 0, 0)),
        out_shape=jax.ShapeDtypeStruct((N, L, CP), jnp.float32),
        compiler_params=cparams,
    )(xflat, wk, scale, shift)

    # --- layout plumbing back to NCHW + drop channel/spatial padding (XLA glue) ---
    out = out_pad[:, :, :Cout]                                      # real channels
    out = jnp.pad(out, ((0, 0), (0, 2), (0, 0)))                    # L -> H*(W+2)
    out = out.reshape(N, H, W + 2, Cout)[:, :, :W, :]               # drop pad columns
    return jnp.transpose(out, (0, 3, 1, 2))                         # NHWC -> NCHW


def reference_forward(x, w3x3, w3x1, w1x3, gamma, beta):
    # Pure-JAX f32 reference reproducing the PyTorch forward (training-mode BN).
    dn = ('NCHW', 'OIHW', 'NCHW')
    hp = jax.lax.Precision.HIGHEST
    sq = jax.lax.conv_general_dilated(x, w3x3, (1, 1), ((1, 1), (1, 1)),
                                      dimension_numbers=dn, precision=hp)
    ver = jax.lax.conv_general_dilated(x, w3x1, (1, 1), ((1, 1), (0, 0)),
                                       dimension_numbers=dn, precision=hp)
    hor = jax.lax.conv_general_dilated(x, w1x3, (1, 1), ((0, 0), (1, 1)),
                                       dimension_numbers=dn, precision=hp)
    s = sq + ver + hor
    mean = jnp.mean(s, axis=(0, 2, 3), keepdims=True)
    var = jnp.mean((s - mean) ** 2, axis=(0, 2, 3), keepdims=True)
    y = (s - mean) * jax.lax.rsqrt(var + EPS)
    y = y * gamma.reshape(1, -1, 1, 1) + beta.reshape(1, -1, 1, 1)
    return jnp.maximum(y, 0.0)


def reference_forward_bf16_inputs(x, w3x3, w3x1, w1x3, gamma, beta):
    # Same math, but x and the fused conv weight are rounded to bf16 exactly like the
    # kernel's MXU operands, isolating kernel logic from the intentional bf16 cast.
    wc = w3x3
    wc = wc.at[:, :, :, 1].add(w3x1[:, :, :, 0])
    wc = wc.at[:, :, 1, :].add(w1x3[:, :, 0, :])
    xq = x.astype(jnp.bfloat16).astype(jnp.float32)
    wq = wc.astype(jnp.bfloat16).astype(jnp.float32)
    dn = ('NCHW', 'OIHW', 'NCHW')
    s = jax.lax.conv_general_dilated(xq, wq, (1, 1), ((1, 1), (1, 1)),
                                     dimension_numbers=dn,
                                     precision=jax.lax.Precision.HIGHEST)
    mean = jnp.mean(s, axis=(0, 2, 3), keepdims=True)
    var = jnp.mean((s - mean) ** 2, axis=(0, 2, 3), keepdims=True)
    y = (s - mean) * jax.lax.rsqrt(var + EPS)
    y = y * gamma.reshape(1, -1, 1, 1) + beta.reshape(1, -1, 1, 1)
    return jnp.maximum(y, 0.0)


if __name__ == "__main__":
    N, Cin, Cout, H, W = 2, 4, 8, 16, 16

    key = jax.random.PRNGKey(0)
    kx, k1, k2, k3 = jax.random.split(key, 4)
    x = jax.random.normal(kx, (N, Cin, H, W), dtype=jnp.float32)

    # Deterministic synthetic parameters (PyTorch shapes, bias=False, BN defaults).
    w3x3 = 0.1 * jax.random.normal(k1, (Cout, Cin, 3, 3), dtype=jnp.float32)
    w3x1 = 0.1 * jax.random.normal(k2, (Cout, Cin, 3, 1), dtype=jnp.float32)
    w1x3 = 0.1 * jax.random.normal(k3, (Cout, Cin, 1, 3), dtype=jnp.float32)
    gamma = jnp.ones((Cout,), dtype=jnp.float32)
    beta = jnp.zeros((Cout,), dtype=jnp.float32)

    fwd = jax.jit(skeleton_block_forward)
    out = jax.block_until_ready(fwd(x, w3x3, w3x1, w1x3, gamma, beta))

    ref_q = jax.block_until_ready(reference_forward_bf16_inputs(x, w3x3, w3x1, w1x3, gamma, beta))
    ref_f = jax.block_until_ready(reference_forward(x, w3x3, w3x1, w1x3, gamma, beta))

    assert out.shape == (N, Cout, H, W), out.shape
    # Exact-logic check vs a reference fed the same bf16-rounded MXU operands.
    assert jnp.allclose(out, ref_q, rtol=2e-3, atol=2e-3), float(jnp.max(jnp.abs(out - ref_q)))
    # Sanity check vs the full-f32 module semantics (loose only because of the bf16 MXU cast).
    assert jnp.allclose(out, ref_f, rtol=1e-1, atol=1e-1), float(jnp.max(jnp.abs(out - ref_f)))

    print("KERNEL_OK")
</pallas_src>

<mosaic_0001>
module attributes {stable_mosaic.version = 11 : i64} {
  func.func @_conv_stats_kernel(%arg0: i32, %arg1: memref<1x324x4xbf16, #tpu.memory_space<vmem>>, %arg2: memref<9x4x128xbf16, #tpu.memory_space<vmem>>, %arg3: memref<286x1xf32, #tpu.memory_space<vmem>>, %arg4: memref<1x1x128xf32, #tpu.memory_space<vmem>>, %arg5: memref<1x1x128xf32, #tpu.memory_space<vmem>>) attributes {dimension_semantics = [#tpu.dimension_semantics<parallel>], iteration_bounds = array<i64: 2>, scalar_prefetch = 0 : i64, scratch_operands = 0 : i64, tpu.core_type = #tpu.core_type<tc>, window_params = [{transform_indices = @transform_0, window_bounds = array<i64: 1, 324, 4>}, {pipeline_mode = #tpu.pipeline_mode<synchronous>, transform_indices = @transform_1, window_bounds = array<i64: 9, 4, 128>}, {pipeline_mode = #tpu.pipeline_mode<synchronous>, transform_indices = @transform_2, window_bounds = array<i64: 286, 1>}, {transform_indices = @transform_3, window_bounds = array<i64: 1, 1, 128>}, {transform_indices = @transform_4, window_bounds = array<i64: 1, 1, 128>}]} {
    %c0 = arith.constant 0 : index
    %c0_0 = arith.constant 0 : index
    %c0_1 = arith.constant 0 : index
    %0 = vector.load %arg1[%c0, %c0_0, %c0_1] : memref<1x324x4xbf16, #tpu.memory_space<vmem>>, vector<1x286x4xbf16>
    %1 = vector.shape_cast %0 : vector<1x286x4xbf16> to vector<286x4xbf16>
    %c0_2 = arith.constant 0 : index
    %c0_3 = arith.constant 0 : index
    %c0_4 = arith.constant 0 : index
    %2 = vector.load %arg2[%c0_2, %c0_3, %c0_4] : memref<9x4x128xbf16, #tpu.memory_space<vmem>>, vector<1x4x128xbf16>
    %3 = vector.shape_cast %2 : vector<1x4x128xbf16> to vector<4x128xbf16>
    %cst = arith.constant dense<0.000000e+00> : vector<286x128xf32>
    %4 = tpu.matmul %1, %3, %cst {dimension_numbers = #tpu.dot_dimension_numbers<[1], [0], [0], [1], [0, 0, 1, 1], [], []>} : vector<286x4xbf16>, vector<4x128xbf16>, vector<286x128xf32> -> vector<286x128xf32>
    %c0_5 = arith.constant 0 : index
    %c1 = arith.constant 1 : index
    %c0_6 = arith.constant 0 : index
    %5 = vector.load %arg1[%c0_5, %c1, %c0_6] : memref<1x324x4xbf16, #tpu.memory_space<vmem>>, vector<1x286x4xbf16>
    %6 = vector.shape_cast %5 : vector<1x286x4xbf16> to vector<286x4xbf16>
    %c1_7 = arith.constant 1 : index
    %c0_8 = arith.constant 0 : index
    %c0_9 = arith.constant 0 : index
    %7 = vector.load %arg2[%c1_7, %c0_8, %c0_9] : memref<9x4x128xbf16, #tpu.memory_space<vmem>>, vector<1x4x128xbf16>
    %8 = vector.shape_cast %7 : vector<1x4x128xbf16> to vector<4x128xbf16>
    %cst_10 = arith.constant dense<0.000000e+00> : vector<286x128xf32>
    %9 = tpu.matmul %6, %8, %cst_10 {dimension_numbers = #tpu.dot_dimension_numbers<[1], [0], [0], [1], [0, 0, 1, 1], [], []>} : vector<286x4xbf16>, vector<4x128xbf16>, vector<286x128xf32> -> vector<286x128xf32>
    %10 = arith.addf %4, %9 : vector<286x128xf32>
    %c0_11 = arith.constant 0 : index
    %c2 = arith.constant 2 : index
    %c0_12 = arith.constant 0 : index
    %11 = vector.load %arg1[%c0_11, %c2, %c0_12] : memref<1x324x4xbf16, #tpu.memory_space<vmem>>, vector<1x286x4xbf16>
    %12 = vector.shape_cast %11 : vector<1x286x4xbf16> to vector<286x4xbf16>
    %c2_13 = arith.constant 2 : index
    %c0_14 = arith.constant 0 : index
    %c0_15 = arith.constant 0 : index
    %13 = vector.load %arg2[%c2_13, %c0_14, %c0_15] : memref<9x4x128xbf16, #tpu.memory_space<vmem>>, vector<1x4x128xbf16>
    %14 = vector.shape_cast %13 : vector<1x4x128xbf16> to vector<4x128xbf16>
    %cst_16 = arith.constant dense<0.000000e+00> : vector<286x128xf32>
    %15 = tpu.matmul %12, %14, %cst_16 {dimension_numbers = #tpu.dot_dimension_numbers<[1], [0], [0], [1], [0, 0, 1, 1], [], []>} : vector<286x4xbf16>, vector<4x128xbf16>, vector<286x128xf32> -> vector<286x128xf32>
    %16 = arith.addf %10, %15 : vector<286x128xf32>
    %c0_17 = arith.constant 0 : index
    %c18 = arith.constant 18 : index
    %c0_18 = arith.constant 0 : index
    %17 = vector.load %arg1[%c0_17, %c18, %c0_18] : memref<1x324x4xbf16, #tpu.memory_space<vmem>>, vector<1x286x4xbf16>
    %18 = vector.shape_cast %17 : vector<1x286x4xbf16> to vector<286x4xbf16>
    %c3 = arith.constant 3 : index
    %c0_19 = arith.constant 0 : index
    %c0_20 = arith.constant 0 : index
    %19 = vector.load %arg2[%c3, %c0_19, %c0_20] : memref<9x4x128xbf16, #tpu.memory_space<vmem>>, vector<1x4x128xbf16>
    %20 = vector.shape_cast %19 : vector<1x4x128xbf16> to vector<4x128xbf16>
    %cst_21 = arith.constant dense<0.000000e+00> : vector<286x128xf32>
    %21 = tpu.matmul %18, %20, %cst_21 {dimension_numbers = #tpu.dot_dimension_numbers<[1], [0], [0], [1], [0, 0, 1, 1], [], []>} : vector<286x4xbf16>, vector<4x128xbf16>, vector<286x128xf32> -> vector<286x128xf32>
    %22 = arith.addf %16, %21 : vector<286x128xf32>
    %c0_22 = arith.constant 0 : index
    %c19 = arith.constant 19 : index
    %c0_23 = arith.constant 0 : index
    %23 = vector.load %arg1[%c0_22, %c19, %c0_23] : memref<1x324x4xbf16, #tpu.memory_space<vmem>>, vector<1x286x4xbf16>
    %24 = vector.shape_cast %23 : vector<1x286x4xbf16> to vector<286x4xbf16>
    %c4 = arith.constant 4 : index
    %c0_24 = arith.constant 0 : index
    %c0_25 = arith.constant 0 : index
    %25 = vector.load %arg2[%c4, %c0_24, %c0_25] : memref<9x4x128xbf16, #tpu.memory_space<vmem>>, vector<1x4x128xbf16>
    %26 = vector.shape_cast %25 : vector<1x4x128xbf16> to vector<4x128xbf16>
    %cst_26 = arith.constant dense<0.000000e+00> : vector<286x128xf32>
    %27 = tpu.matmul %24, %26, %cst_26 {dimension_numbers = #tpu.dot_dimension_numbers<[1], [0], [0], [1], [0, 0, 1, 1], [], []>} : vector<286x4xbf16>, vector<4x128xbf16>, vector<286x128xf32> -> vector<286x128xf32>
    %28 = arith.addf %22, %27 : vector<286x128xf32>
    %c0_27 = arith.constant 0 : index
    %c20 = arith.constant 20 : index
    %c0_28 = arith.constant 0 : index
    %29 = vector.load %arg1[%c0_27, %c20, %c0_28] : memref<1x324x4xbf16, #tpu.memory_space<vmem>>, vector<1x286x4xbf16>
    %30 = vector.shape_cast %29 : vector<1x286x4xbf16> to vector<286x4xbf16>
    %c5 = arith.constant 5 : index
    %c0_29 = arith.constant 0 : index
    %c0_30 = arith.constant 0 : index
    %31 = vector.load %arg2[%c5, %c0_29, %c0_30] : memref<9x4x128xbf16, #tpu.memory_space<vmem>>, vector<1x4x128xbf16>
    %32 = vector.shape_cast %31 : vector<1x4x128xbf16> to vector<4x128xbf16>
    %cst_31 = arith.constant dense<0.000000e+00> : vector<286x128xf32>
    %33 = tpu.matmul %30, %32, %cst_31 {dimension_numbers = #tpu.dot_dimension_numbers<[1], [0], [0], [1], [0, 0, 1, 1], [], []>} : vector<286x4xbf16>, vector<4x128xbf16>, vector<286x128xf32> -> vector<286x128xf32>
    %34 = arith.addf %28, %33 : vector<286x128xf32>
    %c0_32 = arith.constant 0 : index
    %c36 = arith.constant 36 : index
    %c0_33 = arith.constant 0 : index
    %35 = vector.load %arg1[%c0_32, %c36, %c0_33] : memref<1x324x4xbf16, #tpu.memory_space<vmem>>, vector<1x286x4xbf16>
    %36 = vector.shape_cast %35 : vector<1x286x4xbf16> to vector<286x4xbf16>
    %c6 = arith.constant 6 : index
    %c0_34 = arith.constant 0 : index
    %c0_35 = arith.constant 0 : index
    %37 = vector.load %arg2[%c6, %c0_34, %c0_35] : memref<9x4x128xbf16, #tpu.memory_space<vmem>>, vector<1x4x128xbf16>
    %38 = vector.shape_cast %37 : vector<1x4x128xbf16> to vector<4x128xbf16>
    %cst_36 = arith.constant dense<0.000000e+00> : vector<286x128xf32>
    %39 = tpu.matmul %36, %38, %cst_36 {dimension_numbers = #tpu.dot_dimension_numbers<[1], [0], [0], [1], [0, 0, 1, 1], [], []>} : vector<286x4xbf16>, vector<4x128xbf16>, vector<286x128xf32> -> vector<286x128xf32>
    %40 = arith.addf %34, %39 : vector<286x128xf32>
    %c0_37 = arith.constant 0 : index
    %c37 = arith.constant 37 : index
    %c0_38 = arith.constant 0 : index
    %41 = vector.load %arg1[%c0_37, %c37, %c0_38] : memref<1x324x4xbf16, #tpu.memory_space<vmem>>, vector<1x286x4xbf16>
    %42 = vector.shape_cast %41 : vector<1x286x4xbf16> to vector<286x4xbf16>
    %c7 = arith.constant 7 : index
    %c0_39 = arith.constant 0 : index
    %c0_40 = arith.constant 0 : index
    %43 = vector.load %arg2[%c7, %c0_39, %c0_40] : memref<9x4x128xbf16, #tpu.memory_space<vmem>>, vector<1x4x128xbf16>
    %44 = vector.shape_cast %43 : vector<1x4x128xbf16> to vector<4x128xbf16>
    %cst_41 = arith.constant dense<0.000000e+00> : vector<286x128xf32>
    %45 = tpu.matmul %42, %44, %cst_41 {dimension_numbers = #tpu.dot_dimension_numbers<[1], [0], [0], [1], [0, 0, 1, 1], [], []>} : vector<286x4xbf16>, vector<4x128xbf16>, vector<286x128xf32> -> vector<286x128xf32>
    %46 = arith.addf %40, %45 : vector<286x128xf32>
    %c0_42 = arith.constant 0 : index
    %c38 = arith.constant 38 : index
    %c0_43 = arith.constant 0 : index
    %47 = vector.load %arg1[%c0_42, %c38, %c0_43] : memref<1x324x4xbf16, #tpu.memory_space<vmem>>, vector<1x286x4xbf16>
    %48 = vector.shape_cast %47 : vector<1x286x4xbf16> to vector<286x4xbf16>
    %c8 = arith.constant 8 : index
    %c0_44 = arith.constant 0 : index
    %c0_45 = arith.constant 0 : index
    %49 = vector.load %arg2[%c8, %c0_44, %c0_45] : memref<9x4x128xbf16, #tpu.memory_space<vmem>>, vector<1x4x128xbf16>
    %50 = vector.shape_cast %49 : vector<1x4x128xbf16> to vector<4x128xbf16>
    %cst_46 = arith.constant dense<0.000000e+00> : vector<286x128xf32>
    %51 = tpu.matmul %48, %50, %cst_46 {dimension_numbers = #tpu.dot_dimension_numbers<[1], [0], [0], [1], [0, 0, 1, 1], [], []>} : vector<286x4xbf16>, vector<4x128xbf16>, vector<286x128xf32> -> vector<286x128xf32>
    %52 = arith.addf %46, %51 : vector<286x128xf32>
    %c0_47 = arith.constant 0 : index
    %c0_48 = arith.constant 0 : index
    %53 = vector.load %arg3[%c0_47, %c0_48] : memref<286x1xf32, #tpu.memory_space<vmem>>, vector<286x1xf32>
    %54 = vector.broadcast %53 : vector<286x1xf32> to vector<286x128xf32>
    %55 = arith.mulf %52, %54 : vector<286x128xf32>
    %cst_49 = arith.constant dense<0.000000e+00> : vector<128xf32>
    %56 = vector.multi_reduction <add>, %55, %cst_49 [0] : vector<286x128xf32> to vector<128xf32>
    %57 = vector.shape_cast %56 : vector<128xf32> to vector<1x128xf32>
    %c0_50 = arith.constant 0 : index
    %c0_51 = arith.constant 0 : index
    %c0_52 = arith.constant 0 : index
    %58 = vector.load %arg4[%c0_50, %c0_51, %c0_52] : memref<1x1x128xf32, #tpu.memory_space<vmem>>, vector<1x1x128xf32>
    %59 = vector.shape_cast %58 : vector<1x1x128xf32> to vector<1x128xf32>
    %60 = vector.shape_cast %57 : vector<1x128xf32> to vector<1x1x128xf32>
    tpu.vector_store %arg4[%c0_50, %c0_51, %c0_52], %60 {strides = array<i32>} : memref<1x1x128xf32, #tpu.memory_space<vmem>>, vector<1x1x128xf32>,
    %61 = arith.mulf %55, %52 : vector<286x128xf32>
    %cst_53 = arith.constant dense<0.000000e+00> : vector<128xf32>
    %62 = vector.multi_reduction <add>, %61, %cst_53 [0] : vector<286x128xf32> to vector<128xf32>
    %63 = vector.shape_cast %62 : vector<128xf32> to vector<1x128xf32>
    %c0_54 = arith.constant 0 : index
    %c0_55 = arith.constant 0 : index
    %c0_56 = arith.constant 0 : index
    %64 = vector.load %arg5[%c0_54, %c0_55, %c0_56] : memref<1x1x128xf32, #tpu.memory_space<vmem>>, vector<1x1x128xf32>
    %65 = vector.shape_cast %64 : vector<1x1x128xf32> to vector<1x128xf32>
    %66 = vector.shape_cast %63 : vector<1x128xf32> to vector<1x1x128xf32>
    tpu.vector_store %arg5[%c0_54, %c0_55, %c0_56], %66 {strides = array<i32>} : memref<1x1x128xf32, #tpu.memory_space<vmem>>, vector<1x1x128xf32>,
    return
  }
  func.func @transform_0(%arg0: i32) -> (i32, i32, i32) {
    %c0_i32 = arith.constant 0 : i32
    %c0_i32_0 = arith.constant 0 : i32
    %c0_i32_1 = arith.constant 0 : i32
    return %arg0, %c0_i32, %c0_i32_0 : i32, i32, i32
  }
  func.func @transform_1(%arg0: i32) -> (i32, i32, i32) {
    %c0_i32 = arith.constant 0 : i32
    %c0_i32_0 = arith.constant 0 : i32
    %c0_i32_1 = arith.constant 0 : i32
    %c0_i32_2 = arith.constant 0 : i32
    return %c0_i32, %c0_i32_0, %c0_i32_1 : i32, i32, i32
  }
  func.func @transform_2(%arg0: i32) -> (i32, i32) {
    %c0_i32 = arith.constant 0 : i32
    %c0_i32_0 = arith.constant 0 : i32
    %c0_i32_1 = arith.constant 0 : i32
    return %c0_i32, %c0_i32_0 : i32, i32
  }
  func.func @transform_3(%arg0: i32) -> (i32, i32, i32) {
    %c0_i32 = arith.constant 0 : i32
    %c0_i32_0 = arith.constant 0 : i32
    %c0_i32_1 = arith.constant 0 : i32
    return %arg0, %c0_i32, %c0_i32_0 : i32, i32, i32
  }
  func.func @transform_4(%arg0: i32) -> (i32, i32, i32) {
    %c0_i32 = arith.constant 0 : i32
    %c0_i32_0 = arith.constant 0 : i32
    %c0_i32_1 = arith.constant 0 : i32
    return %arg0, %c0_i32, %c0_i32_0 : i32, i32, i32
  }
}

module attributes {stable_mosaic.version = 11 : i64} {
  func.func @_conv_bn_relu_kernel(%arg0: i32, %arg1: memref<1x324x4xbf16, #tpu.memory_space<vmem>>, %arg2: memref<9x4x128xbf16, #tpu.memory_space<vmem>>, %arg3: memref<1x128xf32, #tpu.memory_space<vmem>>, %arg4: memref<1x128xf32, #tpu.memory_space<vmem>>, %arg5: memref<1x286x128xf32, #tpu.memory_space<vmem>>) attributes {dimension_semantics = [#tpu.dimension_semantics<parallel>], iteration_bounds = array<i64: 2>, scalar_prefetch = 0 : i64, scratch_operands = 0 : i64, tpu.core_type = #tpu.core_type<tc>, window_params = [{transform_indices = @transform_0, window_bounds = array<i64: 1, 324, 4>}, {pipeline_mode = #tpu.pipeline_mode<synchronous>, transform_indices = @transform_1, window_bounds = array<i64: 9, 4, 128>}, {pipeline_mode = #tpu.pipeline_mode<synchronous>, transform_indices = @transform_2, window_bounds = array<i64: 1, 128>}, {pipeline_mode = #tpu.pipeline_mode<synchronous>, transform_indices = @transform_3, window_bounds = array<i64: 1, 128>}, {transform_indices = @transform_4, window_bounds = array<i64: 1, 286, 128>}]} {
    %c0 = arith.constant 0 : index
    %c0_0 = arith.constant 0 : index
    %c0_1 = arith.constant 0 : index
    %0 = vector.load %arg1[%c0, %c0_0, %c0_1] : memref<1x324x4xbf16, #tpu.memory_space<vmem>>, vector<1x286x4xbf16>
    %1 = vector.shape_cast %0 : vector<1x286x4xbf16> to vector<286x4xbf16>
    %c0_2 = arith.constant 0 : index
    %c0_3 = arith.constant 0 : index
    %c0_4 = arith.constant 0 : index
    %2 = vector.load %arg2[%c0_2, %c0_3, %c0_4] : memref<9x4x128xbf16, #tpu.memory_space<vmem>>, vector<1x4x128xbf16>
    %3 = vector.shape_cast %2 : vector<1x4x128xbf16> to vector<4x128xbf16>
    %cst = arith.constant dense<0.000000e+00> : vector<286x128xf32>
    %4 = tpu.matmul %1, %3, %cst {dimension_numbers = #tpu.dot_dimension_numbers<[1], [0], [0], [1], [0, 0, 1, 1], [], []>} : vector<286x4xbf16>, vector<4x128xbf16>, vector<286x128xf32> -> vector<286x128xf32>
    %c0_5 = arith.constant 0 : index
    %c1 = arith.constant 1 : index
    %c0_6 = arith.constant 0 : index
    %5 = vector.load %arg1[%c0_5, %c1, %c0_6] : memref<1x324x4xbf16, #tpu.memory_space<vmem>>, vector<1x286x4xbf16>
    %6 = vector.shape_cast %5 : vector<1x286x4xbf16> to vector<286x4xbf16>
    %c1_7 = arith.constant 1 : index
    %c0_8 = arith.constant 0 : index
    %c0_9 = arith.constant 0 : index
    %7 = vector.load %arg2[%c1_7, %c0_8, %c0_9] : memref<9x4x128xbf16, #tpu.memory_space<vmem>>, vector<1x4x128xbf16>
    %8 = vector.shape_cast %7 : vector<1x4x128xbf16> to vector<4x128xbf16>
    %cst_10 = arith.constant dense<0.000000e+00> : vector<286x128xf32>
    %9 = tpu.matmul %6, %8, %cst_10 {dimension_numbers = #tpu.dot_dimension_numbers<[1], [0], [0], [1], [0, 0, 1, 1], [], []>} : vector<286x4xbf16>, vector<4x128xbf16>, vector<286x128xf32> -> vector<286x128xf32>
    %10 = arith.addf %4, %9 : vector<286x128xf32>
    %c0_11 = arith.constant 0 : index
    %c2 = arith.constant 2 : index
    %c0_12 = arith.constant 0 : index
    %11 = vector.load %arg1[%c0_11, %c2, %c0_12] : memref<1x324x4xbf16, #tpu.memory_space<vmem>>, vector<1x286x4xbf16>
    %12 = vector.shape_cast %11 : vector<1x286x4xbf16> to vector<286x4xbf16>
    %c2_13 = arith.constant 2 : index
    %c0_14 = arith.constant 0 : index
    %c0_15 = arith.constant 0 : index
    %13 = vector.load %arg2[%c2_13, %c0_14, %c0_15] : memref<9x4x128xbf16, #tpu.memory_space<vmem>>, vector<1x4x128xbf16>
    %14 = vector.shape_cast %13 : vector<1x4x128xbf16> to vector<4x128xbf16>
    %cst_16 = arith.constant dense<0.000000e+00> : vector<286x128xf32>
    %15 = tpu.matmul %12, %14, %cst_16 {dimension_numbers = #tpu.dot_dimension_numbers<[1], [0], [0], [1], [0, 0, 1, 1], [], []>} : vector<286x4xbf16>, vector<4x128xbf16>, vector<286x128xf32> -> vector<286x128xf32>
    %16 = arith.addf %10, %15 : vector<286x128xf32>
    %c0_17 = arith.constant 0 : index
    %c18 = arith.constant 18 : index
    %c0_18 = arith.constant 0 : index
    %17 = vector.load %arg1[%c0_17, %c18, %c0_18] : memref<1x324x4xbf16, #tpu.memory_space<vmem>>, vector<1x286x4xbf16>
    %18 = vector.shape_cast %17 : vector<1x286x4xbf16> to vector<286x4xbf16>
    %c3 = arith.constant 3 : index
    %c0_19 = arith.constant 0 : index
    %c0_20 = arith.constant 0 : index
    %19 = vector.load %arg2[%c3, %c0_19, %c0_20] : memref<9x4x128xbf16, #tpu.memory_space<vmem>>, vector<1x4x128xbf16>
    %20 = vector.shape_cast %19 : vector<1x4x128xbf16> to vector<4x128xbf16>
    %cst_21 = arith.constant dense<0.000000e+00> : vector<286x128xf32>
    %21 = tpu.matmul %18, %20, %cst_21 {dimension_numbers = #tpu.dot_dimension_numbers<[1], [0], [0], [1], [0, 0, 1, 1], [], []>} : vector<286x4xbf16>, vector<4x128xbf16>, vector<286x128xf32> -> vector<286x128xf32>
    %22 = arith.addf %16, %21 : vector<286x128xf32>
    %c0_22 = arith.constant 0 : index
    %c19 = arith.constant 19 : index
    %c0_23 = arith.constant 0 : index
    %23 = vector.load %arg1[%c0_22, %c19, %c0_23] : memref<1x324x4xbf16, #tpu.memory_space<vmem>>, vector<1x286x4xbf16>
    %24 = vector.shape_cast %23 : vector<1x286x4xbf16> to vector<286x4xbf16>
    %c4 = arith.constant 4 : index
    %c0_24 = arith.constant 0 : index
    %c0_25 = arith.constant 0 : index
    %25 = vector.load %arg2[%c4, %c0_24, %c0_25] : memref<9x4x128xbf16, #tpu.memory_space<vmem>>, vector<1x4x128xbf16>
    %26 = vector.shape_cast %25 : vector<1x4x128xbf16> to vector<4x128xbf16>
    %cst_26 = arith.constant dense<0.000000e+00> : vector<286x128xf32>
    %27 = tpu.matmul %24, %26, %cst_26 {dimension_numbers = #tpu.dot_dimension_numbers<[1], [0], [0], [1], [0, 0, 1, 1], [], []>} : vector<286x4xbf16>, vector<4x128xbf16>, vector<286x128xf32> -> vector<286x128xf32>
    %28 = arith.addf %22, %27 : vector<286x128xf32>
    %c0_27 = arith.constant 0 : index
    %c20 = arith.constant 20 : index
    %c0_28 = arith.constant 0 : index
    %29 = vector.load %arg1[%c0_27, %c20, %c0_28] : memref<1x324x4xbf16, #tpu.memory_space<vmem>>, vector<1x286x4xbf16>
    %30 = vector.shape_cast %29 : vector<1x286x4xbf16> to vector<286x4xbf16>
    %c5 = arith.constant 5 : index
    %c0_29 = arith.constant 0 : index
    %c0_30 = arith.constant 0 : index
    %31 = vector.load %arg2[%c5, %c0_29, %c0_30] : memref<9x4x128xbf16, #tpu.memory_space<vmem>>, vector<1x4x128xbf16>
    %32 = vector.shape_cast %31 : vector<1x4x128xbf16> to vector<4x128xbf16>
    %cst_31 = arith.constant dense<0.000000e+00> : vector<286x128xf32>
    %33 = tpu.matmul %30, %32, %cst_31 {dimension_numbers = #tpu.dot_dimension_numbers<[1], [0], [0], [1], [0, 0, 1, 1], [], []>} : vector<286x4xbf16>, vector<4x128xbf16>, vector<286x128xf32> -> vector<286x128xf32>
    %34 = arith.addf %28, %33 : vector<286x128xf32>
    %c0_32 = arith.constant 0 : index
    %c36 = arith.constant 36 : index
    %c0_33 = arith.constant 0 : index
    %35 = vector.load %arg1[%c0_32, %c36, %c0_33] : memref<1x324x4xbf16, #tpu.memory_space<vmem>>, vector<1x286x4xbf16>
    %36 = vector.shape_cast %35 : vector<1x286x4xbf16> to vector<286x4xbf16>
    %c6 = arith.constant 6 : index
    %c0_34 = arith.constant 0 : index
    %c0_35 = arith.constant 0 : index
    %37 = vector.load %arg2[%c6, %c0_34, %c0_35] : memref<9x4x128xbf16, #tpu.memory_space<vmem>>, vector<1x4x128xbf16>
    %38 = vector.shape_cast %37 : vector<1x4x128xbf16> to vector<4x128xbf16>
    %cst_36 = arith.constant dense<0.000000e+00> : vector<286x128xf32>
    %39 = tpu.matmul %36, %38, %cst_36 {dimension_numbers = #tpu.dot_dimension_numbers<[1], [0], [0], [1], [0, 0, 1, 1], [], []>} : vector<286x4xbf16>, vector<4x128xbf16>, vector<286x128xf32> -> vector<286x128xf32>
    %40 = arith.addf %34, %39 : vector<286x128xf32>
    %c0_37 = arith.constant 0 : index
    %c37 = arith.constant 37 : index
    %c0_38 = arith.constant 0 : index
    %41 = vector.load %arg1[%c0_37, %c37, %c0_38] : memref<1x324x4xbf16, #tpu.memory_space<vmem>>, vector<1x286x4xbf16>
    %42 = vector.shape_cast %41 : vector<1x286x4xbf16> to vector<286x4xbf16>
    %c7 = arith.constant 7 : index
    %c0_39 = arith.constant 0 : index
    %c0_40 = arith.constant 0 : index
    %43 = vector.load %arg2[%c7, %c0_39, %c0_40] : memref<9x4x128xbf16, #tpu.memory_space<vmem>>, vector<1x4x128xbf16>
    %44 = vector.shape_cast %43 : vector<1x4x128xbf16> to vector<4x128xbf16>
    %cst_41 = arith.constant dense<0.000000e+00> : vector<286x128xf32>
    %45 = tpu.matmul %42, %44, %cst_41 {dimension_numbers = #tpu.dot_dimension_numbers<[1], [0], [0], [1], [0, 0, 1, 1], [], []>} : vector<286x4xbf16>, vector<4x128xbf16>, vector<286x128xf32> -> vector<286x128xf32>
    %46 = arith.addf %40, %45 : vector<286x128xf32>
    %c0_42 = arith.constant 0 : index
    %c38 = arith.constant 38 : index
    %c0_43 = arith.constant 0 : index
    %47 = vector.load %arg1[%c0_42, %c38, %c0_43] : memref<1x324x4xbf16, #tpu.memory_space<vmem>>, vector<1x286x4xbf16>
    %48 = vector.shape_cast %47 : vector<1x286x4xbf16> to vector<286x4xbf16>
    %c8 = arith.constant 8 : index
    %c0_44 = arith.constant 0 : index
    %c0_45 = arith.constant 0 : index
    %49 = vector.load %arg2[%c8, %c0_44, %c0_45] : memref<9x4x128xbf16, #tpu.memory_space<vmem>>, vector<1x4x128xbf16>
    %50 = vector.shape_cast %49 : vector<1x4x128xbf16> to vector<4x128xbf16>
    %cst_46 = arith.constant dense<0.000000e+00> : vector<286x128xf32>
    %51 = tpu.matmul %48, %50, %cst_46 {dimension_numbers = #tpu.dot_dimension_numbers<[1], [0], [0], [1], [0, 0, 1, 1], [], []>} : vector<286x4xbf16>, vector<4x128xbf16>, vector<286x128xf32> -> vector<286x128xf32>
    %52 = arith.addf %46, %51 : vector<286x128xf32>
    %c0_47 = arith.constant 0 : index
    %c0_48 = arith.constant 0 : index
    %53 = vector.load %arg3[%c0_47, %c0_48] : memref<1x128xf32, #tpu.memory_space<vmem>>, vector<1x128xf32>
    %54 = vector.broadcast %53 : vector<1x128xf32> to vector<286x128xf32>
    %55 = arith.mulf %52, %54 : vector<286x128xf32>
    %c0_49 = arith.constant 0 : index
    %c0_50 = arith.constant 0 : index
    %56 = vector.load %arg4[%c0_49, %c0_50] : memref<1x128xf32, #tpu.memory_space<vmem>>, vector<1x128xf32>
    %57 = vector.broadcast %56 : vector<1x128xf32> to vector<286x128xf32>
    %58 = arith.addf %55, %57 : vector<286x128xf32>
    %cst_51 = arith.constant 0.000000e+00 : f32
    %59 = vector.broadcast %cst_51 : f32 to vector<286x128xf32>
    %60 = arith.maximumf %58, %59 : vector<286x128xf32>
    %c0_52 = arith.constant 0 : index
    %c0_53 = arith.constant 0 : index
    %c0_54 = arith.constant 0 : index
    %61 = vector.load %arg5[%c0_52, %c0_53, %c0_54] : memref<1x286x128xf32, #tpu.memory_space<vmem>>, vector<1x286x128xf32>
    %62 = vector.shape_cast %61 : vector<1x286x128xf32> to vector<286x128xf32>
    %63 = vector.shape_cast %60 : vector<286x128xf32> to vector<1x286x128xf32>
    tpu.vector_store %arg5[%c0_52, %c0_53, %c0_54], %63 {strides = array<i32>} : memref<1x286x128xf32, #tpu.memory_space<vmem>>, vector<1x286x128xf32>,
    return
  }
  func.func @transform_0(%arg0: i32) -> (i32, i32, i32) {
    %c0_i32 = arith.constant 0 : i32
    %c0_i32_0 = arith.constant 0 : i32
    %c0_i32_1 = arith.constant 0 : i32
    return %arg0, %c0_i32, %c0_i32_0 : i32, i32, i32
  }
  func.func @transform_1(%arg0: i32) -> (i32, i32, i32) {
    %c0_i32 = arith.constant 0 : i32
    %c0_i32_0 = arith.constant 0 : i32
    %c0_i32_1 = arith.constant 0 : i32
    %c0_i32_2 = arith.constant 0 : i32
    return %c0_i32, %c0_i32_0, %c0_i32_1 : i32, i32, i32
  }
  func.func @transform_2(%arg0: i32) -> (i32, i32) {
    %c0_i32 = arith.constant 0 : i32
    %c0_i32_0 = arith.constant 0 : i32
    %c0_i32_1 = arith.constant 0 : i32
    return %c0_i32, %c0_i32_0 : i32, i32
  }
  func.func @transform_3(%arg0: i32) -> (i32, i32) {
    %c0_i32 = arith.constant 0 : i32
    %c0_i32_0 = arith.constant 0 : i32
    %c0_i32_1 = arith.constant 0 : i32
    return %c0_i32, %c0_i32_0 : i32, i32
  }
  func.func @transform_4(%arg0: i32) -> (i32, i32, i32) {
    %c0_i32 = arith.constant 0 : i32
    %c0_i32_0 = arith.constant 0 : i32
    %c0_i32_1 = arith.constant 0 : i32
    return %arg0, %c0_i32, %c0_i32_0 : i32, i32, i32
  }
}

</mosaic_0001>

<llo_original>
// kernel: skeleton_block_forward.2
$region0: #{skeleton_block_forward.2}
  #allocation0 [shape = 'u32[]', space=smem, size = 0x4, offset = 0x4, fixed_abs, tag = 'smem constant byte address 0x4 - core index']
  #allocation1 [shape = 'u32[144,128]{1,0:T(1,128)}', space=vmem, size = 0x12000, scoped, tag = 'internal scratch']
  %s0 = inlined_call_operand.vmem [shape: bf16[2,324,4], index: 0, kind: input, shape index: {}]
  %s1 = inlined_call_operand.vmem [shape: bf16[9,4,128], index: 1, kind: input, shape index: {}]
  %s2 = inlined_call_operand.vmem [shape: f32[286,1], index: 2, kind: input, shape index: {}]
  %s3 = inlined_call_operand.vmem [shape: f32[2,1,128], index: 3, kind: output, shape index: {0}]
  %s4 = inlined_call_operand.vmem [shape: f32[2,1,128], index: 4, kind: output, shape index: {1}]
  %5 = xla_tuple %s3, %s4
  %s6 = sld [smem:[#allocation0]]
  $region53: #{skeleton_block_forward.2} parent=0
    _
  %s8 = ssub.s32 1, %s6
  %s9 = scalar_select 0, %s8, %s6
  loop: start=0, step=1, limit=4
  $region2: #{skeleton_block_forward.2} parent=0 // loop_pre_header
    _
  $region3: #{skeleton_block_forward.2} parent=0 // loop_header
    %s11 = sphi 0, %s15
    %p12 = scmp.ge.s32.totalorder %s11, 4
    %s21 = sphi 0, %s23
    %s24 = sphi 0, %s21
    %s25 = sphi 0, %s24
    %s41 = sphi 0, %s25
    %s45 = sphi 0, %s45
    %s47 = sphi 0, %s45
    %s48 = sphi 0, %s47
    %s62 = sphi 0, %s48
    %s66 = sphi 0, %s66
    %s68 = sphi 0, %s66
    %s69 = sphi 0, %s68
    %s83 = sphi 0, %s69
    %s89 = sphi 0, %s91
    %s92 = sphi 0, %s89
    %s93 = sphi 0, %s92
    %s109 = sphi 0, %s93
    %s115 = sphi 0, %s117
    %s118 = sphi 0, %s115
    %s119 = sphi 0, %s118
    %s135 = sphi 0, %s119
  $region4: #{skeleton_block_forward.2} parent=0 // loop_header_branch
    %14 = sbr.rel (%p12) target = $region8
  $region5: #{skeleton_block_forward.2} parent=0 // loop_body
    %s16 = ssub.s32 %s11, 1
    %s17 = ssub.s32 %s11, 2
    %s18 = sadd.s32 %s11, 1
    %s19 = ssub.s32 %s11, %s18
    %p20 = scmp.eq.s32.totalorder %s19, 0
    %s22 = sadd.s32 %s21, 1
    %s23 = scalar_select %p20, %s21, %s22
    %p26 = pneg %p20
    %p27 = scmp.eq.s32.totalorder %s11, 1
    %p28 = por %p26, %p27
    %p29 = scmp.ne.s32.totalorder %s21, %s24
    %p30 = scmp.eq.s32.totalorder %s11, 0
    %p31 = por %p29, %p30
    %p32 = scmp.ne.s32.totalorder %s21, %s24
    %p33 = scmp.eq.s32.totalorder %s16, 1
    %p34 = por %p32, %p33
    %p35 = scmp.ne.s32.totalorder %s24, %s25
    %p36 = scmp.eq.s32.totalorder %s16, 0
    %p37 = por %p35, %p36
    %p38 = scmp.ne.s32.totalorder %s24, %s25
    %p39 = scmp.eq.s32.totalorder %s17, 1
    %p40 = por %p38, %p39
    %p42 = scmp.ne.s32.totalorder %s25, %s41
    %p43 = scmp.eq.s32.totalorder %s17, 0
    %p44 = por %p42, %p43
    %s46 = sadd.s32 %s45, 1
    %p49 = scmp.eq.s32.totalorder %s11, 1
    %p50 = scmp.ne.s32.totalorder %s45, %s47
    %p51 = scmp.eq.s32.totalorder %s11, 0
    %p52 = por %p50, %p51
    %p53 = scmp.ne.s32.totalorder %s45, %s47
    %p54 = scmp.eq.s32.totalorder %s16, 1
    %p55 = por %p53, %p54
    %p56 = scmp.ne.s32.totalorder %s47, %s48
    %p57 = scmp.eq.s32.totalorder %s16, 0
    %p58 = por %p56, %p57
    %p59 = scmp.ne.s32.totalorder %s47, %s48
    %p60 = scmp.eq.s32.totalorder %s17, 1
    %p61 = por %p59, %p60
    %p63 = scmp.ne.s32.totalorder %s48, %s62
    %p64 = scmp.eq.s32.totalorder %s17, 0
    %p65 = por %p63, %p64
    %s67 = sadd.s32 %s66, 1
    %p70 = scmp.eq.s32.totalorder %s11, 1
    %p71 = scmp.ne.s32.totalorder %s66, %s68
    %p72 = scmp.eq.s32.totalorder %s11, 0
    %p73 = por %p71, %p72
    %p74 = scmp.ne.s32.totalorder %s66, %s68
    %p75 = scmp.eq.s32.totalorder %s16, 1
    %p76 = por %p74, %p75
    %p77 = scmp.ne.s32.totalorder %s68, %s69
    %p78 = scmp.eq.s32.totalorder %s16, 0
    %p79 = por %p77, %p78
    %p80 = scmp.ne.s32.totalorder %s68, %s69
    %p81 = scmp.eq.s32.totalorder %s17, 1
    %p82 = por %p80, %p81
    %p84 = scmp.ne.s32.totalorder %s69, %s83
    %p85 = scmp.eq.s32.totalorder %s17, 0
    %p86 = por %p84, %p85
    %s87 = ssub.s32 %s11, %s18
    %p88 = scmp.eq.s32.totalorder %s87, 0
    %s90 = sadd.s32 %s89, 1
    %s91 = scalar_select %p88, %s89, %s90
    %p94 = pneg %p88
    %p95 = scmp.eq.s32.totalorder %s11, 1
    %p96 = por %p94, %p95
    %p97 = scmp.ne.s32.totalorder %s89, %s92
    %p98 = scmp.eq.s32.totalorder %s11, 0
    %p99 = por %p97, %p98
    %p100 = scmp.ne.s32.totalorder %s89, %s92
    %p101 = scmp.eq.s32.totalorder %s16, 1
    %p102 = por %p100, %p101
    %p103 = scmp.ne.s32.totalorder %s92, %s93
    %p104 = scmp.eq.s32.totalorder %s16, 0
    %p105 = por %p103, %p104
    %p106 = scmp.ne.s32.totalorder %s92, %s93
    %p107 = scmp.eq.s32.totalorder %s17, 1
    %p108 = por %p106, %p107
    %p110 = scmp.ne.s32.totalorder %s93, %s109
    %p111 = scmp.eq.s32.totalorder %s17, 0
    %p112 = por %p110, %p111
    %s113 = ssub.s32 %s11, %s18
    %p114 = scmp.eq.s32.totalorder %s113, 0
    %s116 = sadd.s32 %s115, 1
    %s117 = scalar_select %p114, %s115, %s116
    %p120 = pneg %p114
    %p121 = scmp.eq.s32.totalorder %s11, 1
    %p122 = por %p120, %p121
    %p123 = scmp.ne.s32.totalorder %s115, %s118
    %p124 = scmp.eq.s32.totalorder %s11, 0
    %p125 = por %p123, %p124
    %p126 = scmp.ne.s32.totalorder %s115, %s118
    %p127 = scmp.eq.s32.totalorder %s16, 1
    %p128 = por %p126, %p127
    %p129 = scmp.ne.s32.totalorder %s118, %s119
    %p130 = scmp.eq.s32.totalorder %s16, 0
    %p131 = por %p129, %p130
    %p132 = scmp.ne.s32.totalorder %s118, %s119
    %p133 = scmp.eq.s32.totalorder %s17, 1
    %p134 = por %p132, %p133
    %p136 = scmp.ne.s32.totalorder %s119, %s135
    %p137 = scmp.eq.s32.totalorder %s17, 0
    %p138 = por %p136, %p137
    %p139 = scmp.le.s32.totalorder 1, %s11
    %p140 = scmp.lt.s32.totalorder %s11, 3
    %p141 = pnand %p139, %p140
    %p142 = pneg %p141
    // Predicated region
    $region9: #{skeleton_block_forward.2} parent=5 // pred_check
      _
    $region10: #{skeleton_block_forward.2} parent=5 // pred_check_branch
      %144 = sbr.rel (%p141) target = $region12
    $region11: #{skeleton_block_forward.2} parent=5 // pred_region
      %s145 = ssub.s32 %s11, 1
      // Predicated region
      $region13: #{skeleton_block_forward.2} parent=11 // pred_check
        %p146 = pneg %p58
      $region14: #{skeleton_block_forward.2} parent=11 // pred_check_branch
        %148 = sbr.rel (%p146) target = $region16
      $region15: #{skeleton_block_forward.2} parent=11 // pred_region
        _
      $region16: #{skeleton_block_forward.2} parent=11 // pred_fallthru
        _
      // Predicated region
      $region17: #{skeleton_block_forward.2} parent=11 // pred_check
        %p149 = pneg %p79
      $region18: #{skeleton_block_forward.2} parent=11 // pred_check_branch
        %151 = sbr.rel (%p149) target = $region20
      $region19: #{skeleton_block_forward.2} parent=11 // pred_region
        _
      $region20: #{skeleton_block_forward.2} parent=11 // pred_fallthru
        _
    $region12: #{skeleton_block_forward.2} parent=5 // pred_fallthru
      _
    %p152 = scmp.lt.s32.totalorder %s11, 2
    // Predicated region
    $region21: #{skeleton_block_forward.2} parent=5 // pred_check
      %p153 = pneg %p152
    $region22: #{skeleton_block_forward.2} parent=5 // pred_check_branch
      %155 = sbr.rel (%p153) target = $region24
    $region23: #{skeleton_block_forward.2} parent=5 // pred_region
      // Predicated region
      $region25: #{skeleton_block_forward.2} parent=23 // pred_check
        %p156 = pneg %p31
      $region26: #{skeleton_block_forward.2} parent=23 // pred_check_branch
        %158 = sbr.rel (%p156) target = $region28
      $region27: #{skeleton_block_forward.2} parent=23 // pred_region
        %p159 = scmp.lt.s32.totalorder %s11, 1
        %s160 = scalar_select %p159, %s11, 1
        %s161 = smul.addr %s160, 41
        %s162 = smul.addr %s161, 4
        %s163 = scalar_lea.vmem %s0, %s162
      $region28: #{skeleton_block_forward.2} parent=23 // pred_fallthru
        _
    $region24: #{skeleton_block_forward.2} parent=5 // pred_fallthru
      _
    %p164 = scmp.le.s32.totalorder 1, %s11
    %p165 = scmp.lt.s32.totalorder %s11, 3
    %p166 = pnand %p164, %p165
    %p167 = pneg %p166
    // Predicated region
    $region29: #{skeleton_block_forward.2} parent=5 // pred_check
      _
    $region30: #{skeleton_block_forward.2} parent=5 // pred_check_branch
      %169 = sbr.rel (%p166) target = $region32
    $region31: #{skeleton_block_forward.2} parent=5 // pred_region
      %s170 = ssub.s32 %s11, 1
      %p171 = scmp.lt.s32.totalorder %s16, 1
      %s172 = scalar_select %p171, %s16, 1
      %s173 = smul.addr %s172, 41
      %s174 = smul.addr %s173, 4
      %s175 = scalar_lea.vmem %s0, %s174
      %p176 = pneg %p37
      %p177 = pneg %p34
      %p178 = pneg %p58
      %p179 = pneg %p55
      %p180 = pneg %p79
      %p181 = pneg %p76
      %p182 = pneg %p105
      %p183 = pneg %p102
      %p184 = scmp.lt.s32.totalorder %s16, 1
      %s185 = scalar_select %p184, %s16, 1
      %s186 = scalar_lea.vmem %s3, %s185
      %p187 = pneg %p131
      %p188 = pneg %p128
      %p189 = scmp.lt.s32.totalorder %s16, 1
      %s190 = scalar_select %p189, %s16, 1
      %s191 = scalar_lea.vmem %s4, %s190
      %p192 = scmp.lt.s32.totalorder %s16, 1
      %s193 = scalar_select %p192, %s16, 1
      %s194 = smul.addr %s193, 41
      %s195 = smul.addr %s194, 4
      %s196 = scalar_lea.vmem %s0, %s195
      %p197 = scmp.lt.s32.totalorder %s16, 1
      %s198 = scalar_select %p197, %s16, 1
      %s199 = scalar_lea.vmem %s3, %s198
      %p200 = scmp.lt.s32.totalorder %s16, 1
      %s201 = scalar_select %p200, %s16, 1
      %s202 = scalar_lea.vmem %s4, %s201
      %v204 = vld [vmem:[%s196] sm:$0xf]
      %v205 = vld [vmem:[%s196 + $0x4] sm:$0xf]
      %v206 = vld [vmem:[%s196 + $0x8] sm:$0xf]
      %v207 = vld [vmem:[%s196 + $0xc] sm:$0xf]
      %v208 = vld [vmem:[%s196 + $0x10] sm:$0xf]
      %v209 = vld [vmem:[%s196 + $0x14] sm:$0xf]
      %v210 = vld [vmem:[%s196 + $0x18] sm:$0xf]
      %v211 = vld [vmem:[%s196 + $0x1c] sm:$0xf]
      %v212 = vld [vmem:[%s196 + $0x20] sm:$0xf]
      %v213 = vld [vmem:[%s196 + $0x24] sm:$0xf]
      %v214 = vld [vmem:[%s196 + $0x28] sm:$0xf]
      %v215 = vld [vmem:[%s196 + $0x2c] sm:$0xf]
      %v216 = vld [vmem:[%s196 + $0x30] sm:$0xf]
      %v217 = vld [vmem:[%s196 + $0x34] sm:$0xf]
      %v218 = vld [vmem:[%s196 + $0x38] sm:$0xf]
      %v219 = vld [vmem:[%s196 + $0x3c] sm:$0xf]
      %v220 = vld [vmem:[%s196 + $0x40] sm:$0xf]
      %v221 = vld [vmem:[%s196 + $0x44] sm:$0xf]
      %v222 = vld [vmem:[%s196 + $0x48] sm:$0xf]
      %v223 = vld [vmem:[%s196 + $0x4c] sm:$0xf]
      %v224 = vld [vmem:[%s196 + $0x50] sm:$0xf]
      %v225 = vld [vmem:[%s196 + $0x54] sm:$0xf]
      %v226 = vld [vmem:[%s196 + $0x58] sm:$0xf]
      %v227 = vld [vmem:[%s196 + $0x5c] sm:$0xf]
      %v228 = vld [vmem:[%s196 + $0x60] sm:$0xf]
      %v229 = vld [vmem:[%s196 + $0x64] sm:$0xf]
      %v230 = vld [vmem:[%s196 + $0x68] sm:$0xf]
      %v231 = vld [vmem:[%s196 + $0x6c] sm:$0xf]
      %v232 = vld [vmem:[%s196 + $0x70] sm:$0xf]
      %v233 = vld [vmem:[%s196 + $0x74] sm:$0xf]
      %v234 = vld [vmem:[%s196 + $0x78] sm:$0xf]
      %v235 = vld [vmem:[%s196 + $0x7c] sm:$0xf]
      %v236 = vld [vmem:[%s196 + $0x80] sm:$0xf]
      %v237 = vld [vmem:[%s196 + $0x84] sm:$0xf]
      %v238 = vld [vmem:[%s196 + $0x88] sm:$0xf]
      %v239 = vld [vmem:[%s196 + $0x8c] sm:$0x7]
      %v240 = vld [vmem:[%s1] sm:$0x3]
      %v241 = vld [vmem:[%s196 + $0x8c] sm:$0xf]
      %s242 = scalar_lea.vmem %s1, 2
      %v243 = vld [vmem:[%s242] sm:$0x3]
      %v280 = vunpack.c.l.b16 %v204
      %v281 = vunpack.c.l.b16 %v205
      %v282 = vunpack.c.l.b16 %v206
      %v283 = vunpack.c.l.b16 %v207
      %v284 = vunpack.c.l.b16 %v208
      %v285 = vunpack.c.l.b16 %v209
      %v286 = vunpack.c.l.b16 %v210
      %v287 = vunpack.c.l.b16 %v211
      %v288 = vunpack.c.l.b16 %v212
      %v289 = vunpack.c.l.b16 %v213
      %v290 = vunpack.c.l.b16 %v214
      %v291 = vunpack.c.l.b16 %v215
      %v292 = vunpack.c.l.b16 %v216
      %v293 = vunpack.c.l.b16 %v217
      %v294 = vunpack.c.l.b16 %v218
      %v295 = vunpack.c.l.b16 %v219
      %v296 = vunpack.c.l.b16 %v220
      %v297 = vunpack.c.l.b16 %v221
      %v298 = vunpack.c.l.b16 %v222
      %v299 = vunpack.c.l.b16 %v223
      %v300 = vunpack.c.l.b16 %v224
      %v301 = vunpack.c.l.b16 %v225
      %v302 = vunpack.c.l.b16 %v226
      %v303 = vunpack.c.l.b16 %v227
      %v304 = vunpack.c.l.b16 %v228
      %v305 = vunpack.c.l.b16 %v229
      %v306 = vunpack.c.l.b16 %v230
      %v307 = vunpack.c.l.b16 %v231
      %v308 = vunpack.c.l.b16 %v232
      %v309 = vunpack.c.l.b16 %v233
      %v310 = vunpack.c.l.b16 %v234
      %v311 = vunpack.c.l.b16 %v235
      %v312 = vunpack.c.l.b16 %v236
      %v313 = vunpack.c.l.b16 %v237
      %v314 = vunpack.c.l.b16 %v238
      %v315 = vunpack.c.l.b16 %v241
      %v316 = vpack.c.b16 %v281, %v280
      %v317 = vpack.c.b16 %v283, %v282
      %v318 = vpack.c.b16 %v285, %v284
      %v319 = vpack.c.b16 %v287, %v286
      %v320 = vpack.c.b16 %v289, %v288
      %v321 = vpack.c.b16 %v291, %v290
      %v322 = vpack.c.b16 %v293, %v292
      %v323 = vpack.c.b16 %v295, %v294
      %v324 = vpack.c.b16 %v297, %v296
      %v325 = vpack.c.b16 %v299, %v298
      %v326 = vpack.c.b16 %v301, %v300
      %v327 = vpack.c.b16 %v303, %v302
      %v328 = vpack.c.b16 %v305, %v304
      %v329 = vpack.c.b16 %v307, %v306
      %v330 = vpack.c.b16 %v309, %v308
      %v331 = vpack.c.b16 %v311, %v310
      %v332 = vpack.c.b16 %v313, %v312
      %v333 = vpack.c.b16 %v315, %v314
      %vm334 = vsmask.f32 7424
      %v336 = vshrl.u32 %v316, 16
      %v338 = vshll.u32 %v316, 16
      %v340 = vrot.slane %v338, 1
      %v341 = vor.u32 %v336, %v340
      %v343 = vshll.u32 %v317, 16
      %v345 = vrot.slane %v343, 1
      %v346 = vsel %vm334, %v341, %v345
      %v347 = vshrl.u32 %v317, 16
      %v349 = vor.u32 %v347, %v345
      %v351 = vshll.u32 %v318, 16
      %v353 = vrot.slane %v351, 1
      %v354 = vsel %vm334, %v349, %v353
      %v355 = vshrl.u32 %v318, 16
      %v357 = vor.u32 %v355, %v353
      %v359 = vshll.u32 %v319, 16
      %v361 = vrot.slane %v359, 1
      %v362 = vsel %vm334, %v357, %v361
      %v363 = vshrl.u32 %v319, 16
      %v365 = vor.u32 %v363, %v361
      %v367 = vshll.u32 %v320, 16
      %v369 = vrot.slane %v367, 1
      %v370 = vsel %vm334, %v365, %v369
      %v371 = vshrl.u32 %v320, 16
      %v373 = vor.u32 %v371, %v369
      %v375 = vshll.u32 %v321, 16
      %v377 = vrot.slane %v375, 1
      %v378 = vsel %vm334, %v373, %v377
      %v379 = vshrl.u32 %v321, 16
      %v381 = vor.u32 %v379, %v377
      %v383 = vshll.u32 %v322, 16
      %v385 = vrot.slane %v383, 1
      %v386 = vsel %vm334, %v381, %v385
      %v387 = vshrl.u32 %v322, 16
      %v389 = vor.u32 %v387, %v385
      %v391 = vshll.u32 %v323, 16
      %v393 = vrot.slane %v391, 1
      %v394 = vsel %vm334, %v389, %v393
      %v395 = vshrl.u32 %v323, 16
      %v397 = vor.u32 %v395, %v393
      %v399 = vshll.u32 %v324, 16
      %v401 = vrot.slane %v399, 1
      %v402 = vsel %vm334, %v397, %v401
      %v403 = vshrl.u32 %v324, 16
      %v405 = vor.u32 %v403, %v401
      %v407 = vshll.u32 %v325, 16
      %v409 = vrot.slane %v407, 1
      %v410 = vsel %vm334, %v405, %v409
      %v411 = vshrl.u32 %v325, 16
      %v413 = vor.u32 %v411, %v409
      %v415 = vshll.u32 %v326, 16
      %v417 = vrot.slane %v415, 1
      %v418 = vsel %vm334, %v413, %v417
      %v419 = vshrl.u32 %v326, 16
      %v421 = vor.u32 %v419, %v417
      %v423 = vshll.u32 %v327, 16
      %v425 = vrot.slane %v423, 1
      %v426 = vsel %vm334, %v421, %v425
      %v427 = vshrl.u32 %v327, 16
      %v429 = vor.u32 %v427, %v425
      %v431 = vshll.u32 %v328, 16
      %v433 = vrot.slane %v431, 1
      %v434 = vsel %vm334, %v429, %v433
      %v435 = vshrl.u32 %v328, 16
      %v437 = vor.u32 %v435, %v433
      %v439 = vshll.u32 %v329, 16
      %v441 = vrot.slane %v439, 1
      %v442 = vsel %vm334, %v437, %v441
      %v443 = vshrl.u32 %v329, 16
      %v445 = vor.u32 %v443, %v441
      %v447 = vshll.u32 %v330, 16
      %v449 = vrot.slane %v447, 1
      %v450 = vsel %vm334, %v445, %v449
      %v451 = vshrl.u32 %v330, 16
      %v453 = vor.u32 %v451, %v449
      %v455 = vshll.u32 %v331, 16
      %v457 = vrot.slane %v455, 1
      %v458 = vsel %vm334, %v453, %v457
      %v459 = vshrl.u32 %v331, 16
      %v461 = vor.u32 %v459, %v457
      %v463 = vshll.u32 %v332, 16
      %v465 = vrot.slane %v463, 1
      %v466 = vsel %vm334, %v461, %v465
      %v467 = vshrl.u32 %v332, 16
      %v469 = vor.u32 %v467, %v465
      %v471 = vshll.u32 %v333, 16
      %v473 = vrot.slane %v471, 1
      %v474 = vsel %vm334, %v469, %v473
      %v475 = vshrl.u32 %v333, 16
      %v477 = vor.u32 %v475, %v473
      %vm478 = vcmask 31744
      %v480 = vsel %vm478, %v346, 0
      %v483 = vsel %vm478, %v354, 0
      %v486 = vsel %vm478, %v362, 0
      %v489 = vsel %vm478, %v370, 0
      %v492 = vsel %vm478, %v378, 0
      %v495 = vsel %vm478, %v386, 0
      %v498 = vsel %vm478, %v394, 0
      %v501 = vsel %vm478, %v402, 0
      %v504 = vsel %vm478, %v410, 0
      %v507 = vsel %vm478, %v418, 0
      %v510 = vsel %vm478, %v426, 0
      %v513 = vsel %vm478, %v434, 0
      %v516 = vsel %vm478, %v442, 0
      %v519 = vsel %vm478, %v450, 0
      %v522 = vsel %vm478, %v458, 0
      %v525 = vsel %vm478, %v466, 0
      %v528 = vsel %vm478, %v474, 0
      %v531 = vsel %vm478, %v477, 0
      %vm533 = vcmask 1041408
      %v535 = vsel %vm533, %v243, 0
      %537 = vmatprep.subr.bf16.mxu0 0
      %538 = vmatpush1.bf16.msra.mxu0 %v535
      %539 = vmatprep.subr.bf16.mxu0 0
      %540 = vmatpush1.bf16.msra.mxu0 0
      %541 = vmatprep.subr.bf16.mxu0 0
      %542 = vmatpush1.bf16.msra.mxu0 0
      %543 = vmatprep.subr.bf16.mxu0 0
      %544 = vmatpush1.bf16.msra.mxu0 0
      %545 = vmatprep.subr.bf16.mxu0 0
      %546 = vmatpush1.bf16.msra.mxu0 0
      %547 = vmatprep.subr.bf16.mxu0 0
      %548 = vmatpush1.bf16.msra.mxu0 0
      %549 = vmatprep.subr.bf16.mxu0 0
      %550 = vmatpush1.bf16.msra.mxu0 0
      %551 = vmatprep.subr.bf16.mxu0 0
      %552 = vmatpush1.bf16.msra.mxu0 0
      %553 = vmatprep.subr.bf16.mxu0 0
      %554 = vmatpush1.bf16.msra.mxu0 0
      %555 = vmatprep.subr.bf16.mxu0 0
      %556 = vmatpush1.bf16.msra.mxu0 0
      %557 = vmatprep.subr.bf16.mxu0 0
      %558 = vmatpush1.bf16.msra.mxu0 0
      %559 = vmatprep.subr.bf16.mxu0 0
      %560 = vmatpush1.bf16.msra.mxu0 0
      %561 = vmatprep.subr.bf16.mxu0 0
      %562 = vmatpush1.bf16.msra.mxu0 0
      %563 = vmatprep.subr.bf16.mxu0 0
      %564 = vmatpush1.bf16.msra.mxu0 0
      %565 = vmatprep.subr.bf16.mxu0 0
      %566 = vmatpush1.bf16.msra.mxu0 0
      %567 = vmatprep.subr.bf16.mxu0 0
      %568 = vmatpush1.bf16.msra.mxu0 0
      %569 = vmatprep.mubr.bf16.mxu0 0
      %570 = vmatmul.mubr.bf16.gmra.mrb[0].mxu0 %v480
      %v571 = vpop.f32.mrb[0].mxu0
      %v572 = vadd.f32 0.0, %v571
      %v573 = vpop.f32.mrb[0].mxu0
      %v574 = vpop.f32.mrb[0].mxu0
      %v575 = vadd.f32 0.0, %v574
      %v576 = vpop.f32.mrb[0].mxu0
      %577 = vmatprep.mubr.bf16.mxu0 0
      %578 = vmatmul.mubr.bf16.gmra.mrb[0].mxu0 %v483
      %v579 = vpop.f32.mrb[0].mxu0
      %v580 = vadd.f32 0.0, %v579
      %v581 = vpop.f32.mrb[0].mxu0
      %v582 = vpop.f32.mrb[0].mxu0
      %v583 = vadd.f32 0.0, %v582
      %v584 = vpop.f32.mrb[0].mxu0
      %585 = vmatprep.mubr.bf16.mxu0 0
      %586 = vmatmul.mubr.bf16.gmra.mrb[0].mxu0 %v486
      %v587 = vpop.f32.mrb[0].mxu0
      %v588 = vadd.f32 0.0, %v587
      %v589 = vpop.f32.mrb[0].mxu0
      %v590 = vpop.f32.mrb[0].mxu0
      %v591 = vadd.f32 0.0, %v590
      %v592 = vpop.f32.mrb[0].mxu0
      %593 = vmatprep.mubr.bf16.mxu0 0
      %594 = vmatmul.mubr.bf16.gmra.mrb[0].mxu0 %v489
      %v595 = vpop.f32.mrb[0].mxu0
      %v596 = vadd.f32 0.0, %v595
      %v597 = vpop.f32.mrb[0].mxu0
      %v598 = vpop.f32.mrb[0].mxu0
      %v599 = vadd.f32 0.0, %v598
      %v600 = vpop.f32.mrb[0].mxu0
      %601 = vmatprep.mubr.bf16.mxu0 0
      %602 = vmatmul.mubr.bf16.gmra.mrb[0].mxu0 %v492
      %v603 = vpop.f32.mrb[0].mxu0
      %v604 = vadd.f32 0.0, %v603
      %v605 = vpop.f32.mrb[0].mxu0
      %v606 = vpop.f32.mrb[0].mxu0
      %v607 = vadd.f32 0.0, %v606
      %v608 = vpop.f32.mrb[0].mxu0
      %609 = vmatprep.mubr.bf16.mxu0 0
      %610 = vmatmul.mubr.bf16.gmra.mrb[0].mxu0 %v495
      %v611 = vpop.f32.mrb[0].mxu0
      %v612 = vadd.f32 0.0, %v611
      %v613 = vpop.f32.mrb[0].mxu0
      %v614 = vpop.f32.mrb[0].mxu0
      %v615 = vadd.f32 0.0, %v614
      %v616 = vpop.f32.mrb[0].mxu0
      %617 = vmatprep.mubr.bf16.mxu0 0
      %618 = vmatmul.mubr.bf16.gmra.mrb[0].mxu0 %v498
      %v619 = vpop.f32.mrb[0].mxu0
      %v620 = vadd.f32 0.0, %v619
      %v621 = vpop.f32.mrb[0].mxu0
      %v622 = vpop.f32.mrb[0].mxu0
      %v623 = vadd.f32 0.0, %v622
      %v624 = vpop.f32.mrb[0].mxu0
      %625 = vmatprep.mubr.bf16.mxu0 0
      %626 = vmatmul.mubr.bf16.gmra.mrb[0].mxu0 %v501
      %v627 = vpop.f32.mrb[0].mxu0
      %v628 = vadd.f32 0.0, %v627
      %v629 = vpop.f32.mrb[0].mxu0
      %v630 = vpop.f32.mrb[0].mxu0
      %v631 = vadd.f32 0.0, %v630
      %v632 = vpop.f32.mrb[0].mxu0
      %633 = vmatprep.mubr.bf16.mxu0 0
      %634 = vmatmul.mubr.bf16.gmra.mrb[0].mxu0 %v504
      %v635 = vpop.f32.mrb[0].mxu0
      %v636 = vadd.f32 0.0, %v635
      %v637 = vpop.f32.mrb[0].mxu0
      %v638 = vpop.f32.mrb[0].mxu0
      %v639 = vadd.f32 0.0, %v638
      %v640 = vpop.f32.mrb[0].mxu0
      %641 = vmatprep.mubr.bf16.mxu0 0
      %642 = vmatmul.mubr.bf16.gmra.mrb[0].mxu0 %v507
      %v643 = vpop.f32.mrb[0].mxu0
      %v644 = vadd.f32 0.0, %v643
      %v645 = vpop.f32.mrb[0].mxu0
      %v646 = vpop.f32.mrb[0].mxu0
      %v647 = vadd.f32 0.0, %v646
      %v648 = vpop.f32.mrb[0].mxu0
      %649 = vmatprep.mubr.bf16.mxu0 0
      %650 = vmatmul.mubr.bf16.gmra.mrb[0].mxu0 %v510
      %v651 = vpop.f32.mrb[0].mxu0
      %v652 = vadd.f32 0.0, %v651
      %v653 = vpop.f32.mrb[0].mxu0
      %v654 = vpop.f32.mrb[0].mxu0
      %v655 = vadd.f32 0.0, %v654
      %v656 = vpop.f32.mrb[0].mxu0
      %657 = vmatprep.mubr.bf16.mxu0 0
      %658 = vmatmul.mubr.bf16.gmra.mrb[0].mxu0 %v513
      %v659 = vpop.f32.mrb[0].mxu0
      %v660 = vadd.f32 0.0, %v659
      %v661 = vpop.f32.mrb[0].mxu0
      %v662 = vpop.f32.mrb[0].mxu0
      %v663 = vadd.f32 0.0, %v662
      %v664 = vpop.f32.mrb[0].mxu0
      %665 = vmatprep.mubr.bf16.mxu0 0
      %666 = vmatmul.mubr.bf16.gmra.mrb[0].mxu0 %v516
      %v667 = vpop.f32.mrb[0].mxu0
      %v668 = vadd.f32 0.0, %v667
      %v669 = vpop.f32.mrb[0].mxu0
      %v670 = vpop.f32.mrb[0].mxu0
      %v671 = vadd.f32 0.0, %v670
      %v672 = vpop.f32.mrb[0].mxu0
      %673 = vmatprep.mubr.bf16.mxu0 0
      %674 = vmatmul.mubr.bf16.gmra.mrb[0].mxu0 %v519
      %v675 = vpop.f32.mrb[0].mxu0
      %v676 = vadd.f32 0.0, %v675
      %v677 = vpop.f32.mrb[0].mxu0
      %v678 = vpop.f32.mrb[0].mxu0
      %v679 = vadd.f32 0.0, %v678
      %v680 = vpop.f32.mrb[0].mxu0
      %681 = vmatprep.mubr.bf16.mxu0 0
      %682 = vmatmul.mubr.bf16.gmra.mrb[0].mxu0 %v522
      %v683 = vpop.f32.mrb[0].mxu0
      %v684 = vadd.f32 0.0, %v683
      %v685 = vpop.f32.mrb[0].mxu0
      %v686 = vpop.f32.mrb[0].mxu0
      %v687 = vadd.f32 0.0, %v686
      %v688 = vpop.f32.mrb[0].mxu0
      %689 = vmatprep.mubr.bf16.mxu0 0
      %690 = vmatmul.mubr.bf16.gmra.mrb[0].mxu0 %v525
      %v691 = vpop.f32.mrb[0].mxu0
      %v692 = vadd.f32 0.0, %v691
      %v693 = vpop.f32.mrb[0].mxu0
      %v694 = vpop.f32.mrb[0].mxu0
      %v695 = vadd.f32 0.0, %v694
      %v696 = vpop.f32.mrb[0].mxu0
      %697 = vmatprep.mubr.bf16.mxu0 0
      %698 = vmatmul.mubr.bf16.gmra.mrb[0].mxu0 %v528
      %v699 = vpop.f32.mrb[0].mxu0
      %v700 = vadd.f32 0.0, %v699
      %v701 = vpop.f32.mrb[0].mxu0
      %v702 = vpop.f32.mrb[0].mxu0
      %v703 = vadd.f32 0.0, %v702
      %v704 = vpop.f32.mrb[0].mxu0
      %705 = vmatprep.mubr.bf16.mxu0 0
      %706 = vmatmul.mubr.bf16.gmra.mrb[0].mxu0 %v531
      %v707 = vpop.f32.mrb[0].mxu0
      %v708 = vadd.f32 0.0, %v707
      %v709 = vpop.f32.mrb[0].mxu0
      %v710 = vpop.f32.mrb[0].mxu0
      %v711 = vadd.f32 0.0, %v710
      %v712 = vpop.f32.mrb[0].mxu0
      %713 = vdwg.mxu0
      %v715 = vunpack.c.l.b16 %v239
      %v716 = vpack.c.b16 %v715, %v314
      %v717 = vsel %vm478, %v316, 0
      %v719 = vsel %vm478, %v317, 0
      %v721 = vsel %vm478, %v318, 0
      %v723 = vsel %vm478, %v319, 0
      %v725 = vsel %vm478, %v320, 0
      %v727 = vsel %vm478, %v321, 0
      %v729 = vsel %vm478, %v322, 0
      %v731 = vsel %vm478, %v323, 0
      %v733 = vsel %vm478, %v324, 0
      %v735 = vsel %vm478, %v325, 0
      %v737 = vsel %vm478, %v326, 0
      %v739 = vsel %vm478, %v327, 0
      %v741 = vsel %vm478, %v328, 0
      %v743 = vsel %vm478, %v329, 0
      %v745 = vsel %vm478, %v330, 0
      %v747 = vsel %vm478, %v331, 0
      %v749 = vsel %vm478, %v332, 0
      %v752 = vsel %vm478, %v716, 0
      %v755 = vsel %vm533, %v240, 0
      %757 = vmatprep.subr.bf16.mxu0 0
      %758 = vmatpush1.bf16.msra.mxu0 %v755
      %759 = vmatprep.subr.bf16.mxu0 0
      %760 = vmatpush1.bf16.msra.mxu0 0
      %761 = vmatprep.subr.bf16.mxu0 0
      %762 = vmatpush1.bf16.msra.mxu0 0
      %763 = vmatprep.subr.bf16.mxu0 0
      %764 = vmatpush1.bf16.msra.mxu0 0
      %765 = vmatprep.subr.bf16.mxu0 0
      %766 = vmatpush1.bf16.msra.mxu0 0
      %767 = vmatprep.subr.bf16.mxu0 0
      %768 = vmatpush1.bf16.msra.mxu0 0
      %769 = vmatprep.subr.bf16.mxu0 0
      %770 = vmatpush1.bf16.msra.mxu0 0
      %771 = vmatprep.subr.bf16.mxu0 0
      %772 = vmatpush1.bf16.msra.mxu0 0
      %773 = vmatprep.subr.bf16.mxu0 0
      %774 = vmatpush1.bf16.msra.mxu0 0
      %775 = vmatprep.subr.bf16.mxu0 0
      %776 = vmatpush1.bf16.msra.mxu0 0
      %777 = vmatprep.subr.bf16.mxu0 0
      %778 = vmatpush1.bf16.msra.mxu0 0
      %779 = vmatprep.subr.bf16.mxu0 0
      %780 = vmatpush1.bf16.msra.mxu0 0
      %781 = vmatprep.subr.bf16.mxu0 0
      %782 = vmatpush1.bf16.msra.mxu0 0
      %783 = vmatprep.subr.bf16.mxu0 0
      %784 = vmatpush1.bf16.msra.mxu0 0
      %785 = vmatprep.subr.bf16.mxu0 0
      %786 = vmatpush1.bf16.msra.mxu0 0
      %787 = vmatprep.subr.bf16.mxu0 0
      %788 = vmatpush1.bf16.msra.mxu0 0
      %789 = vmatprep.mubr.bf16.mxu0 0
      %790 = vmatmul.mubr.bf16.gmra.mrb[0].mxu0 %v717
      %v791 = vpop.f32.mrb[0].mxu0
      %v792 = vadd.f32 %v572, %v791
      %v793 = vpop.f32.mrb[0].mxu0
      %v794 = vpop.f32.mrb[0].mxu0
      %v795 = vadd.f32 %v575, %v794
      %v796 = vpop.f32.mrb[0].mxu0
      %797 = vmatprep.mubr.bf16.mxu0 0
      %798 = vmatmul.mubr.bf16.gmra.mrb[0].mxu0 %v719
      %v799 = vpop.f32.mrb[0].mxu0
      %v800 = vadd.f32 %v580, %v799
      %v801 = vpop.f32.mrb[0].mxu0
      %v802 = vpop.f32.mrb[0].mxu0
      %v803 = vadd.f32 %v583, %v802
      %v804 = vpop.f32.mrb[0].mxu0
      %805 = vmatprep.mubr.bf16.mxu0 0
      %806 = vmatmul.mubr.bf16.gmra.mrb[0].mxu0 %v721
      %v807 = vpop.f32.mrb[0].mxu0
      %v808 = vadd.f32 %v588, %v807
      %v809 = vpop.f32.mrb[0].mxu0
      %v810 = vpop.f32.mrb[0].mxu0
      %v811 = vadd.f32 %v591, %v810
      %v812 = vpop.f32.mrb[0].mxu0
      %813 = vmatprep.mubr.bf16.mxu0 0
      %814 = vmatmul.mubr.bf16.gmra.mrb[0].mxu0 %v723
      %v815 = vpop.f32.mrb[0].mxu0
      %v816 = vadd.f32 %v596, %v815
      %v817 = vpop.f32.mrb[0].mxu0
      %v818 = vpop.f32.mrb[0].mxu0
      %v819 = vadd.f32 %v599, %v818
      %v820 = vpop.f32.mrb[0].mxu0
      %821 = vmatprep.mubr.bf16.mxu0 0
      %822 = vmatmul.mubr.bf16.gmra.mrb[0].mxu0 %v725
      %v823 = vpop.f32.mrb[0].mxu0
      %v824 = vadd.f32 %v604, %v823
      %v825 = vpop.f32.mrb[0].mxu0
      %v826 = vpop.f32.mrb[0].mxu0
      %v827 = vadd.f32 %v607, %v826
      %v828 = vpop.f32.mrb[0].mxu0
      %829 = vmatprep.mubr.bf16.mxu0 0
      %830 = vmatmul.mubr.bf16.gmra.mrb[0].mxu0 %v727
      %v831 = vpop.f32.mrb[0].mxu0
      %v832 = vadd.f32 %v612, %v831
      %v833 = vpop.f32.mrb[0].mxu0
      %v834 = vpop.f32.mrb[0].mxu0
      %v835 = vadd.f32 %v615, %v834
      %v836 = vpop.f32.mrb[0].mxu0
      %837 = vmatprep.mubr.bf16.mxu0 0
      %838 = vmatmul.mubr.bf16.gmra.mrb[0].mxu0 %v729
      %v839 = vpop.f32.mrb[0].mxu0
      %v840 = vadd.f32 %v620, %v839
      %v841 = vpop.f32.mrb[0].mxu0
      %v842 = vpop.f32.mrb[0].mxu0
      %v843 = vadd.f32 %v623, %v842
      %v844 = vpop.f32.mrb[0].mxu0
      %845 = vmatprep.mubr.bf16.mxu0 0
      %846 = vmatmul.mubr.bf16.gmra.mrb[0].mxu0 %v731
      %v847 = vpop.f32.mrb[0].mxu0
      %v848 = vadd.f32 %v628, %v847
      %v849 = vpop.f32.mrb[0].mxu0
      %v850 = vpop.f32.mrb[0].mxu0
      %v851 = vadd.f32 %v631, %v850
      %v852 = vpop.f32.mrb[0].mxu0
      %853 = vmatprep.mubr.bf16.mxu0 0
      %854 = vmatmul.mubr.bf16.gmra.mrb[0].mxu0 %v733
      %v855 = vpop.f32.mrb[0].mxu0
      %v856 = vadd.f32 %v636, %v855
      %v857 = vpop.f32.mrb[0].mxu0
      %v858 = vpop.f32.mrb[0].mxu0
      %v859 = vadd.f32 %v639, %v858
      %v860 = vpop.f32.mrb[0].mxu0
      %861 = vmatprep.mubr.bf16.mxu0 0
      %862 = vmatmul.mubr.bf16.gmra.mrb[0].mxu0 %v735
      %v863 = vpop.f32.mrb[0].mxu0
      %v864 = vadd.f32 %v644, %v863
      %v865 = vpop.f32.mrb[0].mxu0
      %v866 = vpop.f32.mrb[0].mxu0
      %v867 = vadd.f32 %v647, %v866
      %v868 = vpop.f32.mrb[0].mxu0
      %869 = vmatprep.mubr.bf16.mxu0 0
      %870 = vmatmul.mubr.bf16.gmra.mrb[0].mxu0 %v737
      %v871 = vpop.f32.mrb[0].mxu0
      %v872 = vadd.f32 %v652, %v871
      %v873 = vpop.f32.mrb[0].mxu0
      %v874 = vpop.f32.mrb[0].mxu0
      %v875 = vadd.f32 %v655, %v874
      %v876 = vpop.f32.mrb[0].mxu0
      %877 = vmatprep.mubr.bf16.mxu0 0
      %878 = vmatmul.mubr.bf16.gmra.mrb[0].mxu0 %v739
      %v879 = vpop.f32.mrb[0].mxu0
      %v880 = vadd.f32 %v660, %v879
      %v881 = vpop.f32.mrb[0].mxu0
      %v882 = vpop.f32.mrb[0].mxu0
      %v883 = vadd.f32 %v663, %v882
      %v884 = vpop.f32.mrb[0].mxu0
      %885 = vmatprep.mubr.bf16.mxu0 0
      %886 = vmatmul.mubr.bf16.gmra.mrb[0].mxu0 %v741
      %v887 = vpop.f32.mrb[0].mxu0
      %v888 = vadd.f32 %v668, %v887
      %v889 = vpop.f32.mrb[0].mxu0
      %v890 = vpop.f32.mrb[0].mxu0
      %v891 = vadd.f32 %v671, %v890
      %v892 = vpop.f32.mrb[0].mxu0
      %893 = vmatprep.mubr.bf16.mxu0 0
      %894 = vmatmul.mubr.bf16.gmra.mrb[0].mxu0 %v743
      %v895 = vpop.f32.mrb[0].mxu0
      %v896 = vadd.f32 %v676, %v895
      %v897 = vpop.f32.mrb[0].mxu0
      %v898 = vpop.f32.mrb[0].mxu0
      %v899 = vadd.f32 %v679, %v898
      %v900 = vpop.f32.mrb[0].mxu0
      %901 = vmatprep.mubr.bf16.mxu0 0
      %902 = vmatmul.mubr.bf16.gmra.mrb[0].mxu0 %v745
      %v903 = vpop.f32.mrb[0].mxu0
      %v904 = vadd.f32 %v684, %v903
      %v905 = vpop.f32.mrb[0].mxu0
      %v906 = vpop.f32.mrb[0].mxu0
      %v907 = vadd.f32 %v687, %v906
      %v908 = vpop.f32.mrb[0].mxu0
      %909 = vmatprep.mubr.bf16.mxu0 0
      %910 = vmatmul.mubr.bf16.gmra.mrb[0].mxu0 %v747
      %v911 = vpop.f32.mrb[0].mxu0
      %v912 = vadd.f32 %v692, %v911
      %v913 = vpop.f32.mrb[0].mxu0
      %v914 = vpop.f32.mrb[0].mxu0
      %v915 = vadd.f32 %v695, %v914
      %v916 = vpop.f32.mrb[0].mxu0
      %917 = vmatprep.mubr.bf16.mxu0 0
      %918 = vmatmul.mubr.bf16.gmra.mrb[0].mxu0 %v749
      %v919 = vpop.f32.mrb[0].mxu0
      %v920 = vadd.f32 %v700, %v919
      %v921 = vpop.f32.mrb[0].mxu0
      %v922 = vpop.f32.mrb[0].mxu0
      %v923 = vadd.f32 %v703, %v922
      %v924 = vpop.f32.mrb[0].mxu0
      %925 = vmatprep.mubr.bf16.mxu0 0
      %926 = vmatmul.mubr.bf16.gmra.mrb[0].mxu0 %v752
      %v927 = vpop.f32.mrb[0].mxu0
      %v928 = vadd.f32 %v708, %v927
      %v929 = vpop.f32.mrb[0].mxu0
      %v930 = vpop.f32.mrb[0].mxu0
      %v931 = vadd.f32 %v711, %v930
      %v932 = vpop.f32.mrb[0].mxu0
      %933 = vdwg.mxu0
      %v934 = vld [vmem:[%s196] sm:$0xe]
      %s935 = scalar_lea.vmem %s1, 4
      %v936 = vld [vmem:[%s935] sm:$0x3]
      %v938 = vunpack.c.l.b16 %v934
      %v939 = vpack.c.b16 %v281, %v938
      %vm940 = vcmask 1046528
      %v941 = vrot.slane %v939, 1
      %v942 = vrot.slane %v317, 1
      %v943 = vsel %vm940, %v941, %v942
      %v944 = vrot.slane %v318, 1
      %v945 = vsel %vm940, %v942, %v944
      %v946 = vrot.slane %v319, 1
      %v947 = vsel %vm940, %v944, %v946
      %v948 = vrot.slane %v320, 1
      %v949 = vsel %vm940, %v946, %v948
      %v950 = vrot.slane %v321, 1
      %v951 = vsel %vm940, %v948, %v950
      %v952 = vrot.slane %v322, 1
      %v953 = vsel %vm940, %v950, %v952
      %v954 = vrot.slane %v323, 1
      %v955 = vsel %vm940, %v952, %v954
      %v956 = vrot.slane %v324, 1
      %v957 = vsel %vm940, %v954, %v956
      %v958 = vrot.slane %v325, 1
      %v959 = vsel %vm940, %v956, %v958
      %v960 = vrot.slane %v326, 1
      %v961 = vsel %vm940, %v958, %v960
      %v962 = vrot.slane %v327, 1
      %v963 = vsel %vm940, %v960, %v962
      %v964 = vrot.slane %v328, 1
      %v965 = vsel %vm940, %v962, %v964
      %v966 = vrot.slane %v329, 1
      %v967 = vsel %vm940, %v964, %v966
      %v968 = vrot.slane %v330, 1
      %v969 = vsel %vm940, %v966, %v968
      %v970 = vrot.slane %v331, 1
      %v971 = vsel %vm940, %v968, %v970
      %v972 = vrot.slane %v332, 1
      %v973 = vsel %vm940, %v970, %v972
      %v974 = vrot.slane %v333, 1
      %v975 = vsel %vm940, %v972, %v974
      %v977 = vsel %vm478, %v943, 0
      %v980 = vsel %vm478, %v945, 0
      %v983 = vsel %vm478, %v947, 0
      %v986 = vsel %vm478, %v949, 0
      %v989 = vsel %vm478, %v951, 0
      %v992 = vsel %vm478, %v953, 0
      %v995 = vsel %vm478, %v955, 0
      %v998 = vsel %vm478, %v957, 0
      %v1001 = vsel %vm478, %v959, 0
      %v1004 = vsel %vm478, %v961, 0
      %v1007 = vsel %vm478, %v963, 0
      %v1010 = vsel %vm478, %v965, 0
      %v1013 = vsel %vm478, %v967, 0
      %v1016 = vsel %vm478, %v969, 0
      %v1019 = vsel %vm478, %v971, 0
      %v1022 = vsel %vm478, %v973, 0
      %v1025 = vsel %vm478, %v975, 0
      %v1028 = vsel %vm478, %v974, 0
      %v1031 = vsel %vm533, %v936, 0
      %1033 = vmatprep.subr.bf16.mxu0 0
      %1034 = vmatpush1.bf16.msra.mxu0 %v1031
      %1035 = vmatprep.subr.bf16.mxu0 0
      %1036 = vmatpush1.bf16.msra.mxu0 0
      %1037 = vmatprep.subr.bf16.mxu0 0
      %1038 = vmatpush1.bf16.msra.mxu0 0
      %1039 = vmatprep.subr.bf16.mxu0 0
      %1040 = vmatpush1.bf16.msra.mxu0 0
      %1041 = vmatprep.subr.bf16.mxu0 0
      %1042 = vmatpush1.bf16.msra.mxu0 0
      %1043 = vmatprep.subr.bf16.mxu0 0
      %1044 = vmatpush1.bf16.msra.mxu0 0
      %1045 = vmatprep.subr.bf16.mxu0 0
      %1046 = vmatpush1.bf16.msra.mxu0 0
      %1047 = vmatprep.subr.bf16.mxu0 0
      %1048 = vmatpush1.bf16.msra.mxu0 0
      %1049 = vmatprep.subr.bf16.mxu0 0
      %1050 = vmatpush1.bf16.msra.mxu0 0
      %1051 = vmatprep.subr.bf16.mxu0 0
      %1052 = vmatpush1.bf16.msra.mxu0 0
      %1053 = vmatprep.subr.bf16.mxu0 0
      %1054 = vmatpush1.bf16.msra.mxu0 0
      %1055 = vmatprep.subr.bf16.mxu0 0
      %1056 = vmatpush1.bf16.msra.mxu0 0
      %1057 = vmatprep.subr.bf16.mxu0 0
      %1058 = vmatpush1.bf16.msra.mxu0 0
      %1059 = vmatprep.subr.bf16.mxu0 0
      %1060 = vmatpush1.bf16.msra.mxu0 0
      %1061 = vmatprep.subr.bf16.mxu0 0
      %1062 = vmatpush1.bf16.msra.mxu0 0
      %1063 = vmatprep.subr.bf16.mxu0 0
      %1064 = vmatpush1.bf16.msra.mxu0 0
      %1065 = vmatprep.mubr.bf16.mxu0 0
      %1066 = vmatmul.mubr.bf16.gmra.mrb[0].mxu0 %v977
      %v1067 = vpop.f32.mrb[0].mxu0
      %v1068 = vadd.f32 0.0, %v1067
      %v1069 = vpop.f32.mrb[0].mxu0
      %v1070 = vpop.f32.mrb[0].mxu0
      %v1071 = vadd.f32 0.0, %v1070
      %v1072 = vpop.f32.mrb[0].mxu0
      %1073 = vmatprep.mubr.bf16.mxu0 0
      %1074 = vmatmul.mubr.bf16.gmra.mrb[0].mxu0 %v980
      %v1075 = vpop.f32.mrb[0].mxu0
      %v1076 = vadd.f32 0.0, %v1075
      %v1077 = vpop.f32.mrb[0].mxu0
      %v1078 = vpop.f32.mrb[0].mxu0
      %v1079 = vadd.f32 0.0, %v1078
      %v1080 = vpop.f32.mrb[0].mxu0
      %1081 = vmatprep.mubr.bf16.mxu0 0
      %1082 = vmatmul.mubr.bf16.gmra.mrb[0].mxu0 %v983
      %v1083 = vpop.f32.mrb[0].mxu0
      %v1084 = vadd.f32 0.0, %v1083
      %v1085 = vpop.f32.mrb[0].mxu0
      %v1086 = vpop.f32.mrb[0].mxu0
      %v1087 = vadd.f32 0.0, %v1086
      %v1088 = vpop.f32.mrb[0].mxu0
      %1089 = vmatprep.mubr.bf16.mxu0 0
      %1090 = vmatmul.mubr.bf16.gmra.mrb[0].mxu0 %v986
      %v1091 = vpop.f32.mrb[0].mxu0
      %v1092 = vadd.f32 0.0, %v1091
      %v1093 = vpop.f32.mrb[0].mxu0
      %v1094 = vpop.f32.mrb[0].mxu0
      %v1095 = vadd.f32 0.0, %v1094
      %v1096 = vpop.f32.mrb[0].mxu0
      %1097 = vmatprep.mubr.bf16.mxu0 0
      %1098 = vmatmul.mubr.bf16.gmra.mrb[0].mxu0 %v989
      %v1099 = vpop.f32.mrb[0].mxu0
      %v1100 = vadd.f32 0.0, %v1099
      %v1101 = vpop.f32.mrb[0].mxu0
      %v1102 = vpop.f32.mrb[0].mxu0
      %v1103 = vadd.f32 0.0, %v1102
      %v1104 = vpop.f32.mrb[0].mxu0
      %1105 = vmatprep.mubr.bf16.mxu0 0
      %1106 = vmatmul.mubr.bf16.gmra.mrb[0].mxu0 %v992
      %v1107 = vpop.f32.mrb[0].mxu0
      %v1108 = vadd.f32 0.0, %v1107
      %v1109 = vpop.f32.mrb[0].mxu0
      %v1110 = vpop.f32.mrb[0].mxu0
      %v1111 = vadd.f32 0.0, %v1110
      %v1112 = vpop.f32.mrb[0].mxu0
      %1113 = vmatprep.mubr.bf16.mxu0 0
      %1114 = vmatmul.mubr.bf16.gmra.mrb[0].mxu0 %v995
      %v1115 = vpop.f32.mrb[0].mxu0
      %v1116 = vadd.f32 0.0, %v1115
      %v1117 = vpop.f32.mrb[0].mxu0
      %v1118 = vpop.f32.mrb[0].mxu0
      %v1119 = vadd.f32 0.0, %v1118
      %v1120 = vpop.f32.mrb[0].mxu0
      %1121 = vmatprep.mubr.bf16.mxu0 0
      %1122 = vmatmul.mubr.bf16.gmra.mrb[0].mxu0 %v998
      %v1123 = vpop.f32.mrb[0].mxu0
      %v1124 = vadd.f32 0.0, %v1123
      %v1125 = vpop.f32.mrb[0].mxu0
      %v1126 = vpop.f32.mrb[0].mxu0
      %v1127 = vadd.f32 0.0, %v1126
      %v1128 = vpop.f32.mrb[0].mxu0
      %1129 = vmatprep.mubr.bf16.mxu0 0
      %1130 = vmatmul.mubr.bf16.gmra.mrb[0].mxu0 %v1001
      %v1131 = vpop.f32.mrb[0].mxu0
      %v1132 = vadd.f32 0.0, %v1131
      %v1133 = vpop.f32.mrb[0].mxu0
      %v1134 = vpop.f32.mrb[0].mxu0
      %v1135 = vadd.f32 0.0, %v1134
      %v1136 = vpop.f32.mrb[0].mxu0
      %1137 = vmatprep.mubr.bf16.mxu0 0
      %1138 = vmatmul.mubr.bf16.gmra.mrb[0].mxu0 %v1004
      %v1139 = vpop.f32.mrb[0].mxu0
      %v1140 = vadd.f32 0.0, %v1139
      %v1141 = vpop.f32.mrb[0].mxu0
      %v1142 = vpop.f32.mrb[0].mxu0
      %v1143 = vadd.f32 0.0, %v1142
      %v1144 = vpop.f32.mrb[0].mxu0
      %1145 = vmatprep.mubr.bf16.mxu0 0
      %1146 = vmatmul.mubr.bf16.gmra.mrb[0].mxu0 %v1007
      %v1147 = vpop.f32.mrb[0].mxu0
      %v1148 = vadd.f32 0.0, %v1147
      %v1149 = vpop.f32.mrb[0].mxu0
      %v1150 = vpop.f32.mrb[0].mxu0
      %v1151 = vadd.f32 0.0, %v1150
      %v1152 = vpop.f32.mrb[0].mxu0
      %1153 = vmatprep.mubr.bf16.mxu0 0
      %1154 = vmatmul.mubr.bf16.gmra.mrb[0].mxu0 %v1010
      %v1155 = vpop.f32.mrb[0].mxu0
      %v1156 = vadd.f32 0.0, %v1155
      %v1157 = vpop.f32.mrb[0].mxu0
      %v1158 = vpop.f32.mrb[0].mxu0
      %v1159 = vadd.f32 0.0, %v1158
      %v1160 = vpop.f32.mrb[0].mxu0
      %1161 = vmatprep.mubr.bf16.mxu0 0
      %1162 = vmatmul.mubr.bf16.gmra.mrb[0].mxu0 %v1013
      %v1163 = vpop.f32.mrb[0].mxu0
      %v1164 = vadd.f32 0.0, %v1163
      %v1165 = vpop.f32.mrb[0].mxu0
      %v1166 = vpop.f32.mrb[0].mxu0
      %v1167 = vadd.f32 0.0, %v1166
      %v1168 = vpop.f32.mrb[0].mxu0
      %1169 = vmatprep.mubr.bf16.mxu0 0
      %1170 = vmatmul.mubr.bf16.gmra.mrb[0].mxu0 %v1016
      %v1171 = vpop.f32.mrb[0].mxu0
      %v1172 = vadd.f32 0.0, %v1171
      %v1173 = vpop.f32.mrb[0].mxu0
      %v1174 = vpop.f32.mrb[0].mxu0
      %v1175 = vadd.f32 0.0, %v1174
      %v1176 = vpop.f32.mrb[0].mxu0
      %1177 = vmatprep.mubr.bf16.mxu0 0
      %1178 = vmatmul.mubr.bf16.gmra.mrb[0].mxu0 %v1019
      %v1179 = vpop.f32.mrb[0].mxu0
      %v1180 = vadd.f32 0.0, %v1179
      %v1181 = vpop.f32.mrb[0].mxu0
      %v1182 = vpop.f32.mrb[0].mxu0
      %v1183 = vadd.f32 0.0, %v1182
      %v1184 = vpop.f32.mrb[0].mxu0
      %1185 = vmatprep.mubr.bf16.mxu0 0
      %1186 = vmatmul.mubr.bf16.gmra.mrb[0].mxu0 %v1022
      %v1187 = vpop.f32.mrb[0].mxu0
      %v1188 = vadd.f32 0.0, %v1187
      %v1189 = vpop.f32.mrb[0].mxu0
      %v1190 = vpop.f32.mrb[0].mxu0
      %v1191 = vadd.f32 0.0, %v1190
      %v1192 = vpop.f32.mrb[0].mxu0
      %1193 = vmatprep.mubr.bf16.mxu0 0
      %1194 = vmatmul.mubr.bf16.gmra.mrb[0].mxu0 %v1025
      %v1195 = vpop.f32.mrb[0].mxu0
      %v1196 = vadd.f32 0.0, %v1195
      %v1197 = vpop.f32.mrb[0].mxu0
      %v1198 = vpop.f32.mrb[0].mxu0
      %v1199 = vadd.f32 0.0, %v1198
      %v1200 = vpop.f32.mrb[0].mxu0
      %1201 = vmatprep.mubr.bf16.mxu0 0
      %1202 = vmatmul.mubr.bf16.gmra.mrb[0].mxu0 %v1028
      %v1203 = vpop.f32.mrb[0].mxu0
      %v1204 = vadd.f32 0.0, %v1203
      %v1205 = vpop.f32.mrb[0].mxu0
      %v1206 = vpop.f32.mrb[0].mxu0
      %v1207 = vadd.f32 0.0, %v1206
      %v1208 = vpop.f32.mrb[0].mxu0
      %1209 = vdwg.mxu0
      %v1210 = vadd.f32 %v792, %v1068
      %v1211 = vadd.f32 %v795, %v1071
      %v1212 = vadd.f32 %v800, %v1076
      %v1213 = vadd.f32 %v803, %v1079
      %v1214 = vadd.f32 %v808, %v1084
      %v1215 = vadd.f32 %v811, %v1087
      %v1216 = vadd.f32 %v816, %v1092
      %v1217 = vadd.f32 %v819, %v1095
      %v1218 = vadd.f32 %v824, %v1100
      %v1219 = vadd.f32 %v827, %v1103
      %v1220 = vadd.f32 %v832, %v1108
      %v1221 = vadd.f32 %v835, %v1111
      %v1222 = vadd.f32 %v840, %v1116
      %v1223 = vadd.f32 %v843, %v1119
      %v1224 = vadd.f32 %v848, %v1124
      %v1225 = vadd.f32 %v851, %v1127
      %v1226 = vadd.f32 %v856, %v1132
      %v1227 = vadd.f32 %v859, %v1135
      %v1228 = vadd.f32 %v864, %v1140
      %v1229 = vadd.f32 %v867, %v1143
      %v1230 = vadd.f32 %v872, %v1148
      %v1231 = vadd.f32 %v875, %v1151
      %v1232 = vadd.f32 %v880, %v1156
      %v1233 = vadd.f32 %v883, %v1159
      %v1234 = vadd.f32 %v888, %v1164
      %v1235 = vadd.f32 %v891, %v1167
      %v1236 = vadd.f32 %v896, %v1172
      %v1237 = vadd.f32 %v899, %v1175
      %v1238 = vadd.f32 %v904, %v1180
      %v1239 = vadd.f32 %v907, %v1183
      %v1240 = vadd.f32 %v912, %v1188
      %v1241 = vadd.f32 %v915, %v1191
      %v1242 = vadd.f32 %v920, %v1196
      %v1243 = vadd.f32 %v923, %v1199
      %v1244 = vadd.f32 %v928, %v1204
      %v1245 = vadd.f32 %v931, %v1207
      %v1246 = vld [vmem:[%s196 + $0x8] sm:$0xe]
      %v1247 = vld [vmem:[%s196 + $0xc] sm:$0xf]
      %v1248 = vld [vmem:[%s196 + $0x10] sm:$0xf]
      %v1249 = vld [vmem:[%s196 + $0x14] sm:$0xf]
      %v1250 = vld [vmem:[%s196 + $0x18] sm:$0xf]
      %v1251 = vld [vmem:[%s196 + $0x1c] sm:$0xf]
      %v1252 = vld [vmem:[%s196 + $0x20] sm:$0xf]
      %v1253 = vld [vmem:[%s196 + $0x24] sm:$0xf]
      %v1254 = vld [vmem:[%s196 + $0x28] sm:$0xf]
      %v1255 = vld [vmem:[%s196 + $0x2c] sm:$0xf]
      %v1256 = vld [vmem:[%s196 + $0x30] sm:$0xf]
      %v1257 = vld [vmem:[%s196 + $0x34] sm:$0xf]
      %v1258 = vld [vmem:[%s196 + $0x38] sm:$0xf]
      %v1259 = vld [vmem:[%s196 + $0x3c] sm:$0xf]
      %v1260 = vld [vmem:[%s196 + $0x40] sm:$0xf]
      %v1261 = vld [vmem:[%s196 + $0x44] sm:$0xf]
      %v1262 = vld [vmem:[%s196 + $0x48] sm:$0xf]
      %v1263 = vld [vmem:[%s196 + $0x4c] sm:$0xf]
      %v1264 = vld [vmem:[%s196 + $0x50] sm:$0xf]
      %v1265 = vld [vmem:[%s196 + $0x54] sm:$0xf]
      %v1266 = vld [vmem:[%s196 + $0x58] sm:$0xf]
      %v1267 = vld [vmem:[%s196 + $0x5c] sm:$0xf]
      %v1268 = vld [vmem:[%s196 + $0x60] sm:$0xf]
      %v1269 = vld [vmem:[%s196 + $0x64] sm:$0xf]
      %v1270 = vld [vmem:[%s196 + $0x68] sm:$0xf]
      %v1271 = vld [vmem:[%s196 + $0x6c] sm:$0xf]
      %v1272 = vld [vmem:[%s196 + $0x70] sm:$0xf]
      %v1273 = vld [vmem:[%s196 + $0x74] sm:$0xf]
      %v1274 = vld [vmem:[%s196 + $0x78] sm:$0xf]
      %v1275 = vld [vmem:[%s196 + $0x7c] sm:$0xf]
      %v1276 = vld [vmem:[%s196 + $0x80] sm:$0xf]
      %v1277 = vld [vmem:[%s196 + $0x84] sm:$0xf]
      %v1278 = vld [vmem:[%s196 + $0x88] sm:$0xf]
      %v1279 = vld [vmem:[%s196 + $0x8c] sm:$0xf]
      %v1280 = vld [vmem:[%s196 + $0x90] sm:$0xf]
      %v1281 = vld [vmem:[%s196 + $0x94] sm:$0xf]
      %s1282 = scalar_lea.vmem %s1, 6
      %v1283 = vld [vmem:[%s1282] sm:$0x3]
      %v1320 = vunpack.c.l.b16 %v1246
      %v1321 = vunpack.c.l.b16 %v1247
      %v1322 = vunpack.c.l.b16 %v1248
      %v1323 = vunpack.c.l.b16 %v1249
      %v1324 = vunpack.c.l.b16 %v1250
      %v1325 = vunpack.c.l.b16 %v1251
      %v1326 = vunpack.c.l.b16 %v1252
      %v1327 = vunpack.c.l.b16 %v1253
      %v1328 = vunpack.c.l.b16 %v1254
      %v1329 = vunpack.c.l.b16 %v1255
      %v1330 = vunpack.c.l.b16 %v1256
      %v1331 = vunpack.c.l.b16 %v1257
      %v1332 = vunpack.c.l.b16 %v1258
      %v1333 = vunpack.c.l.b16 %v1259
      %v1334 = vunpack.c.l.b16 %v1260
      %v1335 = vunpack.c.l.b16 %v1261
      %v1336 = vunpack.c.l.b16 %v1262
      %v1337 = vunpack.c.l.b16 %v1263
      %v1338 = vunpack.c.l.b16 %v1264
      %v1339 = vunpack.c.l.b16 %v1265
      %v1340 = vunpack.c.l.b16 %v1266
      %v1341 = vunpack.c.l.b16 %v1267
      %v1342 = vunpack.c.l.b16 %v1268
      %v1343 = vunpack.c.l.b16 %v1269
      %v1344 = vunpack.c.l.b16 %v1270
      %v1345 = vunpack.c.l.b16 %v1271
      %v1346 = vunpack.c.l.b16 %v1272
      %v1347 = vunpack.c.l.b16 %v1273
      %v1348 = vunpack.c.l.b16 %v1274
      %v1349 = vunpack.c.l.b16 %v1275
      %v1350 = vunpack.c.l.b16 %v1276
      %v1351 = vunpack.c.l.b16 %v1277
      %v1352 = vunpack.c.l.b16 %v1278
      %v1353 = vunpack.c.l.b16 %v1279
      %v1354 = vunpack.c.l.b16 %v1280
      %v1355 = vunpack.c.l.b16 %v1281
      %v1356 = vpack.c.b16 %v1321, %v1320
      %v1357 = vpack.c.b16 %v1323, %v1322
      %v1358 = vpack.c.b16 %v1325, %v1324
      %v1359 = vpack.c.b16 %v1327, %v1326
      %v1360 = vpack.c.b16 %v1329, %v1328
      %v1361 = vpack.c.b16 %v1331, %v1330
      %v1362 = vpack.c.b16 %v1333, %v1332
      %v1363 = vpack.c.b16 %v1335, %v1334
      %v1364 = vpack.c.b16 %v1337, %v1336
      %v1365 = vpack.c.b16 %v1339, %v1338
      %v1366 = vpack.c.b16 %v1341, %v1340
      %v1367 = vpack.c.b16 %v1343, %v1342
      %v1368 = vpack.c.b16 %v1345, %v1344
      %v1369 = vpack.c.b16 %v1347, %v1346
      %v1370 = vpack.c.b16 %v1349, %v1348
      %v1371 = vpack.c.b16 %v1351, %v1350
      %v1372 = vpack.c.b16 %v1353, %v1352
      %v1373 = vpack.c.b16 %v1355, %v1354
      %v1374 = vrot.slane %v1356, 1
      %v1375 = vrot.slane %v1357, 1
      %v1376 = vsel %vm940, %v1374, %v1375
      %v1377 = vrot.slane %v1358, 1
      %v1378 = vsel %vm940, %v1375, %v1377
      %v1379 = vrot.slane %v1359, 1
      %v1380 = vsel %vm940, %v1377, %v1379
      %v1381 = vrot.slane %v1360, 1
      %v1382 = vsel %vm940, %v1379, %v1381
      %v1383 = vrot.slane %v1361, 1
      %v1384 = vsel %vm940, %v1381, %v1383
      %v1385 = vrot.slane %v1362, 1
      %v1386 = vsel %vm940, %v1383, %v1385
      %v1387 = vrot.slane %v1363, 1
      %v1388 = vsel %vm940, %v1385, %v1387
      %v1389 = vrot.slane %v1364, 1
      %v1390 = vsel %vm940, %v1387, %v1389
      %v1391 = vrot.slane %v1365, 1
      %v1392 = vsel %vm940, %v1389, %v1391
      %v1393 = vrot.slane %v1366, 1
      %v1394 = vsel %vm940, %v1391, %v1393
      %v1395 = vrot.slane %v1367, 1
      %v1396 = vsel %vm940, %v1393, %v1395
      %v1397 = vrot.slane %v1368, 1
      %v1398 = vsel %vm940, %v1395, %v1397
      %v1399 = vrot.slane %v1369, 1
      %v1400 = vsel %vm940, %v1397, %v1399
      %v1401 = vrot.slane %v1370, 1
      %v1402 = vsel %vm940, %v1399, %v1401
      %v1403 = vrot.slane %v1371, 1
      %v1404 = vsel %vm940, %v1401, %v1403
      %v1405 = vrot.slane %v1372, 1
      %v1406 = vsel %vm940, %v1403, %v1405
      %v1407 = vrot.slane %v1373, 1
      %v1408 = vsel %vm940, %v1405, %v1407
      %v1410 = vsel %vm478, %v1376, 0
      %v1413 = vsel %vm478, %v1378, 0
      %v1416 = vsel %vm478, %v1380, 0
      %v1419 = vsel %vm478, %v1382, 0
      %v1422 = vsel %vm478, %v1384, 0
      %v1425 = vsel %vm478, %v1386, 0
      %v1428 = vsel %vm478, %v1388, 0
      %v1431 = vsel %vm478, %v1390, 0
      %v1434 = vsel %vm478, %v1392, 0
      %v1437 = vsel %vm478, %v1394, 0
      %v1440 = vsel %vm478, %v1396, 0
      %v1443 = vsel %vm478, %v1398, 0
      %v1446 = vsel %vm478, %v1400, 0
      %v1449 = vsel %vm478, %v1402, 0
      %v1452 = vsel %vm478, %v1404, 0
      %v1455 = vsel %vm478, %v1406, 0
      %v1458 = vsel %vm478, %v1408, 0
      %v1461 = vsel %vm478, %v1407, 0
      %v1464 = vsel %vm533, %v1283, 0
      %1466 = vmatprep.subr.bf16.mxu0 0
      %1467 = vmatpush1.bf16.msra.mxu0 %v1464
      %1468 = vmatprep.subr.bf16.mxu0 0
      %1469 = vmatpush1.bf16.msra.mxu0 0
      %1470 = vmatprep.subr.bf16.mxu0 0
      %1471 = vmatpush1.bf16.msra.mxu0 0
      %1472 = vmatprep.subr.bf16.mxu0 0
      %1473 = vmatpush1.bf16.msra.mxu0 0
      %1474 = vmatprep.subr.bf16.mxu0 0
      %1475 = vmatpush1.bf16.msra.mxu0 0
      %1476 = vmatprep.subr.bf16.mxu0 0
      %1477 = vmatpush1.bf16.msra.mxu0 0
      %1478 = vmatprep.subr.bf16.mxu0 0
      %1479 = vmatpush1.bf16.msra.mxu0 0
      %1480 = vmatprep.subr.bf16.mxu0 0
      %1481 = vmatpush1.bf16.msra.mxu0 0
      %1482 = vmatprep.subr.bf16.mxu0 0
      %1483 = vmatpush1.bf16.msra.mxu0 0
      %1484 = vmatprep.subr.bf16.mxu0 0
      %1485 = vmatpush1.bf16.msra.mxu0 0
      %1486 = vmatprep.subr.bf16.mxu0 0
      %1487 = vmatpush1.bf16.msra.mxu0 0
      %1488 = vmatprep.subr.bf16.mxu0 0
      %1489 = vmatpush1.bf16.msra.mxu0 0
      %1490 = vmatprep.subr.bf16.mxu0 0
      %1491 = vmatpush1.bf16.msra.mxu0 0
      %1492 = vmatprep.subr.bf16.mxu0 0
      %1493 = vmatpush1.bf16.msra.mxu0 0
      %1494 = vmatprep.subr.bf16.mxu0 0
      %1495 = vmatpush1.bf16.msra.mxu0 0
      %1496 = vmatprep.subr.bf16.mxu0 0
      %1497 = vmatpush1.bf16.msra.mxu0 0
      %1498 = vmatprep.mubr.bf16.mxu0 0
      %1499 = vmatmul.mubr.bf16.gmra.mrb[0].mxu0 %v1410
      %v1500 = vpop.f32.mrb[0].mxu0
      %v1501 = vadd.f32 0.0, %v1500
      %v1502 = vpop.f32.mrb[0].mxu0
      %v1503 = vpop.f32.mrb[0].mxu0
      %v1504 = vadd.f32 0.0, %v1503
      %v1505 = vpop.f32.mrb[0].mxu0
      %1506 = vmatprep.mubr.bf16.mxu0 0
      %1507 = vmatmul.mubr.bf16.gmra.mrb[0].mxu0 %v1413
      %v1508 = vpop.f32.mrb[0].mxu0
      %v1509 = vadd.f32 0.0, %v1508
      %v1510 = vpop.f32.mrb[0].mxu0
      %v1511 = vpop.f32.mrb[0].mxu0
      %v1512 = vadd.f32 0.0, %v1511
      %v1513 = vpop.f32.mrb[0].mxu0
      %1514 = vmatprep.mubr.bf16.mxu0 0
      %1515 = vmatmul.mubr.bf16.gmra.mrb[0].mxu0 %v1416
      %v1516 = vpop.f32.mrb[0].mxu0
      %v1517 = vadd.f32 0.0, %v1516
      %v1518 = vpop.f32.mrb[0].mxu0
      %v1519 = vpop.f32.mrb[0].mxu0
      %v1520 = vadd.f32 0.0, %v1519
      %v1521 = vpop.f32.mrb[0].mxu0
      %1522 = vmatprep.mubr.bf16.mxu0 0
      %1523 = vmatmul.mubr.bf16.gmra.mrb[0].mxu0 %v1419
      %v1524 = vpop.f32.mrb[0].mxu0
      %v1525 = vadd.f32 0.0, %v1524
      %v1526 = vpop.f32.mrb[0].mxu0
      %v1527 = vpop.f32.mrb[0].mxu0
      %v1528 = vadd.f32 0.0, %v1527
      %v1529 = vpop.f32.mrb[0].mxu0
      %1530 = vmatprep.mubr.bf16.mxu0 0
      %1531 = vmatmul.mubr.bf16.gmra.mrb[0].mxu0 %v1422
      %v1532 = vpop.f32.mrb[0].mxu0
      %v1533 = vadd.f32 0.0, %v1532
      %v1534 = vpop.f32.mrb[0].mxu0
      %v1535 = vpop.f32.mrb[0].mxu0
      %v1536 = vadd.f32 0.0, %v1535
      %v1537 = vpop.f32.mrb[0].mxu0
      %1538 = vmatprep.mubr.bf16.mxu0 0
      %1539 = vmatmul.mubr.bf16.gmra.mrb[0].mxu0 %v1425
      %v1540 = vpop.f32.mrb[0].mxu0
      %v1541 = vadd.f32 0.0, %v1540
      %v1542 = vpop.f32.mrb[0].mxu0
      %v1543 = vpop.f32.mrb[0].mxu0
      %v1544 = vadd.f32 0.0, %v1543
      %v1545 = vpop.f32.mrb[0].mxu0
      %1546 = vmatprep.mubr.bf16.mxu0 0
      %1547 = vmatmul.mubr.bf16.gmra.mrb[0].mxu0 %v1428
      %v1548 = vpop.f32.mrb[0].mxu0
      %v1549 = vadd.f32 0.0, %v1548
      %v1550 = vpop.f32.mrb[0].mxu0
      %v1551 = vpop.f32.mrb[0].mxu0
      %v1552 = vadd.f32 0.0, %v1551
      %v1553 = vpop.f32.mrb[0].mxu0
      %1554 = vmatprep.mubr.bf16.mxu0 0
      %1555 = vmatmul.mubr.bf16.gmra.mrb[0].mxu0 %v1431
      %v1556 = vpop.f32.mrb[0].mxu0
      %v1557 = vadd.f32 0.0, %v1556
      %v1558 = vpop.f32.mrb[0].mxu0
      %v1559 = vpop.f32.mrb[0].mxu0
      %v1560 = vadd.f32 0.0, %v1559
      %v1561 = vpop.f32.mrb[0].mxu0
      %1562 = vmatprep.mubr.bf16.mxu0 0
      %1563 = vmatmul.mubr.bf16.gmra.mrb[0].mxu0 %v1434
      %v1564 = vpop.f32.mrb[0].mxu0
      %v1565 = vadd.f32 0.0, %v1564
      %v1566 = vpop.f32.mrb[0].mxu0
      %v1567 = vpop.f32.mrb[0].mxu0
      %v1568 = vadd.f32 0.0, %v1567
      %v1569 = vpop.f32.mrb[0].mxu0
      %1570 = vmatprep.mubr.bf16.mxu0 0
      %1571 = vmatmul.mubr.bf16.gmra.mrb[0].mxu0 %v1437
      %v1572 = vpop.f32.mrb[0].mxu0
      %v1573 = vadd.f32 0.0, %v1572
      %v1574 = vpop.f32.mrb[0].mxu0
      %v1575 = vpop.f32.mrb[0].mxu0
      %v1576 = vadd.f32 0.0, %v1575
      %v1577 = vpop.f32.mrb[0].mxu0
      %1578 = vmatprep.mubr.bf16.mxu0 0
      %1579 = vmatmul.mubr.bf16.gmra.mrb[0].mxu0 %v1440
      %v1580 = vpop.f32.mrb[0].mxu0
      %v1581 = vadd.f32 0.0, %v1580
      %v1582 = vpop.f32.mrb[0].mxu0
      %v1583 = vpop.f32.mrb[0].mxu0
      %v1584 = vadd.f32 0.0, %v1583
      %v1585 = vpop.f32.mrb[0].mxu0
      %1586 = vmatprep.mubr.bf16.mxu0 0
      %1587 = vmatmul.mubr.bf16.gmra.mrb[0].mxu0 %v1443
      %v1588 = vpop.f32.mrb[0].mxu0
      %v1589 = vadd.f32 0.0, %v1588
      %v1590 = vpop.f32.mrb[0].mxu0
      %v1591 = vpop.f32.mrb[0].mxu0
      %v1592 = vadd.f32 0.0, %v1591
      %v1593 = vpop.f32.mrb[0].mxu0
      %1594 = vmatprep.mubr.bf16.mxu0 0
      %1595 = vmatmul.mubr.bf16.gmra.mrb[0].mxu0 %v1446
      %v1596 = vpop.f32.mrb[0].mxu0
      %v1597 = vadd.f32 0.0, %v1596
      %v1598 = vpop.f32.mrb[0].mxu0
      %v1599 = vpop.f32.mrb[0].mxu0
      %v1600 = vadd.f32 0.0, %v1599
      %v1601 = vpop.f32.mrb[0].mxu0
      %1602 = vmatprep.mubr.bf16.mxu0 0
      %1603 = vmatmul.mubr.bf16.gmra.mrb[0].mxu0 %v1449
      %v1604 = vpop.f32.mrb[0].mxu0
      %v1605 = vadd.f32 0.0, %v1604
      %v1606 = vpop.f32.mrb[0].mxu0
      %v1607 = vpop.f32.mrb[0].mxu0
      %v1608 = vadd.f32 0.0, %v1607
      %v1609 = vpop.f32.mrb[0].mxu0
      %1610 = vmatprep.mubr.bf16.mxu0 0
      %1611 = vmatmul.mubr.bf16.gmra.mrb[0].mxu0 %v1452
      %v1612 = vpop.f32.mrb[0].mxu0
      %v1613 = vadd.f32 0.0, %v1612
      %v1614 = vpop.f32.mrb[0].mxu0
      %v1615 = vpop.f32.mrb[0].mxu0
      %v1616 = vadd.f32 0.0, %v1615
      %v1617 = vpop.f32.mrb[0].mxu0
      %1618 = vmatprep.mubr.bf16.mxu0 0
      %1619 = vmatmul.mubr.bf16.gmra.mrb[0].mxu0 %v1455
      %v1620 = vpop.f32.mrb[0].mxu0
      %v1621 = vadd.f32 0.0, %v1620
      %v1622 = vpop.f32.mrb[0].mxu0
      %v1623 = vpop.f32.mrb[0].mxu0
      %v1624 = vadd.f32 0.0, %v1623
      %v1625 = vpop.f32.mrb[0].mxu0
      %1626 = vmatprep.mubr.bf16.mxu0 0
      %1627 = vmatmul.mubr.bf16.gmra.mrb[0].mxu0 %v1458
      %v1628 = vpop.f32.mrb[0].mxu0
      %v1629 = vadd.f32 0.0, %v1628
      %v1630 = vpop.f32.mrb[0].mxu0
      %v1631 = vpop.f32.mrb[0].mxu0
      %v1632 = vadd.f32 0.0, %v1631
      %v1633 = vpop.f32.mrb[0].mxu0
      %1634 = vmatprep.mubr.bf16.mxu0 0
      %1635 = vmatmul.mubr.bf16.gmra.mrb[0].mxu0 %v1461
      %v1636 = vpop.f32.mrb[0].mxu0
      %v1637 = vadd.f32 0.0, %v1636
      %v1638 = vpop.f32.mrb[0].mxu0
      %v1639 = vpop.f32.mrb[0].mxu0
      %v1640 = vadd.f32 0.0, %v1639
      %v1641 = vpop.f32.mrb[0].mxu0
      %1642 = vdwg.mxu0
      %v1643 = vadd.f32 %v1210, %v1501
      %v1644 = vadd.f32 %v1211, %v1504
      %v1645 = vadd.f32 %v1212, %v1509
      %v1646 = vadd.f32 %v1213, %v1512
      %v1647 = vadd.f32 %v1214, %v1517
      %v1648 = vadd.f32 %v1215, %v1520
      %v1649 = vadd.f32 %v1216, %v1525
      %v1650 = vadd.f32 %v1217, %v1528
      %v1651 = vadd.f32 %v1218, %v1533
      %v1652 = vadd.f32 %v1219, %v1536
      %v1653 = vadd.f32 %v1220, %v1541
      %v1654 = vadd.f32 %v1221, %v1544
      %v1655 = vadd.f32 %v1222, %v1549
      %v1656 = vadd.f32 %v1223, %v1552
      %v1657 = vadd.f32 %v1224, %v1557
      %v1658 = vadd.f32 %v1225, %v1560
      %v1659 = vadd.f32 %v1226, %v1565
      %v1660 = vadd.f32 %v1227, %v1568
      %v1661 = vadd.f32 %v1228, %v1573
      %v1662 = vadd.f32 %v1229, %v1576
      %v1663 = vadd.f32 %v1230, %v1581
      %v1664 = vadd.f32 %v1231, %v1584
      %v1665 = vadd.f32 %v1232, %v1589
      %v1666 = vadd.f32 %v1233, %v1592
      %v1667 = vadd.f32 %v1234, %v1597
      %v1668 = vadd.f32 %v1235, %v1600
      %v1669 = vadd.f32 %v1236, %v1605
      %v1670 = vadd.f32 %v1237, %v1608
      %v1671 = vadd.f32 %v1238, %v1613
      %v1672 = vadd.f32 %v1239, %v1616
      %v1673 = vadd.f32 %v1240, %v1621
      %v1674 = vadd.f32 %v1241, %v1624
      %v1675 = vadd.f32 %v1242, %v1629
      %v1676 = vadd.f32 %v1243, %v1632
      %v1677 = vadd.f32 %v1244, %v1637
      %v1678 = vadd.f32 %v1245, %v1640
      %v1679 = vld [vmem:[%s196 + $0x8] sm:$0xe]
      %v1680 = vld [vmem:[%s196 + $0xc] sm:$0xf]
      %v1681 = vld [vmem:[%s196 + $0x10] sm:$0xf]
      %v1682 = vld [vmem:[%s196 + $0x14] sm:$0xf]
      %v1683 = vld [vmem:[%s196 + $0x18] sm:$0xf]
      %v1684 = vld [vmem:[%s196 + $0x1c] sm:$0xf]
      %v1685 = vld [vmem:[%s196 + $0x20] sm:$0xf]
      %v1686 = vld [vmem:[%s196 + $0x24] sm:$0xf]
      %v1687 = vld [vmem:[%s196 + $0x28] sm:$0xf]
      %v1688 = vld [vmem:[%s196 + $0x2c] sm:$0xf]
      %v1689 = vld [vmem:[%s196 + $0x30] sm:$0xf]
      %v1690 = vld [vmem:[%s196 + $0x34] sm:$0xf]
      %v1691 = vld [vmem:[%s196 + $0x38] sm:$0xf]
      %v1692 = vld [vmem:[%s196 + $0x3c] sm:$0xf]
      %v1693 = vld [vmem:[%s196 + $0x40] sm:$0xf]
      %v1694 = vld [vmem:[%s196 + $0x44] sm:$0xf]
      %v1695 = vld [vmem:[%s196 + $0x48] sm:$0xf]
      %v1696 = vld [vmem:[%s196 + $0x4c] sm:$0xf]
      %v1697 = vld [vmem:[%s196 + $0x50] sm:$0xf]
      %v1698 = vld [vmem:[%s196 + $0x54] sm:$0xf]
      %v1699 = vld [vmem:[%s196 + $0x58] sm:$0xf]
      %v1700 = vld [vmem:[%s196 + $0x5c] sm:$0xf]
      %v1701 = vld [vmem:[%s196 + $0x60] sm:$0xf]
      %v1702 = vld [vmem:[%s196 + $0x64] sm:$0xf]
      %v1703 = vld [vmem:[%s196 + $0x68] sm:$0xf]
      %v1704 = vld [vmem:[%s196 + $0x6c] sm:$0xf]
      %v1705 = vld [vmem:[%s196 + $0x70] sm:$0xf]
      %v1706 = vld [vmem:[%s196 + $0x74] sm:$0xf]
      %v1707 = vld [vmem:[%s196 + $0x78] sm:$0xf]
      %v1708 = vld [vmem:[%s196 + $0x7c] sm:$0xf]
      %v1709 = vld [vmem:[%s196 + $0x80] sm:$0xf]
      %v1710 = vld [vmem:[%s196 + $0x84] sm:$0xf]
      %v1711 = vld [vmem:[%s196 + $0x88] sm:$0xf]
      %v1712 = vld [vmem:[%s196 + $0x8c] sm:$0xf]
      %v1713 = vld [vmem:[%s196 + $0x90] sm:$0xf]
      %v1714 = vld [vmem:[%s196 + $0x94] sm:$0xf]
      %v1715 = vld [vmem:[%s196 + $0x98] sm:$0x1]
      %s1716 = scalar_lea.vmem %s1, 8
      %v1717 = vld [vmem:[%s1716] sm:$0x3]
      %v1755 = vunpack.c.l.b16 %v1679
      %v1756 = vunpack.c.l.b16 %v1680
      %v1757 = vunpack.c.l.b16 %v1681
      %v1758 = vunpack.c.l.b16 %v1682
      %v1759 = vunpack.c.l.b16 %v1683
      %v1760 = vunpack.c.l.b16 %v1684
      %v1761 = vunpack.c.l.b16 %v1685
      %v1762 = vunpack.c.l.b16 %v1686
      %v1763 = vunpack.c.l.b16 %v1687
      %v1764 = vunpack.c.l.b16 %v1688
      %v1765 = vunpack.c.l.b16 %v1689
      %v1766 = vunpack.c.l.b16 %v1690
      %v1767 = vunpack.c.l.b16 %v1691
      %v1768 = vunpack.c.l.b16 %v1692
      %v1769 = vunpack.c.l.b16 %v1693
      %v1770 = vunpack.c.l.b16 %v1694
      %v1771 = vunpack.c.l.b16 %v1695
      %v1772 = vunpack.c.l.b16 %v1696
      %v1773 = vunpack.c.l.b16 %v1697
      %v1774 = vunpack.c.l.b16 %v1698
      %v1775 = vunpack.c.l.b16 %v1699
      %v1776 = vunpack.c.l.b16 %v1700
      %v1777 = vunpack.c.l.b16 %v1701
      %v1778 = vunpack.c.l.b16 %v1702
      %v1779 = vunpack.c.l.b16 %v1703
      %v1780 = vunpack.c.l.b16 %v1704
      %v1781 = vunpack.c.l.b16 %v1705
      %v1782 = vunpack.c.l.b16 %v1706
      %v1783 = vunpack.c.l.b16 %v1707
      %v1784 = vunpack.c.l.b16 %v1708
      %v1785 = vunpack.c.l.b16 %v1709
      %v1786 = vunpack.c.l.b16 %v1710
      %v1787 = vunpack.c.l.b16 %v1711
      %v1788 = vunpack.c.l.b16 %v1712
      %v1789 = vunpack.c.l.b16 %v1713
      %v1790 = vunpack.c.l.b16 %v1714
      %v1791 = vunpack.c.l.b16 %v1715
      %v1792 = vpack.c.b16 %v1756, %v1755
      %v1793 = vpack.c.b16 %v1758, %v1757
      %v1794 = vpack.c.b16 %v1760, %v1759
      %v1795 = vpack.c.b16 %v1762, %v1761
      %v1796 = vpack.c.b16 %v1764, %v1763
      %v1797 = vpack.c.b16 %v1766, %v1765
      %v1798 = vpack.c.b16 %v1768, %v1767
      %v1799 = vpack.c.b16 %v1770, %v1769
      %v1800 = vpack.c.b16 %v1772, %v1771
      %v1801 = vpack.c.b16 %v1774, %v1773
      %v1802 = vpack.c.b16 %v1776, %v1775
      %v1803 = vpack.c.b16 %v1778, %v1777
      %v1804 = vpack.c.b16 %v1780, %v1779
      %v1805 = vpack.c.b16 %v1782, %v1781
      %v1806 = vpack.c.b16 %v1784, %v1783
      %v1807 = vpack.c.b16 %v1786, %v1785
      %v1808 = vpack.c.b16 %v1788, %v1787
      %v1809 = vpack.c.b16 %v1790, %v1789
      %v1810 = vpack.c.b16 %v1791, %v1791
      %vm1811 = vsmask.f32 6400
      %v1813 = vshrl.u32 %v1792, 16
      %v1815 = vrot.slane %v1813, 1
      %v1816 = vshll.u32 %v1792, 16
      %v1818 = vrot.slane %v1816, 2
      %v1819 = vor.u32 %v1815, %v1818
      %v1821 = vshrl.u32 %v1793, 16
      %v1823 = vrot.slane %v1821, 1
      %v1824 = vshll.u32 %v1793, 16
      %v1826 = vrot.slane %v1824, 2
      %v1827 = vor.u32 %v1823, %v1826
      %v1828 = vsel %vm1811, %v1819, %v1827
      %v1830 = vshrl.u32 %v1794, 16
      %v1832 = vrot.slane %v1830, 1
      %v1833 = vshll.u32 %v1794, 16
      %v1835 = vrot.slane %v1833, 2
      %v1836 = vor.u32 %v1832, %v1835
      %v1837 = vsel %vm1811, %v1827, %v1836
      %v1839 = vshrl.u32 %v1795, 16
      %v1841 = vrot.slane %v1839, 1
      %v1842 = vshll.u32 %v1795, 16
      %v1844 = vrot.slane %v1842, 2
      %v1845 = vor.u32 %v1841, %v1844
      %v1846 = vsel %vm1811, %v1836, %v1845
      %v1848 = vshrl.u32 %v1796, 16
      %v1850 = vrot.slane %v1848, 1
      %v1851 = vshll.u32 %v1796, 16
      %v1853 = vrot.slane %v1851, 2
      %v1854 = vor.u32 %v1850, %v1853
      %v1855 = vsel %vm1811, %v1845, %v1854
      %v1857 = vshrl.u32 %v1797, 16
      %v1859 = vrot.slane %v1857, 1
      %v1860 = vshll.u32 %v1797, 16
      %v1862 = vrot.slane %v1860, 2
      %v1863 = vor.u32 %v1859, %v1862
      %v1864 = vsel %vm1811, %v1854, %v1863
      %v1866 = vshrl.u32 %v1798, 16
      %v1868 = vrot.slane %v1866, 1
      %v1869 = vshll.u32 %v1798, 16
      %v1871 = vrot.slane %v1869, 2
      %v1872 = vor.u32 %v1868, %v1871
      %v1873 = vsel %vm1811, %v1863, %v1872
      %v1875 = vshrl.u32 %v1799, 16
      %v1877 = vrot.slane %v1875, 1
      %v1878 = vshll.u32 %v1799, 16
      %v1880 = vrot.slane %v1878, 2
      %v1881 = vor.u32 %v1877, %v1880
      %v1882 = vsel %vm1811, %v1872, %v1881
      %v1884 = vshrl.u32 %v1800, 16
      %v1886 = vrot.slane %v1884, 1
      %v1887 = vshll.u32 %v1800, 16
      %v1889 = vrot.slane %v1887, 2
      %v1890 = vor.u32 %v1886, %v1889
      %v1891 = vsel %vm1811, %v1881, %v1890
      %v1893 = vshrl.u32 %v1801, 16
      %v1895 = vrot.slane %v1893, 1
      %v1896 = vshll.u32 %v1801, 16
      %v1898 = vrot.slane %v1896, 2
      %v1899 = vor.u32 %v1895, %v1898
      %v1900 = vsel %vm1811, %v1890, %v1899
      %v1902 = vshrl.u32 %v1802, 16
      %v1904 = vrot.slane %v1902, 1
      %v1905 = vshll.u32 %v1802, 16
      %v1907 = vrot.slane %v1905, 2
      %v1908 = vor.u32 %v1904, %v1907
      %v1909 = vsel %vm1811, %v1899, %v1908
      %v1911 = vshrl.u32 %v1803, 16
      %v1913 = vrot.slane %v1911, 1
      %v1914 = vshll.u32 %v1803, 16
      %v1916 = vrot.slane %v1914, 2
      %v1917 = vor.u32 %v1913, %v1916
      %v1918 = vsel %vm1811, %v1908, %v1917
      %v1920 = vshrl.u32 %v1804, 16
      %v1922 = vrot.slane %v1920, 1
      %v1923 = vshll.u32 %v1804, 16
      %v1925 = vrot.slane %v1923, 2
      %v1926 = vor.u32 %v1922, %v1925
      %v1927 = vsel %vm1811, %v1917, %v1926
      %v1929 = vshrl.u32 %v1805, 16
      %v1931 = vrot.slane %v1929, 1
      %v1932 = vshll.u32 %v1805, 16
      %v1934 = vrot.slane %v1932, 2
      %v1935 = vor.u32 %v1931, %v1934
      %v1936 = vsel %vm1811, %v1926, %v1935
      %v1938 = vshrl.u32 %v1806, 16
      %v1940 = vrot.slane %v1938, 1
      %v1941 = vshll.u32 %v1806, 16
      %v1943 = vrot.slane %v1941, 2
      %v1944 = vor.u32 %v1940, %v1943
      %v1945 = vsel %vm1811, %v1935, %v1944
      %v1947 = vshrl.u32 %v1807, 16
      %v1949 = vrot.slane %v1947, 1
      %v1950 = vshll.u32 %v1807, 16
      %v1952 = vrot.slane %v1950, 2
      %v1953 = vor.u32 %v1949, %v1952
      %v1954 = vsel %vm1811, %v1944, %v1953
      %v1956 = vshrl.u32 %v1808, 16
      %v1958 = vrot.slane %v1956, 1
      %v1959 = vshll.u32 %v1808, 16
      %v1961 = vrot.slane %v1959, 2
      %v1962 = vor.u32 %v1958, %v1961
      %v1963 = vsel %vm1811, %v1953, %v1962
      %v1965 = vshrl.u32 %v1809, 16
      %v1967 = vrot.slane %v1965, 1
      %v1968 = vshll.u32 %v1809, 16
      %v1970 = vrot.slane %v1968, 2
      %v1971 = vor.u32 %v1967, %v1970
      %v1972 = vsel %vm1811, %v1962, %v1971
      %v1974 = vshll.u32 %v1810, 16
      %v1976 = vrot.slane %v1974, 2
      %v1977 = vsel %vm1811, %v1971, %v1976
      %v1979 = vsel %vm478, %v1828, 0
      %v1982 = vsel %vm478, %v1837, 0
      %v1985 = vsel %vm478, %v1846, 0
      %v1988 = vsel %vm478, %v1855, 0
      %v1991 = vsel %vm478, %v1864, 0
      %v1994 = vsel %vm478, %v1873, 0
      %v1997 = vsel %vm478, %v1882, 0
      %v2000 = vsel %vm478, %v1891, 0
      %v2003 = vsel %vm478, %v1900, 0
      %v2006 = vsel %vm478, %v1909, 0
      %v2009 = vsel %vm478, %v1918, 0
      %v2012 = vsel %vm478, %v1927, 0
      %v2015 = vsel %vm478, %v1936, 0
      %v2018 = vsel %vm478, %v1945, 0
      %v2021 = vsel %vm478, %v1954, 0
      %v2024 = vsel %vm478, %v1963, 0
      %v2027 = vsel %vm478, %v1972, 0
      %v2030 = vsel %vm478, %v1977, 0
      %v2033 = vsel %vm533, %v1717, 0
      %2035 = vmatprep.subr.bf16.mxu0 0
      %2036 = vmatpush1.bf16.msra.mxu0 %v2033
      %2037 = vmatprep.subr.bf16.mxu0 0
      %2038 = vmatpush1.bf16.msra.mxu0 0
      %2039 = vmatprep.subr.bf16.mxu0 0
      %2040 = vmatpush1.bf16.msra.mxu0 0
      %2041 = vmatprep.subr.bf16.mxu0 0
      %2042 = vmatpush1.bf16.msra.mxu0 0
      %2043 = vmatprep.subr.bf16.mxu0 0
      %2044 = vmatpush1.bf16.msra.mxu0 0
      %2045 = vmatprep.subr.bf16.mxu0 0
      %2046 = vmatpush1.bf16.msra.mxu0 0
      %2047 = vmatprep.subr.bf16.mxu0 0
      %2048 = vmatpush1.bf16.msra.mxu0 0
      %2049 = vmatprep.subr.bf16.mxu0 0
      %2050 = vmatpush1.bf16.msra.mxu0 0
      %2051 = vmatprep.subr.bf16.mxu0 0
      %2052 = vmatpush1.bf16.msra.mxu0 0
      %2053 = vmatprep.subr.bf16.mxu0 0
      %2054 = vmatpush1.bf16.msra.mxu0 0
      %2055 = vmatprep.subr.bf16.mxu0 0
      %2056 = vmatpush1.bf16.msra.mxu0 0
      %2057 = vmatprep.subr.bf16.mxu0 0
      %2058 = vmatpush1.bf16.msra.mxu0 0
      %2059 = vmatprep.subr.bf16.mxu0 0
      %2060 = vmatpush1.bf16.msra.mxu0 0
      %2061 = vmatprep.subr.bf16.mxu0 0
      %2062 = vmatpush1.bf16.msra.mxu0 0
      %2063 = vmatprep.subr.bf16.mxu0 0
      %2064 = vmatpush1.bf16.msra.mxu0 0
      %2065 = vmatprep.subr.bf16.mxu0 0
      %2066 = vmatpush1.bf16.msra.mxu0 0
      %2067 = vmatprep.mubr.bf16.mxu0 0
      %2068 = vmatmul.mubr.bf16.gmra.mrb[0].mxu0 %v1979
      %v2069 = vpop.f32.mrb[0].mxu0
      %v2070 = vadd.f32 0.0, %v2069
      %v2071 = vpop.f32.mrb[0].mxu0
      %v2072 = vpop.f32.mrb[0].mxu0
      %v2073 = vadd.f32 0.0, %v2072
      %v2074 = vpop.f32.mrb[0].mxu0
      %2075 = vmatprep.mubr.bf16.mxu0 0
      %2076 = vmatmul.mubr.bf16.gmra.mrb[0].mxu0 %v1982
      %v2077 = vpop.f32.mrb[0].mxu0
      %v2078 = vadd.f32 0.0, %v2077
      %v2079 = vpop.f32.mrb[0].mxu0
      %v2080 = vpop.f32.mrb[0].mxu0
      %v2081 = vadd.f32 0.0, %v2080
      %v2082 = vpop.f32.mrb[0].mxu0
      %2083 = vmatprep.mubr.bf16.mxu0 0
      %2084 = vmatmul.mubr.bf16.gmra.mrb[0].mxu0 %v1985
      %v2085 = vpop.f32.mrb[0].mxu0
      %v2086 = vadd.f32 0.0, %v2085
      %v2087 = vpop.f32.mrb[0].mxu0
      %v2088 = vpop.f32.mrb[0].mxu0
      %v2089 = vadd.f32 0.0, %v2088
      %v2090 = vpop.f32.mrb[0].mxu0
      %2091 = vmatprep.mubr.bf16.mxu0 0
      %2092 = vmatmul.mubr.bf16.gmra.mrb[0].mxu0 %v1988
      %v2093 = vpop.f32.mrb[0].mxu0
      %v2094 = vadd.f32 0.0, %v2093
      %v2095 = vpop.f32.mrb[0].mxu0
      %v2096 = vpop.f32.mrb[0].mxu0
      %v2097 = vadd.f32 0.0, %v2096
      %v2098 = vpop.f32.mrb[0].mxu0
      %2099 = vmatprep.mubr.bf16.mxu0 0
      %2100 = vmatmul.mubr.bf16.gmra.mrb[0].mxu0 %v1991
      %v2101 = vpop.f32.mrb[0].mxu0
      %v2102 = vadd.f32 0.0, %v2101
      %v2103 = vpop.f32.mrb[0].mxu0
      %v2104 = vpop.f32.mrb[0].mxu0
      %v2105 = vadd.f32 0.0, %v2104
      %v2106 = vpop.f32.mrb[0].mxu0
      %2107 = vmatprep.mubr.bf16.mxu0 0
      %2108 = vmatmul.mubr.bf16.gmra.mrb[0].mxu0 %v1994
      %v2109 = vpop.f32.mrb[0].mxu0
      %v2110 = vadd.f32 0.0, %v2109
      %v2111 = vpop.f32.mrb[0].mxu0
      %v2112 = vpop.f32.mrb[0].mxu0
      %v2113 = vadd.f32 0.0, %v2112
      %v2114 = vpop.f32.mrb[0].mxu0
      %2115 = vmatprep.mubr.bf16.mxu0 0
      %2116 = vmatmul.mubr.bf16.gmra.mrb[0].mxu0 %v1997
      %v2117 = vpop.f32.mrb[0].mxu0
      %v2118 = vadd.f32 0.0, %v2117
      %v2119 = vpop.f32.mrb[0].mxu0
      %v2120 = vpop.f32.mrb[0].mxu0
      %v2121 = vadd.f32 0.0, %v2120
      %v2122 = vpop.f32.mrb[0].mxu0
      %2123 = vmatprep.mubr.bf16.mxu0 0
      %2124 = vmatmul.mubr.bf16.gmra.mrb[0].mxu0 %v2000
      %v2125 = vpop.f32.mrb[0].mxu0
      %v2126 = vadd.f32 0.0, %v2125
      %v2127 = vpop.f32.mrb[0].mxu0
      %v2128 = vpop.f32.mrb[0].mxu0
      %v2129 = vadd.f32 0.0, %v2128
      %v2130 = vpop.f32.mrb[0].mxu0
      %2131 = vmatprep.mubr.bf16.mxu0 0
      %2132 = vmatmul.mubr.bf16.gmra.mrb[0].mxu0 %v2003
      %v2133 = vpop.f32.mrb[0].mxu0
      %v2134 = vadd.f32 0.0, %v2133
      %v2135 = vpop.f32.mrb[0].mxu0
      %v2136 = vpop.f32.mrb[0].mxu0
      %v2137 = vadd.f32 0.0, %v2136
      %v2138 = vpop.f32.mrb[0].mxu0
      %2139 = vmatprep.mubr.bf16.mxu0 0
      %2140 = vmatmul.mubr.bf16.gmra.mrb[0].mxu0 %v2006
      %v2141 = vpop.f32.mrb[0].mxu0
      %v2142 = vadd.f32 0.0, %v2141
      %v2143 = vpop.f32.mrb[0].mxu0
      %v2144 = vpop.f32.mrb[0].mxu0
      %v2145 = vadd.f32 0.0, %v2144
      %v2146 = vpop.f32.mrb[0].mxu0
      %2147 = vmatprep.mubr.bf16.mxu0 0
      %2148 = vmatmul.mubr.bf16.gmra.mrb[0].mxu0 %v2009
      %v2149 = vpop.f32.mrb[0].mxu0
      %v2150 = vadd.f32 0.0, %v2149
      %v2151 = vpop.f32.mrb[0].mxu0
      %v2152 = vpop.f32.mrb[0].mxu0
      %v2153 = vadd.f32 0.0, %v2152
      %v2154 = vpop.f32.mrb[0].mxu0
      %2155 = vmatprep.mubr.bf16.mxu0 0
      %2156 = vmatmul.mubr.bf16.gmra.mrb[0].mxu0 %v2012
      %v2157 = vpop.f32.mrb[0].mxu0
      %v2158 = vadd.f32 0.0, %v2157
      %v2159 = vpop.f32.mrb[0].mxu0
      %v2160 = vpop.f32.mrb[0].mxu0
      %v2161 = vadd.f32 0.0, %v2160
      %v2162 = vpop.f32.mrb[0].mxu0
      %2163 = vmatprep.mubr.bf16.mxu0 0
      %2164 = vmatmul.mubr.bf16.gmra.mrb[0].mxu0 %v2015
      %v2165 = vpop.f32.mrb[0].mxu0
      %v2166 = vadd.f32 0.0, %v2165
      %v2167 = vpop.f32.mrb[0].mxu0
      %v2168 = vpop.f32.mrb[0].mxu0
      %v2169 = vadd.f32 0.0, %v2168
      %v2170 = vpop.f32.mrb[0].mxu0
      %2171 = vmatprep.mubr.bf16.mxu0 0
      %2172 = vmatmul.mubr.bf16.gmra.mrb[0].mxu0 %v2018
      %v2173 = vpop.f32.mrb[0].mxu0
      %v2174 = vadd.f32 0.0, %v2173
      %v2175 = vpop.f32.mrb[0].mxu0
      %v2176 = vpop.f32.mrb[0].mxu0
      %v2177 = vadd.f32 0.0, %v2176
      %v2178 = vpop.f32.mrb[0].mxu0
      %2179 = vmatprep.mubr.bf16.mxu0 0
      %2180 = vmatmul.mubr.bf16.gmra.mrb[0].mxu0 %v2021
      %v2181 = vpop.f32.mrb[0].mxu0
      %v2182 = vadd.f32 0.0, %v2181
      %v2183 = vpop.f32.mrb[0].mxu0
      %v2184 = vpop.f32.mrb[0].mxu0
      %v2185 = vadd.f32 0.0, %v2184
      %v2186 = vpop.f32.mrb[0].mxu0
      %2187 = vmatprep.mubr.bf16.mxu0 0
      %2188 = vmatmul.mubr.bf16.gmra.mrb[0].mxu0 %v2024
      %v2189 = vpop.f32.mrb[0].mxu0
      %v2190 = vadd.f32 0.0, %v2189
      %v2191 = vpop.f32.mrb[0].mxu0
      %v2192 = vpop.f32.mrb[0].mxu0
      %v2193 = vadd.f32 0.0, %v2192
      %v2194 = vpop.f32.mrb[0].mxu0
      %2195 = vmatprep.mubr.bf16.mxu0 0
      %2196 = vmatmul.mubr.bf16.gmra.mrb[0].mxu0 %v2027
      %v2197 = vpop.f32.mrb[0].mxu0
      %v2198 = vadd.f32 0.0, %v2197
      %v2199 = vpop.f32.mrb[0].mxu0
      %v2200 = vpop.f32.mrb[0].mxu0
      %v2201 = vadd.f32 0.0, %v2200
      %v2202 = vpop.f32.mrb[0].mxu0
      %2203 = vmatprep.mubr.bf16.mxu0 0
      %2204 = vmatmul.mubr.bf16.gmra.mrb[0].mxu0 %v2030
      %v2205 = vpop.f32.mrb[0].mxu0
      %v2206 = vadd.f32 0.0, %v2205
      %v2207 = vpop.f32.mrb[0].mxu0
      %v2208 = vpop.f32.mrb[0].mxu0
      %v2209 = vadd.f32 0.0, %v2208
      %v2210 = vpop.f32.mrb[0].mxu0
      %2211 = vdwg.mxu0
      %v2212 = vadd.f32 %v1643, %v2070
      %v2213 = vadd.f32 %v1644, %v2073
      %v2214 = vadd.f32 %v1645, %v2078
      %v2215 = vadd.f32 %v1646, %v2081
      %v2216 = vadd.f32 %v1647, %v2086
      %v2217 = vadd.f32 %v1648, %v2089
      %v2218 = vadd.f32 %v1649, %v2094
      %v2219 = vadd.f32 %v1650, %v2097
      %v2220 = vadd.f32 %v1651, %v2102
      %v2221 = vadd.f32 %v1652, %v2105
      %v2222 = vadd.f32 %v1653, %v2110
      %v2223 = vadd.f32 %v1654, %v2113
      %v2224 = vadd.f32 %v1655, %v2118
      %v2225 = vadd.f32 %v1656, %v2121
      %v2226 = vadd.f32 %v1657, %v2126
      %v2227 = vadd.f32 %v1658, %v2129
      %v2228 = vadd.f32 %v1659, %v2134
      %v2229 = vadd.f32 %v1660, %v2137
      %v2230 = vadd.f32 %v1661, %v2142
      %v2231 = vadd.f32 %v1662, %v2145
      %v2232 = vadd.f32 %v1663, %v2150
      %v2233 = vadd.f32 %v1664, %v2153
      %v2234 = vadd.f32 %v1665, %v2158
      %v2235 = vadd.f32 %v1666, %v2161
      %v2236 = vadd.f32 %v1667, %v2166
      %v2237 = vadd.f32 %v1668, %v2169
      %v2238 = vadd.f32 %v1669, %v2174
      %v2239 = vadd.f32 %v1670, %v2177
      %v2240 = vadd.f32 %v1671, %v2182
      %v2241 = vadd.f32 %v1672, %v2185
      %v2242 = vadd.f32 %v1673, %v2190
      %v2243 = vadd.f32 %v1674, %v2193
      %v2244 = vadd.f32 %v1675, %v2198
      %v2245 = vadd.f32 %v1676, %v2201
      %v2246 = vadd.f32 %v1677, %v2206
      %v2247 = vadd.f32 %v1678, %v2209
      %v2248 = vld [vmem:[%s196 + $0x8] sm:$0xc]
      %s2249 = scalar_lea.vmem %s1, 10
      %v2250 = vld [vmem:[%s2249] sm:$0x3]
      %v2252 = vunpack.c.l.b16 %v2248
      %v2253 = vpack.c.b16 %v1756, %v2252
      %vm2254 = vcmask 1045504
      %v2255 = vrot.slane %v2253, 2
      %v2256 = vrot.slane %v1793, 2
      %v2257 = vsel %vm2254, %v2255, %v2256
      %v2258 = vrot.slane %v1794, 2
      %v2259 = vsel %vm2254, %v2256, %v2258
      %v2260 = vrot.slane %v1795, 2
      %v2261 = vsel %vm2254, %v2258, %v2260
      %v2262 = vrot.slane %v1796, 2
      %v2263 = vsel %vm2254, %v2260, %v2262
      %v2264 = vrot.slane %v1797, 2
      %v2265 = vsel %vm2254, %v2262, %v2264
      %v2266 = vrot.slane %v1798, 2
      %v2267 = vsel %vm2254, %v2264, %v2266
      %v2268 = vrot.slane %v1799, 2
      %v2269 = vsel %vm2254, %v2266, %v2268
      %v2270 = vrot.slane %v1800, 2
      %v2271 = vsel %vm2254, %v2268, %v2270
      %v2272 = vrot.slane %v1801, 2
      %v2273 = vsel %vm2254, %v2270, %v2272
      %v2274 = vrot.slane %v1802, 2
      %v2275 = vsel %vm2254, %v2272, %v2274
      %v2276 = vrot.slane %v1803, 2
      %v2277 = vsel %vm2254, %v2274, %v2276
      %v2278 = vrot.slane %v1804, 2
      %v2279 = vsel %vm2254, %v2276, %v2278
      %v2280 = vrot.slane %v1805, 2
      %v2281 = vsel %vm2254, %v2278, %v2280
      %v2282 = vrot.slane %v1806, 2
      %v2283 = vsel %vm2254, %v2280, %v2282
      %v2284 = vrot.slane %v1807, 2
      %v2285 = vsel %vm2254, %v2282, %v2284
      %v2286 = vrot.slane %v1808, 2
      %v2287 = vsel %vm2254, %v2284, %v2286
      %v2288 = vrot.slane %v1809, 2
      %v2289 = vsel %vm2254, %v2286, %v2288
      %v2290 = vrot.slane %v1810, 2
      %v2291 = vsel %vm2254, %v2288, %v2290
      %v2293 = vsel %vm478, %v2257, 0
      %v2296 = vsel %vm478, %v2259, 0
      %v2299 = vsel %vm478, %v2261, 0
      %v2302 = vsel %vm478, %v2263, 0
      %v2305 = vsel %vm478, %v2265, 0
      %v2308 = vsel %vm478, %v2267, 0
      %v2311 = vsel %vm478, %v2269, 0
      %v2314 = vsel %vm478, %v2271, 0
      %v2317 = vsel %vm478, %v2273, 0
      %v2320 = vsel %vm478, %v2275, 0
      %v2323 = vsel %vm478, %v2277, 0
      %v2326 = vsel %vm478, %v2279, 0
      %v2329 = vsel %vm478, %v2281, 0
      %v2332 = vsel %vm478, %v2283, 0
      %v2335 = vsel %vm478, %v2285, 0
      %v2338 = vsel %vm478, %v2287, 0
      %v2341 = vsel %vm478, %v2289, 0
      %v2344 = vsel %vm478, %v2291, 0
      %v2347 = vsel %vm533, %v2250, 0
      %2349 = vmatprep.subr.bf16.mxu0 0
      %2350 = vmatpush1.bf16.msra.mxu0 %v2347
      %2351 = vmatprep.subr.bf16.mxu0 0
      %2352 = vmatpush1.bf16.msra.mxu0 0
      %2353 = vmatprep.subr.bf16.mxu0 0
      %2354 = vmatpush1.bf16.msra.mxu0 0
      %2355 = vmatprep.subr.bf16.mxu0 0
      %2356 = vmatpush1.bf16.msra.mxu0 0
      %2357 = vmatprep.subr.bf16.mxu0 0
      %2358 = vmatpush1.bf16.msra.mxu0 0
      %2359 = vmatprep.subr.bf16.mxu0 0
      %2360 = vmatpush1.bf16.msra.mxu0 0
      %2361 = vmatprep.subr.bf16.mxu0 0
      %2362 = vmatpush1.bf16.msra.mxu0 0
      %2363 = vmatprep.subr.bf16.mxu0 0
      %2364 = vmatpush1.bf16.msra.mxu0 0
      %2365 = vmatprep.subr.bf16.mxu0 0
      %2366 = vmatpush1.bf16.msra.mxu0 0
      %2367 = vmatprep.subr.bf16.mxu0 0
      %2368 = vmatpush1.bf16.msra.mxu0 0
      %2369 = vmatprep.subr.bf16.mxu0 0
      %2370 = vmatpush1.bf16.msra.mxu0 0
      %2371 = vmatprep.subr.bf16.mxu0 0
      %2372 = vmatpush1.bf16.msra.mxu0 0
      %2373 = vmatprep.subr.bf16.mxu0 0
      %2374 = vmatpush1.bf16.msra.mxu0 0
      %2375 = vmatprep.subr.bf16.mxu0 0
      %2376 = vmatpush1.bf16.msra.mxu0 0
      %2377 = vmatprep.subr.bf16.mxu0 0
      %2378 = vmatpush1.bf16.msra.mxu0 0
      %2379 = vmatprep.subr.bf16.mxu0 0
      %2380 = vmatpush1.bf16.msra.mxu0 0
      %2381 = vmatprep.mubr.bf16.mxu0 0
      %2382 = vmatmul.mubr.bf16.gmra.mrb[0].mxu0 %v2293
      %v2383 = vpop.f32.mrb[0].mxu0
      %v2384 = vadd.f32 0.0, %v2383
      %v2385 = vpop.f32.mrb[0].mxu0
      %v2386 = vpop.f32.mrb[0].mxu0
      %v2387 = vadd.f32 0.0, %v2386
      %v2388 = vpop.f32.mrb[0].mxu0
      %2389 = vmatprep.mubr.bf16.mxu0 0
      %2390 = vmatmul.mubr.bf16.gmra.mrb[0].mxu0 %v2296
      %v2391 = vpop.f32.mrb[0].mxu0
      %v2392 = vadd.f32 0.0, %v2391
      %v2393 = vpop.f32.mrb[0].mxu0
      %v2394 = vpop.f32.mrb[0].mxu0
      %v2395 = vadd.f32 0.0, %v2394
      %v2396 = vpop.f32.mrb[0].mxu0
      %2397 = vmatprep.mubr.bf16.mxu0 0
      %2398 = vmatmul.mubr.bf16.gmra.mrb[0].mxu0 %v2299
      %v2399 = vpop.f32.mrb[0].mxu0
      %v2400 = vadd.f32 0.0, %v2399
      %v2401 = vpop.f32.mrb[0].mxu0
      %v2402 = vpop.f32.mrb[0].mxu0
      %v2403 = vadd.f32 0.0, %v2402
      %v2404 = vpop.f32.mrb[0].mxu0
      %2405 = vmatprep.mubr.bf16.mxu0 0
      %2406 = vmatmul.mubr.bf16.gmra.mrb[0].mxu0 %v2302
      %v2407 = vpop.f32.mrb[0].mxu0
      %v2408 = vadd.f32 0.0, %v2407
      %v2409 = vpop.f32.mrb[0].mxu0
      %v2410 = vpop.f32.mrb[0].mxu0
      %v2411 = vadd.f32 0.0, %v2410
      %v2412 = vpop.f32.mrb[0].mxu0
      %2413 = vmatprep.mubr.bf16.mxu0 0
      %2414 = vmatmul.mubr.bf16.gmra.mrb[0].mxu0 %v2305
      %v2415 = vpop.f32.mrb[0].mxu0
      %v2416 = vadd.f32 0.0, %v2415
      %v2417 = vpop.f32.mrb[0].mxu0
      %v2418 = vpop.f32.mrb[0].mxu0
      %v2419 = vadd.f32 0.0, %v2418
      %v2420 = vpop.f32.mrb[0].mxu0
      %2421 = vmatprep.mubr.bf16.mxu0 0
      %2422 = vmatmul.mubr.bf16.gmra.mrb[0].mxu0 %v2308
      %v2423 = vpop.f32.mrb[0].mxu0
      %v2424 = vadd.f32 0.0, %v2423
      %v2425 = vpop.f32.mrb[0].mxu0
      %v2426 = vpop.f32.mrb[0].mxu0
      %v2427 = vadd.f32 0.0, %v2426
      %v2428 = vpop.f32.mrb[0].mxu0
      %2429 = vmatprep.mubr.bf16.mxu0 0
      %2430 = vmatmul.mubr.bf16.gmra.mrb[0].mxu0 %v2311
      %v2431 = vpop.f32.mrb[0].mxu0
      %v2432 = vadd.f32 0.0, %v2431
      %v2433 = vpop.f32.mrb[0].mxu0
      %v2434 = vpop.f32.mrb[0].mxu0
      %v2435 = vadd.f32 0.0, %v2434
      %v2436 = vpop.f32.mrb[0].mxu0
      %2437 = vmatprep.mubr.bf16.mxu0 0
      %2438 = vmatmul.mubr.bf16.gmra.mrb[0].mxu0 %v2314
      %v2439 = vpop.f32.mrb[0].mxu0
      %v2440 = vadd.f32 0.0, %v2439
      %v2441 = vpop.f32.mrb[0].mxu0
      %v2442 = vpop.f32.mrb[0].mxu0
      %v2443 = vadd.f32 0.0, %v2442
      %v2444 = vpop.f32.mrb[0].mxu0
      %2445 = vmatprep.mubr.bf16.mxu0 0
      %2446 = vmatmul.mubr.bf16.gmra.mrb[0].mxu0 %v2317
      %v2447 = vpop.f32.mrb[0].mxu0
      %v2448 = vadd.f32 0.0, %v2447
      %v2449 = vpop.f32.mrb[0].mxu0
      %v2450 = vpop.f32.mrb[0].mxu0
      %v2451 = vadd.f32 0.0, %v2450
      %v2452 = vpop.f32.mrb[0].mxu0
      %2453 = vmatprep.mubr.bf16.mxu0 0
      %2454 = vmatmul.mubr.bf16.gmra.mrb[0].mxu0 %v2320
      %v2455 = vpop.f32.mrb[0].mxu0
      %v2456 = vadd.f32 0.0, %v2455
      %v2457 = vpop.f32.mrb[0].mxu0
      %v2458 = vpop.f32.mrb[0].mxu0
      %v2459 = vadd.f32 0.0, %v2458
      %v2460 = vpop.f32.mrb[0].mxu0
      %2461 = vmatprep.mubr.bf16.mxu0 0
      %2462 = vmatmul.mubr.bf16.gmra.mrb[0].mxu0 %v2323
      %v2463 = vpop.f32.mrb[0].mxu0
      %v2464 = vadd.f32 0.0, %v2463
      %v2465 = vpop.f32.mrb[0].mxu0
      %v2466 = vpop.f32.mrb[0].mxu0
      %v2467 = vadd.f32 0.0, %v2466
      %v2468 = vpop.f32.mrb[0].mxu0
      %2469 = vmatprep.mubr.bf16.mxu0 0
      %2470 = vmatmul.mubr.bf16.gmra.mrb[0].mxu0 %v2326
      %v2471 = vpop.f32.mrb[0].mxu0
      %v2472 = vadd.f32 0.0, %v2471
      %v2473 = vpop.f32.mrb[0].mxu0
      %v2474 = vpop.f32.mrb[0].mxu0
      %v2475 = vadd.f32 0.0, %v2474
      %v2476 = vpop.f32.mrb[0].mxu0
      %2477 = vmatprep.mubr.bf16.mxu0 0
      %2478 = vmatmul.mubr.bf16.gmra.mrb[0].mxu0 %v2329
      %v2479 = vpop.f32.mrb[0].mxu0
      %v2480 = vadd.f32 0.0, %v2479
      %v2481 = vpop.f32.mrb[0].mxu0
      %v2482 = vpop.f32.mrb[0].mxu0
      %v2483 = vadd.f32 0.0, %v2482
      %v2484 = vpop.f32.mrb[0].mxu0
      %2485 = vmatprep.mubr.bf16.mxu0 0
      %2486 = vmatmul.mubr.bf16.gmra.mrb[0].mxu0 %v2332
      %v2487 = vpop.f32.mrb[0].mxu0
      %v2488 = vadd.f32 0.0, %v2487
      %v2489 = vpop.f32.mrb[0].mxu0
      %v2490 = vpop.f32.mrb[0].mxu0
      %v2491 = vadd.f32 0.0, %v2490
      %v2492 = vpop.f32.mrb[0].mxu0
      %2493 = vmatprep.mubr.bf16.mxu0 0
      %2494 = vmatmul.mubr.bf16.gmra.mrb[0].mxu0 %v2335
      %v2495 = vpop.f32.mrb[0].mxu0
      %v2496 = vadd.f32 0.0, %v2495
      %v2497 = vpop.f32.mrb[0].mxu0
      %v2498 = vpop.f32.mrb[0].mxu0
      %v2499 = vadd.f32 0.0, %v2498
      %v2500 = vpop.f32.mrb[0].mxu0
      %2501 = vmatprep.mubr.bf16.mxu0 0
      %2502 = vmatmul.mubr.bf16.gmra.mrb[0].mxu0 %v2338
      %v2503 = vpop.f32.mrb[0].mxu0
      %v2504 = vadd.f32 0.0, %v2503
      %v2505 = vpop.f32.mrb[0].mxu0
      %v2506 = vpop.f32.mrb[0].mxu0
      %v2507 = vadd.f32 0.0, %v2506
      %v2508 = vpop.f32.mrb[0].mxu0
      %2509 = vmatprep.mubr.bf16.mxu0 0
      %2510 = vmatmul.mubr.bf16.gmra.mrb[0].mxu0 %v2341
      %v2511 = vpop.f32.mrb[0].mxu0
      %v2512 = vadd.f32 0.0, %v2511
      %v2513 = vpop.f32.mrb[0].mxu0
      %v2514 = vpop.f32.mrb[0].mxu0
      %v2515 = vadd.f32 0.0, %v2514
      %v2516 = vpop.f32.mrb[0].mxu0
      %2517 = vmatprep.mubr.bf16.mxu0 0
      %2518 = vmatmul.mubr.bf16.gmra.mrb[0].mxu0 %v2344
      %v2519 = vpop.f32.mrb[0].mxu0
      %v2520 = vadd.f32 0.0, %v2519
      %v2521 = vpop.f32.mrb[0].mxu0
      %v2522 = vpop.f32.mrb[0].mxu0
      %v2523 = vadd.f32 0.0, %v2522
      %v2524 = vpop.f32.mrb[0].mxu0
      %2525 = vdwg.mxu0
      %v2526 = vadd.f32 %v2212, %v2384
      %v2527 = vadd.f32 %v2213, %v2387
      %v2528 = vadd.f32 %v2214, %v2392
      %v2529 = vadd.f32 %v2215, %v2395
      %v2530 = vadd.f32 %v2216, %v2400
      %v2531 = vadd.f32 %v2217, %v2403
      %v2532 = vadd.f32 %v2218, %v2408
      %v2533 = vadd.f32 %v2219, %v2411
      %v2534 = vadd.f32 %v2220, %v2416
      %v2535 = vadd.f32 %v2221, %v2419
      %v2536 = vadd.f32 %v2222, %v2424
      %v2537 = vadd.f32 %v2223, %v2427
      %v2538 = vadd.f32 %v2224, %v2432
      %v2539 = vadd.f32 %v2225, %v2435
      %v2540 = vadd.f32 %v2226, %v2440
      %v2541 = vadd.f32 %v2227, %v2443
      %v2542 = vadd.f32 %v2228, %v2448
      %v2543 = vadd.f32 %v2229, %v2451
      %v2544 = vadd.f32 %v2230, %v2456
      %v2545 = vadd.f32 %v2231, %v2459
      %v2546 = vadd.f32 %v2232, %v2464
      %v2547 = vadd.f32 %v2233, %v2467
      %v2548 = vadd.f32 %v2234, %v2472
      %v2549 = vadd.f32 %v2235, %v2475
      %v2550 = vadd.f32 %v2236, %v2480
      %v2551 = vadd.f32 %v2237, %v2483
      %v2552 = vadd.f32 %v2238, %v2488
      %v2553 = vadd.f32 %v2239, %v2491
      %v2554 = vadd.f32 %v2240, %v2496
      %v2555 = vadd.f32 %v2241, %v2499
      %v2556 = vadd.f32 %v2242, %v2504
      %v2557 = vadd.f32 %v2243, %v2507
      %v2558 = vadd.f32 %v2244, %v2512
      %v2559 = vadd.f32 %v2245, %v2515
      %v2560 = vadd.f32 %v2246, %v2520
      %v2561 = vadd.f32 %v2247, %v2523
      %v2562 = vld [vmem:[%s196 + $0x10] sm:$0xc]
      %v2563 = vld [vmem:[%s196 + $0x14] sm:$0xf]
      %v2564 = vld [vmem:[%s196 + $0x18] sm:$0xf]
      %v2565 = vld [vmem:[%s196 + $0x1c] sm:$0xf]
      %v2566 = vld [vmem:[%s196 + $0x20] sm:$0xf]
      %v2567 = vld [vmem:[%s196 + $0x24] sm:$0xf]
      %v2568 = vld [vmem:[%s196 + $0x28] sm:$0xf]
      %v2569 = vld [vmem:[%s196 + $0x2c] sm:$0xf]
      %v2570 = vld [vmem:[%s196 + $0x30] sm:$0xf]
      %v2571 = vld [vmem:[%s196 + $0x34] sm:$0xf]
      %v2572 = vld [vmem:[%s196 + $0x38] sm:$0xf]
      %v2573 = vld [vmem:[%s196 + $0x3c] sm:$0xf]
      %v2574 = vld [vmem:[%s196 + $0x40] sm:$0xf]
      %v2575 = vld [vmem:[%s196 + $0x44] sm:$0xf]
      %v2576 = vld [vmem:[%s196 + $0x48] sm:$0xf]
      %v2577 = vld [vmem:[%s196 + $0x4c] sm:$0xf]
      %v2578 = vld [vmem:[%s196 + $0x50] sm:$0xf]
      %v2579 = vld [vmem:[%s196 + $0x54] sm:$0xf]
      %v2580 = vld [vmem:[%s196 + $0x58] sm:$0xf]
      %v2581 = vld [vmem:[%s196 + $0x5c] sm:$0xf]
      %v2582 = vld [vmem:[%s196 + $0x60] sm:$0xf]
      %v2583 = vld [vmem:[%s196 + $0x64] sm:$0xf]
      %v2584 = vld [vmem:[%s196 + $0x68] sm:$0xf]
      %v2585 = vld [vmem:[%s196 + $0x6c] sm:$0xf]
      %v2586 = vld [vmem:[%s196 + $0x70] sm:$0xf]
      %v2587 = vld [vmem:[%s196 + $0x74] sm:$0xf]
      %v2588 = vld [vmem:[%s196 + $0x78] sm:$0xf]
      %v2589 = vld [vmem:[%s196 + $0x7c] sm:$0xf]
      %v2590 = vld [vmem:[%s196 + $0x80] sm:$0xf]
      %v2591 = vld [vmem:[%s196 + $0x84] sm:$0xf]
      %v2592 = vld [vmem:[%s196 + $0x88] sm:$0xf]
      %v2593 = vld [vmem:[%s196 + $0x8c] sm:$0xf]
      %v2594 = vld [vmem:[%s196 + $0x90] sm:$0xf]
      %v2595 = vld [vmem:[%s196 + $0x94] sm:$0xf]
      %v2596 = vld [vmem:[%s196 + $0x98] sm:$0xf]
      %v2597 = vld [vmem:[%s196 + $0x9c] sm:$0xf]
      %v2598 = vld [vmem:[%s196 + $0xa0] sm:$0x1]
      %s2599 = scalar_lea.vmem %s1, 12
      %v2600 = vld [vmem:[%s2599] sm:$0x3]
      %v2638 = vunpack.c.l.b16 %v2562
      %v2639 = vunpack.c.l.b16 %v2563
      %v2640 = vunpack.c.l.b16 %v2564
      %v2641 = vunpack.c.l.b16 %v2565
      %v2642 = vunpack.c.l.b16 %v2566
      %v2643 = vunpack.c.l.b16 %v2567
      %v2644 = vunpack.c.l.b16 %v2568
      %v2645 = vunpack.c.l.b16 %v2569
      %v2646 = vunpack.c.l.b16 %v2570
      %v2647 = vunpack.c.l.b16 %v2571
      %v2648 = vunpack.c.l.b16 %v2572
      %v2649 = vunpack.c.l.b16 %v2573
      %v2650 = vunpack.c.l.b16 %v2574
      %v2651 = vunpack.c.l.b16 %v2575
      %v2652 = vunpack.c.l.b16 %v2576
      %v2653 = vunpack.c.l.b16 %v2577
      %v2654 = vunpack.c.l.b16 %v2578
      %v2655 = vunpack.c.l.b16 %v2579
      %v2656 = vunpack.c.l.b16 %v2580
      %v2657 = vunpack.c.l.b16 %v2581
      %v2658 = vunpack.c.l.b16 %v2582
      %v2659 = vunpack.c.l.b16 %v2583
      %v2660 = vunpack.c.l.b16 %v2584
      %v2661 = vunpack.c.l.b16 %v2585
      %v2662 = vunpack.c.l.b16 %v2586
      %v2663 = vunpack.c.l.b16 %v2587
      %v2664 = vunpack.c.l.b16 %v2588
      %v2665 = vunpack.c.l.b16 %v2589
      %v2666 = vunpack.c.l.b16 %v2590
      %v2667 = vunpack.c.l.b16 %v2591
      %v2668 = vunpack.c.l.b16 %v2592
      %v2669 = vunpack.c.l.b16 %v2593
      %v2670 = vunpack.c.l.b16 %v2594
      %v2671 = vunpack.c.l.b16 %v2595
      %v2672 = vunpack.c.l.b16 %v2596
      %v2673 = vunpack.c.l.b16 %v2597
      %v2674 = vunpack.c.l.b16 %v2598
      %v2675 = vpack.c.b16 %v2639, %v2638
      %v2676 = vpack.c.b16 %v2641, %v2640
      %v2677 = vpack.c.b16 %v2643, %v2642
      %v2678 = vpack.c.b16 %v2645, %v2644
      %v2679 = vpack.c.b16 %v2647, %v2646
      %v2680 = vpack.c.b16 %v2649, %v2648
      %v2681 = vpack.c.b16 %v2651, %v2650
      %v2682 = vpack.c.b16 %v2653, %v2652
      %v2683 = vpack.c.b16 %v2655, %v2654
      %v2684 = vpack.c.b16 %v2657, %v2656
      %v2685 = vpack.c.b16 %v2659, %v2658
      %v2686 = vpack.c.b16 %v2661, %v2660
      %v2687 = vpack.c.b16 %v2663, %v2662
      %v2688 = vpack.c.b16 %v2665, %v2664
      %v2689 = vpack.c.b16 %v2667, %v2666
      %v2690 = vpack.c.b16 %v2669, %v2668
      %v2691 = vpack.c.b16 %v2671, %v2670
      %v2692 = vpack.c.b16 %v2673, %v2672
      %v2693 = vpack.c.b16 %v2674, %v2674
      %v2694 = vrot.slane %v2675, 2
      %v2695 = vrot.slane %v2676, 2
      %v2696 = vsel %vm2254, %v2694, %v2695
      %v2697 = vrot.slane %v2677, 2
      %v2698 = vsel %vm2254, %v2695, %v2697
      %v2699 = vrot.slane %v2678, 2
      %v2700 = vsel %vm2254, %v2697, %v2699
      %v2701 = vrot.slane %v2679, 2
      %v2702 = vsel %vm2254, %v2699, %v2701
      %v2703 = vrot.slane %v2680, 2
      %v2704 = vsel %vm2254, %v2701, %v2703
      %v2705 = vrot.slane %v2681, 2
      %v2706 = vsel %vm2254, %v2703, %v2705
      %v2707 = vrot.slane %v2682, 2
      %v2708 = vsel %vm2254, %v2705, %v2707
      %v2709 = vrot.slane %v2683, 2
      %v2710 = vsel %vm2254, %v2707, %v2709
      %v2711 = vrot.slane %v2684, 2
      %v2712 = vsel %vm2254, %v2709, %v2711
      %v2713 = vrot.slane %v2685, 2
      %v2714 = vsel %vm2254, %v2711, %v2713
      %v2715 = vrot.slane %v2686, 2
      %v2716 = vsel %vm2254, %v2713, %v2715
      %v2717 = vrot.slane %v2687, 2
      %v2718 = vsel %vm2254, %v2715, %v2717
      %v2719 = vrot.slane %v2688, 2
      %v2720 = vsel %vm2254, %v2717, %v2719
      %v2721 = vrot.slane %v2689, 2
      %v2722 = vsel %vm2254, %v2719, %v2721
      %v2723 = vrot.slane %v2690, 2
      %v2724 = vsel %vm2254, %v2721, %v2723
      %v2725 = vrot.slane %v2691, 2
      %v2726 = vsel %vm2254, %v2723, %v2725
      %v2727 = vrot.slane %v2692, 2
      %v2728 = vsel %vm2254, %v2725, %v2727
      %v2729 = vrot.slane %v2693, 2
      %v2730 = vsel %vm2254, %v2727, %v2729
      %v2732 = vsel %vm478, %v2696, 0
      %v2735 = vsel %vm478, %v2698, 0
      %v2738 = vsel %vm478, %v2700, 0
      %v2741 = vsel %vm478, %v2702, 0
      %v2744 = vsel %vm478, %v2704, 0
      %v2747 = vsel %vm478, %v2706, 0
      %v2750 = vsel %vm478, %v2708, 0
      %v2753 = vsel %vm478, %v2710, 0
      %v2756 = vsel %vm478, %v2712, 0
      %v2759 = vsel %vm478, %v2714, 0
      %v2762 = vsel %vm478, %v2716, 0
      %v2765 = vsel %vm478, %v2718, 0
      %v2768 = vsel %vm478, %v2720, 0
      %v2771 = vsel %vm478, %v2722, 0
      %v2774 = vsel %vm478, %v2724, 0
      %v2777 = vsel %vm478, %v2726, 0
      %v2780 = vsel %vm478, %v2728, 0
      %v2783 = vsel %vm478, %v2730, 0
      %v2786 = vsel %vm533, %v2600, 0
      %2788 = vmatprep.subr.bf16.mxu0 0
      %2789 = vmatpush1.bf16.msra.mxu0 %v2786
      %2790 = vmatprep.subr.bf16.mxu0 0
      %2791 = vmatpush1.bf16.msra.mxu0 0
      %2792 = vmatprep.subr.bf16.mxu0 0
      %2793 = vmatpush1.bf16.msra.mxu0 0
      %2794 = vmatprep.subr.bf16.mxu0 0
      %2795 = vmatpush1.bf16.msra.mxu0 0
      %2796 = vmatprep.subr.bf16.mxu0 0
      %2797 = vmatpush1.bf16.msra.mxu0 0
      %2798 = vmatprep.subr.bf16.mxu0 0
      %2799 = vmatpush1.bf16.msra.mxu0 0
      %2800 = vmatprep.subr.bf16.mxu0 0
      %2801 = vmatpush1.bf16.msra.mxu0 0
      %2802 = vmatprep.subr.bf16.mxu0 0
      %2803 = vmatpush1.bf16.msra.mxu0 0
      %2804 = vmatprep.subr.bf16.mxu0 0
      %2805 = vmatpush1.bf16.msra.mxu0 0
      %2806 = vmatprep.subr.bf16.mxu0 0
      %2807 = vmatpush1.bf16.msra.mxu0 0
      %2808 = vmatprep.subr.bf16.mxu0 0
      %2809 = vmatpush1.bf16.msra.mxu0 0
      %2810 = vmatprep.subr.bf16.mxu0 0
      %2811 = vmatpush1.bf16.msra.mxu0 0
      %2812 = vmatprep.subr.bf16.mxu0 0
      %2813 = vmatpush1.bf16.msra.mxu0 0
      %2814 = vmatprep.subr.bf16.mxu0 0
      %2815 = vmatpush1.bf16.msra.mxu0 0
      %2816 = vmatprep.subr.bf16.mxu0 0
      %2817 = vmatpush1.bf16.msra.mxu0 0
      %2818 = vmatprep.subr.bf16.mxu0 0
      %2819 = vmatpush1.bf16.msra.mxu0 0
      %2820 = vmatprep.mubr.bf16.mxu0 0
      %2821 = vmatmul.mubr.bf16.gmra.mrb[0].mxu0 %v2732
      %v2822 = vpop.f32.mrb[0].mxu0
      %v2823 = vadd.f32 0.0, %v2822
      %v2824 = vpop.f32.mrb[0].mxu0
      %v2825 = vpop.f32.mrb[0].mxu0
      %v2826 = vadd.f32 0.0, %v2825
      %v2827 = vpop.f32.mrb[0].mxu0
      %2828 = vmatprep.mubr.bf16.mxu0 0
      %2829 = vmatmul.mubr.bf16.gmra.mrb[0].mxu0 %v2735
      %v2830 = vpop.f32.mrb[0].mxu0
      %v2831 = vadd.f32 0.0, %v2830
      %v2832 = vpop.f32.mrb[0].mxu0
      %v2833 = vpop.f32.mrb[0].mxu0
      %v2834 = vadd.f32 0.0, %v2833
      %v2835 = vpop.f32.mrb[0].mxu0
      %2836 = vmatprep.mubr.bf16.mxu0 0
      %2837 = vmatmul.mubr.bf16.gmra.mrb[0].mxu0 %v2738
      %v2838 = vpop.f32.mrb[0].mxu0
      %v2839 = vadd.f32 0.0, %v2838
      %v2840 = vpop.f32.mrb[0].mxu0
      %v2841 = vpop.f32.mrb[0].mxu0
      %v2842 = vadd.f32 0.0, %v2841
      %v2843 = vpop.f32.mrb[0].mxu0
      %2844 = vmatprep.mubr.bf16.mxu0 0
      %2845 = vmatmul.mubr.bf16.gmra.mrb[0].mxu0 %v2741
      %v2846 = vpop.f32.mrb[0].mxu0
      %v2847 = vadd.f32 0.0, %v2846
      %v2848 = vpop.f32.mrb[0].mxu0
      %v2849 = vpop.f32.mrb[0].mxu0
      %v2850 = vadd.f32 0.0, %v2849
      %v2851 = vpop.f32.mrb[0].mxu0
      %2852 = vmatprep.mubr.bf16.mxu0 0
      %2853 = vmatmul.mubr.bf16.gmra.mrb[0].mxu0 %v2744
      %v2854 = vpop.f32.mrb[0].mxu0
      %v2855 = vadd.f32 0.0, %v2854
      %v2856 = vpop.f32.mrb[0].mxu0
      %v2857 = vpop.f32.mrb[0].mxu0
      %v2858 = vadd.f32 0.0, %v2857
      %v2859 = vpop.f32.mrb[0].mxu0
      %2860 = vmatprep.mubr.bf16.mxu0 0
      %2861 = vmatmul.mubr.bf16.gmra.mrb[0].mxu0 %v2747
      %v2862 = vpop.f32.mrb[0].mxu0
      %v2863 = vadd.f32 0.0, %v2862
      %v2864 = vpop.f32.mrb[0].mxu0
      %v2865 = vpop.f32.mrb[0].mxu0
      %v2866 = vadd.f32 0.0, %v2865
      %v2867 = vpop.f32.mrb[0].mxu0
      %2868 = vmatprep.mubr.bf16.mxu0 0
      %2869 = vmatmul.mubr.bf16.gmra.mrb[0].mxu0 %v2750
      %v2870 = vpop.f32.mrb[0].mxu0
      %v2871 = vadd.f32 0.0, %v2870
      %v2872 = vpop.f32.mrb[0].mxu0
      %v2873 = vpop.f32.mrb[0].mxu0
      %v2874 = vadd.f32 0.0, %v2873
      %v2875 = vpop.f32.mrb[0].mxu0
      %2876 = vmatprep.mubr.bf16.mxu0 0
      %2877 = vmatmul.mubr.bf16.gmra.mrb[0].mxu0 %v2753
      %v2878 = vpop.f32.mrb[0].mxu0
      %v2879 = vadd.f32 0.0, %v2878
      %v2880 = vpop.f32.mrb[0].mxu0
      %v2881 = vpop.f32.mrb[0].mxu0
      %v2882 = vadd.f32 0.0, %v2881
      %v2883 = vpop.f32.mrb[0].mxu0
      %2884 = vmatprep.mubr.bf16.mxu0 0
      %2885 = vmatmul.mubr.bf16.gmra.mrb[0].mxu0 %v2756
      %v2886 = vpop.f32.mrb[0].mxu0
      %v2887 = vadd.f32 0.0, %v2886
      %v2888 = vpop.f32.mrb[0].mxu0
      %v2889 = vpop.f32.mrb[0].mxu0
      %v2890 = vadd.f32 0.0, %v2889
      %v2891 = vpop.f32.mrb[0].mxu0
      %2892 = vmatprep.mubr.bf16.mxu0 0
      %2893 = vmatmul.mubr.bf16.gmra.mrb[0].mxu0 %v2759
      %v2894 = vpop.f32.mrb[0].mxu0
      %v2895 = vadd.f32 0.0, %v2894
      %v2896 = vpop.f32.mrb[0].mxu0
      %v2897 = vpop.f32.mrb[0].mxu0
      %v2898 = vadd.f32 0.0, %v2897
      %v2899 = vpop.f32.mrb[0].mxu0
      %2900 = vmatprep.mubr.bf16.mxu0 0
      %2901 = vmatmul.mubr.bf16.gmra.mrb[0].mxu0 %v2762
      %v2902 = vpop.f32.mrb[0].mxu0
      %v2903 = vadd.f32 0.0, %v2902
      %v2904 = vpop.f32.mrb[0].mxu0
      %v2905 = vpop.f32.mrb[0].mxu0
      %v2906 = vadd.f32 0.0, %v2905
      %v2907 = vpop.f32.mrb[0].mxu0
      %2908 = vmatprep.mubr.bf16.mxu0 0
      %2909 = vmatmul.mubr.bf16.gmra.mrb[0].mxu0 %v2765
      %v2910 = vpop.f32.mrb[0].mxu0
      %v2911 = vadd.f32 0.0, %v2910
      %v2912 = vpop.f32.mrb[0].mxu0
      %v2913 = vpop.f32.mrb[0].mxu0
      %v2914 = vadd.f32 0.0, %v2913
      %v2915 = vpop.f32.mrb[0].mxu0
      %2916 = vmatprep.mubr.bf16.mxu0 0
      %2917 = vmatmul.mubr.bf16.gmra.mrb[0].mxu0 %v2768
      %v2918 = vpop.f32.mrb[0].mxu0
      %v2919 = vadd.f32 0.0, %v2918
      %v2920 = vpop.f32.mrb[0].mxu0
      %v2921 = vpop.f32.mrb[0].mxu0
      %v2922 = vadd.f32 0.0, %v2921
      %v2923 = vpop.f32.mrb[0].mxu0
      %2924 = vmatprep.mubr.bf16.mxu0 0
      %2925 = vmatmul.mubr.bf16.gmra.mrb[0].mxu0 %v2771
      %v2926 = vpop.f32.mrb[0].mxu0
      %v2927 = vadd.f32 0.0, %v2926
      %v2928 = vpop.f32.mrb[0].mxu0
      %v2929 = vpop.f32.mrb[0].mxu0
      %v2930 = vadd.f32 0.0, %v2929
      %v2931 = vpop.f32.mrb[0].mxu0
      %2932 = vmatprep.mubr.bf16.mxu0 0
      %2933 = vmatmul.mubr.bf16.gmra.mrb[0].mxu0 %v2774
      %v2934 = vpop.f32.mrb[0].mxu0
      %v2935 = vadd.f32 0.0, %v2934
      %v2936 = vpop.f32.mrb[0].mxu0
      %v2937 = vpop.f32.mrb[0].mxu0
      %v2938 = vadd.f32 0.0, %v2937
      %v2939 = vpop.f32.mrb[0].mxu0
      %2940 = vmatprep.mubr.bf16.mxu0 0
      %2941 = vmatmul.mubr.bf16.gmra.mrb[0].mxu0 %v2777
      %v2942 = vpop.f32.mrb[0].mxu0
      %v2943 = vadd.f32 0.0, %v2942
      %v2944 = vpop.f32.mrb[0].mxu0
      %v2945 = vpop.f32.mrb[0].mxu0
      %v2946 = vadd.f32 0.0, %v2945
      %v2947 = vpop.f32.mrb[0].mxu0
      %2948 = vmatprep.mubr.bf16.mxu0 0
      %2949 = vmatmul.mubr.bf16.gmra.mrb[0].mxu0 %v2780
      %v2950 = vpop.f32.mrb[0].mxu0
      %v2951 = vadd.f32 0.0, %v2950
      %v2952 = vpop.f32.mrb[0].mxu0
      %v2953 = vpop.f32.mrb[0].mxu0
      %v2954 = vadd.f32 0.0, %v2953
      %v2955 = vpop.f32.mrb[0].mxu0
      %2956 = vmatprep.mubr.bf16.mxu0 0
      %2957 = vmatmul.mubr.bf16.gmra.mrb[0].mxu0 %v2783
      %v2958 = vpop.f32.mrb[0].mxu0
      %v2959 = vadd.f32 0.0, %v2958
      %v2960 = vpop.f32.mrb[0].mxu0
      %v2961 = vpop.f32.mrb[0].mxu0
      %v2962 = vadd.f32 0.0, %v2961
      %v2963 = vpop.f32.mrb[0].mxu0
      %2964 = vdwg.mxu0
      %v2965 = vadd.f32 %v2526, %v2823
      %v2966 = vadd.f32 %v2527, %v2826
      %v2967 = vadd.f32 %v2528, %v2831
      %v2968 = vadd.f32 %v2529, %v2834
      %v2969 = vadd.f32 %v2530, %v2839
      %v2970 = vadd.f32 %v2531, %v2842
      %v2971 = vadd.f32 %v2532, %v2847
      %v2972 = vadd.f32 %v2533, %v2850
      %v2973 = vadd.f32 %v2534, %v2855
      %v2974 = vadd.f32 %v2535, %v2858
      %v2975 = vadd.f32 %v2536, %v2863
      %v2976 = vadd.f32 %v2537, %v2866
      %v2977 = vadd.f32 %v2538, %v2871
      %v2978 = vadd.f32 %v2539, %v2874
      %v2979 = vadd.f32 %v2540, %v2879
      %v2980 = vadd.f32 %v2541, %v2882
      %v2981 = vadd.f32 %v2542, %v2887
      %v2982 = vadd.f32 %v2543, %v2890
      %v2983 = vadd.f32 %v2544, %v2895
      %v2984 = vadd.f32 %v2545, %v2898
      %v2985 = vadd.f32 %v2546, %v2903
      %v2986 = vadd.f32 %v2547, %v2906
      %v2987 = vadd.f32 %v2548, %v2911
      %v2988 = vadd.f32 %v2549, %v2914
      %v2989 = vadd.f32 %v2550, %v2919
      %v2990 = vadd.f32 %v2551, %v2922
      %v2991 = vadd.f32 %v2552, %v2927
      %v2992 = vadd.f32 %v2553, %v2930
      %v2993 = vadd.f32 %v2554, %v2935
      %v2994 = vadd.f32 %v2555, %v2938
      %v2995 = vadd.f32 %v2556, %v2943
      %v2996 = vadd.f32 %v2557, %v2946
      %v2997 = vadd.f32 %v2558, %v2951
      %v2998 = vadd.f32 %v2559, %v2954
      %v2999 = vadd.f32 %v2560, %v2959
      %v3000 = vadd.f32 %v2561, %v2962
      %v3001 = vld [vmem:[%s196 + $0xa0] sm:$0x3]
      %s3002 = scalar_lea.vmem %s1, 14
      %v3003 = vld [vmem:[%s3002] sm:$0x3]
      %v3005 = vunpack.c.l.b16 %v3001
      %v3006 = vpack.c.b16 %v3005, %v3005
      %vm3007 = vsmask.f32 5376
      %v3009 = vshrl.u32 %v2675, 16
      %v3011 = vrot.slane %v3009, 2
      %v3012 = vshll.u32 %v2675, 16
      %v3014 = vrot.slane %v3012, 3
      %v3015 = vor.u32 %v3011, %v3014
      %v3017 = vshrl.u32 %v2676, 16
      %v3019 = vrot.slane %v3017, 2
      %v3020 = vshll.u32 %v2676, 16
      %v3022 = vrot.slane %v3020, 3
      %v3023 = vor.u32 %v3019, %v3022
      %v3024 = vsel %vm3007, %v3015, %v3023
      %v3026 = vshrl.u32 %v2677, 16
      %v3028 = vrot.slane %v3026, 2
      %v3029 = vshll.u32 %v2677, 16
      %v3031 = vrot.slane %v3029, 3
      %v3032 = vor.u32 %v3028, %v3031
      %v3033 = vsel %vm3007, %v3023, %v3032
      %v3035 = vshrl.u32 %v2678, 16
      %v3037 = vrot.slane %v3035, 2
      %v3038 = vshll.u32 %v2678, 16
      %v3040 = vrot.slane %v3038, 3
      %v3041 = vor.u32 %v3037, %v3040
      %v3042 = vsel %vm3007, %v3032, %v3041
      %v3044 = vshrl.u32 %v2679, 16
      %v3046 = vrot.slane %v3044, 2
      %v3047 = vshll.u32 %v2679, 16
      %v3049 = vrot.slane %v3047, 3
      %v3050 = vor.u32 %v3046, %v3049
      %v3051 = vsel %vm3007, %v3041, %v3050
      %v3053 = vshrl.u32 %v2680, 16
      %v3055 = vrot.slane %v3053, 2
      %v3056 = vshll.u32 %v2680, 16
      %v3058 = vrot.slane %v3056, 3
      %v3059 = vor.u32 %v3055, %v3058
      %v3060 = vsel %vm3007, %v3050, %v3059
      %v3062 = vshrl.u32 %v2681, 16
      %v3064 = vrot.slane %v3062, 2
      %v3065 = vshll.u32 %v2681, 16
      %v3067 = vrot.slane %v3065, 3
      %v3068 = vor.u32 %v3064, %v3067
      %v3069 = vsel %vm3007, %v3059, %v3068
      %v3071 = vshrl.u32 %v2682, 16
      %v3073 = vrot.slane %v3071, 2
      %v3074 = vshll.u32 %v2682, 16
      %v3076 = vrot.slane %v3074, 3
      %v3077 = vor.u32 %v3073, %v3076
      %v3078 = vsel %vm3007, %v3068, %v3077
      %v3080 = vshrl.u32 %v2683, 16
      %v3082 = vrot.slane %v3080, 2
      %v3083 = vshll.u32 %v2683, 16
      %v3085 = vrot.slane %v3083, 3
      %v3086 = vor.u32 %v3082, %v3085
      %v3087 = vsel %vm3007, %v3077, %v3086
      %v3089 = vshrl.u32 %v2684, 16
      %v3091 = vrot.slane %v3089, 2
      %v3092 = vshll.u32 %v2684, 16
      %v3094 = vrot.slane %v3092, 3
      %v3095 = vor.u32 %v3091, %v3094
      %v3096 = vsel %vm3007, %v3086, %v3095
      %v3098 = vshrl.u32 %v2685, 16
      %v3100 = vrot.slane %v3098, 2
      %v3101 = vshll.u32 %v2685, 16
      %v3103 = vrot.slane %v3101, 3
      %v3104 = vor.u32 %v3100, %v3103
      %v3105 = vsel %vm3007, %v3095, %v3104
      %v3107 = vshrl.u32 %v2686, 16
      %v3109 = vrot.slane %v3107, 2
      %v3110 = vshll.u32 %v2686, 16
      %v3112 = vrot.slane %v3110, 3
      %v3113 = vor.u32 %v3109, %v3112
      %v3114 = vsel %vm3007, %v3104, %v3113
      %v3116 = vshrl.u32 %v2687, 16
      %v3118 = vrot.slane %v3116, 2
      %v3119 = vshll.u32 %v2687, 16
      %v3121 = vrot.slane %v3119, 3
      %v3122 = vor.u32 %v3118, %v3121
      %v3123 = vsel %vm3007, %v3113, %v3122
      %v3125 = vshrl.u32 %v2688, 16
      %v3127 = vrot.slane %v3125, 2
      %v3128 = vshll.u32 %v2688, 16
      %v3130 = vrot.slane %v3128, 3
      %v3131 = vor.u32 %v3127, %v3130
      %v3132 = vsel %vm3007, %v3122, %v3131
      %v3134 = vshrl.u32 %v2689, 16
      %v3136 = vrot.slane %v3134, 2
      %v3137 = vshll.u32 %v2689, 16
      %v3139 = vrot.slane %v3137, 3
      %v3140 = vor.u32 %v3136, %v3139
      %v3141 = vsel %vm3007, %v3131, %v3140
      %v3143 = vshrl.u32 %v2690, 16
      %v3145 = vrot.slane %v3143, 2
      %v3146 = vshll.u32 %v2690, 16
      %v3148 = vrot.slane %v3146, 3
      %v3149 = vor.u32 %v3145, %v3148
      %v3150 = vsel %vm3007, %v3140, %v3149
      %v3152 = vshrl.u32 %v2691, 16
      %v3154 = vrot.slane %v3152, 2
      %v3155 = vshll.u32 %v2691, 16
      %v3157 = vrot.slane %v3155, 3
      %v3158 = vor.u32 %v3154, %v3157
      %v3159 = vsel %vm3007, %v3149, %v3158
      %v3161 = vshrl.u32 %v2692, 16
      %v3163 = vrot.slane %v3161, 2
      %v3164 = vshll.u32 %v2692, 16
      %v3166 = vrot.slane %v3164, 3
      %v3167 = vor.u32 %v3163, %v3166
      %v3168 = vsel %vm3007, %v3158, %v3167
      %v3170 = vshrl.u32 %v3006, 16
      %v3172 = vrot.slane %v3170, 2
      %v3173 = vshll.u32 %v3006, 16
      %v3175 = vrot.slane %v3173, 3
      %v3176 = vor.u32 %v3172, %v3175
      %v3177 = vsel %vm3007, %v3167, %v3176
      %v3179 = vsel %vm478, %v3024, 0
      %v3182 = vsel %vm478, %v3033, 0
      %v3185 = vsel %vm478, %v3042, 0
      %v3188 = vsel %vm478, %v3051, 0
      %v3191 = vsel %vm478, %v3060, 0
      %v3194 = vsel %vm478, %v3069, 0
      %v3197 = vsel %vm478, %v3078, 0
      %v3200 = vsel %vm478, %v3087, 0
      %v3203 = vsel %vm478, %v3096, 0
      %v3206 = vsel %vm478, %v3105, 0
      %v3209 = vsel %vm478, %v3114, 0
      %v3212 = vsel %vm478, %v3123, 0
      %v3215 = vsel %vm478, %v3132, 0
      %v3218 = vsel %vm478, %v3141, 0
      %v3221 = vsel %vm478, %v3150, 0
      %v3224 = vsel %vm478, %v3159, 0
      %v3227 = vsel %vm478, %v3168, 0
      %v3230 = vsel %vm478, %v3177, 0
      %v3233 = vsel %vm533, %v3003, 0
      %3235 = vmatprep.subr.bf16.mxu0 0
      %3236 = vmatpush1.bf16.msra.mxu0 %v3233
      %3237 = vmatprep.subr.bf16.mxu0 0
      %3238 = vmatpush1.bf16.msra.mxu0 0
      %3239 = vmatprep.subr.bf16.mxu0 0
      %3240 = vmatpush1.bf16.msra.mxu0 0
      %3241 = vmatprep.subr.bf16.mxu0 0
      %3242 = vmatpush1.bf16.msra.mxu0 0
      %3243 = vmatprep.subr.bf16.mxu0 0
      %3244 = vmatpush1.bf16.msra.mxu0 0
      %3245 = vmatprep.subr.bf16.mxu0 0
      %3246 = vmatpush1.bf16.msra.mxu0 0
      %3247 = vmatprep.subr.bf16.mxu0 0
      %3248 = vmatpush1.bf16.msra.mxu0 0
      %3249 = vmatprep.subr.bf16.mxu0 0
      %3250 = vmatpush1.bf16.msra.mxu0 0
      %3251 = vmatprep.subr.bf16.mxu0 0
      %3252 = vmatpush1.bf16.msra.mxu0 0
      %3253 = vmatprep.subr.bf16.mxu0 0
      %3254 = vmatpush1.bf16.msra.mxu0 0
      %3255 = vmatprep.subr.bf16.mxu0 0
      %3256 = vmatpush1.bf16.msra.mxu0 0
      %3257 = vmatprep.subr.bf16.mxu0 0
      %3258 = vmatpush1.bf16.msra.mxu0 0
      %3259 = vmatprep.subr.bf16.mxu0 0
      %3260 = vmatpush1.bf16.msra.mxu0 0
      %3261 = vmatprep.subr.bf16.mxu0 0
      %3262 = vmatpush1.bf16.msra.mxu0 0
      %3263 = vmatprep.subr.bf16.mxu0 0
      %3264 = vmatpush1.bf16.msra.mxu0 0
      %3265 = vmatprep.subr.bf16.mxu0 0
      %3266 = vmatpush1.bf16.msra.mxu0 0
      %3267 = vmatprep.mubr.bf16.mxu0 0
      %3268 = vmatmul.mubr.bf16.gmra.mrb[0].mxu0 %v3179
      %v3269 = vpop.f32.mrb[0].mxu0
      %v3270 = vadd.f32 0.0, %v3269
      %v3271 = vpop.f32.mrb[0].mxu0
      %v3272 = vpop.f32.mrb[0].mxu0
      %v3273 = vadd.f32 0.0, %v3272
      %v3274 = vpop.f32.mrb[0].mxu0
      %3275 = vmatprep.mubr.bf16.mxu0 0
      %3276 = vmatmul.mubr.bf16.gmra.mrb[0].mxu0 %v3182
      %v3277 = vpop.f32.mrb[0].mxu0
      %v3278 = vadd.f32 0.0, %v3277
      %v3279 = vpop.f32.mrb[0].mxu0
      %v3280 = vpop.f32.mrb[0].mxu0
      %v3281 = vadd.f32 0.0, %v3280
      %v3282 = vpop.f32.mrb[0].mxu0
      %3283 = vmatprep.mubr.bf16.mxu0 0
      %3284 = vmatmul.mubr.bf16.gmra.mrb[0].mxu0 %v3185
      %v3285 = vpop.f32.mrb[0].mxu0
      %v3286 = vadd.f32 0.0, %v3285
      %v3287 = vpop.f32.mrb[0].mxu0
      %v3288 = vpop.f32.mrb[0].mxu0
      %v3289 = vadd.f32 0.0, %v3288
      %v3290 = vpop.f32.mrb[0].mxu0
      %3291 = vmatprep.mubr.bf16.mxu0 0
      %3292 = vmatmul.mubr.bf16.gmra.mrb[0].mxu0 %v3188
      %v3293 = vpop.f32.mrb[0].mxu0
      %v3294 = vadd.f32 0.0, %v3293
      %v3295 = vpop.f32.mrb[0].mxu0
      %v3296 = vpop.f32.mrb[0].mxu0
      %v3297 = vadd.f32 0.0, %v3296
      %v3298 = vpop.f32.mrb[0].mxu0
      %3299 = vmatprep.mubr.bf16.mxu0 0
      %3300 = vmatmul.mubr.bf16.gmra.mrb[0].mxu0 %v3191
      %v3301 = vpop.f32.mrb[0].mxu0
      %v3302 = vadd.f32 0.0, %v3301
      %v3303 = vpop.f32.mrb[0].mxu0
      %v3304 = vpop.f32.mrb[0].mxu0
      %v3305 = vadd.f32 0.0, %v3304
      %v3306 = vpop.f32.mrb[0].mxu0
      %3307 = vmatprep.mubr.bf16.mxu0 0
      %3308 = vmatmul.mubr.bf16.gmra.mrb[0].mxu0 %v3194
      %v3309 = vpop.f32.mrb[0].mxu0
      %v3310 = vadd.f32 0.0, %v3309
      %v3311 = vpop.f32.mrb[0].mxu0
      %v3312 = vpop.f32.mrb[0].mxu0
      %v3313 = vadd.f32 0.0, %v3312
      %v3314 = vpop.f32.mrb[0].mxu0
      %3315 = vmatprep.mubr.bf16.mxu0 0
      %3316 = vmatmul.mubr.bf16.gmra.mrb[0].mxu0 %v3197
      %v3317 = vpop.f32.mrb[0].mxu0
      %v3318 = vadd.f32 0.0, %v3317
      %v3319 = vpop.f32.mrb[0].mxu0
      %v3320 = vpop.f32.mrb[0].mxu0
      %v3321 = vadd.f32 0.0, %v3320
      %v3322 = vpop.f32.mrb[0].mxu0
      %3323 = vmatprep.mubr.bf16.mxu0 0
      %3324 = vmatmul.mubr.bf16.gmra.mrb[0].mxu0 %v3200
      %v3325 = vpop.f32.mrb[0].mxu0
      %v3326 = vadd.f32 0.0, %v3325
      %v3327 = vpop.f32.mrb[0].mxu0
      %v3328 = vpop.f32.mrb[0].mxu0
      %v3329 = vadd.f32 0.0, %v3328
      %v3330 = vpop.f32.mrb[0].mxu0
      %3331 = vmatprep.mubr.bf16.mxu0 0
      %3332 = vmatmul.mubr.bf16.gmra.mrb[0].mxu0 %v3203
      %v3333 = vpop.f32.mrb[0].mxu0
      %v3334 = vadd.f32 0.0, %v3333
      %v3335 = vpop.f32.mrb[0].mxu0
      %v3336 = vpop.f32.mrb[0].mxu0
      %v3337 = vadd.f32 0.0, %v3336
      %v3338 = vpop.f32.mrb[0].mxu0
      %3339 = vmatprep.mubr.bf16.mxu0 0
      %3340 = vmatmul.mubr.bf16.gmra.mrb[0].mxu0 %v3206
      %v3341 = vpop.f32.mrb[0].mxu0
      %v3342 = vadd.f32 0.0, %v3341
      %v3343 = vpop.f32.mrb[0].mxu0
      %v3344 = vpop.f32.mrb[0].mxu0
      %v3345 = vadd.f32 0.0, %v3344
      %v3346 = vpop.f32.mrb[0].mxu0
      %3347 = vmatprep.mubr.bf16.mxu0 0
      %3348 = vmatmul.mubr.bf16.gmra.mrb[0].mxu0 %v3209
      %v3349 = vpop.f32.mrb[0].mxu0
      %v3350 = vadd.f32 0.0, %v3349
      %v3351 = vpop.f32.mrb[0].mxu0
      %v3352 = vpop.f32.mrb[0].mxu0
      %v3353 = vadd.f32 0.0, %v3352
      %v3354 = vpop.f32.mrb[0].mxu0
      %3355 = vmatprep.mubr.bf16.mxu0 0
      %3356 = vmatmul.mubr.bf16.gmra.mrb[0].mxu0 %v3212
      %v3357 = vpop.f32.mrb[0].mxu0
      %v3358 = vadd.f32 0.0, %v3357
      %v3359 = vpop.f32.mrb[0].mxu0
      %v3360 = vpop.f32.mrb[0].mxu0
      %v3361 = vadd.f32 0.0, %v3360
      %v3362 = vpop.f32.mrb[0].mxu0
      %3363 = vmatprep.mubr.bf16.mxu0 0
      %3364 = vmatmul.mubr.bf16.gmra.mrb[0].mxu0 %v3215
      %v3365 = vpop.f32.mrb[0].mxu0
      %v3366 = vadd.f32 0.0, %v3365
      %v3367 = vpop.f32.mrb[0].mxu0
      %v3368 = vpop.f32.mrb[0].mxu0
      %v3369 = vadd.f32 0.0, %v3368
      %v3370 = vpop.f32.mrb[0].mxu0
      %3371 = vmatprep.mubr.bf16.mxu0 0
      %3372 = vmatmul.mubr.bf16.gmra.mrb[0].mxu0 %v3218
      %v3373 = vpop.f32.mrb[0].mxu0
      %v3374 = vadd.f32 0.0, %v3373
      %v3375 = vpop.f32.mrb[0].mxu0
      %v3376 = vpop.f32.mrb[0].mxu0
      %v3377 = vadd.f32 0.0, %v3376
      %v3378 = vpop.f32.mrb[0].mxu0
      %3379 = vmatprep.mubr.bf16.mxu0 0
      %3380 = vmatmul.mubr.bf16.gmra.mrb[0].mxu0 %v3221
      %v3381 = vpop.f32.mrb[0].mxu0
      %v3382 = vadd.f32 0.0, %v3381
      %v3383 = vpop.f32.mrb[0].mxu0
      %v3384 = vpop.f32.mrb[0].mxu0
      %v3385 = vadd.f32 0.0, %v3384
      %v3386 = vpop.f32.mrb[0].mxu0
      %3387 = vmatprep.mubr.bf16.mxu0 0
      %3388 = vmatmul.mubr.bf16.gmra.mrb[0].mxu0 %v3224
      %v3389 = vpop.f32.mrb[0].mxu0
      %v3390 = vadd.f32 0.0, %v3389
      %v3391 = vpop.f32.mrb[0].mxu0
      %v3392 = vpop.f32.mrb[0].mxu0
      %v3393 = vadd.f32 0.0, %v3392
      %v3394 = vpop.f32.mrb[0].mxu0
      %3395 = vmatprep.mubr.bf16.mxu0 0
      %3396 = vmatmul.mubr.bf16.gmra.mrb[0].mxu0 %v3227
      %v3397 = vpop.f32.mrb[0].mxu0
      %v3398 = vadd.f32 0.0, %v3397
      %v3399 = vpop.f32.mrb[0].mxu0
      %v3400 = vpop.f32.mrb[0].mxu0
      %v3401 = vadd.f32 0.0, %v3400
      %v3402 = vpop.f32.mrb[0].mxu0
      %3403 = vmatprep.mubr.bf16.mxu0 0
      %3404 = vmatmul.mubr.bf16.gmra.mrb[0].mxu0 %v3230
      %v3405 = vpop.f32.mrb[0].mxu0
      %v3406 = vadd.f32 0.0, %v3405
      %v3407 = vpop.f32.mrb[0].mxu0
      %v3408 = vpop.f32.mrb[0].mxu0
      %v3409 = vadd.f32 0.0, %v3408
      %v3410 = vpop.f32.mrb[0].mxu0
      %3411 = vdwg.mxu0
      %v3412 = vadd.f32 %v2965, %v3270
      %v3413 = vadd.f32 %v2966, %v3273
      %v3414 = vadd.f32 %v2967, %v3278
      %v3415 = vadd.f32 %v2968, %v3281
      %v3416 = vadd.f32 %v2969, %v3286
      %v3417 = vadd.f32 %v2970, %v3289
      %v3418 = vadd.f32 %v2971, %v3294
      %v3419 = vadd.f32 %v2972, %v3297
      %v3420 = vadd.f32 %v2973, %v3302
      %v3421 = vadd.f32 %v2974, %v3305
      %v3422 = vadd.f32 %v2975, %v3310
      %v3423 = vadd.f32 %v2976, %v3313
      %v3424 = vadd.f32 %v2977, %v3318
      %v3425 = vadd.f32 %v2978, %v3321
      %v3426 = vadd.f32 %v2979, %v3326
      %v3427 = vadd.f32 %v2980, %v3329
      %v3428 = vadd.f32 %v2981, %v3334
      %v3429 = vadd.f32 %v2982, %v3337
      %v3430 = vadd.f32 %v2983, %v3342
      %v3431 = vadd.f32 %v2984, %v3345
      %v3432 = vadd.f32 %v2985, %v3350
      %v3433 = vadd.f32 %v2986, %v3353
      %v3434 = vadd.f32 %v2987, %v3358
      %v3435 = vadd.f32 %v2988, %v3361
      %v3436 = vadd.f32 %v2989, %v3366
      %v3437 = vadd.f32 %v2990, %v3369
      %v3438 = vadd.f32 %v2991, %v3374
      %v3439 = vadd.f32 %v2992, %v3377
      %v3440 = vadd.f32 %v2993, %v3382
      %v3441 = vadd.f32 %v2994, %v3385
      %v3442 = vadd.f32 %v2995, %v3390
      %v3443 = vadd.f32 %v2996, %v3393
      %v3444 = vadd.f32 %v2997, %v3398
      %v3445 = vadd.f32 %v2998, %v3401
      %v3446 = vadd.f32 %v2999, %v3406
      %v3447 = vadd.f32 %v3000, %v3409
      %v3448 = vld [vmem:[%s196 + $0x10] sm:$0x8]
      %s3449 = scalar_lea.vmem %s1, 16
      %v3450 = vld [vmem:[%s3449] sm:$0x3]
      %v3452 = vunpack.c.l.b16 %v3448
      %v3453 = vpack.c.b16 %v2639, %v3452
      %vm3454 = vcmask 1044480
      %v3455 = vrot.slane %v3453, 3
      %v3456 = vrot.slane %v2676, 3
      %v3457 = vsel %vm3454, %v3455, %v3456
      %v3458 = vrot.slane %v2677, 3
      %v3459 = vsel %vm3454, %v3456, %v3458
      %v3460 = vrot.slane %v2678, 3
      %v3461 = vsel %vm3454, %v3458, %v3460
      %v3462 = vrot.slane %v2679, 3
      %v3463 = vsel %vm3454, %v3460, %v3462
      %v3464 = vrot.slane %v2680, 3
      %v3465 = vsel %vm3454, %v3462, %v3464
      %v3466 = vrot.slane %v2681, 3
      %v3467 = vsel %vm3454, %v3464, %v3466
      %v3468 = vrot.slane %v2682, 3
      %v3469 = vsel %vm3454, %v3466, %v3468
      %v3470 = vrot.slane %v2683, 3
      %v3471 = vsel %vm3454, %v3468, %v3470
      %v3472 = vrot.slane %v2684, 3
      %v3473 = vsel %vm3454, %v3470, %v3472
      %v3474 = vrot.slane %v2685, 3
      %v3475 = vsel %vm3454, %v3472, %v3474
      %v3476 = vrot.slane %v2686, 3
      %v3477 = vsel %vm3454, %v3474, %v3476
      %v3478 = vrot.slane %v2687, 3
      %v3479 = vsel %vm3454, %v3476, %v3478
      %v3480 = vrot.slane %v2688, 3
      %v3481 = vsel %vm3454, %v3478, %v3480
      %v3482 = vrot.slane %v2689, 3
      %v3483 = vsel %vm3454, %v3480, %v3482
      %v3484 = vrot.slane %v2690, 3
      %v3485 = vsel %vm3454, %v3482, %v3484
      %v3486 = vrot.slane %v2691, 3
      %v3487 = vsel %vm3454, %v3484, %v3486
      %v3488 = vrot.slane %v2692, 3
      %v3489 = vsel %vm3454, %v3486, %v3488
      %v3490 = vrot.slane %v3006, 3
      %v3491 = vsel %vm3454, %v3488, %v3490
      %v3493 = vsel %vm478, %v3457, 0
      %v3496 = vsel %vm478, %v3459, 0
      %v3499 = vsel %vm478, %v3461, 0
      %v3502 = vsel %vm478, %v3463, 0
      %v3505 = vsel %vm478, %v3465, 0
      %v3508 = vsel %vm478, %v3467, 0
      %v3511 = vsel %vm478, %v3469, 0
      %v3514 = vsel %vm478, %v3471, 0
      %v3517 = vsel %vm478, %v3473, 0
      %v3520 = vsel %vm478, %v3475, 0
      %v3523 = vsel %vm478, %v3477, 0
      %v3526 = vsel %vm478, %v3479, 0
      %v3529 = vsel %vm478, %v3481, 0
      %v3532 = vsel %vm478, %v3483, 0
      %v3535 = vsel %vm478, %v3485, 0
      %v3538 = vsel %vm478, %v3487, 0
      %v3541 = vsel %vm478, %v3489, 0
      %v3544 = vsel %vm478, %v3491, 0
      %v3547 = vsel %vm533, %v3450, 0
      %3549 = vmatprep.subr.bf16.mxu0 0
      %3550 = vmatpush1.bf16.msra.mxu0 %v3547
      %3551 = vmatprep.subr.bf16.mxu0 0
      %3552 = vmatpush1.bf16.msra.mxu0 0
      %3553 = vmatprep.subr.bf16.mxu0 0
      %3554 = vmatpush1.bf16.msra.mxu0 0
      %3555 = vmatprep.subr.bf16.mxu0 0
      %3556 = vmatpush1.bf16.msra.mxu0 0
      %3557 = vmatprep.subr.bf16.mxu0 0
      %3558 = vmatpush1.bf16.msra.mxu0 0
      %3559 = vmatprep.subr.bf16.mxu0 0
      %3560 = vmatpush1.bf16.msra.mxu0 0
      %3561 = vmatprep.subr.bf16.mxu0 0
      %3562 = vmatpush1.bf16.msra.mxu0 0
      %3563 = vmatprep.subr.bf16.mxu0 0
      %3564 = vmatpush1.bf16.msra.mxu0 0
      %3565 = vmatprep.subr.bf16.mxu0 0
      %3566 = vmatpush1.bf16.msra.mxu0 0
      %3567 = vmatprep.subr.bf16.mxu0 0
      %3568 = vmatpush1.bf16.msra.mxu0 0
      %3569 = vmatprep.subr.bf16.mxu0 0
      %3570 = vmatpush1.bf16.msra.mxu0 0
      %3571 = vmatprep.subr.bf16.mxu0 0
      %3572 = vmatpush1.bf16.msra.mxu0 0
      %3573 = vmatprep.subr.bf16.mxu0 0
      %3574 = vmatpush1.bf16.msra.mxu0 0
      %3575 = vmatprep.subr.bf16.mxu0 0
      %3576 = vmatpush1.bf16.msra.mxu0 0
      %3577 = vmatprep.subr.bf16.mxu0 0
      %3578 = vmatpush1.bf16.msra.mxu0 0
      %3579 = vmatprep.subr.bf16.mxu0 0
      %3580 = vmatpush1.bf16.msra.mxu0 0
      %3581 = vmatprep.mubr.bf16.mxu0 0
      %3582 = vmatmul.mubr.bf16.gmra.mrb[0].mxu0 %v3493
      %v3583 = vpop.f32.mrb[0].mxu0
      %v3584 = vadd.f32 0.0, %v3583
      %v3585 = vpop.f32.mrb[0].mxu0
      %v3586 = vpop.f32.mrb[0].mxu0
      %v3587 = vadd.f32 0.0, %v3586
      %v3588 = vpop.f32.mrb[0].mxu0
      %3589 = vmatprep.mubr.bf16.mxu0 0
      %3590 = vmatmul.mubr.bf16.gmra.mrb[0].mxu0 %v3496
      %v3591 = vpop.f32.mrb[0].mxu0
      %v3592 = vadd.f32 0.0, %v3591
      %v3593 = vpop.f32.mrb[0].mxu0
      %v3594 = vpop.f32.mrb[0].mxu0
      %v3595 = vadd.f32 0.0, %v3594
      %v3596 = vpop.f32.mrb[0].mxu0
      %3597 = vmatprep.mubr.bf16.mxu0 0
      %3598 = vmatmul.mubr.bf16.gmra.mrb[0].mxu0 %v3499
      %v3599 = vpop.f32.mrb[0].mxu0
      %v3600 = vadd.f32 0.0, %v3599
      %v3601 = vpop.f32.mrb[0].mxu0
      %v3602 = vpop.f32.mrb[0].mxu0
      %v3603 = vadd.f32 0.0, %v3602
      %v3604 = vpop.f32.mrb[0].mxu0
      %3605 = vmatprep.mubr.bf16.mxu0 0
      %3606 = vmatmul.mubr.bf16.gmra.mrb[0].mxu0 %v3502
      %v3607 = vpop.f32.mrb[0].mxu0
      %v3608 = vadd.f32 0.0, %v3607
      %v3609 = vpop.f32.mrb[0].mxu0
      %v3610 = vpop.f32.mrb[0].mxu0
      %v3611 = vadd.f32 0.0, %v3610
      %v3612 = vpop.f32.mrb[0].mxu0
      %3613 = vmatprep.mubr.bf16.mxu0 0
      %3614 = vmatmul.mubr.bf16.gmra.mrb[0].mxu0 %v3505
      %v3615 = vpop.f32.mrb[0].mxu0
      %v3616 = vadd.f32 0.0, %v3615
      %v3617 = vpop.f32.mrb[0].mxu0
      %v3618 = vpop.f32.mrb[0].mxu0
      %v3619 = vadd.f32 0.0, %v3618
      %v3620 = vpop.f32.mrb[0].mxu0
      %3621 = vmatprep.mubr.bf16.mxu0 0
      %3622 = vmatmul.mubr.bf16.gmra.mrb[0].mxu0 %v3508
      %v3623 = vpop.f32.mrb[0].mxu0
      %v3624 = vadd.f32 0.0, %v3623
      %v3625 = vpop.f32.mrb[0].mxu0
      %v3626 = vpop.f32.mrb[0].mxu0
      %v3627 = vadd.f32 0.0, %v3626
      %v3628 = vpop.f32.mrb[0].mxu0
      %3629 = vmatprep.mubr.bf16.mxu0 0
      %3630 = vmatmul.mubr.bf16.gmra.mrb[0].mxu0 %v3511
      %v3631 = vpop.f32.mrb[0].mxu0
      %v3632 = vadd.f32 0.0, %v3631
      %v3633 = vpop.f32.mrb[0].mxu0
      %v3634 = vpop.f32.mrb[0].mxu0
      %v3635 = vadd.f32 0.0, %v3634
      %v3636 = vpop.f32.mrb[0].mxu0
      %3637 = vmatprep.mubr.bf16.mxu0 0
      %3638 = vmatmul.mubr.bf16.gmra.mrb[0].mxu0 %v3514
      %v3639 = vpop.f32.mrb[0].mxu0
      %v3640 = vadd.f32 0.0, %v3639
      %v3641 = vpop.f32.mrb[0].mxu0
      %v3642 = vpop.f32.mrb[0].mxu0
      %v3643 = vadd.f32 0.0, %v3642
      %v3644 = vpop.f32.mrb[0].mxu0
      %3645 = vmatprep.mubr.bf16.mxu0 0
      %3646 = vmatmul.mubr.bf16.gmra.mrb[0].mxu0 %v3517
      %v3647 = vpop.f32.mrb[0].mxu0
      %v3648 = vadd.f32 0.0, %v3647
      %v3649 = vpop.f32.mrb[0].mxu0
      %v3650 = vpop.f32.mrb[0].mxu0
      %v3651 = vadd.f32 0.0, %v3650
      %v3652 = vpop.f32.mrb[0].mxu0
      %3653 = vmatprep.mubr.bf16.mxu0 0
      %3654 = vmatmul.mubr.bf16.gmra.mrb[0].mxu0 %v3520
      %v3655 = vpop.f32.mrb[0].mxu0
      %v3656 = vadd.f32 0.0, %v3655
      %v3657 = vpop.f32.mrb[0].mxu0
      %v3658 = vpop.f32.mrb[0].mxu0
      %v3659 = vadd.f32 0.0, %v3658
      %v3660 = vpop.f32.mrb[0].mxu0
      %3661 = vmatprep.mubr.bf16.mxu0 0
      %3662 = vmatmul.mubr.bf16.gmra.mrb[0].mxu0 %v3523
      %v3663 = vpop.f32.mrb[0].mxu0
      %v3664 = vadd.f32 0.0, %v3663
      %v3665 = vpop.f32.mrb[0].mxu0
      %v3666 = vpop.f32.mrb[0].mxu0
      %v3667 = vadd.f32 0.0, %v3666
      %v3668 = vpop.f32.mrb[0].mxu0
      %3669 = vmatprep.mubr.bf16.mxu0 0
      %3670 = vmatmul.mubr.bf16.gmra.mrb[0].mxu0 %v3526
      %v3671 = vpop.f32.mrb[0].mxu0
      %v3672 = vadd.f32 0.0, %v3671
      %v3673 = vpop.f32.mrb[0].mxu0
      %v3674 = vpop.f32.mrb[0].mxu0
      %v3675 = vadd.f32 0.0, %v3674
      %v3676 = vpop.f32.mrb[0].mxu0
      %3677 = vmatprep.mubr.bf16.mxu0 0
      %3678 = vmatmul.mubr.bf16.gmra.mrb[0].mxu0 %v3529
      %v3679 = vpop.f32.mrb[0].mxu0
      %v3680 = vadd.f32 0.0, %v3679
      %v3681 = vpop.f32.mrb[0].mxu0
      %v3682 = vpop.f32.mrb[0].mxu0
      %v3683 = vadd.f32 0.0, %v3682
      %v3684 = vpop.f32.mrb[0].mxu0
      %3685 = vmatprep.mubr.bf16.mxu0 0
      %3686 = vmatmul.mubr.bf16.gmra.mrb[0].mxu0 %v3532
      %v3687 = vpop.f32.mrb[0].mxu0
      %v3688 = vadd.f32 0.0, %v3687
      %v3689 = vpop.f32.mrb[0].mxu0
      %v3690 = vpop.f32.mrb[0].mxu0
      %v3691 = vadd.f32 0.0, %v3690
      %v3692 = vpop.f32.mrb[0].mxu0
      %3693 = vmatprep.mubr.bf16.mxu0 0
      %3694 = vmatmul.mubr.bf16.gmra.mrb[0].mxu0 %v3535
      %v3695 = vpop.f32.mrb[0].mxu0
      %v3696 = vadd.f32 0.0, %v3695
      %v3697 = vpop.f32.mrb[0].mxu0
      %v3698 = vpop.f32.mrb[0].mxu0
      %v3699 = vadd.f32 0.0, %v3698
      %v3700 = vpop.f32.mrb[0].mxu0
      %3701 = vmatprep.mubr.bf16.mxu0 0
      %3702 = vmatmul.mubr.bf16.gmra.mrb[0].mxu0 %v3538
      %v3703 = vpop.f32.mrb[0].mxu0
      %v3704 = vadd.f32 0.0, %v3703
      %v3705 = vpop.f32.mrb[0].mxu0
      %v3706 = vpop.f32.mrb[0].mxu0
      %v3707 = vadd.f32 0.0, %v3706
      %v3708 = vpop.f32.mrb[0].mxu0
      %3709 = vmatprep.mubr.bf16.mxu0 0
      %3710 = vmatmul.mubr.bf16.gmra.mrb[0].mxu0 %v3541
      %v3711 = vpop.f32.mrb[0].mxu0
      %v3712 = vadd.f32 0.0, %v3711
      %v3713 = vpop.f32.mrb[0].mxu0
      %v3714 = vpop.f32.mrb[0].mxu0
      %v3715 = vadd.f32 0.0, %v3714
      %v3716 = vpop.f32.mrb[0].mxu0
      %3717 = vmatprep.mubr.bf16.mxu0 0
      %3718 = vmatmul.mubr.bf16.gmra.mrb[0].mxu0 %v3544
      %v3719 = vpop.f32.mrb[0].mxu0
      %v3720 = vadd.f32 0.0, %v3719
      %v3721 = vpop.f32.mrb[0].mxu0
      %v3722 = vpop.f32.mrb[0].mxu0
      %v3723 = vadd.f32 0.0, %v3722
      %v3724 = vpop.f32.mrb[0].mxu0
      %3725 = vdwg.mxu0
      %v3726 = vadd.f32 %v3412, %v3584
      %v3727 = vadd.f32 %v3413, %v3587
      %v3728 = vadd.f32 %v3414, %v3592
      %v3729 = vadd.f32 %v3415, %v3595
      %v3730 = vadd.f32 %v3416, %v3600
      %v3731 = vadd.f32 %v3417, %v3603
      %v3732 = vadd.f32 %v3418, %v3608
      %v3733 = vadd.f32 %v3419, %v3611
      %v3734 = vadd.f32 %v3420, %v3616
      %v3735 = vadd.f32 %v3421, %v3619
      %v3736 = vadd.f32 %v3422, %v3624
      %v3737 = vadd.f32 %v3423, %v3627
      %v3738 = vadd.f32 %v3424, %v3632
      %v3739 = vadd.f32 %v3425, %v3635
      %v3740 = vadd.f32 %v3426, %v3640
      %v3741 = vadd.f32 %v3427, %v3643
      %v3742 = vadd.f32 %v3428, %v3648
      %v3743 = vadd.f32 %v3429, %v3651
      %v3744 = vadd.f32 %v3430, %v3656
      %v3745 = vadd.f32 %v3431, %v3659
      %v3746 = vadd.f32 %v3432, %v3664
      %v3747 = vadd.f32 %v3433, %v3667
      %v3748 = vadd.f32 %v3434, %v3672
      %v3749 = vadd.f32 %v3435, %v3675
      %v3750 = vadd.f32 %v3436, %v3680
      %v3751 = vadd.f32 %v3437, %v3683
      %v3752 = vadd.f32 %v3438, %v3688
      %v3753 = vadd.f32 %v3439, %v3691
      %v3754 = vadd.f32 %v3440, %v3696
      %v3755 = vadd.f32 %v3441, %v3699
      %v3756 = vadd.f32 %v3442, %v3704
      %v3757 = vadd.f32 %v3443, %v3707
      %v3758 = vadd.f32 %v3444, %v3712
      %v3759 = vadd.f32 %v3445, %v3715
      %v3760 = vadd.f32 %v3446, %v3720
      %v3761 = vadd.f32 %v3447, %v3723
      %v3762 = vld [vmem:[%s2] sm:$0xff]
      %v3763 = vld [vmem:[%s2 + $0x8] sm:$0xff]
      %v3764 = vld [vmem:[%s2 + $0x10] sm:$0xff]
      %v3765 = vld [vmem:[%s2 + $0x18] sm:$0xff]
      %v3766 = vld [vmem:[%s2 + $0x20] sm:$0xff]
      %v3767 = vld [vmem:[%s2 + $0x28] sm:$0xff]
      %v3768 = vld [vmem:[%s2 + $0x30] sm:$0xff]
      %v3769 = vld [vmem:[%s2 + $0x38] sm:$0xff]
      %v3770 = vld [vmem:[%s2 + $0x40] sm:$0xff]
      %v3771 = vld [vmem:[%s2 + $0x48] sm:$0xff]
      %v3772 = vld [vmem:[%s2 + $0x50] sm:$0xff]
      %v3773 = vld [vmem:[%s2 + $0x58] sm:$0xff]
      %v3774 = vld [vmem:[%s2 + $0x60] sm:$0xff]
      %v3775 = vld [vmem:[%s2 + $0x68] sm:$0xff]
      %v3776 = vld [vmem:[%s2 + $0x70] sm:$0xff]
      %v3777 = vld [vmem:[%s2 + $0x78] sm:$0xff]
      %v3778 = vld [vmem:[%s2 + $0x80] sm:$0xff]
      %v3779 = vld [vmem:[%s2 + $0x88] sm:$0xff]
      %v3780 = vld [vmem:[%s2 + $0x90] sm:$0xff]
      %v3781 = vld [vmem:[%s2 + $0x98] sm:$0xff]
      %v3782 = vld [vmem:[%s2 + $0xa0] sm:$0xff]
      %v3783 = vld [vmem:[%s2 + $0xa8] sm:$0xff]
      %v3784 = vld [vmem:[%s2 + $0xb0] sm:$0xff]
      %v3785 = vld [vmem:[%s2 + $0xb8] sm:$0xff]
      %v3786 = vld [vmem:[%s2 + $0xc0] sm:$0xff]
      %v3787 = vld [vmem:[%s2 + $0xc8] sm:$0xff]
      %v3788 = vld [vmem:[%s2 + $0xd0] sm:$0xff]
      %v3789 = vld [vmem:[%s2 + $0xd8] sm:$0xff]
      %v3790 = vld [vmem:[%s2 + $0xe0] sm:$0xff]
      %v3791 = vld [vmem:[%s2 + $0xe8] sm:$0xff]
      %v3792 = vld [vmem:[%s2 + $0xf0] sm:$0xff]
      %v3793 = vld [vmem:[%s2 + $0xf8] sm:$0xff]
      %v3794 = vld [vmem:[%s2 + $0x100] sm:$0xff]
      %v3795 = vld [vmem:[%s2 + $0x108] sm:$0xff]
      %v3796 = vld [vmem:[%s2 + $0x110] sm:$0xff]
      %v3797 = vld [vmem:[%s2 + $0x118] sm:$0x3f]
      %3799 = vset.pattern.permute.xlu0 0
      %3800 = vperm.xlu0 %3799, %v3762
      %v3801 = vpop.permute.xlu0 %3800
      %3804 = vset.pattern.permute.xlu0 0
      %3805 = vperm.xlu0 %3804, %v3763
      %v3806 = vpop.permute.xlu0 %3805
      %3809 = vset.pattern.permute.xlu0 0
      %3810 = vperm.xlu0 %3809, %v3764
      %v3811 = vpop.permute.xlu0 %3810
      %3814 = vset.pattern.permute.xlu0 0
      %3815 = vperm.xlu0 %3814, %v3765
      %v3816 = vpop.permute.xlu0 %3815
      %3819 = vset.pattern.permute.xlu0 0
      %3820 = vperm.xlu0 %3819, %v3766
      %v3821 = vpop.permute.xlu0 %3820
      %3824 = vset.pattern.permute.xlu0 0
      %3825 = vperm.xlu0 %3824, %v3767
      %v3826 = vpop.permute.xlu0 %3825
      %3829 = vset.pattern.permute.xlu0 0
      %3830 = vperm.xlu0 %3829, %v3768
      %v3831 = vpop.permute.xlu0 %3830
      %3834 = vset.pattern.permute.xlu0 0
      %3835 = vperm.xlu0 %3834, %v3769
      %v3836 = vpop.permute.xlu0 %3835
      %3839 = vset.pattern.permute.xlu0 0
      %3840 = vperm.xlu0 %3839, %v3770
      %v3841 = vpop.permute.xlu0 %3840
      %3844 = vset.pattern.permute.xlu0 0
      %3845 = vperm.xlu0 %3844, %v3771
      %v3846 = vpop.permute.xlu0 %3845
      %3849 = vset.pattern.permute.xlu0 0
      %3850 = vperm.xlu0 %3849, %v3772
      %v3851 = vpop.permute.xlu0 %3850
      %3854 = vset.pattern.permute.xlu0 0
      %3855 = vperm.xlu0 %3854, %v3773
      %v3856 = vpop.permute.xlu0 %3855
      %3859 = vset.pattern.permute.xlu0 0
      %3860 = vperm.xlu0 %3859, %v3774
      %v3861 = vpop.permute.xlu0 %3860
      %3864 = vset.pattern.permute.xlu0 0
      %3865 = vperm.xlu0 %3864, %v3775
      %v3866 = vpop.permute.xlu0 %3865
      %3869 = vset.pattern.permute.xlu0 0
      %3870 = vperm.xlu0 %3869, %v3776
      %v3871 = vpop.permute.xlu0 %3870
      %3874 = vset.pattern.permute.xlu0 0
      %3875 = vperm.xlu0 %3874, %v3777
      %v3876 = vpop.permute.xlu0 %3875
      %3879 = vset.pattern.permute.xlu0 0
      %3880 = vperm.xlu0 %3879, %v3778
      %v3881 = vpop.permute.xlu0 %3880
      %3884 = vset.pattern.permute.xlu0 0
      %3885 = vperm.xlu0 %3884, %v3779
      %v3886 = vpop.permute.xlu0 %3885
      %3889 = vset.pattern.permute.xlu0 0
      %3890 = vperm.xlu0 %3889, %v3780
      %v3891 = vpop.permute.xlu0 %3890
      %3894 = vset.pattern.permute.xlu0 0
      %3895 = vperm.xlu0 %3894, %v3781
      %v3896 = vpop.permute.xlu0 %3895
      %3899 = vset.pattern.permute.xlu0 0
      %3900 = vperm.xlu0 %3899, %v3782
      %v3901 = vpop.permute.xlu0 %3900
      %3904 = vset.pattern.permute.xlu0 0
      %3905 = vperm.xlu0 %3904, %v3783
      %v3906 = vpop.permute.xlu0 %3905
      %3909 = vset.pattern.permute.xlu0 0
      %3910 = vperm.xlu0 %3909, %v3784
      %v3911 = vpop.permute.xlu0 %3910
      %3914 = vset.pattern.permute.xlu0 0
      %3915 = vperm.xlu0 %3914, %v3785
      %v3916 = vpop.permute.xlu0 %3915
      %3919 = vset.pattern.permute.xlu0 0
      %3920 = vperm.xlu0 %3919, %v3786
      %v3921 = vpop.permute.xlu0 %3920
      %3924 = vset.pattern.permute.xlu0 0
      %3925 = vperm.xlu0 %3924, %v3787
      %v3926 = vpop.permute.xlu0 %3925
      %3929 = vset.pattern.permute.xlu0 0
      %3930 = vperm.xlu0 %3929, %v3788
      %v3931 = vpop.permute.xlu0 %3930
      %3934 = vset.pattern.permute.xlu0 0
      %3935 = vperm.xlu0 %3934, %v3789
      %v3936 = vpop.permute.xlu0 %3935
      %3939 = vset.pattern.permute.xlu0 0
      %3940 = vperm.xlu0 %3939, %v3790
      %v3941 = vpop.permute.xlu0 %3940
      %3944 = vset.pattern.permute.xlu0 0
      %3945 = vperm.xlu0 %3944, %v3791
      %v3946 = vpop.permute.xlu0 %3945
      %3949 = vset.pattern.permute.xlu0 0
      %3950 = vperm.xlu0 %3949, %v3792
      %v3951 = vpop.permute.xlu0 %3950
      %3954 = vset.pattern.permute.xlu0 0
      %3955 = vperm.xlu0 %3954, %v3793
      %v3956 = vpop.permute.xlu0 %3955
      %3959 = vset.pattern.permute.xlu0 0
      %3960 = vperm.xlu0 %3959, %v3794
      %v3961 = vpop.permute.xlu0 %3960
      %3964 = vset.pattern.permute.xlu0 0
      %3965 = vperm.xlu0 %3964, %v3795
      %v3966 = vpop.permute.xlu0 %3965
      %3969 = vset.pattern.permute.xlu0 0
      %3970 = vperm.xlu0 %3969, %v3796
      %v3971 = vpop.permute.xlu0 %3970
      %3974 = vset.pattern.permute.xlu0 0
      %3975 = vperm.xlu0 %3974, %v3797
      %v3976 = vpop.permute.xlu0 %3975
      %v3978 = vmul.f32 %v3726, %v3801
      %v3979 = vmul.f32 %v3727, %v3806
      %v3980 = vmul.f32 %v3728, %v3811
      %v3981 = vmul.f32 %v3729, %v3816
      %v3982 = vmul.f32 %v3730, %v3821
      %v3983 = vmul.f32 %v3731, %v3826
      %v3984 = vmul.f32 %v3732, %v3831
      %v3985 = vmul.f32 %v3733, %v3836
      %v3986 = vmul.f32 %v3734, %v3841
      %v3987 = vmul.f32 %v3735, %v3846
      %v3988 = vmul.f32 %v3736, %v3851
      %v3989 = vmul.f32 %v3737, %v3856
      %v3990 = vmul.f32 %v3738, %v3861
      %v3991 = vmul.f32 %v3739, %v3866
      %v3992 = vmul.f32 %v3740, %v3871
      %v3993 = vmul.f32 %v3741, %v3876
      %v3994 = vmul.f32 %v3742, %v3881
      %v3995 = vmul.f32 %v3743, %v3886
      %v3996 = vmul.f32 %v3744, %v3891
      %v3997 = vmul.f32 %v3745, %v3896
      %v3998 = vmul.f32 %v3746, %v3901
      %v3999 = vmul.f32 %v3747, %v3906
      %v4000 = vmul.f32 %v3748, %v3911
      %v4001 = vmul.f32 %v3749, %v3916
      %v4002 = vmul.f32 %v3750, %v3921
      %v4003 = vmul.f32 %v3751, %v3926
      %v4004 = vmul.f32 %v3752, %v3931
      %v4005 = vmul.f32 %v3753, %v3936
      %v4006 = vmul.f32 %v3754, %v3941
      %v4007 = vmul.f32 %v3755, %v3946
      %v4008 = vmul.f32 %v3756, %v3951
      %v4009 = vmul.f32 %v3757, %v3956
      %v4010 = vmul.f32 %v3758, %v3961
      %v4011 = vmul.f32 %v3759, %v3966
      %v4012 = vmul.f32 %v3760, %v3971
      %v4013 = vmul.f32 %v3761, %v3976
      %v4014 = vadd.f32 %v3978, %v3979
      %v4015 = vadd.f32 %v4014, %v3980
      %v4016 = vadd.f32 %v4015, %v3981
      %v4017 = vadd.f32 %v4016, %v3982
      %v4018 = vadd.f32 %v4017, %v3983
      %v4019 = vadd.f32 %v4018, %v3984
      %v4020 = vadd.f32 %v4019, %v3985
      %v4021 = vadd.f32 %v4020, %v3986
      %v4022 = vadd.f32 %v4021, %v3987
      %v4023 = vadd.f32 %v4022, %v3988
      %v4024 = vadd.f32 %v4023, %v3989
      %v4025 = vadd.f32 %v4024, %v3990
      %v4026 = vadd.f32 %v4025, %v3991
      %v4027 = vadd.f32 %v4026, %v3992
      %v4028 = vadd.f32 %v4027, %v3993
      %v4029 = vadd.f32 %v4028, %v3994
      %v4030 = vadd.f32 %v4029, %v3995
      %v4031 = vadd.f32 %v4030, %v3996
      %v4032 = vadd.f32 %v4031, %v3997
      %v4033 = vadd.f32 %v4032, %v3998
      %v4034 = vadd.f32 %v4033, %v3999
      %v4035 = vadd.f32 %v4034, %v4000
      %v4036 = vadd.f32 %v4035, %v4001
      %v4037 = vadd.f32 %v4036, %v4002
      %v4038 = vadd.f32 %v4037, %v4003
      %v4039 = vadd.f32 %v4038, %v4004
      %v4040 = vadd.f32 %v4039, %v4005
      %v4041 = vadd.f32 %v4040, %v4006
      %v4042 = vadd.f32 %v4041, %v4007
      %v4043 = vadd.f32 %v4042, %v4008
      %v4044 = vadd.f32 %v4043, %v4009
      %v4045 = vadd.f32 %v4044, %v4010
      %v4046 = vadd.f32 %v4045, %v4011
      %v4047 = vadd.f32 %v4046, %v4012
      %vm4048 = vcmask 1045504
      %v4049 = vsel %vm4048, %v4013, 0.0
      %v4050 = vadd.f32 %v4047, %v4049
      %v4051 = vrot.slane %v4050, 4
      %v4052 = vadd.f32 %v4050, %v4051
      %v4053 = vrot.slane %v4052, 2
      %v4054 = vadd.f32 %v4052, %v4053
      %v4055 = vrot.slane %v4054, 1
      %v4056 = vadd.f32 %v4054, %v4055
      %4057 = vst [vmem:[%s199] sm:$0x1] %v4056
      %v4058 = vmul.f32 %v3978, %v3726
      %v4059 = vmul.f32 %v3979, %v3727
      %v4060 = vmul.f32 %v3980, %v3728
      %v4061 = vmul.f32 %v3981, %v3729
      %v4062 = vmul.f32 %v3982, %v3730
      %v4063 = vmul.f32 %v3983, %v3731
      %v4064 = vmul.f32 %v3984, %v3732
      %v4065 = vmul.f32 %v3985, %v3733
      %v4066 = vmul.f32 %v3986, %v3734
      %v4067 = vmul.f32 %v3987, %v3735
      %v4068 = vmul.f32 %v3988, %v3736
      %v4069 = vmul.f32 %v3989, %v3737
      %v4070 = vmul.f32 %v3990, %v3738
      %v4071 = vmul.f32 %v3991, %v3739
      %v4072 = vmul.f32 %v3992, %v3740
      %v4073 = vmul.f32 %v3993, %v3741
      %v4074 = vmul.f32 %v3994, %v3742
      %v4075 = vmul.f32 %v3995, %v3743
      %v4076 = vmul.f32 %v3996, %v3744
      %v4077 = vmul.f32 %v3997, %v3745
      %v4078 = vmul.f32 %v3998, %v3746
      %v4079 = vmul.f32 %v3999, %v3747
      %v4080 = vmul.f32 %v4000, %v3748
      %v4081 = vmul.f32 %v4001, %v3749
      %v4082 = vmul.f32 %v4002, %v3750
      %v4083 = vmul.f32 %v4003, %v3751
      %v4084 = vmul.f32 %v4004, %v3752
      %v4085 = vmul.f32 %v4005, %v3753
      %v4086 = vmul.f32 %v4006, %v3754
      %v4087 = vmul.f32 %v4007, %v3755
      %v4088 = vmul.f32 %v4008, %v3756
      %v4089 = vmul.f32 %v4009, %v3757
      %v4090 = vmul.f32 %v4010, %v3758
      %v4091 = vmul.f32 %v4011, %v3759
      %v4092 = vmul.f32 %v4012, %v3760
      %v4093 = vmul.f32 %v4013, %v3761
      %v4094 = vadd.f32 %v4058, %v4059
      %v4095 = vadd.f32 %v4094, %v4060
      %v4096 = vadd.f32 %v4095, %v4061
      %v4097 = vadd.f32 %v4096, %v4062
      %v4098 = vadd.f32 %v4097, %v4063
      %v4099 = vadd.f32 %v4098, %v4064
      %v4100 = vadd.f32 %v4099, %v4065
      %v4101 = vadd.f32 %v4100, %v4066
      %v4102 = vadd.f32 %v4101, %v4067
      %v4103 = vadd.f32 %v4102, %v4068
      %v4104 = vadd.f32 %v4103, %v4069
      %v4105 = vadd.f32 %v4104, %v4070
      %v4106 = vadd.f32 %v4105, %v4071
      %v4107 = vadd.f32 %v4106, %v4072
      %v4108 = vadd.f32 %v4107, %v4073
      %v4109 = vadd.f32 %v4108, %v4074
      %v4110 = vadd.f32 %v4109, %v4075
      %v4111 = vadd.f32 %v4110, %v4076
      %v4112 = vadd.f32 %v4111, %v4077
      %v4113 = vadd.f32 %v4112, %v4078
      %v4114 = vadd.f32 %v4113, %v4079
      %v4115 = vadd.f32 %v4114, %v4080
      %v4116 = vadd.f32 %v4115, %v4081
      %v4117 = vadd.f32 %v4116, %v4082
      %v4118 = vadd.f32 %v4117, %v4083
      %v4119 = vadd.f32 %v4118, %v4084
      %v4120 = vadd.f32 %v4119, %v4085
      %v4121 = vadd.f32 %v4120, %v4086
      %v4122 = vadd.f32 %v4121, %v4087
      %v4123 = vadd.f32 %v4122, %v4088
      %v4124 = vadd.f32 %v4123, %v4089
      %v4125 = vadd.f32 %v4124, %v4090
      %v4126 = vadd.f32 %v4125, %v4091
      %v4127 = vadd.f32 %v4126, %v4092
      %v4128 = vsel %vm4048, %v4093, 0.0
      %v4129 = vadd.f32 %v4127, %v4128
      %v4130 = vrot.slane %v4129, 4
      %v4131 = vadd.f32 %v4129, %v4130
      %v4132 = vrot.slane %v4131, 2
      %v4133 = vadd.f32 %v4131, %v4132
      %v4134 = vrot.slane %v4133, 1
      %v4135 = vadd.f32 %v4133, %v4134
      %4136 = vst [vmem:[%s202] sm:$0x1] %v4135
      %p4137 = scmp.lt.s32.totalorder %s16, 1
      %s4138 = scalar_select %p4137, %s16, 1
      %s4139 = scalar_lea.vmem %s3, %s4138
      %p4140 = scmp.lt.s32.totalorder %s16, 1
      %s4141 = scalar_select %p4140, %s16, 1
      %s4142 = scalar_lea.vmem %s4, %s4141
      // Predicated region
      $region33: #{skeleton_block_forward.2} parent=31 // pred_check
        %p4143 = pneg %p102
      $region34: #{skeleton_block_forward.2} parent=31 // pred_check_branch
        %4145 = sbr.rel (%p4143) target = $region36
      $region35: #{skeleton_block_forward.2} parent=31 // pred_region
        _
      $region36: #{skeleton_block_forward.2} parent=31 // pred_fallthru
        _
      // Predicated region
      $region37: #{skeleton_block_forward.2} parent=31 // pred_check
        %p4146 = pneg %p128
      $region38: #{skeleton_block_forward.2} parent=31 // pred_check_branch
        %4148 = sbr.rel (%p4146) target = $region40
      $region39: #{skeleton_block_forward.2} parent=31 // pred_region
        _
      $region40: #{skeleton_block_forward.2} parent=31 // pred_fallthru
        _
    $region32: #{skeleton_block_forward.2} parent=5 // pred_fallthru
      _
    %p4149 = scmp.le.s32.totalorder 2, %s11
    // Predicated region
    $region41: #{skeleton_block_forward.2} parent=5 // pred_check
      %p4150 = pneg %p4149
    $region42: #{skeleton_block_forward.2} parent=5 // pred_check_branch
      %4152 = sbr.rel (%p4150) target = $region44
    $region43: #{skeleton_block_forward.2} parent=5 // pred_region
      %s4153 = ssub.s32 %s11, 2
      // Predicated region
      $region45: #{skeleton_block_forward.2} parent=43 // pred_check
        %p4154 = pneg %p108
      $region46: #{skeleton_block_forward.2} parent=43 // pred_check_branch
        %4156 = sbr.rel (%p4154) target = $region48
      $region47: #{skeleton_block_forward.2} parent=43 // pred_region
        %p4157 = scmp.lt.s32.totalorder %s17, 1
        %s4158 = scalar_select %p4157, %s17, 1
        %s4159 = scalar_lea.vmem %s3, %s4158
      $region48: #{skeleton_block_forward.2} parent=43 // pred_fallthru
        _
      // Predicated region
      $region49: #{skeleton_block_forward.2} parent=43 // pred_check
        %p4160 = pneg %p134
      $region50: #{skeleton_block_forward.2} parent=43 // pred_check_branch
        %4162 = sbr.rel (%p4160) target = $region52
      $region51: #{skeleton_block_forward.2} parent=43 // pred_region
        %p4163 = scmp.lt.s32.totalorder %s17, 1
        %s4164 = scalar_select %p4163, %s17, 1
        %s4165 = scalar_lea.vmem %s4, %s4164
      $region52: #{skeleton_block_forward.2} parent=43 // pred_fallthru
        _
    $region44: #{skeleton_block_forward.2} parent=5 // pred_fallthru
      _
  $region6: #{skeleton_block_forward.2} parent=0 // loop_footer
    %s15 = sadd.s32 1, %s11
  $region7: #{skeleton_block_forward.2} parent=0 // loop_footer_branch
    %10 = sbr.rel target = $region3
  $region8: #{skeleton_block_forward.2} parent=0 // loop_exit
    _

// kernel: skeleton_block_forward.3
$region0: #{skeleton_block_forward.3}
  #allocation0 [shape = 'u32[]', space=smem, size = 0x4, offset = 0x4, fixed_abs, tag = 'smem constant byte address 0x4 - core index']
  #allocation1 [shape = 'u32[144,128]{1,0:T(1,128)}', space=vmem, size = 0x12000, scoped, tag = 'internal scratch']
  %s0 = inlined_call_operand.vmem [shape: bf16[2,324,4], index: 0, kind: input, shape index: {}]
  %s1 = inlined_call_operand.vmem [shape: bf16[9,4,128], index: 1, kind: input, shape index: {}]
  %s2 = inlined_call_operand.vmem [shape: f32[1,128], index: 2, kind: input, shape index: {}]
  %s3 = inlined_call_operand.vmem [shape: f32[1,128], index: 3, kind: input, shape index: {}]
  %s4 = inlined_call_operand.vmem [shape: f32[2,286,128], index: 4, kind: output, shape index: {}]
  %s5 = sld [smem:[#allocation0]]
  $region49: #{skeleton_block_forward.3} parent=0
    _
  %s7 = ssub.s32 1, %s5
  %s8 = scalar_select 0, %s7, %s5
  loop: start=0, step=1, limit=4
  $region2: #{skeleton_block_forward.3} parent=0 // loop_pre_header
    _
  $region3: #{skeleton_block_forward.3} parent=0 // loop_header
    %s10 = sphi 0, %s14
    %p11 = scmp.ge.s32.totalorder %s10, 4
    %s20 = sphi 0, %s22
    %s23 = sphi 0, %s20
    %s24 = sphi 0, %s23
    %s40 = sphi 0, %s24
    %s44 = sphi 0, %s44
    %s46 = sphi 0, %s44
    %s47 = sphi 0, %s46
    %s61 = sphi 0, %s47
    %s65 = sphi 0, %s65
    %s67 = sphi 0, %s65
    %s68 = sphi 0, %s67
    %s82 = sphi 0, %s68
    %s86 = sphi 0, %s86
    %s88 = sphi 0, %s86
    %s89 = sphi 0, %s88
    %s103 = sphi 0, %s89
    %s109 = sphi 0, %s111
    %s112 = sphi 0, %s109
    %s113 = sphi 0, %s112
    %s129 = sphi 0, %s113
  $region4: #{skeleton_block_forward.3} parent=0 // loop_header_branch
    %13 = sbr.rel (%p11) target = $region8
  $region5: #{skeleton_block_forward.3} parent=0 // loop_body
    %s15 = ssub.s32 %s10, 1
    %s16 = ssub.s32 %s10, 2
    %s17 = sadd.s32 %s10, 1
    %s18 = ssub.s32 %s10, %s17
    %p19 = scmp.eq.s32.totalorder %s18, 0
    %s21 = sadd.s32 %s20, 1
    %s22 = scalar_select %p19, %s20, %s21
    %p25 = pneg %p19
    %p26 = scmp.eq.s32.totalorder %s10, 1
    %p27 = por %p25, %p26
    %p28 = scmp.ne.s32.totalorder %s20, %s23
    %p29 = scmp.eq.s32.totalorder %s10, 0
    %p30 = por %p28, %p29
    %p31 = scmp.ne.s32.totalorder %s20, %s23
    %p32 = scmp.eq.s32.totalorder %s15, 1
    %p33 = por %p31, %p32
    %p34 = scmp.ne.s32.totalorder %s23, %s24
    %p35 = scmp.eq.s32.totalorder %s15, 0
    %p36 = por %p34, %p35
    %p37 = scmp.ne.s32.totalorder %s23, %s24
    %p38 = scmp.eq.s32.totalorder %s16, 1
    %p39 = por %p37, %p38
    %p41 = scmp.ne.s32.totalorder %s24, %s40
    %p42 = scmp.eq.s32.totalorder %s16, 0
    %p43 = por %p41, %p42
    %s45 = sadd.s32 %s44, 1
    %p48 = scmp.eq.s32.totalorder %s10, 1
    %p49 = scmp.ne.s32.totalorder %s44, %s46
    %p50 = scmp.eq.s32.totalorder %s10, 0
    %p51 = por %p49, %p50
    %p52 = scmp.ne.s32.totalorder %s44, %s46
    %p53 = scmp.eq.s32.totalorder %s15, 1
    %p54 = por %p52, %p53
    %p55 = scmp.ne.s32.totalorder %s46, %s47
    %p56 = scmp.eq.s32.totalorder %s15, 0
    %p57 = por %p55, %p56
    %p58 = scmp.ne.s32.totalorder %s46, %s47
    %p59 = scmp.eq.s32.totalorder %s16, 1
    %p60 = por %p58, %p59
    %p62 = scmp.ne.s32.totalorder %s47, %s61
    %p63 = scmp.eq.s32.totalorder %s16, 0
    %p64 = por %p62, %p63
    %s66 = sadd.s32 %s65, 1
    %p69 = scmp.eq.s32.totalorder %s10, 1
    %p70 = scmp.ne.s32.totalorder %s65, %s67
    %p71 = scmp.eq.s32.totalorder %s10, 0
    %p72 = por %p70, %p71
    %p73 = scmp.ne.s32.totalorder %s65, %s67
    %p74 = scmp.eq.s32.totalorder %s15, 1
    %p75 = por %p73, %p74
    %p76 = scmp.ne.s32.totalorder %s67, %s68
    %p77 = scmp.eq.s32.totalorder %s15, 0
    %p78 = por %p76, %p77
    %p79 = scmp.ne.s32.totalorder %s67, %s68
    %p80 = scmp.eq.s32.totalorder %s16, 1
    %p81 = por %p79, %p80
    %p83 = scmp.ne.s32.totalorder %s68, %s82
    %p84 = scmp.eq.s32.totalorder %s16, 0
    %p85 = por %p83, %p84
    %s87 = sadd.s32 %s86, 1
    %p90 = scmp.eq.s32.totalorder %s10, 1
    %p91 = scmp.ne.s32.totalorder %s86, %s88
    %p92 = scmp.eq.s32.totalorder %s10, 0
    %p93 = por %p91, %p92
    %p94 = scmp.ne.s32.totalorder %s86, %s88
    %p95 = scmp.eq.s32.totalorder %s15, 1
    %p96 = por %p94, %p95
    %p97 = scmp.ne.s32.totalorder %s88, %s89
    %p98 = scmp.eq.s32.totalorder %s15, 0
    %p99 = por %p97, %p98
    %p100 = scmp.ne.s32.totalorder %s88, %s89
    %p101 = scmp.eq.s32.totalorder %s16, 1
    %p102 = por %p100, %p101
    %p104 = scmp.ne.s32.totalorder %s89, %s103
    %p105 = scmp.eq.s32.totalorder %s16, 0
    %p106 = por %p104, %p105
    %s107 = ssub.s32 %s10, %s17
    %p108 = scmp.eq.s32.totalorder %s107, 0
    %s110 = sadd.s32 %s109, 1
    %s111 = scalar_select %p108, %s109, %s110
    %p114 = pneg %p108
    %p115 = scmp.eq.s32.totalorder %s10, 1
    %p116 = por %p114, %p115
    %p117 = scmp.ne.s32.totalorder %s109, %s112
    %p118 = scmp.eq.s32.totalorder %s10, 0
    %p119 = por %p117, %p118
    %p120 = scmp.ne.s32.totalorder %s109, %s112
    %p121 = scmp.eq.s32.totalorder %s15, 1
    %p122 = por %p120, %p121
    %p123 = scmp.ne.s32.totalorder %s112, %s113
    %p124 = scmp.eq.s32.totalorder %s15, 0
    %p125 = por %p123, %p124
    %p126 = scmp.ne.s32.totalorder %s112, %s113
    %p127 = scmp.eq.s32.totalorder %s16, 1
    %p128 = por %p126, %p127
    %p130 = scmp.ne.s32.totalorder %s113, %s129
    %p131 = scmp.eq.s32.totalorder %s16, 0
    %p132 = por %p130, %p131
    %p133 = scmp.le.s32.totalorder 1, %s10
    %p134 = scmp.lt.s32.totalorder %s10, 3
    %p135 = pnand %p133, %p134
    %p136 = pneg %p135
    // Predicated region
    $region9: #{skeleton_block_forward.3} parent=5 // pred_check
      _
    $region10: #{skeleton_block_forward.3} parent=5 // pred_check_branch
      %138 = sbr.rel (%p135) target = $region12
    $region11: #{skeleton_block_forward.3} parent=5 // pred_region
      %s139 = ssub.s32 %s10, 1
      // Predicated region
      $region13: #{skeleton_block_forward.3} parent=11 // pred_check
        %p140 = pneg %p57
      $region14: #{skeleton_block_forward.3} parent=11 // pred_check_branch
        %142 = sbr.rel (%p140) target = $region16
      $region15: #{skeleton_block_forward.3} parent=11 // pred_region
        _
      $region16: #{skeleton_block_forward.3} parent=11 // pred_fallthru
        _
      // Predicated region
      $region17: #{skeleton_block_forward.3} parent=11 // pred_check
        %p143 = pneg %p78
      $region18: #{skeleton_block_forward.3} parent=11 // pred_check_branch
        %145 = sbr.rel (%p143) target = $region20
      $region19: #{skeleton_block_forward.3} parent=11 // pred_region
        _
      $region20: #{skeleton_block_forward.3} parent=11 // pred_fallthru
        _
      // Predicated region
      $region21: #{skeleton_block_forward.3} parent=11 // pred_check
        %p146 = pneg %p99
      $region22: #{skeleton_block_forward.3} parent=11 // pred_check_branch
        %148 = sbr.rel (%p146) target = $region24
      $region23: #{skeleton_block_forward.3} parent=11 // pred_region
        _
      $region24: #{skeleton_block_forward.3} parent=11 // pred_fallthru
        _
    $region12: #{skeleton_block_forward.3} parent=5 // pred_fallthru
      _
    %p149 = scmp.lt.s32.totalorder %s10, 2
    // Predicated region
    $region25: #{skeleton_block_forward.3} parent=5 // pred_check
      %p150 = pneg %p149
    $region26: #{skeleton_block_forward.3} parent=5 // pred_check_branch
      %152 = sbr.rel (%p150) target = $region28
    $region27: #{skeleton_block_forward.3} parent=5 // pred_region
      // Predicated region
      $region29: #{skeleton_block_forward.3} parent=27 // pred_check
        %p153 = pneg %p30
      $region30: #{skeleton_block_forward.3} parent=27 // pred_check_branch
        %155 = sbr.rel (%p153) target = $region32
      $region31: #{skeleton_block_forward.3} parent=27 // pred_region
        %p156 = scmp.lt.s32.totalorder %s10, 1
        %s157 = scalar_select %p156, %s10, 1
        %s158 = smul.addr %s157, 41
        %s159 = smul.addr %s158, 4
        %s160 = scalar_lea.vmem %s0, %s159
      $region32: #{skeleton_block_forward.3} parent=27 // pred_fallthru
        _
    $region28: #{skeleton_block_forward.3} parent=5 // pred_fallthru
      _
    %p161 = scmp.le.s32.totalorder 1, %s10
    %p162 = scmp.lt.s32.totalorder %s10, 3
    %p163 = pnand %p161, %p162
    %p164 = pneg %p163
    // Predicated region
    $region33: #{skeleton_block_forward.3} parent=5 // pred_check
      _
    $region34: #{skeleton_block_forward.3} parent=5 // pred_check_branch
      %166 = sbr.rel (%p163) target = $region36
    $region35: #{skeleton_block_forward.3} parent=5 // pred_region
      %s167 = ssub.s32 %s10, 1
      %p168 = scmp.lt.s32.totalorder %s15, 1
      %s169 = scalar_select %p168, %s15, 1
      %s170 = smul.addr %s169, 41
      %s171 = smul.addr %s170, 4
      %s172 = scalar_lea.vmem %s0, %s171
      %p173 = pneg %p36
      %p174 = pneg %p33
      %p175 = pneg %p57
      %p176 = pneg %p54
      %p177 = pneg %p78
      %p178 = pneg %p75
      %p179 = pneg %p99
      %p180 = pneg %p96
      %p181 = pneg %p125
      %p182 = pneg %p122
      %p183 = scmp.lt.s32.totalorder %s15, 1
      %s184 = scalar_select %p183, %s15, 1
      %s185 = smul.addr %s184, 36
      %s186 = smul.addr %s185, 8
      %s187 = scalar_lea.vmem %s4, %s186
      %p188 = scmp.lt.s32.totalorder %s15, 1
      %s189 = scalar_select %p188, %s15, 1
      %s190 = smul.addr %s189, 41
      %s191 = smul.addr %s190, 4
      %s192 = scalar_lea.vmem %s0, %s191
      %p193 = scmp.lt.s32.totalorder %s15, 1
      %s194 = scalar_select %p193, %s15, 1
      %s195 = smul.addr %s194, 36
      %s196 = smul.addr %s195, 8
      %s197 = scalar_lea.vmem %s4, %s196
      %v199 = vld [vmem:[%s192] sm:$0xf]
      %v200 = vld [vmem:[%s192 + $0x4] sm:$0xf]
      %v201 = vld [vmem:[%s192 + $0x8] sm:$0xf]
      %v202 = vld [vmem:[%s192 + $0xc] sm:$0xf]
      %v203 = vld [vmem:[%s192 + $0x10] sm:$0xf]
      %v204 = vld [vmem:[%s192 + $0x14] sm:$0xf]
      %v205 = vld [vmem:[%s192 + $0x18] sm:$0xf]
      %v206 = vld [vmem:[%s192 + $0x1c] sm:$0xf]
      %v207 = vld [vmem:[%s192 + $0x20] sm:$0xf]
      %v208 = vld [vmem:[%s192 + $0x24] sm:$0xf]
      %v209 = vld [vmem:[%s192 + $0x28] sm:$0xf]
      %v210 = vld [vmem:[%s192 + $0x2c] sm:$0xf]
      %v211 = vld [vmem:[%s192 + $0x30] sm:$0xf]
      %v212 = vld [vmem:[%s192 + $0x34] sm:$0xf]
      %v213 = vld [vmem:[%s192 + $0x38] sm:$0xf]
      %v214 = vld [vmem:[%s192 + $0x3c] sm:$0xf]
      %v215 = vld [vmem:[%s192 + $0x40] sm:$0xf]
      %v216 = vld [vmem:[%s192 + $0x44] sm:$0xf]
      %v217 = vld [vmem:[%s192 + $0x48] sm:$0xf]
      %v218 = vld [vmem:[%s192 + $0x4c] sm:$0xf]
      %v219 = vld [vmem:[%s192 + $0x50] sm:$0xf]
      %v220 = vld [vmem:[%s192 + $0x54] sm:$0xf]
      %v221 = vld [vmem:[%s192 + $0x58] sm:$0xf]
      %v222 = vld [vmem:[%s192 + $0x5c] sm:$0xf]
      %v223 = vld [vmem:[%s192 + $0x60] sm:$0xf]
      %v224 = vld [vmem:[%s192 + $0x64] sm:$0xf]
      %v225 = vld [vmem:[%s192 + $0x68] sm:$0xf]
      %v226 = vld [vmem:[%s192 + $0x6c] sm:$0xf]
      %v227 = vld [vmem:[%s192 + $0x70] sm:$0xf]
      %v228 = vld [vmem:[%s192 + $0x74] sm:$0xf]
      %v229 = vld [vmem:[%s192 + $0x78] sm:$0xf]
      %v230 = vld [vmem:[%s192 + $0x7c] sm:$0xf]
      %v231 = vld [vmem:[%s192 + $0x80] sm:$0xf]
      %v232 = vld [vmem:[%s192 + $0x84] sm:$0xf]
      %v233 = vld [vmem:[%s192 + $0x88] sm:$0xf]
      %v234 = vld [vmem:[%s192 + $0x8c] sm:$0x7]
      %v235 = vld [vmem:[%s1] sm:$0x3]
      %v236 = vld [vmem:[%s192 + $0x8c] sm:$0xf]
      %s237 = scalar_lea.vmem %s1, 2
      %v238 = vld [vmem:[%s237] sm:$0x3]
      %v275 = vunpack.c.l.b16 %v199
      %v276 = vunpack.c.l.b16 %v200
      %v277 = vunpack.c.l.b16 %v201
      %v278 = vunpack.c.l.b16 %v202
      %v279 = vunpack.c.l.b16 %v203
      %v280 = vunpack.c.l.b16 %v204
      %v281 = vunpack.c.l.b16 %v205
      %v282 = vunpack.c.l.b16 %v206
      %v283 = vunpack.c.l.b16 %v207
      %v284 = vunpack.c.l.b16 %v208
      %v285 = vunpack.c.l.b16 %v209
      %v286 = vunpack.c.l.b16 %v210
      %v287 = vunpack.c.l.b16 %v211
      %v288 = vunpack.c.l.b16 %v212
      %v289 = vunpack.c.l.b16 %v213
      %v290 = vunpack.c.l.b16 %v214
      %v291 = vunpack.c.l.b16 %v215
      %v292 = vunpack.c.l.b16 %v216
      %v293 = vunpack.c.l.b16 %v217
      %v294 = vunpack.c.l.b16 %v218
      %v295 = vunpack.c.l.b16 %v219
      %v296 = vunpack.c.l.b16 %v220
      %v297 = vunpack.c.l.b16 %v221
      %v298 = vunpack.c.l.b16 %v222
      %v299 = vunpack.c.l.b16 %v223
      %v300 = vunpack.c.l.b16 %v224
      %v301 = vunpack.c.l.b16 %v225
      %v302 = vunpack.c.l.b16 %v226
      %v303 = vunpack.c.l.b16 %v227
      %v304 = vunpack.c.l.b16 %v228
      %v305 = vunpack.c.l.b16 %v229
      %v306 = vunpack.c.l.b16 %v230
      %v307 = vunpack.c.l.b16 %v231
      %v308 = vunpack.c.l.b16 %v232
      %v309 = vunpack.c.l.b16 %v233
      %v310 = vunpack.c.l.b16 %v236
      %v311 = vpack.c.b16 %v276, %v275
      %v312 = vpack.c.b16 %v278, %v277
      %v313 = vpack.c.b16 %v280, %v279
      %v314 = vpack.c.b16 %v282, %v281
      %v315 = vpack.c.b16 %v284, %v283
      %v316 = vpack.c.b16 %v286, %v285
      %v317 = vpack.c.b16 %v288, %v287
      %v318 = vpack.c.b16 %v290, %v289
      %v319 = vpack.c.b16 %v292, %v291
      %v320 = vpack.c.b16 %v294, %v293
      %v321 = vpack.c.b16 %v296, %v295
      %v322 = vpack.c.b16 %v298, %v297
      %v323 = vpack.c.b16 %v300, %v299
      %v324 = vpack.c.b16 %v302, %v301
      %v325 = vpack.c.b16 %v304, %v303
      %v326 = vpack.c.b16 %v306, %v305
      %v327 = vpack.c.b16 %v308, %v307
      %v328 = vpack.c.b16 %v310, %v309
      %vm329 = vsmask.f32 7424
      %v331 = vshrl.u32 %v311, 16
      %v333 = vshll.u32 %v311, 16
      %v335 = vrot.slane %v333, 1
      %v336 = vor.u32 %v331, %v335
      %v338 = vshll.u32 %v312, 16
      %v340 = vrot.slane %v338, 1
      %v341 = vsel %vm329, %v336, %v340
      %v342 = vshrl.u32 %v312, 16
      %v344 = vor.u32 %v342, %v340
      %v346 = vshll.u32 %v313, 16
      %v348 = vrot.slane %v346, 1
      %v349 = vsel %vm329, %v344, %v348
      %v350 = vshrl.u32 %v313, 16
      %v352 = vor.u32 %v350, %v348
      %v354 = vshll.u32 %v314, 16
      %v356 = vrot.slane %v354, 1
      %v357 = vsel %vm329, %v352, %v356
      %v358 = vshrl.u32 %v314, 16
      %v360 = vor.u32 %v358, %v356
      %v362 = vshll.u32 %v315, 16
      %v364 = vrot.slane %v362, 1
      %v365 = vsel %vm329, %v360, %v364
      %v366 = vshrl.u32 %v315, 16
      %v368 = vor.u32 %v366, %v364
      %v370 = vshll.u32 %v316, 16
      %v372 = vrot.slane %v370, 1
      %v373 = vsel %vm329, %v368, %v372
      %v374 = vshrl.u32 %v316, 16
      %v376 = vor.u32 %v374, %v372
      %v378 = vshll.u32 %v317, 16
      %v380 = vrot.slane %v378, 1
      %v381 = vsel %vm329, %v376, %v380
      %v382 = vshrl.u32 %v317, 16
      %v384 = vor.u32 %v382, %v380
      %v386 = vshll.u32 %v318, 16
      %v388 = vrot.slane %v386, 1
      %v389 = vsel %vm329, %v384, %v388
      %v390 = vshrl.u32 %v318, 16
      %v392 = vor.u32 %v390, %v388
      %v394 = vshll.u32 %v319, 16
      %v396 = vrot.slane %v394, 1
      %v397 = vsel %vm329, %v392, %v396
      %v398 = vshrl.u32 %v319, 16
      %v400 = vor.u32 %v398, %v396
      %v402 = vshll.u32 %v320, 16
      %v404 = vrot.slane %v402, 1
      %v405 = vsel %vm329, %v400, %v404
      %v406 = vshrl.u32 %v320, 16
      %v408 = vor.u32 %v406, %v404
      %v410 = vshll.u32 %v321, 16
      %v412 = vrot.slane %v410, 1
      %v413 = vsel %vm329, %v408, %v412
      %v414 = vshrl.u32 %v321, 16
      %v416 = vor.u32 %v414, %v412
      %v418 = vshll.u32 %v322, 16
      %v420 = vrot.slane %v418, 1
      %v421 = vsel %vm329, %v416, %v420
      %v422 = vshrl.u32 %v322, 16
      %v424 = vor.u32 %v422, %v420
      %v426 = vshll.u32 %v323, 16
      %v428 = vrot.slane %v426, 1
      %v429 = vsel %vm329, %v424, %v428
      %v430 = vshrl.u32 %v323, 16
      %v432 = vor.u32 %v430, %v428
      %v434 = vshll.u32 %v324, 16
      %v436 = vrot.slane %v434, 1
      %v437 = vsel %vm329, %v432, %v436
      %v438 = vshrl.u32 %v324, 16
      %v440 = vor.u32 %v438, %v436
      %v442 = vshll.u32 %v325, 16
      %v444 = vrot.slane %v442, 1
      %v445 = vsel %vm329, %v440, %v444
      %v446 = vshrl.u32 %v325, 16
      %v448 = vor.u32 %v446, %v444
      %v450 = vshll.u32 %v326, 16
      %v452 = vrot.slane %v450, 1
      %v453 = vsel %vm329, %v448, %v452
      %v454 = vshrl.u32 %v326, 16
      %v456 = vor.u32 %v454, %v452
      %v458 = vshll.u32 %v327, 16
      %v460 = vrot.slane %v458, 1
      %v461 = vsel %vm329, %v456, %v460
      %v462 = vshrl.u32 %v327, 16
      %v464 = vor.u32 %v462, %v460
      %v466 = vshll.u32 %v328, 16
      %v468 = vrot.slane %v466, 1
      %v469 = vsel %vm329, %v464, %v468
      %v470 = vshrl.u32 %v328, 16
      %v472 = vor.u32 %v470, %v468
      %vm473 = vcmask 31744
      %v475 = vsel %vm473, %v341, 0
      %v478 = vsel %vm473, %v349, 0
      %v481 = vsel %vm473, %v357, 0
      %v484 = vsel %vm473, %v365, 0
      %v487 = vsel %vm473, %v373, 0
      %v490 = vsel %vm473, %v381, 0
      %v493 = vsel %vm473, %v389, 0
      %v496 = vsel %vm473, %v397, 0
      %v499 = vsel %vm473, %v405, 0
      %v502 = vsel %vm473, %v413, 0
      %v505 = vsel %vm473, %v421, 0
      %v508 = vsel %vm473, %v429, 0
      %v511 = vsel %vm473, %v437, 0
      %v514 = vsel %vm473, %v445, 0
      %v517 = vsel %vm473, %v453, 0
      %v520 = vsel %vm473, %v461, 0
      %v523 = vsel %vm473, %v469, 0
      %v526 = vsel %vm473, %v472, 0
      %vm528 = vcmask 1041408
      %v530 = vsel %vm528, %v238, 0
      %532 = vmatprep.subr.bf16.mxu0 0
      %533 = vmatpush1.bf16.msra.mxu0 %v530
      %534 = vmatprep.subr.bf16.mxu0 0
      %535 = vmatpush1.bf16.msra.mxu0 0
      %536 = vmatprep.subr.bf16.mxu0 0
      %537 = vmatpush1.bf16.msra.mxu0 0
      %538 = vmatprep.subr.bf16.mxu0 0
      %539 = vmatpush1.bf16.msra.mxu0 0
      %540 = vmatprep.subr.bf16.mxu0 0
      %541 = vmatpush1.bf16.msra.mxu0 0
      %542 = vmatprep.subr.bf16.mxu0 0
      %543 = vmatpush1.bf16.msra.mxu0 0
      %544 = vmatprep.subr.bf16.mxu0 0
      %545 = vmatpush1.bf16.msra.mxu0 0
      %546 = vmatprep.subr.bf16.mxu0 0
      %547 = vmatpush1.bf16.msra.mxu0 0
      %548 = vmatprep.subr.bf16.mxu0 0
      %549 = vmatpush1.bf16.msra.mxu0 0
      %550 = vmatprep.subr.bf16.mxu0 0
      %551 = vmatpush1.bf16.msra.mxu0 0
      %552 = vmatprep.subr.bf16.mxu0 0
      %553 = vmatpush1.bf16.msra.mxu0 0
      %554 = vmatprep.subr.bf16.mxu0 0
      %555 = vmatpush1.bf16.msra.mxu0 0
      %556 = vmatprep.subr.bf16.mxu0 0
      %557 = vmatpush1.bf16.msra.mxu0 0
      %558 = vmatprep.subr.bf16.mxu0 0
      %559 = vmatpush1.bf16.msra.mxu0 0
      %560 = vmatprep.subr.bf16.mxu0 0
      %561 = vmatpush1.bf16.msra.mxu0 0
      %562 = vmatprep.subr.bf16.mxu0 0
      %563 = vmatpush1.bf16.msra.mxu0 0
      %564 = vmatprep.mubr.bf16.mxu0 0
      %565 = vmatmul.mubr.bf16.gmra.mrb[0].mxu0 %v475
      %v566 = vpop.f32.mrb[0].mxu0
      %v567 = vadd.f32 0.0, %v566
      %v568 = vpop.f32.mrb[0].mxu0
      %v569 = vpop.f32.mrb[0].mxu0
      %v570 = vadd.f32 0.0, %v569
      %v571 = vpop.f32.mrb[0].mxu0
      %572 = vmatprep.mubr.bf16.mxu0 0
      %573 = vmatmul.mubr.bf16.gmra.mrb[0].mxu0 %v478
      %v574 = vpop.f32.mrb[0].mxu0
      %v575 = vadd.f32 0.0, %v574
      %v576 = vpop.f32.mrb[0].mxu0
      %v577 = vpop.f32.mrb[0].mxu0
      %v578 = vadd.f32 0.0, %v577
      %v579 = vpop.f32.mrb[0].mxu0
      %580 = vmatprep.mubr.bf16.mxu0 0
      %581 = vmatmul.mubr.bf16.gmra.mrb[0].mxu0 %v481
      %v582 = vpop.f32.mrb[0].mxu0
      %v583 = vadd.f32 0.0, %v582
      %v584 = vpop.f32.mrb[0].mxu0
      %v585 = vpop.f32.mrb[0].mxu0
      %v586 = vadd.f32 0.0, %v585
      %v587 = vpop.f32.mrb[0].mxu0
      %588 = vmatprep.mubr.bf16.mxu0 0
      %589 = vmatmul.mubr.bf16.gmra.mrb[0].mxu0 %v484
      %v590 = vpop.f32.mrb[0].mxu0
      %v591 = vadd.f32 0.0, %v590
      %v592 = vpop.f32.mrb[0].mxu0
      %v593 = vpop.f32.mrb[0].mxu0
      %v594 = vadd.f32 0.0, %v593
      %v595 = vpop.f32.mrb[0].mxu0
      %596 = vmatprep.mubr.bf16.mxu0 0
      %597 = vmatmul.mubr.bf16.gmra.mrb[0].mxu0 %v487
      %v598 = vpop.f32.mrb[0].mxu0
      %v599 = vadd.f32 0.0, %v598
      %v600 = vpop.f32.mrb[0].mxu0
      %v601 = vpop.f32.mrb[0].mxu0
      %v602 = vadd.f32 0.0, %v601
      %v603 = vpop.f32.mrb[0].mxu0
      %604 = vmatprep.mubr.bf16.mxu0 0
      %605 = vmatmul.mubr.bf16.gmra.mrb[0].mxu0 %v490
      %v606 = vpop.f32.mrb[0].mxu0
      %v607 = vadd.f32 0.0, %v606
      %v608 = vpop.f32.mrb[0].mxu0
      %v609 = vpop.f32.mrb[0].mxu0
      %v610 = vadd.f32 0.0, %v609
      %v611 = vpop.f32.mrb[0].mxu0
      %612 = vmatprep.mubr.bf16.mxu0 0
      %613 = vmatmul.mubr.bf16.gmra.mrb[0].mxu0 %v493
      %v614 = vpop.f32.mrb[0].mxu0
      %v615 = vadd.f32 0.0, %v614
      %v616 = vpop.f32.mrb[0].mxu0
      %v617 = vpop.f32.mrb[0].mxu0
      %v618 = vadd.f32 0.0, %v617
      %v619 = vpop.f32.mrb[0].mxu0
      %620 = vmatprep.mubr.bf16.mxu0 0
      %621 = vmatmul.mubr.bf16.gmra.mrb[0].mxu0 %v496
      %v622 = vpop.f32.mrb[0].mxu0
      %v623 = vadd.f32 0.0, %v622
      %v624 = vpop.f32.mrb[0].mxu0
      %v625 = vpop.f32.mrb[0].mxu0
      %v626 = vadd.f32 0.0, %v625
      %v627 = vpop.f32.mrb[0].mxu0
      %628 = vmatprep.mubr.bf16.mxu0 0
      %629 = vmatmul.mubr.bf16.gmra.mrb[0].mxu0 %v499
      %v630 = vpop.f32.mrb[0].mxu0
      %v631 = vadd.f32 0.0, %v630
      %v632 = vpop.f32.mrb[0].mxu0
      %v633 = vpop.f32.mrb[0].mxu0
      %v634 = vadd.f32 0.0, %v633
      %v635 = vpop.f32.mrb[0].mxu0
      %636 = vmatprep.mubr.bf16.mxu0 0
      %637 = vmatmul.mubr.bf16.gmra.mrb[0].mxu0 %v502
      %v638 = vpop.f32.mrb[0].mxu0
      %v639 = vadd.f32 0.0, %v638
      %v640 = vpop.f32.mrb[0].mxu0
      %v641 = vpop.f32.mrb[0].mxu0
      %v642 = vadd.f32 0.0, %v641
      %v643 = vpop.f32.mrb[0].mxu0
      %644 = vmatprep.mubr.bf16.mxu0 0
      %645 = vmatmul.mubr.bf16.gmra.mrb[0].mxu0 %v505
      %v646 = vpop.f32.mrb[0].mxu0
      %v647 = vadd.f32 0.0, %v646
      %v648 = vpop.f32.mrb[0].mxu0
      %v649 = vpop.f32.mrb[0].mxu0
      %v650 = vadd.f32 0.0, %v649
      %v651 = vpop.f32.mrb[0].mxu0
      %652 = vmatprep.mubr.bf16.mxu0 0
      %653 = vmatmul.mubr.bf16.gmra.mrb[0].mxu0 %v508
      %v654 = vpop.f32.mrb[0].mxu0
      %v655 = vadd.f32 0.0, %v654
      %v656 = vpop.f32.mrb[0].mxu0
      %v657 = vpop.f32.mrb[0].mxu0
      %v658 = vadd.f32 0.0, %v657
      %v659 = vpop.f32.mrb[0].mxu0
      %660 = vmatprep.mubr.bf16.mxu0 0
      %661 = vmatmul.mubr.bf16.gmra.mrb[0].mxu0 %v511
      %v662 = vpop.f32.mrb[0].mxu0
      %v663 = vadd.f32 0.0, %v662
      %v664 = vpop.f32.mrb[0].mxu0
      %v665 = vpop.f32.mrb[0].mxu0
      %v666 = vadd.f32 0.0, %v665
      %v667 = vpop.f32.mrb[0].mxu0
      %668 = vmatprep.mubr.bf16.mxu0 0
      %669 = vmatmul.mubr.bf16.gmra.mrb[0].mxu0 %v514
      %v670 = vpop.f32.mrb[0].mxu0
      %v671 = vadd.f32 0.0, %v670
      %v672 = vpop.f32.mrb[0].mxu0
      %v673 = vpop.f32.mrb[0].mxu0
      %v674 = vadd.f32 0.0, %v673
      %v675 = vpop.f32.mrb[0].mxu0
      %676 = vmatprep.mubr.bf16.mxu0 0
      %677 = vmatmul.mubr.bf16.gmra.mrb[0].mxu0 %v517
      %v678 = vpop.f32.mrb[0].mxu0
      %v679 = vadd.f32 0.0, %v678
      %v680 = vpop.f32.mrb[0].mxu0
      %v681 = vpop.f32.mrb[0].mxu0
      %v682 = vadd.f32 0.0, %v681
      %v683 = vpop.f32.mrb[0].mxu0
      %684 = vmatprep.mubr.bf16.mxu0 0
      %685 = vmatmul.mubr.bf16.gmra.mrb[0].mxu0 %v520
      %v686 = vpop.f32.mrb[0].mxu0
      %v687 = vadd.f32 0.0, %v686
      %v688 = vpop.f32.mrb[0].mxu0
      %v689 = vpop.f32.mrb[0].mxu0
      %v690 = vadd.f32 0.0, %v689
      %v691 = vpop.f32.mrb[0].mxu0
      %692 = vmatprep.mubr.bf16.mxu0 0
      %693 = vmatmul.mubr.bf16.gmra.mrb[0].mxu0 %v523
      %v694 = vpop.f32.mrb[0].mxu0
      %v695 = vadd.f32 0.0, %v694
      %v696 = vpop.f32.mrb[0].mxu0
      %v697 = vpop.f32.mrb[0].mxu0
      %v698 = vadd.f32 0.0, %v697
      %v699 = vpop.f32.mrb[0].mxu0
      %700 = vmatprep.mubr.bf16.mxu0 0
      %701 = vmatmul.mubr.bf16.gmra.mrb[0].mxu0 %v526
      %v702 = vpop.f32.mrb[0].mxu0
      %v703 = vadd.f32 0.0, %v702
      %v704 = vpop.f32.mrb[0].mxu0
      %v705 = vpop.f32.mrb[0].mxu0
      %v706 = vadd.f32 0.0, %v705
      %v707 = vpop.f32.mrb[0].mxu0
      %708 = vdwg.mxu0
      %v710 = vunpack.c.l.b16 %v234
      %v711 = vpack.c.b16 %v710, %v309
      %v712 = vsel %vm473, %v311, 0
      %v714 = vsel %vm473, %v312, 0
      %v716 = vsel %vm473, %v313, 0
      %v718 = vsel %vm473, %v314, 0
      %v720 = vsel %vm473, %v315, 0
      %v722 = vsel %vm473, %v316, 0
      %v724 = vsel %vm473, %v317, 0
      %v726 = vsel %vm473, %v318, 0
      %v728 = vsel %vm473, %v319, 0
      %v730 = vsel %vm473, %v320, 0
      %v732 = vsel %vm473, %v321, 0
      %v734 = vsel %vm473, %v322, 0
      %v736 = vsel %vm473, %v323, 0
      %v738 = vsel %vm473, %v324, 0
      %v740 = vsel %vm473, %v325, 0
      %v742 = vsel %vm473, %v326, 0
      %v744 = vsel %vm473, %v327, 0
      %v747 = vsel %vm473, %v711, 0
      %v750 = vsel %vm528, %v235, 0
      %752 = vmatprep.subr.bf16.mxu0 0
      %753 = vmatpush1.bf16.msra.mxu0 %v750
      %754 = vmatprep.subr.bf16.mxu0 0
      %755 = vmatpush1.bf16.msra.mxu0 0
      %756 = vmatprep.subr.bf16.mxu0 0
      %757 = vmatpush1.bf16.msra.mxu0 0
      %758 = vmatprep.subr.bf16.mxu0 0
      %759 = vmatpush1.bf16.msra.mxu0 0
      %760 = vmatprep.subr.bf16.mxu0 0
      %761 = vmatpush1.bf16.msra.mxu0 0
      %762 = vmatprep.subr.bf16.mxu0 0
      %763 = vmatpush1.bf16.msra.mxu0 0
      %764 = vmatprep.subr.bf16.mxu0 0
      %765 = vmatpush1.bf16.msra.mxu0 0
      %766 = vmatprep.subr.bf16.mxu0 0
      %767 = vmatpush1.bf16.msra.mxu0 0
      %768 = vmatprep.subr.bf16.mxu0 0
      %769 = vmatpush1.bf16.msra.mxu0 0
      %770 = vmatprep.subr.bf16.mxu0 0
      %771 = vmatpush1.bf16.msra.mxu0 0
      %772 = vmatprep.subr.bf16.mxu0 0
      %773 = vmatpush1.bf16.msra.mxu0 0
      %774 = vmatprep.subr.bf16.mxu0 0
      %775 = vmatpush1.bf16.msra.mxu0 0
      %776 = vmatprep.subr.bf16.mxu0 0
      %777 = vmatpush1.bf16.msra.mxu0 0
      %778 = vmatprep.subr.bf16.mxu0 0
      %779 = vmatpush1.bf16.msra.mxu0 0
      %780 = vmatprep.subr.bf16.mxu0 0
      %781 = vmatpush1.bf16.msra.mxu0 0
      %782 = vmatprep.subr.bf16.mxu0 0
      %783 = vmatpush1.bf16.msra.mxu0 0
      %784 = vmatprep.mubr.bf16.mxu0 0
      %785 = vmatmul.mubr.bf16.gmra.mrb[0].mxu0 %v712
      %v786 = vpop.f32.mrb[0].mxu0
      %v787 = vadd.f32 %v567, %v786
      %v788 = vpop.f32.mrb[0].mxu0
      %v789 = vpop.f32.mrb[0].mxu0
      %v790 = vadd.f32 %v570, %v789
      %v791 = vpop.f32.mrb[0].mxu0
      %792 = vmatprep.mubr.bf16.mxu0 0
      %793 = vmatmul.mubr.bf16.gmra.mrb[0].mxu0 %v714
      %v794 = vpop.f32.mrb[0].mxu0
      %v795 = vadd.f32 %v575, %v794
      %v796 = vpop.f32.mrb[0].mxu0
      %v797 = vpop.f32.mrb[0].mxu0
      %v798 = vadd.f32 %v578, %v797
      %v799 = vpop.f32.mrb[0].mxu0
      %800 = vmatprep.mubr.bf16.mxu0 0
      %801 = vmatmul.mubr.bf16.gmra.mrb[0].mxu0 %v716
      %v802 = vpop.f32.mrb[0].mxu0
      %v803 = vadd.f32 %v583, %v802
      %v804 = vpop.f32.mrb[0].mxu0
      %v805 = vpop.f32.mrb[0].mxu0
      %v806 = vadd.f32 %v586, %v805
      %v807 = vpop.f32.mrb[0].mxu0
      %808 = vmatprep.mubr.bf16.mxu0 0
      %809 = vmatmul.mubr.bf16.gmra.mrb[0].mxu0 %v718
      %v810 = vpop.f32.mrb[0].mxu0
      %v811 = vadd.f32 %v591, %v810
      %v812 = vpop.f32.mrb[0].mxu0
      %v813 = vpop.f32.mrb[0].mxu0
      %v814 = vadd.f32 %v594, %v813
      %v815 = vpop.f32.mrb[0].mxu0
      %816 = vmatprep.mubr.bf16.mxu0 0
      %817 = vmatmul.mubr.bf16.gmra.mrb[0].mxu0 %v720
      %v818 = vpop.f32.mrb[0].mxu0
      %v819 = vadd.f32 %v599, %v818
      %v820 = vpop.f32.mrb[0].mxu0
      %v821 = vpop.f32.mrb[0].mxu0
      %v822 = vadd.f32 %v602, %v821
      %v823 = vpop.f32.mrb[0].mxu0
      %824 = vmatprep.mubr.bf16.mxu0 0
      %825 = vmatmul.mubr.bf16.gmra.mrb[0].mxu0 %v722
      %v826 = vpop.f32.mrb[0].mxu0
      %v827 = vadd.f32 %v607, %v826
      %v828 = vpop.f32.mrb[0].mxu0
      %v829 = vpop.f32.mrb[0].mxu0
      %v830 = vadd.f32 %v610, %v829
      %v831 = vpop.f32.mrb[0].mxu0
      %832 = vmatprep.mubr.bf16.mxu0 0
      %833 = vmatmul.mubr.bf16.gmra.mrb[0].mxu0 %v724
      %v834 = vpop.f32.mrb[0].mxu0
      %v835 = vadd.f32 %v615, %v834
      %v836 = vpop.f32.mrb[0].mxu0
      %v837 = vpop.f32.mrb[0].mxu0
      %v838 = vadd.f32 %v618, %v837
      %v839 = vpop.f32.mrb[0].mxu0
      %840 = vmatprep.mubr.bf16.mxu0 0
      %841 = vmatmul.mubr.bf16.gmra.mrb[0].mxu0 %v726
      %v842 = vpop.f32.mrb[0].mxu0
      %v843 = vadd.f32 %v623, %v842
      %v844 = vpop.f32.mrb[0].mxu0
      %v845 = vpop.f32.mrb[0].mxu0
      %v846 = vadd.f32 %v626, %v845
      %v847 = vpop.f32.mrb[0].mxu0
      %848 = vmatprep.mubr.bf16.mxu0 0
      %849 = vmatmul.mubr.bf16.gmra.mrb[0].mxu0 %v728
      %v850 = vpop.f32.mrb[0].mxu0
      %v851 = vadd.f32 %v631, %v850
      %v852 = vpop.f32.mrb[0].mxu0
      %v853 = vpop.f32.mrb[0].mxu0
      %v854 = vadd.f32 %v634, %v853
      %v855 = vpop.f32.mrb[0].mxu0
      %856 = vmatprep.mubr.bf16.mxu0 0
      %857 = vmatmul.mubr.bf16.gmra.mrb[0].mxu0 %v730
      %v858 = vpop.f32.mrb[0].mxu0
      %v859 = vadd.f32 %v639, %v858
      %v860 = vpop.f32.mrb[0].mxu0
      %v861 = vpop.f32.mrb[0].mxu0
      %v862 = vadd.f32 %v642, %v861
      %v863 = vpop.f32.mrb[0].mxu0
      %864 = vmatprep.mubr.bf16.mxu0 0
      %865 = vmatmul.mubr.bf16.gmra.mrb[0].mxu0 %v732
      %v866 = vpop.f32.mrb[0].mxu0
      %v867 = vadd.f32 %v647, %v866
      %v868 = vpop.f32.mrb[0].mxu0
      %v869 = vpop.f32.mrb[0].mxu0
      %v870 = vadd.f32 %v650, %v869
      %v871 = vpop.f32.mrb[0].mxu0
      %872 = vmatprep.mubr.bf16.mxu0 0
      %873 = vmatmul.mubr.bf16.gmra.mrb[0].mxu0 %v734
      %v874 = vpop.f32.mrb[0].mxu0
      %v875 = vadd.f32 %v655, %v874
      %v876 = vpop.f32.mrb[0].mxu0
      %v877 = vpop.f32.mrb[0].mxu0
      %v878 = vadd.f32 %v658, %v877
      %v879 = vpop.f32.mrb[0].mxu0
      %880 = vmatprep.mubr.bf16.mxu0 0
      %881 = vmatmul.mubr.bf16.gmra.mrb[0].mxu0 %v736
      %v882 = vpop.f32.mrb[0].mxu0
      %v883 = vadd.f32 %v663, %v882
      %v884 = vpop.f32.mrb[0].mxu0
      %v885 = vpop.f32.mrb[0].mxu0
      %v886 = vadd.f32 %v666, %v885
      %v887 = vpop.f32.mrb[0].mxu0
      %888 = vmatprep.mubr.bf16.mxu0 0
      %889 = vmatmul.mubr.bf16.gmra.mrb[0].mxu0 %v738
      %v890 = vpop.f32.mrb[0].mxu0
      %v891 = vadd.f32 %v671, %v890
      %v892 = vpop.f32.mrb[0].mxu0
      %v893 = vpop.f32.mrb[0].mxu0
      %v894 = vadd.f32 %v674, %v893
      %v895 = vpop.f32.mrb[0].mxu0
      %896 = vmatprep.mubr.bf16.mxu0 0
      %897 = vmatmul.mubr.bf16.gmra.mrb[0].mxu0 %v740
      %v898 = vpop.f32.mrb[0].mxu0
      %v899 = vadd.f32 %v679, %v898
      %v900 = vpop.f32.mrb[0].mxu0
      %v901 = vpop.f32.mrb[0].mxu0
      %v902 = vadd.f32 %v682, %v901
      %v903 = vpop.f32.mrb[0].mxu0
      %904 = vmatprep.mubr.bf16.mxu0 0
      %905 = vmatmul.mubr.bf16.gmra.mrb[0].mxu0 %v742
      %v906 = vpop.f32.mrb[0].mxu0
      %v907 = vadd.f32 %v687, %v906
      %v908 = vpop.f32.mrb[0].mxu0
      %v909 = vpop.f32.mrb[0].mxu0
      %v910 = vadd.f32 %v690, %v909
      %v911 = vpop.f32.mrb[0].mxu0
      %912 = vmatprep.mubr.bf16.mxu0 0
      %913 = vmatmul.mubr.bf16.gmra.mrb[0].mxu0 %v744
      %v914 = vpop.f32.mrb[0].mxu0
      %v915 = vadd.f32 %v695, %v914
      %v916 = vpop.f32.mrb[0].mxu0
      %v917 = vpop.f32.mrb[0].mxu0
      %v918 = vadd.f32 %v698, %v917
      %v919 = vpop.f32.mrb[0].mxu0
      %920 = vmatprep.mubr.bf16.mxu0 0
      %921 = vmatmul.mubr.bf16.gmra.mrb[0].mxu0 %v747
      %v922 = vpop.f32.mrb[0].mxu0
      %v923 = vadd.f32 %v703, %v922
      %v924 = vpop.f32.mrb[0].mxu0
      %v925 = vpop.f32.mrb[0].mxu0
      %v926 = vadd.f32 %v706, %v925
      %v927 = vpop.f32.mrb[0].mxu0
      %928 = vdwg.mxu0
      %v929 = vld [vmem:[%s192] sm:$0xe]
      %s930 = scalar_lea.vmem %s1, 4
      %v931 = vld [vmem:[%s930] sm:$0x3]
      %v933 = vunpack.c.l.b16 %v929
      %v934 = vpack.c.b16 %v276, %v933
      %vm935 = vcmask 1046528
      %v936 = vrot.slane %v934, 1
      %v937 = vrot.slane %v312, 1
      %v938 = vsel %vm935, %v936, %v937
      %v939 = vrot.slane %v313, 1
      %v940 = vsel %vm935, %v937, %v939
      %v941 = vrot.slane %v314, 1
      %v942 = vsel %vm935, %v939, %v941
      %v943 = vrot.slane %v315, 1
      %v944 = vsel %vm935, %v941, %v943
      %v945 = vrot.slane %v316, 1
      %v946 = vsel %vm935, %v943, %v945
      %v947 = vrot.slane %v317, 1
      %v948 = vsel %vm935, %v945, %v947
      %v949 = vrot.slane %v318, 1
      %v950 = vsel %vm935, %v947, %v949
      %v951 = vrot.slane %v319, 1
      %v952 = vsel %vm935, %v949, %v951
      %v953 = vrot.slane %v320, 1
      %v954 = vsel %vm935, %v951, %v953
      %v955 = vrot.slane %v321, 1
      %v956 = vsel %vm935, %v953, %v955
      %v957 = vrot.slane %v322, 1
      %v958 = vsel %vm935, %v955, %v957
      %v959 = vrot.slane %v323, 1
      %v960 = vsel %vm935, %v957, %v959
      %v961 = vrot.slane %v324, 1
      %v962 = vsel %vm935, %v959, %v961
      %v963 = vrot.slane %v325, 1
      %v964 = vsel %vm935, %v961, %v963
      %v965 = vrot.slane %v326, 1
      %v966 = vsel %vm935, %v963, %v965
      %v967 = vrot.slane %v327, 1
      %v968 = vsel %vm935, %v965, %v967
      %v969 = vrot.slane %v328, 1
      %v970 = vsel %vm935, %v967, %v969
      %v972 = vsel %vm473, %v938, 0
      %v975 = vsel %vm473, %v940, 0
      %v978 = vsel %vm473, %v942, 0
      %v981 = vsel %vm473, %v944, 0
      %v984 = vsel %vm473, %v946, 0
      %v987 = vsel %vm473, %v948, 0
      %v990 = vsel %vm473, %v950, 0
      %v993 = vsel %vm473, %v952, 0
      %v996 = vsel %vm473, %v954, 0
      %v999 = vsel %vm473, %v956, 0
      %v1002 = vsel %vm473, %v958, 0
      %v1005 = vsel %vm473, %v960, 0
      %v1008 = vsel %vm473, %v962, 0
      %v1011 = vsel %vm473, %v964, 0
      %v1014 = vsel %vm473, %v966, 0
      %v1017 = vsel %vm473, %v968, 0
      %v1020 = vsel %vm473, %v970, 0
      %v1023 = vsel %vm473, %v969, 0
      %v1026 = vsel %vm528, %v931, 0
      %1028 = vmatprep.subr.bf16.mxu0 0
      %1029 = vmatpush1.bf16.msra.mxu0 %v1026
      %1030 = vmatprep.subr.bf16.mxu0 0
      %1031 = vmatpush1.bf16.msra.mxu0 0
      %1032 = vmatprep.subr.bf16.mxu0 0
      %1033 = vmatpush1.bf16.msra.mxu0 0
      %1034 = vmatprep.subr.bf16.mxu0 0
      %1035 = vmatpush1.bf16.msra.mxu0 0
      %1036 = vmatprep.subr.bf16.mxu0 0
      %1037 = vmatpush1.bf16.msra.mxu0 0
      %1038 = vmatprep.subr.bf16.mxu0 0
      %1039 = vmatpush1.bf16.msra.mxu0 0
      %1040 = vmatprep.subr.bf16.mxu0 0
      %1041 = vmatpush1.bf16.msra.mxu0 0
      %1042 = vmatprep.subr.bf16.mxu0 0
      %1043 = vmatpush1.bf16.msra.mxu0 0
      %1044 = vmatprep.subr.bf16.mxu0 0
      %1045 = vmatpush1.bf16.msra.mxu0 0
      %1046 = vmatprep.subr.bf16.mxu0 0
      %1047 = vmatpush1.bf16.msra.mxu0 0
      %1048 = vmatprep.subr.bf16.mxu0 0
      %1049 = vmatpush1.bf16.msra.mxu0 0
      %1050 = vmatprep.subr.bf16.mxu0 0
      %1051 = vmatpush1.bf16.msra.mxu0 0
      %1052 = vmatprep.subr.bf16.mxu0 0
      %1053 = vmatpush1.bf16.msra.mxu0 0
      %1054 = vmatprep.subr.bf16.mxu0 0
      %1055 = vmatpush1.bf16.msra.mxu0 0
      %1056 = vmatprep.subr.bf16.mxu0 0
      %1057 = vmatpush1.bf16.msra.mxu0 0
      %1058 = vmatprep.subr.bf16.mxu0 0
      %1059 = vmatpush1.bf16.msra.mxu0 0
      %1060 = vmatprep.mubr.bf16.mxu0 0
      %1061 = vmatmul.mubr.bf16.gmra.mrb[0].mxu0 %v972
      %v1062 = vpop.f32.mrb[0].mxu0
      %v1063 = vadd.f32 0.0, %v1062
      %v1064 = vpop.f32.mrb[0].mxu0
      %v1065 = vpop.f32.mrb[0].mxu0
      %v1066 = vadd.f32 0.0, %v1065
      %v1067 = vpop.f32.mrb[0].mxu0
      %1068 = vmatprep.mubr.bf16.mxu0 0
      %1069 = vmatmul.mubr.bf16.gmra.mrb[0].mxu0 %v975
      %v1070 = vpop.f32.mrb[0].mxu0
      %v1071 = vadd.f32 0.0, %v1070
      %v1072 = vpop.f32.mrb[0].mxu0
      %v1073 = vpop.f32.mrb[0].mxu0
      %v1074 = vadd.f32 0.0, %v1073
      %v1075 = vpop.f32.mrb[0].mxu0
      %1076 = vmatprep.mubr.bf16.mxu0 0
      %1077 = vmatmul.mubr.bf16.gmra.mrb[0].mxu0 %v978
      %v1078 = vpop.f32.mrb[0].mxu0
      %v1079 = vadd.f32 0.0, %v1078
      %v1080 = vpop.f32.mrb[0].mxu0
      %v1081 = vpop.f32.mrb[0].mxu0
      %v1082 = vadd.f32 0.0, %v1081
      %v1083 = vpop.f32.mrb[0].mxu0
      %1084 = vmatprep.mubr.bf16.mxu0 0
      %1085 = vmatmul.mubr.bf16.gmra.mrb[0].mxu0 %v981
      %v1086 = vpop.f32.mrb[0].mxu0
      %v1087 = vadd.f32 0.0, %v1086
      %v1088 = vpop.f32.mrb[0].mxu0
      %v1089 = vpop.f32.mrb[0].mxu0
      %v1090 = vadd.f32 0.0, %v1089
      %v1091 = vpop.f32.mrb[0].mxu0
      %1092 = vmatprep.mubr.bf16.mxu0 0
      %1093 = vmatmul.mubr.bf16.gmra.mrb[0].mxu0 %v984
      %v1094 = vpop.f32.mrb[0].mxu0
      %v1095 = vadd.f32 0.0, %v1094
      %v1096 = vpop.f32.mrb[0].mxu0
      %v1097 = vpop.f32.mrb[0].mxu0
      %v1098 = vadd.f32 0.0, %v1097
      %v1099 = vpop.f32.mrb[0].mxu0
      %1100 = vmatprep.mubr.bf16.mxu0 0
      %1101 = vmatmul.mubr.bf16.gmra.mrb[0].mxu0 %v987
      %v1102 = vpop.f32.mrb[0].mxu0
      %v1103 = vadd.f32 0.0, %v1102
      %v1104 = vpop.f32.mrb[0].mxu0
      %v1105 = vpop.f32.mrb[0].mxu0
      %v1106 = vadd.f32 0.0, %v1105
      %v1107 = vpop.f32.mrb[0].mxu0
      %1108 = vmatprep.mubr.bf16.mxu0 0
      %1109 = vmatmul.mubr.bf16.gmra.mrb[0].mxu0 %v990
      %v1110 = vpop.f32.mrb[0].mxu0
      %v1111 = vadd.f32 0.0, %v1110
      %v1112 = vpop.f32.mrb[0].mxu0
      %v1113 = vpop.f32.mrb[0].mxu0
      %v1114 = vadd.f32 0.0, %v1113
      %v1115 = vpop.f32.mrb[0].mxu0
      %1116 = vmatprep.mubr.bf16.mxu0 0
      %1117 = vmatmul.mubr.bf16.gmra.mrb[0].mxu0 %v993
      %v1118 = vpop.f32.mrb[0].mxu0
      %v1119 = vadd.f32 0.0, %v1118
      %v1120 = vpop.f32.mrb[0].mxu0
      %v1121 = vpop.f32.mrb[0].mxu0
      %v1122 = vadd.f32 0.0, %v1121
      %v1123 = vpop.f32.mrb[0].mxu0
      %1124 = vmatprep.mubr.bf16.mxu0 0
      %1125 = vmatmul.mubr.bf16.gmra.mrb[0].mxu0 %v996
      %v1126 = vpop.f32.mrb[0].mxu0
      %v1127 = vadd.f32 0.0, %v1126
      %v1128 = vpop.f32.mrb[0].mxu0
      %v1129 = vpop.f32.mrb[0].mxu0
      %v1130 = vadd.f32 0.0, %v1129
      %v1131 = vpop.f32.mrb[0].mxu0
      %1132 = vmatprep.mubr.bf16.mxu0 0
      %1133 = vmatmul.mubr.bf16.gmra.mrb[0].mxu0 %v999
      %v1134 = vpop.f32.mrb[0].mxu0
      %v1135 = vadd.f32 0.0, %v1134
      %v1136 = vpop.f32.mrb[0].mxu0
      %v1137 = vpop.f32.mrb[0].mxu0
      %v1138 = vadd.f32 0.0, %v1137
      %v1139 = vpop.f32.mrb[0].mxu0
      %1140 = vmatprep.mubr.bf16.mxu0 0
      %1141 = vmatmul.mubr.bf16.gmra.mrb[0].mxu0 %v1002
      %v1142 = vpop.f32.mrb[0].mxu0
      %v1143 = vadd.f32 0.0, %v1142
      %v1144 = vpop.f32.mrb[0].mxu0
      %v1145 = vpop.f32.mrb[0].mxu0
      %v1146 = vadd.f32 0.0, %v1145
      %v1147 = vpop.f32.mrb[0].mxu0
      %1148 = vmatprep.mubr.bf16.mxu0 0
      %1149 = vmatmul.mubr.bf16.gmra.mrb[0].mxu0 %v1005
      %v1150 = vpop.f32.mrb[0].mxu0
      %v1151 = vadd.f32 0.0, %v1150
      %v1152 = vpop.f32.mrb[0].mxu0
      %v1153 = vpop.f32.mrb[0].mxu0
      %v1154 = vadd.f32 0.0, %v1153
      %v1155 = vpop.f32.mrb[0].mxu0
      %1156 = vmatprep.mubr.bf16.mxu0 0
      %1157 = vmatmul.mubr.bf16.gmra.mrb[0].mxu0 %v1008
      %v1158 = vpop.f32.mrb[0].mxu0
      %v1159 = vadd.f32 0.0, %v1158
      %v1160 = vpop.f32.mrb[0].mxu0
      %v1161 = vpop.f32.mrb[0].mxu0
      %v1162 = vadd.f32 0.0, %v1161
      %v1163 = vpop.f32.mrb[0].mxu0
      %1164 = vmatprep.mubr.bf16.mxu0 0
      %1165 = vmatmul.mubr.bf16.gmra.mrb[0].mxu0 %v1011
      %v1166 = vpop.f32.mrb[0].mxu0
      %v1167 = vadd.f32 0.0, %v1166
      %v1168 = vpop.f32.mrb[0].mxu0
      %v1169 = vpop.f32.mrb[0].mxu0
      %v1170 = vadd.f32 0.0, %v1169
      %v1171 = vpop.f32.mrb[0].mxu0
      %1172 = vmatprep.mubr.bf16.mxu0 0
      %1173 = vmatmul.mubr.bf16.gmra.mrb[0].mxu0 %v1014
      %v1174 = vpop.f32.mrb[0].mxu0
      %v1175 = vadd.f32 0.0, %v1174
      %v1176 = vpop.f32.mrb[0].mxu0
      %v1177 = vpop.f32.mrb[0].mxu0
      %v1178 = vadd.f32 0.0, %v1177
      %v1179 = vpop.f32.mrb[0].mxu0
      %1180 = vmatprep.mubr.bf16.mxu0 0
      %1181 = vmatmul.mubr.bf16.gmra.mrb[0].mxu0 %v1017
      %v1182 = vpop.f32.mrb[0].mxu0
      %v1183 = vadd.f32 0.0, %v1182
      %v1184 = vpop.f32.mrb[0].mxu0
      %v1185 = vpop.f32.mrb[0].mxu0
      %v1186 = vadd.f32 0.0, %v1185
      %v1187 = vpop.f32.mrb[0].mxu0
      %1188 = vmatprep.mubr.bf16.mxu0 0
      %1189 = vmatmul.mubr.bf16.gmra.mrb[0].mxu0 %v1020
      %v1190 = vpop.f32.mrb[0].mxu0
      %v1191 = vadd.f32 0.0, %v1190
      %v1192 = vpop.f32.mrb[0].mxu0
      %v1193 = vpop.f32.mrb[0].mxu0
      %v1194 = vadd.f32 0.0, %v1193
      %v1195 = vpop.f32.mrb[0].mxu0
      %1196 = vmatprep.mubr.bf16.mxu0 0
      %1197 = vmatmul.mubr.bf16.gmra.mrb[0].mxu0 %v1023
      %v1198 = vpop.f32.mrb[0].mxu0
      %v1199 = vadd.f32 0.0, %v1198
      %v1200 = vpop.f32.mrb[0].mxu0
      %v1201 = vpop.f32.mrb[0].mxu0
      %v1202 = vadd.f32 0.0, %v1201
      %v1203 = vpop.f32.mrb[0].mxu0
      %1204 = vdwg.mxu0
      %v1205 = vadd.f32 %v787, %v1063
      %v1206 = vadd.f32 %v790, %v1066
      %v1207 = vadd.f32 %v795, %v1071
      %v1208 = vadd.f32 %v798, %v1074
      %v1209 = vadd.f32 %v803, %v1079
      %v1210 = vadd.f32 %v806, %v1082
      %v1211 = vadd.f32 %v811, %v1087
      %v1212 = vadd.f32 %v814, %v1090
      %v1213 = vadd.f32 %v819, %v1095
      %v1214 = vadd.f32 %v822, %v1098
      %v1215 = vadd.f32 %v827, %v1103
      %v1216 = vadd.f32 %v830, %v1106
      %v1217 = vadd.f32 %v835, %v1111
      %v1218 = vadd.f32 %v838, %v1114
      %v1219 = vadd.f32 %v843, %v1119
      %v1220 = vadd.f32 %v846, %v1122
      %v1221 = vadd.f32 %v851, %v1127
      %v1222 = vadd.f32 %v854, %v1130
      %v1223 = vadd.f32 %v859, %v1135
      %v1224 = vadd.f32 %v862, %v1138
      %v1225 = vadd.f32 %v867, %v1143
      %v1226 = vadd.f32 %v870, %v1146
      %v1227 = vadd.f32 %v875, %v1151
      %v1228 = vadd.f32 %v878, %v1154
      %v1229 = vadd.f32 %v883, %v1159
      %v1230 = vadd.f32 %v886, %v1162
      %v1231 = vadd.f32 %v891, %v1167
      %v1232 = vadd.f32 %v894, %v1170
      %v1233 = vadd.f32 %v899, %v1175
      %v1234 = vadd.f32 %v902, %v1178
      %v1235 = vadd.f32 %v907, %v1183
      %v1236 = vadd.f32 %v910, %v1186
      %v1237 = vadd.f32 %v915, %v1191
      %v1238 = vadd.f32 %v918, %v1194
      %v1239 = vadd.f32 %v923, %v1199
      %v1240 = vadd.f32 %v926, %v1202
      %v1241 = vld [vmem:[%s192 + $0x8] sm:$0xe]
      %v1242 = vld [vmem:[%s192 + $0xc] sm:$0xf]
      %v1243 = vld [vmem:[%s192 + $0x10] sm:$0xf]
      %v1244 = vld [vmem:[%s192 + $0x14] sm:$0xf]
      %v1245 = vld [vmem:[%s192 + $0x18] sm:$0xf]
      %v1246 = vld [vmem:[%s192 + $0x1c] sm:$0xf]
      %v1247 = vld [vmem:[%s192 + $0x20] sm:$0xf]
      %v1248 = vld [vmem:[%s192 + $0x24] sm:$0xf]
      %v1249 = vld [vmem:[%s192 + $0x28] sm:$0xf]
      %v1250 = vld [vmem:[%s192 + $0x2c] sm:$0xf]
      %v1251 = vld [vmem:[%s192 + $0x30] sm:$0xf]
      %v1252 = vld [vmem:[%s192 + $0x34] sm:$0xf]
      %v1253 = vld [vmem:[%s192 + $0x38] sm:$0xf]
      %v1254 = vld [vmem:[%s192 + $0x3c] sm:$0xf]
      %v1255 = vld [vmem:[%s192 + $0x40] sm:$0xf]
      %v1256 = vld [vmem:[%s192 + $0x44] sm:$0xf]
      %v1257 = vld [vmem:[%s192 + $0x48] sm:$0xf]
      %v1258 = vld [vmem:[%s192 + $0x4c] sm:$0xf]
      %v1259 = vld [vmem:[%s192 + $0x50] sm:$0xf]
      %v1260 = vld [vmem:[%s192 + $0x54] sm:$0xf]
      %v1261 = vld [vmem:[%s192 + $0x58] sm:$0xf]
      %v1262 = vld [vmem:[%s192 + $0x5c] sm:$0xf]
      %v1263 = vld [vmem:[%s192 + $0x60] sm:$0xf]
      %v1264 = vld [vmem:[%s192 + $0x64] sm:$0xf]
      %v1265 = vld [vmem:[%s192 + $0x68] sm:$0xf]
      %v1266 = vld [vmem:[%s192 + $0x6c] sm:$0xf]
      %v1267 = vld [vmem:[%s192 + $0x70] sm:$0xf]
      %v1268 = vld [vmem:[%s192 + $0x74] sm:$0xf]
      %v1269 = vld [vmem:[%s192 + $0x78] sm:$0xf]
      %v1270 = vld [vmem:[%s192 + $0x7c] sm:$0xf]
      %v1271 = vld [vmem:[%s192 + $0x80] sm:$0xf]
      %v1272 = vld [vmem:[%s192 + $0x84] sm:$0xf]
      %v1273 = vld [vmem:[%s192 + $0x88] sm:$0xf]
      %v1274 = vld [vmem:[%s192 + $0x8c] sm:$0xf]
      %v1275 = vld [vmem:[%s192 + $0x90] sm:$0xf]
      %v1276 = vld [vmem:[%s192 + $0x94] sm:$0xf]
      %s1277 = scalar_lea.vmem %s1, 6
      %v1278 = vld [vmem:[%s1277] sm:$0x3]
      %v1315 = vunpack.c.l.b16 %v1241
      %v1316 = vunpack.c.l.b16 %v1242
      %v1317 = vunpack.c.l.b16 %v1243
      %v1318 = vunpack.c.l.b16 %v1244
      %v1319 = vunpack.c.l.b16 %v1245
      %v1320 = vunpack.c.l.b16 %v1246
      %v1321 = vunpack.c.l.b16 %v1247
      %v1322 = vunpack.c.l.b16 %v1248
      %v1323 = vunpack.c.l.b16 %v1249
      %v1324 = vunpack.c.l.b16 %v1250
      %v1325 = vunpack.c.l.b16 %v1251
      %v1326 = vunpack.c.l.b16 %v1252
      %v1327 = vunpack.c.l.b16 %v1253
      %v1328 = vunpack.c.l.b16 %v1254
      %v1329 = vunpack.c.l.b16 %v1255
      %v1330 = vunpack.c.l.b16 %v1256
      %v1331 = vunpack.c.l.b16 %v1257
      %v1332 = vunpack.c.l.b16 %v1258
      %v1333 = vunpack.c.l.b16 %v1259
      %v1334 = vunpack.c.l.b16 %v1260
      %v1335 = vunpack.c.l.b16 %v1261
      %v1336 = vunpack.c.l.b16 %v1262
      %v1337 = vunpack.c.l.b16 %v1263
      %v1338 = vunpack.c.l.b16 %v1264
      %v1339 = vunpack.c.l.b16 %v1265
      %v1340 = vunpack.c.l.b16 %v1266
      %v1341 = vunpack.c.l.b16 %v1267
      %v1342 = vunpack.c.l.b16 %v1268
      %v1343 = vunpack.c.l.b16 %v1269
      %v1344 = vunpack.c.l.b16 %v1270
      %v1345 = vunpack.c.l.b16 %v1271
      %v1346 = vunpack.c.l.b16 %v1272
      %v1347 = vunpack.c.l.b16 %v1273
      %v1348 = vunpack.c.l.b16 %v1274
      %v1349 = vunpack.c.l.b16 %v1275
      %v1350 = vunpack.c.l.b16 %v1276
      %v1351 = vpack.c.b16 %v1316, %v1315
      %v1352 = vpack.c.b16 %v1318, %v1317
      %v1353 = vpack.c.b16 %v1320, %v1319
      %v1354 = vpack.c.b16 %v1322, %v1321
      %v1355 = vpack.c.b16 %v1324, %v1323
      %v1356 = vpack.c.b16 %v1326, %v1325
      %v1357 = vpack.c.b16 %v1328, %v1327
      %v1358 = vpack.c.b16 %v1330, %v1329
      %v1359 = vpack.c.b16 %v1332, %v1331
      %v1360 = vpack.c.b16 %v1334, %v1333
      %v1361 = vpack.c.b16 %v1336, %v1335
      %v1362 = vpack.c.b16 %v1338, %v1337
      %v1363 = vpack.c.b16 %v1340, %v1339
      %v1364 = vpack.c.b16 %v1342, %v1341
      %v1365 = vpack.c.b16 %v1344, %v1343
      %v1366 = vpack.c.b16 %v1346, %v1345
      %v1367 = vpack.c.b16 %v1348, %v1347
      %v1368 = vpack.c.b16 %v1350, %v1349
      %v1369 = vrot.slane %v1351, 1
      %v1370 = vrot.slane %v1352, 1
      %v1371 = vsel %vm935, %v1369, %v1370
      %v1372 = vrot.slane %v1353, 1
      %v1373 = vsel %vm935, %v1370, %v1372
      %v1374 = vrot.slane %v1354, 1
      %v1375 = vsel %vm935, %v1372, %v1374
      %v1376 = vrot.slane %v1355, 1
      %v1377 = vsel %vm935, %v1374, %v1376
      %v1378 = vrot.slane %v1356, 1
      %v1379 = vsel %vm935, %v1376, %v1378
      %v1380 = vrot.slane %v1357, 1
      %v1381 = vsel %vm935, %v1378, %v1380
      %v1382 = vrot.slane %v1358, 1
      %v1383 = vsel %vm935, %v1380, %v1382
      %v1384 = vrot.slane %v1359, 1
      %v1385 = vsel %vm935, %v1382, %v1384
      %v1386 = vrot.slane %v1360, 1
      %v1387 = vsel %vm935, %v1384, %v1386
      %v1388 = vrot.slane %v1361, 1
      %v1389 = vsel %vm935, %v1386, %v1388
      %v1390 = vrot.slane %v1362, 1
      %v1391 = vsel %vm935, %v1388, %v1390
      %v1392 = vrot.slane %v1363, 1
      %v1393 = vsel %vm935, %v1390, %v1392
      %v1394 = vrot.slane %v1364, 1
      %v1395 = vsel %vm935, %v1392, %v1394
      %v1396 = vrot.slane %v1365, 1
      %v1397 = vsel %vm935, %v1394, %v1396
      %v1398 = vrot.slane %v1366, 1
      %v1399 = vsel %vm935, %v1396, %v1398
      %v1400 = vrot.slane %v1367, 1
      %v1401 = vsel %vm935, %v1398, %v1400
      %v1402 = vrot.slane %v1368, 1
      %v1403 = vsel %vm935, %v1400, %v1402
      %v1405 = vsel %vm473, %v1371, 0
      %v1408 = vsel %vm473, %v1373, 0
      %v1411 = vsel %vm473, %v1375, 0
      %v1414 = vsel %vm473, %v1377, 0
      %v1417 = vsel %vm473, %v1379, 0
      %v1420 = vsel %vm473, %v1381, 0
      %v1423 = vsel %vm473, %v1383, 0
      %v1426 = vsel %vm473, %v1385, 0
      %v1429 = vsel %vm473, %v1387, 0
      %v1432 = vsel %vm473, %v1389, 0
      %v1435 = vsel %vm473, %v1391, 0
      %v1438 = vsel %vm473, %v1393, 0
      %v1441 = vsel %vm473, %v1395, 0
      %v1444 = vsel %vm473, %v1397, 0
      %v1447 = vsel %vm473, %v1399, 0
      %v1450 = vsel %vm473, %v1401, 0
      %v1453 = vsel %vm473, %v1403, 0
      %v1456 = vsel %vm473, %v1402, 0
      %v1459 = vsel %vm528, %v1278, 0
      %1461 = vmatprep.subr.bf16.mxu0 0
      %1462 = vmatpush1.bf16.msra.mxu0 %v1459
      %1463 = vmatprep.subr.bf16.mxu0 0
      %1464 = vmatpush1.bf16.msra.mxu0 0
      %1465 = vmatprep.subr.bf16.mxu0 0
      %1466 = vmatpush1.bf16.msra.mxu0 0
      %1467 = vmatprep.subr.bf16.mxu0 0
      %1468 = vmatpush1.bf16.msra.mxu0 0
      %1469 = vmatprep.subr.bf16.mxu0 0
      %1470 = vmatpush1.bf16.msra.mxu0 0
      %1471 = vmatprep.subr.bf16.mxu0 0
      %1472 = vmatpush1.bf16.msra.mxu0 0
      %1473 = vmatprep.subr.bf16.mxu0 0
      %1474 = vmatpush1.bf16.msra.mxu0 0
      %1475 = vmatprep.subr.bf16.mxu0 0
      %1476 = vmatpush1.bf16.msra.mxu0 0
      %1477 = vmatprep.subr.bf16.mxu0 0
      %1478 = vmatpush1.bf16.msra.mxu0 0
      %1479 = vmatprep.subr.bf16.mxu0 0
      %1480 = vmatpush1.bf16.msra.mxu0 0
      %1481 = vmatprep.subr.bf16.mxu0 0
      %1482 = vmatpush1.bf16.msra.mxu0 0
      %1483 = vmatprep.subr.bf16.mxu0 0
      %1484 = vmatpush1.bf16.msra.mxu0 0
      %1485 = vmatprep.subr.bf16.mxu0 0
      %1486 = vmatpush1.bf16.msra.mxu0 0
      %1487 = vmatprep.subr.bf16.mxu0 0
      %1488 = vmatpush1.bf16.msra.mxu0 0
      %1489 = vmatprep.subr.bf16.mxu0 0
      %1490 = vmatpush1.bf16.msra.mxu0 0
      %1491 = vmatprep.subr.bf16.mxu0 0
      %1492 = vmatpush1.bf16.msra.mxu0 0
      %1493 = vmatprep.mubr.bf16.mxu0 0
      %1494 = vmatmul.mubr.bf16.gmra.mrb[0].mxu0 %v1405
      %v1495 = vpop.f32.mrb[0].mxu0
      %v1496 = vadd.f32 0.0, %v1495
      %v1497 = vpop.f32.mrb[0].mxu0
      %v1498 = vpop.f32.mrb[0].mxu0
      %v1499 = vadd.f32 0.0, %v1498
      %v1500 = vpop.f32.mrb[0].mxu0
      %1501 = vmatprep.mubr.bf16.mxu0 0
      %1502 = vmatmul.mubr.bf16.gmra.mrb[0].mxu0 %v1408
      %v1503 = vpop.f32.mrb[0].mxu0
      %v1504 = vadd.f32 0.0, %v1503
      %v1505 = vpop.f32.mrb[0].mxu0
      %v1506 = vpop.f32.mrb[0].mxu0
      %v1507 = vadd.f32 0.0, %v1506
      %v1508 = vpop.f32.mrb[0].mxu0
      %1509 = vmatprep.mubr.bf16.mxu0 0
      %1510 = vmatmul.mubr.bf16.gmra.mrb[0].mxu0 %v1411
      %v1511 = vpop.f32.mrb[0].mxu0
      %v1512 = vadd.f32 0.0, %v1511
      %v1513 = vpop.f32.mrb[0].mxu0
      %v1514 = vpop.f32.mrb[0].mxu0
      %v1515 = vadd.f32 0.0, %v1514
      %v1516 = vpop.f32.mrb[0].mxu0
      %1517 = vmatprep.mubr.bf16.mxu0 0
      %1518 = vmatmul.mubr.bf16.gmra.mrb[0].mxu0 %v1414
      %v1519 = vpop.f32.mrb[0].mxu0
      %v1520 = vadd.f32 0.0, %v1519
      %v1521 = vpop.f32.mrb[0].mxu0
      %v1522 = vpop.f32.mrb[0].mxu0
      %v1523 = vadd.f32 0.0, %v1522
      %v1524 = vpop.f32.mrb[0].mxu0
      %1525 = vmatprep.mubr.bf16.mxu0 0
      %1526 = vmatmul.mubr.bf16.gmra.mrb[0].mxu0 %v1417
      %v1527 = vpop.f32.mrb[0].mxu0
      %v1528 = vadd.f32 0.0, %v1527
      %v1529 = vpop.f32.mrb[0].mxu0
      %v1530 = vpop.f32.mrb[0].mxu0
      %v1531 = vadd.f32 0.0, %v1530
      %v1532 = vpop.f32.mrb[0].mxu0
      %1533 = vmatprep.mubr.bf16.mxu0 0
      %1534 = vmatmul.mubr.bf16.gmra.mrb[0].mxu0 %v1420
      %v1535 = vpop.f32.mrb[0].mxu0
      %v1536 = vadd.f32 0.0, %v1535
      %v1537 = vpop.f32.mrb[0].mxu0
      %v1538 = vpop.f32.mrb[0].mxu0
      %v1539 = vadd.f32 0.0, %v1538
      %v1540 = vpop.f32.mrb[0].mxu0
      %1541 = vmatprep.mubr.bf16.mxu0 0
      %1542 = vmatmul.mubr.bf16.gmra.mrb[0].mxu0 %v1423
      %v1543 = vpop.f32.mrb[0].mxu0
      %v1544 = vadd.f32 0.0, %v1543
      %v1545 = vpop.f32.mrb[0].mxu0
      %v1546 = vpop.f32.mrb[0].mxu0
      %v1547 = vadd.f32 0.0, %v1546
      %v1548 = vpop.f32.mrb[0].mxu0
      %1549 = vmatprep.mubr.bf16.mxu0 0
      %1550 = vmatmul.mubr.bf16.gmra.mrb[0].mxu0 %v1426
      %v1551 = vpop.f32.mrb[0].mxu0
      %v1552 = vadd.f32 0.0, %v1551
      %v1553 = vpop.f32.mrb[0].mxu0
      %v1554 = vpop.f32.mrb[0].mxu0
      %v1555 = vadd.f32 0.0, %v1554
      %v1556 = vpop.f32.mrb[0].mxu0
      %1557 = vmatprep.mubr.bf16.mxu0 0
      %1558 = vmatmul.mubr.bf16.gmra.mrb[0].mxu0 %v1429
      %v1559 = vpop.f32.mrb[0].mxu0
      %v1560 = vadd.f32 0.0, %v1559
      %v1561 = vpop.f32.mrb[0].mxu0
      %v1562 = vpop.f32.mrb[0].mxu0
      %v1563 = vadd.f32 0.0, %v1562
      %v1564 = vpop.f32.mrb[0].mxu0
      %1565 = vmatprep.mubr.bf16.mxu0 0
      %1566 = vmatmul.mubr.bf16.gmra.mrb[0].mxu0 %v1432
      %v1567 = vpop.f32.mrb[0].mxu0
      %v1568 = vadd.f32 0.0, %v1567
      %v1569 = vpop.f32.mrb[0].mxu0
      %v1570 = vpop.f32.mrb[0].mxu0
      %v1571 = vadd.f32 0.0, %v1570
      %v1572 = vpop.f32.mrb[0].mxu0
      %1573 = vmatprep.mubr.bf16.mxu0 0
      %1574 = vmatmul.mubr.bf16.gmra.mrb[0].mxu0 %v1435
      %v1575 = vpop.f32.mrb[0].mxu0
      %v1576 = vadd.f32 0.0, %v1575
      %v1577 = vpop.f32.mrb[0].mxu0
      %v1578 = vpop.f32.mrb[0].mxu0
      %v1579 = vadd.f32 0.0, %v1578
      %v1580 = vpop.f32.mrb[0].mxu0
      %1581 = vmatprep.mubr.bf16.mxu0 0
      %1582 = vmatmul.mubr.bf16.gmra.mrb[0].mxu0 %v1438
      %v1583 = vpop.f32.mrb[0].mxu0
      %v1584 = vadd.f32 0.0, %v1583
      %v1585 = vpop.f32.mrb[0].mxu0
      %v1586 = vpop.f32.mrb[0].mxu0
      %v1587 = vadd.f32 0.0, %v1586
      %v1588 = vpop.f32.mrb[0].mxu0
      %1589 = vmatprep.mubr.bf16.mxu0 0
      %1590 = vmatmul.mubr.bf16.gmra.mrb[0].mxu0 %v1441
      %v1591 = vpop.f32.mrb[0].mxu0
      %v1592 = vadd.f32 0.0, %v1591
      %v1593 = vpop.f32.mrb[0].mxu0
      %v1594 = vpop.f32.mrb[0].mxu0
      %v1595 = vadd.f32 0.0, %v1594
      %v1596 = vpop.f32.mrb[0].mxu0
      %1597 = vmatprep.mubr.bf16.mxu0 0
      %1598 = vmatmul.mubr.bf16.gmra.mrb[0].mxu0 %v1444
      %v1599 = vpop.f32.mrb[0].mxu0
      %v1600 = vadd.f32 0.0, %v1599
      %v1601 = vpop.f32.mrb[0].mxu0
      %v1602 = vpop.f32.mrb[0].mxu0
      %v1603 = vadd.f32 0.0, %v1602
      %v1604 = vpop.f32.mrb[0].mxu0
      %1605 = vmatprep.mubr.bf16.mxu0 0
      %1606 = vmatmul.mubr.bf16.gmra.mrb[0].mxu0 %v1447
      %v1607 = vpop.f32.mrb[0].mxu0
      %v1608 = vadd.f32 0.0, %v1607
      %v1609 = vpop.f32.mrb[0].mxu0
      %v1610 = vpop.f32.mrb[0].mxu0
      %v1611 = vadd.f32 0.0, %v1610
      %v1612 = vpop.f32.mrb[0].mxu0
      %1613 = vmatprep.mubr.bf16.mxu0 0
      %1614 = vmatmul.mubr.bf16.gmra.mrb[0].mxu0 %v1450
      %v1615 = vpop.f32.mrb[0].mxu0
      %v1616 = vadd.f32 0.0, %v1615
      %v1617 = vpop.f32.mrb[0].mxu0
      %v1618 = vpop.f32.mrb[0].mxu0
      %v1619 = vadd.f32 0.0, %v1618
      %v1620 = vpop.f32.mrb[0].mxu0
      %1621 = vmatprep.mubr.bf16.mxu0 0
      %1622 = vmatmul.mubr.bf16.gmra.mrb[0].mxu0 %v1453
      %v1623 = vpop.f32.mrb[0].mxu0
      %v1624 = vadd.f32 0.0, %v1623
      %v1625 = vpop.f32.mrb[0].mxu0
      %v1626 = vpop.f32.mrb[0].mxu0
      %v1627 = vadd.f32 0.0, %v1626
      %v1628 = vpop.f32.mrb[0].mxu0
      %1629 = vmatprep.mubr.bf16.mxu0 0
      %1630 = vmatmul.mubr.bf16.gmra.mrb[0].mxu0 %v1456
      %v1631 = vpop.f32.mrb[0].mxu0
      %v1632 = vadd.f32 0.0, %v1631
      %v1633 = vpop.f32.mrb[0].mxu0
      %v1634 = vpop.f32.mrb[0].mxu0
      %v1635 = vadd.f32 0.0, %v1634
      %v1636 = vpop.f32.mrb[0].mxu0
      %1637 = vdwg.mxu0
      %v1638 = vadd.f32 %v1205, %v1496
      %v1639 = vadd.f32 %v1206, %v1499
      %v1640 = vadd.f32 %v1207, %v1504
      %v1641 = vadd.f32 %v1208, %v1507
      %v1642 = vadd.f32 %v1209, %v1512
      %v1643 = vadd.f32 %v1210, %v1515
      %v1644 = vadd.f32 %v1211, %v1520
      %v1645 = vadd.f32 %v1212, %v1523
      %v1646 = vadd.f32 %v1213, %v1528
      %v1647 = vadd.f32 %v1214, %v1531
      %v1648 = vadd.f32 %v1215, %v1536
      %v1649 = vadd.f32 %v1216, %v1539
      %v1650 = vadd.f32 %v1217, %v1544
      %v1651 = vadd.f32 %v1218, %v1547
      %v1652 = vadd.f32 %v1219, %v1552
      %v1653 = vadd.f32 %v1220, %v1555
      %v1654 = vadd.f32 %v1221, %v1560
      %v1655 = vadd.f32 %v1222, %v1563
      %v1656 = vadd.f32 %v1223, %v1568
      %v1657 = vadd.f32 %v1224, %v1571
      %v1658 = vadd.f32 %v1225, %v1576
      %v1659 = vadd.f32 %v1226, %v1579
      %v1660 = vadd.f32 %v1227, %v1584
      %v1661 = vadd.f32 %v1228, %v1587
      %v1662 = vadd.f32 %v1229, %v1592
      %v1663 = vadd.f32 %v1230, %v1595
      %v1664 = vadd.f32 %v1231, %v1600
      %v1665 = vadd.f32 %v1232, %v1603
      %v1666 = vadd.f32 %v1233, %v1608
      %v1667 = vadd.f32 %v1234, %v1611
      %v1668 = vadd.f32 %v1235, %v1616
      %v1669 = vadd.f32 %v1236, %v1619
      %v1670 = vadd.f32 %v1237, %v1624
      %v1671 = vadd.f32 %v1238, %v1627
      %v1672 = vadd.f32 %v1239, %v1632
      %v1673 = vadd.f32 %v1240, %v1635
      %v1674 = vld [vmem:[%s192 + $0x8] sm:$0xe]
      %v1675 = vld [vmem:[%s192 + $0xc] sm:$0xf]
      %v1676 = vld [vmem:[%s192 + $0x10] sm:$0xf]
      %v1677 = vld [vmem:[%s192 + $0x14] sm:$0xf]
      %v1678 = vld [vmem:[%s192 + $0x18] sm:$0xf]
      %v1679 = vld [vmem:[%s192 + $0x1c] sm:$0xf]
      %v1680 = vld [vmem:[%s192 + $0x20] sm:$0xf]
      %v1681 = vld [vmem:[%s192 + $0x24] sm:$0xf]
      %v1682 = vld [vmem:[%s192 + $0x28] sm:$0xf]
      %v1683 = vld [vmem:[%s192 + $0x2c] sm:$0xf]
      %v1684 = vld [vmem:[%s192 + $0x30] sm:$0xf]
      %v1685 = vld [vmem:[%s192 + $0x34] sm:$0xf]
      %v1686 = vld [vmem:[%s192 + $0x38] sm:$0xf]
      %v1687 = vld [vmem:[%s192 + $0x3c] sm:$0xf]
      %v1688 = vld [vmem:[%s192 + $0x40] sm:$0xf]
      %v1689 = vld [vmem:[%s192 + $0x44] sm:$0xf]
      %v1690 = vld [vmem:[%s192 + $0x48] sm:$0xf]
      %v1691 = vld [vmem:[%s192 + $0x4c] sm:$0xf]
      %v1692 = vld [vmem:[%s192 + $0x50] sm:$0xf]
      %v1693 = vld [vmem:[%s192 + $0x54] sm:$0xf]
      %v1694 = vld [vmem:[%s192 + $0x58] sm:$0xf]
      %v1695 = vld [vmem:[%s192 + $0x5c] sm:$0xf]
      %v1696 = vld [vmem:[%s192 + $0x60] sm:$0xf]
      %v1697 = vld [vmem:[%s192 + $0x64] sm:$0xf]
      %v1698 = vld [vmem:[%s192 + $0x68] sm:$0xf]
      %v1699 = vld [vmem:[%s192 + $0x6c] sm:$0xf]
      %v1700 = vld [vmem:[%s192 + $0x70] sm:$0xf]
      %v1701 = vld [vmem:[%s192 + $0x74] sm:$0xf]
      %v1702 = vld [vmem:[%s192 + $0x78] sm:$0xf]
      %v1703 = vld [vmem:[%s192 + $0x7c] sm:$0xf]
      %v1704 = vld [vmem:[%s192 + $0x80] sm:$0xf]
      %v1705 = vld [vmem:[%s192 + $0x84] sm:$0xf]
      %v1706 = vld [vmem:[%s192 + $0x88] sm:$0xf]
      %v1707 = vld [vmem:[%s192 + $0x8c] sm:$0xf]
      %v1708 = vld [vmem:[%s192 + $0x90] sm:$0xf]
      %v1709 = vld [vmem:[%s192 + $0x94] sm:$0xf]
      %v1710 = vld [vmem:[%s192 + $0x98] sm:$0x1]
      %s1711 = scalar_lea.vmem %s1, 8
      %v1712 = vld [vmem:[%s1711] sm:$0x3]
      %v1750 = vunpack.c.l.b16 %v1674
      %v1751 = vunpack.c.l.b16 %v1675
      %v1752 = vunpack.c.l.b16 %v1676
      %v1753 = vunpack.c.l.b16 %v1677
      %v1754 = vunpack.c.l.b16 %v1678
      %v1755 = vunpack.c.l.b16 %v1679
      %v1756 = vunpack.c.l.b16 %v1680
      %v1757 = vunpack.c.l.b16 %v1681
      %v1758 = vunpack.c.l.b16 %v1682
      %v1759 = vunpack.c.l.b16 %v1683
      %v1760 = vunpack.c.l.b16 %v1684
      %v1761 = vunpack.c.l.b16 %v1685
      %v1762 = vunpack.c.l.b16 %v1686
      %v1763 = vunpack.c.l.b16 %v1687
      %v1764 = vunpack.c.l.b16 %v1688
      %v1765 = vunpack.c.l.b16 %v1689
      %v1766 = vunpack.c.l.b16 %v1690
      %v1767 = vunpack.c.l.b16 %v1691
      %v1768 = vunpack.c.l.b16 %v1692
      %v1769 = vunpack.c.l.b16 %v1693
      %v1770 = vunpack.c.l.b16 %v1694
      %v1771 = vunpack.c.l.b16 %v1695
      %v1772 = vunpack.c.l.b16 %v1696
      %v1773 = vunpack.c.l.b16 %v1697
      %v1774 = vunpack.c.l.b16 %v1698
      %v1775 = vunpack.c.l.b16 %v1699
      %v1776 = vunpack.c.l.b16 %v1700
      %v1777 = vunpack.c.l.b16 %v1701
      %v1778 = vunpack.c.l.b16 %v1702
      %v1779 = vunpack.c.l.b16 %v1703
      %v1780 = vunpack.c.l.b16 %v1704
      %v1781 = vunpack.c.l.b16 %v1705
      %v1782 = vunpack.c.l.b16 %v1706
      %v1783 = vunpack.c.l.b16 %v1707
      %v1784 = vunpack.c.l.b16 %v1708
      %v1785 = vunpack.c.l.b16 %v1709
      %v1786 = vunpack.c.l.b16 %v1710
      %v1787 = vpack.c.b16 %v1751, %v1750
      %v1788 = vpack.c.b16 %v1753, %v1752
      %v1789 = vpack.c.b16 %v1755, %v1754
      %v1790 = vpack.c.b16 %v1757, %v1756
      %v1791 = vpack.c.b16 %v1759, %v1758
      %v1792 = vpack.c.b16 %v1761, %v1760
      %v1793 = vpack.c.b16 %v1763, %v1762
      %v1794 = vpack.c.b16 %v1765, %v1764
      %v1795 = vpack.c.b16 %v1767, %v1766
      %v1796 = vpack.c.b16 %v1769, %v1768
      %v1797 = vpack.c.b16 %v1771, %v1770
      %v1798 = vpack.c.b16 %v1773, %v1772
      %v1799 = vpack.c.b16 %v1775, %v1774
      %v1800 = vpack.c.b16 %v1777, %v1776
      %v1801 = vpack.c.b16 %v1779, %v1778
      %v1802 = vpack.c.b16 %v1781, %v1780
      %v1803 = vpack.c.b16 %v1783, %v1782
      %v1804 = vpack.c.b16 %v1785, %v1784
      %v1805 = vpack.c.b16 %v1786, %v1786
      %vm1806 = vsmask.f32 6400
      %v1808 = vshrl.u32 %v1787, 16
      %v1810 = vrot.slane %v1808, 1
      %v1811 = vshll.u32 %v1787, 16
      %v1813 = vrot.slane %v1811, 2
      %v1814 = vor.u32 %v1810, %v1813
      %v1816 = vshrl.u32 %v1788, 16
      %v1818 = vrot.slane %v1816, 1
      %v1819 = vshll.u32 %v1788, 16
      %v1821 = vrot.slane %v1819, 2
      %v1822 = vor.u32 %v1818, %v1821
      %v1823 = vsel %vm1806, %v1814, %v1822
      %v1825 = vshrl.u32 %v1789, 16
      %v1827 = vrot.slane %v1825, 1
      %v1828 = vshll.u32 %v1789, 16
      %v1830 = vrot.slane %v1828, 2
      %v1831 = vor.u32 %v1827, %v1830
      %v1832 = vsel %vm1806, %v1822, %v1831
      %v1834 = vshrl.u32 %v1790, 16
      %v1836 = vrot.slane %v1834, 1
      %v1837 = vshll.u32 %v1790, 16
      %v1839 = vrot.slane %v1837, 2
      %v1840 = vor.u32 %v1836, %v1839
      %v1841 = vsel %vm1806, %v1831, %v1840
      %v1843 = vshrl.u32 %v1791, 16
      %v1845 = vrot.slane %v1843, 1
      %v1846 = vshll.u32 %v1791, 16
      %v1848 = vrot.slane %v1846, 2
      %v1849 = vor.u32 %v1845, %v1848
      %v1850 = vsel %vm1806, %v1840, %v1849
      %v1852 = vshrl.u32 %v1792, 16
      %v1854 = vrot.slane %v1852, 1
      %v1855 = vshll.u32 %v1792, 16
      %v1857 = vrot.slane %v1855, 2
      %v1858 = vor.u32 %v1854, %v1857
      %v1859 = vsel %vm1806, %v1849, %v1858
      %v1861 = vshrl.u32 %v1793, 16
      %v1863 = vrot.slane %v1861, 1
      %v1864 = vshll.u32 %v1793, 16
      %v1866 = vrot.slane %v1864, 2
      %v1867 = vor.u32 %v1863, %v1866
      %v1868 = vsel %vm1806, %v1858, %v1867
      %v1870 = vshrl.u32 %v1794, 16
      %v1872 = vrot.slane %v1870, 1
      %v1873 = vshll.u32 %v1794, 16
      %v1875 = vrot.slane %v1873, 2
      %v1876 = vor.u32 %v1872, %v1875
      %v1877 = vsel %vm1806, %v1867, %v1876
      %v1879 = vshrl.u32 %v1795, 16
      %v1881 = vrot.slane %v1879, 1
      %v1882 = vshll.u32 %v1795, 16
      %v1884 = vrot.slane %v1882, 2
      %v1885 = vor.u32 %v1881, %v1884
      %v1886 = vsel %vm1806, %v1876, %v1885
      %v1888 = vshrl.u32 %v1796, 16
      %v1890 = vrot.slane %v1888, 1
      %v1891 = vshll.u32 %v1796, 16
      %v1893 = vrot.slane %v1891, 2
      %v1894 = vor.u32 %v1890, %v1893
      %v1895 = vsel %vm1806, %v1885, %v1894
      %v1897 = vshrl.u32 %v1797, 16
      %v1899 = vrot.slane %v1897, 1
      %v1900 = vshll.u32 %v1797, 16
      %v1902 = vrot.slane %v1900, 2
      %v1903 = vor.u32 %v1899, %v1902
      %v1904 = vsel %vm1806, %v1894, %v1903
      %v1906 = vshrl.u32 %v1798, 16
      %v1908 = vrot.slane %v1906, 1
      %v1909 = vshll.u32 %v1798, 16
      %v1911 = vrot.slane %v1909, 2
      %v1912 = vor.u32 %v1908, %v1911
      %v1913 = vsel %vm1806, %v1903, %v1912
      %v1915 = vshrl.u32 %v1799, 16
      %v1917 = vrot.slane %v1915, 1
      %v1918 = vshll.u32 %v1799, 16
      %v1920 = vrot.slane %v1918, 2
      %v1921 = vor.u32 %v1917, %v1920
      %v1922 = vsel %vm1806, %v1912, %v1921
      %v1924 = vshrl.u32 %v1800, 16
      %v1926 = vrot.slane %v1924, 1
      %v1927 = vshll.u32 %v1800, 16
      %v1929 = vrot.slane %v1927, 2
      %v1930 = vor.u32 %v1926, %v1929
      %v1931 = vsel %vm1806, %v1921, %v1930
      %v1933 = vshrl.u32 %v1801, 16
      %v1935 = vrot.slane %v1933, 1
      %v1936 = vshll.u32 %v1801, 16
      %v1938 = vrot.slane %v1936, 2
      %v1939 = vor.u32 %v1935, %v1938
      %v1940 = vsel %vm1806, %v1930, %v1939
      %v1942 = vshrl.u32 %v1802, 16
      %v1944 = vrot.slane %v1942, 1
      %v1945 = vshll.u32 %v1802, 16
      %v1947 = vrot.slane %v1945, 2
      %v1948 = vor.u32 %v1944, %v1947
      %v1949 = vsel %vm1806, %v1939, %v1948
      %v1951 = vshrl.u32 %v1803, 16
      %v1953 = vrot.slane %v1951, 1
      %v1954 = vshll.u32 %v1803, 16
      %v1956 = vrot.slane %v1954, 2
      %v1957 = vor.u32 %v1953, %v1956
      %v1958 = vsel %vm1806, %v1948, %v1957
      %v1960 = vshrl.u32 %v1804, 16
      %v1962 = vrot.slane %v1960, 1
      %v1963 = vshll.u32 %v1804, 16
      %v1965 = vrot.slane %v1963, 2
      %v1966 = vor.u32 %v1962, %v1965
      %v1967 = vsel %vm1806, %v1957, %v1966
      %v1969 = vshll.u32 %v1805, 16
      %v1971 = vrot.slane %v1969, 2
      %v1972 = vsel %vm1806, %v1966, %v1971
      %v1974 = vsel %vm473, %v1823, 0
      %v1977 = vsel %vm473, %v1832, 0
      %v1980 = vsel %vm473, %v1841, 0
      %v1983 = vsel %vm473, %v1850, 0
      %v1986 = vsel %vm473, %v1859, 0
      %v1989 = vsel %vm473, %v1868, 0
      %v1992 = vsel %vm473, %v1877, 0
      %v1995 = vsel %vm473, %v1886, 0
      %v1998 = vsel %vm473, %v1895, 0
      %v2001 = vsel %vm473, %v1904, 0
      %v2004 = vsel %vm473, %v1913, 0
      %v2007 = vsel %vm473, %v1922, 0
      %v2010 = vsel %vm473, %v1931, 0
      %v2013 = vsel %vm473, %v1940, 0
      %v2016 = vsel %vm473, %v1949, 0
      %v2019 = vsel %vm473, %v1958, 0
      %v2022 = vsel %vm473, %v1967, 0
      %v2025 = vsel %vm473, %v1972, 0
      %v2028 = vsel %vm528, %v1712, 0
      %2030 = vmatprep.subr.bf16.mxu0 0
      %2031 = vmatpush1.bf16.msra.mxu0 %v2028
      %2032 = vmatprep.subr.bf16.mxu0 0
      %2033 = vmatpush1.bf16.msra.mxu0 0
      %2034 = vmatprep.subr.bf16.mxu0 0
      %2035 = vmatpush1.bf16.msra.mxu0 0
      %2036 = vmatprep.subr.bf16.mxu0 0
      %2037 = vmatpush1.bf16.msra.mxu0 0
      %2038 = vmatprep.subr.bf16.mxu0 0
      %2039 = vmatpush1.bf16.msra.mxu0 0
      %2040 = vmatprep.subr.bf16.mxu0 0
      %2041 = vmatpush1.bf16.msra.mxu0 0
      %2042 = vmatprep.subr.bf16.mxu0 0
      %2043 = vmatpush1.bf16.msra.mxu0 0
      %2044 = vmatprep.subr.bf16.mxu0 0
      %2045 = vmatpush1.bf16.msra.mxu0 0
      %2046 = vmatprep.subr.bf16.mxu0 0
      %2047 = vmatpush1.bf16.msra.mxu0 0
      %2048 = vmatprep.subr.bf16.mxu0 0
      %2049 = vmatpush1.bf16.msra.mxu0 0
      %2050 = vmatprep.subr.bf16.mxu0 0
      %2051 = vmatpush1.bf16.msra.mxu0 0
      %2052 = vmatprep.subr.bf16.mxu0 0
      %2053 = vmatpush1.bf16.msra.mxu0 0
      %2054 = vmatprep.subr.bf16.mxu0 0
      %2055 = vmatpush1.bf16.msra.mxu0 0
      %2056 = vmatprep.subr.bf16.mxu0 0
      %2057 = vmatpush1.bf16.msra.mxu0 0
      %2058 = vmatprep.subr.bf16.mxu0 0
      %2059 = vmatpush1.bf16.msra.mxu0 0
      %2060 = vmatprep.subr.bf16.mxu0 0
      %2061 = vmatpush1.bf16.msra.mxu0 0
      %2062 = vmatprep.mubr.bf16.mxu0 0
      %2063 = vmatmul.mubr.bf16.gmra.mrb[0].mxu0 %v1974
      %v2064 = vpop.f32.mrb[0].mxu0
      %v2065 = vadd.f32 0.0, %v2064
      %v2066 = vpop.f32.mrb[0].mxu0
      %v2067 = vpop.f32.mrb[0].mxu0
      %v2068 = vadd.f32 0.0, %v2067
      %v2069 = vpop.f32.mrb[0].mxu0
      %2070 = vmatprep.mubr.bf16.mxu0 0
      %2071 = vmatmul.mubr.bf16.gmra.mrb[0].mxu0 %v1977
      %v2072 = vpop.f32.mrb[0].mxu0
      %v2073 = vadd.f32 0.0, %v2072
      %v2074 = vpop.f32.mrb[0].mxu0
      %v2075 = vpop.f32.mrb[0].mxu0
      %v2076 = vadd.f32 0.0, %v2075
      %v2077 = vpop.f32.mrb[0].mxu0
      %2078 = vmatprep.mubr.bf16.mxu0 0
      %2079 = vmatmul.mubr.bf16.gmra.mrb[0].mxu0 %v1980
      %v2080 = vpop.f32.mrb[0].mxu0
      %v2081 = vadd.f32 0.0, %v2080
      %v2082 = vpop.f32.mrb[0].mxu0
      %v2083 = vpop.f32.mrb[0].mxu0
      %v2084 = vadd.f32 0.0, %v2083
      %v2085 = vpop.f32.mrb[0].mxu0
      %2086 = vmatprep.mubr.bf16.mxu0 0
      %2087 = vmatmul.mubr.bf16.gmra.mrb[0].mxu0 %v1983
      %v2088 = vpop.f32.mrb[0].mxu0
      %v2089 = vadd.f32 0.0, %v2088
      %v2090 = vpop.f32.mrb[0].mxu0
      %v2091 = vpop.f32.mrb[0].mxu0
      %v2092 = vadd.f32 0.0, %v2091
      %v2093 = vpop.f32.mrb[0].mxu0
      %2094 = vmatprep.mubr.bf16.mxu0 0
      %2095 = vmatmul.mubr.bf16.gmra.mrb[0].mxu0 %v1986
      %v2096 = vpop.f32.mrb[0].mxu0
      %v2097 = vadd.f32 0.0, %v2096
      %v2098 = vpop.f32.mrb[0].mxu0
      %v2099 = vpop.f32.mrb[0].mxu0
      %v2100 = vadd.f32 0.0, %v2099
      %v2101 = vpop.f32.mrb[0].mxu0
      %2102 = vmatprep.mubr.bf16.mxu0 0
      %2103 = vmatmul.mubr.bf16.gmra.mrb[0].mxu0 %v1989
      %v2104 = vpop.f32.mrb[0].mxu0
      %v2105 = vadd.f32 0.0, %v2104
      %v2106 = vpop.f32.mrb[0].mxu0
      %v2107 = vpop.f32.mrb[0].mxu0
      %v2108 = vadd.f32 0.0, %v2107
      %v2109 = vpop.f32.mrb[0].mxu0
      %2110 = vmatprep.mubr.bf16.mxu0 0
      %2111 = vmatmul.mubr.bf16.gmra.mrb[0].mxu0 %v1992
      %v2112 = vpop.f32.mrb[0].mxu0
      %v2113 = vadd.f32 0.0, %v2112
      %v2114 = vpop.f32.mrb[0].mxu0
      %v2115 = vpop.f32.mrb[0].mxu0
      %v2116 = vadd.f32 0.0, %v2115
      %v2117 = vpop.f32.mrb[0].mxu0
      %2118 = vmatprep.mubr.bf16.mxu0 0
      %2119 = vmatmul.mubr.bf16.gmra.mrb[0].mxu0 %v1995
      %v2120 = vpop.f32.mrb[0].mxu0
      %v2121 = vadd.f32 0.0, %v2120
      %v2122 = vpop.f32.mrb[0].mxu0
      %v2123 = vpop.f32.mrb[0].mxu0
      %v2124 = vadd.f32 0.0, %v2123
      %v2125 = vpop.f32.mrb[0].mxu0
      %2126 = vmatprep.mubr.bf16.mxu0 0
      %2127 = vmatmul.mubr.bf16.gmra.mrb[0].mxu0 %v1998
      %v2128 = vpop.f32.mrb[0].mxu0
      %v2129 = vadd.f32 0.0, %v2128
      %v2130 = vpop.f32.mrb[0].mxu0
      %v2131 = vpop.f32.mrb[0].mxu0
      %v2132 = vadd.f32 0.0, %v2131
      %v2133 = vpop.f32.mrb[0].mxu0
      %2134 = vmatprep.mubr.bf16.mxu0 0
      %2135 = vmatmul.mubr.bf16.gmra.mrb[0].mxu0 %v2001
      %v2136 = vpop.f32.mrb[0].mxu0
      %v2137 = vadd.f32 0.0, %v2136
      %v2138 = vpop.f32.mrb[0].mxu0
      %v2139 = vpop.f32.mrb[0].mxu0
      %v2140 = vadd.f32 0.0, %v2139
      %v2141 = vpop.f32.mrb[0].mxu0
      %2142 = vmatprep.mubr.bf16.mxu0 0
      %2143 = vmatmul.mubr.bf16.gmra.mrb[0].mxu0 %v2004
      %v2144 = vpop.f32.mrb[0].mxu0
      %v2145 = vadd.f32 0.0, %v2144
      %v2146 = vpop.f32.mrb[0].mxu0
      %v2147 = vpop.f32.mrb[0].mxu0
      %v2148 = vadd.f32 0.0, %v2147
      %v2149 = vpop.f32.mrb[0].mxu0
      %2150 = vmatprep.mubr.bf16.mxu0 0
      %2151 = vmatmul.mubr.bf16.gmra.mrb[0].mxu0 %v2007
      %v2152 = vpop.f32.mrb[0].mxu0
      %v2153 = vadd.f32 0.0, %v2152
      %v2154 = vpop.f32.mrb[0].mxu0
      %v2155 = vpop.f32.mrb[0].mxu0
      %v2156 = vadd.f32 0.0, %v2155
      %v2157 = vpop.f32.mrb[0].mxu0
      %2158 = vmatprep.mubr.bf16.mxu0 0
      %2159 = vmatmul.mubr.bf16.gmra.mrb[0].mxu0 %v2010
      %v2160 = vpop.f32.mrb[0].mxu0
      %v2161 = vadd.f32 0.0, %v2160
      %v2162 = vpop.f32.mrb[0].mxu0
      %v2163 = vpop.f32.mrb[0].mxu0
      %v2164 = vadd.f32 0.0, %v2163
      %v2165 = vpop.f32.mrb[0].mxu0
      %2166 = vmatprep.mubr.bf16.mxu0 0
      %2167 = vmatmul.mubr.bf16.gmra.mrb[0].mxu0 %v2013
      %v2168 = vpop.f32.mrb[0].mxu0
      %v2169 = vadd.f32 0.0, %v2168
      %v2170 = vpop.f32.mrb[0].mxu0
      %v2171 = vpop.f32.mrb[0].mxu0
      %v2172 = vadd.f32 0.0, %v2171
      %v2173 = vpop.f32.mrb[0].mxu0
      %2174 = vmatprep.mubr.bf16.mxu0 0
      %2175 = vmatmul.mubr.bf16.gmra.mrb[0].mxu0 %v2016
      %v2176 = vpop.f32.mrb[0].mxu0
      %v2177 = vadd.f32 0.0, %v2176
      %v2178 = vpop.f32.mrb[0].mxu0
      %v2179 = vpop.f32.mrb[0].mxu0
      %v2180 = vadd.f32 0.0, %v2179
      %v2181 = vpop.f32.mrb[0].mxu0
      %2182 = vmatprep.mubr.bf16.mxu0 0
      %2183 = vmatmul.mubr.bf16.gmra.mrb[0].mxu0 %v2019
      %v2184 = vpop.f32.mrb[0].mxu0
      %v2185 = vadd.f32 0.0, %v2184
      %v2186 = vpop.f32.mrb[0].mxu0
      %v2187 = vpop.f32.mrb[0].mxu0
      %v2188 = vadd.f32 0.0, %v2187
      %v2189 = vpop.f32.mrb[0].mxu0
      %2190 = vmatprep.mubr.bf16.mxu0 0
      %2191 = vmatmul.mubr.bf16.gmra.mrb[0].mxu0 %v2022
      %v2192 = vpop.f32.mrb[0].mxu0
      %v2193 = vadd.f32 0.0, %v2192
      %v2194 = vpop.f32.mrb[0].mxu0
      %v2195 = vpop.f32.mrb[0].mxu0
      %v2196 = vadd.f32 0.0, %v2195
      %v2197 = vpop.f32.mrb[0].mxu0
      %2198 = vmatprep.mubr.bf16.mxu0 0
      %2199 = vmatmul.mubr.bf16.gmra.mrb[0].mxu0 %v2025
      %v2200 = vpop.f32.mrb[0].mxu0
      %v2201 = vadd.f32 0.0, %v2200
      %v2202 = vpop.f32.mrb[0].mxu0
      %v2203 = vpop.f32.mrb[0].mxu0
      %v2204 = vadd.f32 0.0, %v2203
      %v2205 = vpop.f32.mrb[0].mxu0
      %2206 = vdwg.mxu0
      %v2207 = vadd.f32 %v1638, %v2065
      %v2208 = vadd.f32 %v1639, %v2068
      %v2209 = vadd.f32 %v1640, %v2073
      %v2210 = vadd.f32 %v1641, %v2076
      %v2211 = vadd.f32 %v1642, %v2081
      %v2212 = vadd.f32 %v1643, %v2084
      %v2213 = vadd.f32 %v1644, %v2089
      %v2214 = vadd.f32 %v1645, %v2092
      %v2215 = vadd.f32 %v1646, %v2097
      %v2216 = vadd.f32 %v1647, %v2100
      %v2217 = vadd.f32 %v1648, %v2105
      %v2218 = vadd.f32 %v1649, %v2108
      %v2219 = vadd.f32 %v1650, %v2113
      %v2220 = vadd.f32 %v1651, %v2116
      %v2221 = vadd.f32 %v1652, %v2121
      %v2222 = vadd.f32 %v1653, %v2124
      %v2223 = vadd.f32 %v1654, %v2129
      %v2224 = vadd.f32 %v1655, %v2132
      %v2225 = vadd.f32 %v1656, %v2137
      %v2226 = vadd.f32 %v1657, %v2140
      %v2227 = vadd.f32 %v1658, %v2145
      %v2228 = vadd.f32 %v1659, %v2148
      %v2229 = vadd.f32 %v1660, %v2153
      %v2230 = vadd.f32 %v1661, %v2156
      %v2231 = vadd.f32 %v1662, %v2161
      %v2232 = vadd.f32 %v1663, %v2164
      %v2233 = vadd.f32 %v1664, %v2169
      %v2234 = vadd.f32 %v1665, %v2172
      %v2235 = vadd.f32 %v1666, %v2177
      %v2236 = vadd.f32 %v1667, %v2180
      %v2237 = vadd.f32 %v1668, %v2185
      %v2238 = vadd.f32 %v1669, %v2188
      %v2239 = vadd.f32 %v1670, %v2193
      %v2240 = vadd.f32 %v1671, %v2196
      %v2241 = vadd.f32 %v1672, %v2201
      %v2242 = vadd.f32 %v1673, %v2204
      %v2243 = vld [vmem:[%s192 + $0x8] sm:$0xc]
      %s2244 = scalar_lea.vmem %s1, 10
      %v2245 = vld [vmem:[%s2244] sm:$0x3]
      %v2247 = vunpack.c.l.b16 %v2243
      %v2248 = vpack.c.b16 %v1751, %v2247
      %vm2249 = vcmask 1045504
      %v2250 = vrot.slane %v2248, 2
      %v2251 = vrot.slane %v1788, 2
      %v2252 = vsel %vm2249, %v2250, %v2251
      %v2253 = vrot.slane %v1789, 2
      %v2254 = vsel %vm2249, %v2251, %v2253
      %v2255 = vrot.slane %v1790, 2
      %v2256 = vsel %vm2249, %v2253, %v2255
      %v2257 = vrot.slane %v1791, 2
      %v2258 = vsel %vm2249, %v2255, %v2257
      %v2259 = vrot.slane %v1792, 2
      %v2260 = vsel %vm2249, %v2257, %v2259
      %v2261 = vrot.slane %v1793, 2
      %v2262 = vsel %vm2249, %v2259, %v2261
      %v2263 = vrot.slane %v1794, 2
      %v2264 = vsel %vm2249, %v2261, %v2263
      %v2265 = vrot.slane %v1795, 2
      %v2266 = vsel %vm2249, %v2263, %v2265
      %v2267 = vrot.slane %v1796, 2
      %v2268 = vsel %vm2249, %v2265, %v2267
      %v2269 = vrot.slane %v1797, 2
      %v2270 = vsel %vm2249, %v2267, %v2269
      %v2271 = vrot.slane %v1798, 2
      %v2272 = vsel %vm2249, %v2269, %v2271
      %v2273 = vrot.slane %v1799, 2
      %v2274 = vsel %vm2249, %v2271, %v2273
      %v2275 = vrot.slane %v1800, 2
      %v2276 = vsel %vm2249, %v2273, %v2275
      %v2277 = vrot.slane %v1801, 2
      %v2278 = vsel %vm2249, %v2275, %v2277
      %v2279 = vrot.slane %v1802, 2
      %v2280 = vsel %vm2249, %v2277, %v2279
      %v2281 = vrot.slane %v1803, 2
      %v2282 = vsel %vm2249, %v2279, %v2281
      %v2283 = vrot.slane %v1804, 2
      %v2284 = vsel %vm2249, %v2281, %v2283
      %v2285 = vrot.slane %v1805, 2
      %v2286 = vsel %vm2249, %v2283, %v2285
      %v2288 = vsel %vm473, %v2252, 0
      %v2291 = vsel %vm473, %v2254, 0
      %v2294 = vsel %vm473, %v2256, 0
      %v2297 = vsel %vm473, %v2258, 0
      %v2300 = vsel %vm473, %v2260, 0
      %v2303 = vsel %vm473, %v2262, 0
      %v2306 = vsel %vm473, %v2264, 0
      %v2309 = vsel %vm473, %v2266, 0
      %v2312 = vsel %vm473, %v2268, 0
      %v2315 = vsel %vm473, %v2270, 0
      %v2318 = vsel %vm473, %v2272, 0
      %v2321 = vsel %vm473, %v2274, 0
      %v2324 = vsel %vm473, %v2276, 0
      %v2327 = vsel %vm473, %v2278, 0
      %v2330 = vsel %vm473, %v2280, 0
      %v2333 = vsel %vm473, %v2282, 0
      %v2336 = vsel %vm473, %v2284, 0
      %v2339 = vsel %vm473, %v2286, 0
      %v2342 = vsel %vm528, %v2245, 0
      %2344 = vmatprep.subr.bf16.mxu0 0
      %2345 = vmatpush1.bf16.msra.mxu0 %v2342
      %2346 = vmatprep.subr.bf16.mxu0 0
      %2347 = vmatpush1.bf16.msra.mxu0 0
      %2348 = vmatprep.subr.bf16.mxu0 0
      %2349 = vmatpush1.bf16.msra.mxu0 0
      %2350 = vmatprep.subr.bf16.mxu0 0
      %2351 = vmatpush1.bf16.msra.mxu0 0
      %2352 = vmatprep.subr.bf16.mxu0 0
      %2353 = vmatpush1.bf16.msra.mxu0 0
      %2354 = vmatprep.subr.bf16.mxu0 0
      %2355 = vmatpush1.bf16.msra.mxu0 0
      %2356 = vmatprep.subr.bf16.mxu0 0
      %2357 = vmatpush1.bf16.msra.mxu0 0
      %2358 = vmatprep.subr.bf16.mxu0 0
      %2359 = vmatpush1.bf16.msra.mxu0 0
      %2360 = vmatprep.subr.bf16.mxu0 0
      %2361 = vmatpush1.bf16.msra.mxu0 0
      %2362 = vmatprep.subr.bf16.mxu0 0
      %2363 = vmatpush1.bf16.msra.mxu0 0
      %2364 = vmatprep.subr.bf16.mxu0 0
      %2365 = vmatpush1.bf16.msra.mxu0 0
      %2366 = vmatprep.subr.bf16.mxu0 0
      %2367 = vmatpush1.bf16.msra.mxu0 0
      %2368 = vmatprep.subr.bf16.mxu0 0
      %2369 = vmatpush1.bf16.msra.mxu0 0
      %2370 = vmatprep.subr.bf16.mxu0 0
      %2371 = vmatpush1.bf16.msra.mxu0 0
      %2372 = vmatprep.subr.bf16.mxu0 0
      %2373 = vmatpush1.bf16.msra.mxu0 0
      %2374 = vmatprep.subr.bf16.mxu0 0
      %2375 = vmatpush1.bf16.msra.mxu0 0
      %2376 = vmatprep.mubr.bf16.mxu0 0
      %2377 = vmatmul.mubr.bf16.gmra.mrb[0].mxu0 %v2288
      %v2378 = vpop.f32.mrb[0].mxu0
      %v2379 = vadd.f32 0.0, %v2378
      %v2380 = vpop.f32.mrb[0].mxu0
      %v2381 = vpop.f32.mrb[0].mxu0
      %v2382 = vadd.f32 0.0, %v2381
      %v2383 = vpop.f32.mrb[0].mxu0
      %2384 = vmatprep.mubr.bf16.mxu0 0
      %2385 = vmatmul.mubr.bf16.gmra.mrb[0].mxu0 %v2291
      %v2386 = vpop.f32.mrb[0].mxu0
      %v2387 = vadd.f32 0.0, %v2386
      %v2388 = vpop.f32.mrb[0].mxu0
      %v2389 = vpop.f32.mrb[0].mxu0
      %v2390 = vadd.f32 0.0, %v2389
      %v2391 = vpop.f32.mrb[0].mxu0
      %2392 = vmatprep.mubr.bf16.mxu0 0
      %2393 = vmatmul.mubr.bf16.gmra.mrb[0].mxu0 %v2294
      %v2394 = vpop.f32.mrb[0].mxu0
      %v2395 = vadd.f32 0.0, %v2394
      %v2396 = vpop.f32.mrb[0].mxu0
      %v2397 = vpop.f32.mrb[0].mxu0
      %v2398 = vadd.f32 0.0, %v2397
      %v2399 = vpop.f32.mrb[0].mxu0
      %2400 = vmatprep.mubr.bf16.mxu0 0
      %2401 = vmatmul.mubr.bf16.gmra.mrb[0].mxu0 %v2297
      %v2402 = vpop.f32.mrb[0].mxu0
      %v2403 = vadd.f32 0.0, %v2402
      %v2404 = vpop.f32.mrb[0].mxu0
      %v2405 = vpop.f32.mrb[0].mxu0
      %v2406 = vadd.f32 0.0, %v2405
      %v2407 = vpop.f32.mrb[0].mxu0
      %2408 = vmatprep.mubr.bf16.mxu0 0
      %2409 = vmatmul.mubr.bf16.gmra.mrb[0].mxu0 %v2300
      %v2410 = vpop.f32.mrb[0].mxu0
      %v2411 = vadd.f32 0.0, %v2410
      %v2412 = vpop.f32.mrb[0].mxu0
      %v2413 = vpop.f32.mrb[0].mxu0
      %v2414 = vadd.f32 0.0, %v2413
      %v2415 = vpop.f32.mrb[0].mxu0
      %2416 = vmatprep.mubr.bf16.mxu0 0
      %2417 = vmatmul.mubr.bf16.gmra.mrb[0].mxu0 %v2303
      %v2418 = vpop.f32.mrb[0].mxu0
      %v2419 = vadd.f32 0.0, %v2418
      %v2420 = vpop.f32.mrb[0].mxu0
      %v2421 = vpop.f32.mrb[0].mxu0
      %v2422 = vadd.f32 0.0, %v2421
      %v2423 = vpop.f32.mrb[0].mxu0
      %2424 = vmatprep.mubr.bf16.mxu0 0
      %2425 = vmatmul.mubr.bf16.gmra.mrb[0].mxu0 %v2306
      %v2426 = vpop.f32.mrb[0].mxu0
      %v2427 = vadd.f32 0.0, %v2426
      %v2428 = vpop.f32.mrb[0].mxu0
      %v2429 = vpop.f32.mrb[0].mxu0
      %v2430 = vadd.f32 0.0, %v2429
      %v2431 = vpop.f32.mrb[0].mxu0
      %2432 = vmatprep.mubr.bf16.mxu0 0
      %2433 = vmatmul.mubr.bf16.gmra.mrb[0].mxu0 %v2309
      %v2434 = vpop.f32.mrb[0].mxu0
      %v2435 = vadd.f32 0.0, %v2434
      %v2436 = vpop.f32.mrb[0].mxu0
      %v2437 = vpop.f32.mrb[0].mxu0
      %v2438 = vadd.f32 0.0, %v2437
      %v2439 = vpop.f32.mrb[0].mxu0
      %2440 = vmatprep.mubr.bf16.mxu0 0
      %2441 = vmatmul.mubr.bf16.gmra.mrb[0].mxu0 %v2312
      %v2442 = vpop.f32.mrb[0].mxu0
      %v2443 = vadd.f32 0.0, %v2442
      %v2444 = vpop.f32.mrb[0].mxu0
      %v2445 = vpop.f32.mrb[0].mxu0
      %v2446 = vadd.f32 0.0, %v2445
      %v2447 = vpop.f32.mrb[0].mxu0
      %2448 = vmatprep.mubr.bf16.mxu0 0
      %2449 = vmatmul.mubr.bf16.gmra.mrb[0].mxu0 %v2315
      %v2450 = vpop.f32.mrb[0].mxu0
      %v2451 = vadd.f32 0.0, %v2450
      %v2452 = vpop.f32.mrb[0].mxu0
      %v2453 = vpop.f32.mrb[0].mxu0
      %v2454 = vadd.f32 0.0, %v2453
      %v2455 = vpop.f32.mrb[0].mxu0
      %2456 = vmatprep.mubr.bf16.mxu0 0
      %2457 = vmatmul.mubr.bf16.gmra.mrb[0].mxu0 %v2318
      %v2458 = vpop.f32.mrb[0].mxu0
      %v2459 = vadd.f32 0.0, %v2458
      %v2460 = vpop.f32.mrb[0].mxu0
      %v2461 = vpop.f32.mrb[0].mxu0
      %v2462 = vadd.f32 0.0, %v2461
      %v2463 = vpop.f32.mrb[0].mxu0
      %2464 = vmatprep.mubr.bf16.mxu0 0
      %2465 = vmatmul.mubr.bf16.gmra.mrb[0].mxu0 %v2321
      %v2466 = vpop.f32.mrb[0].mxu0
      %v2467 = vadd.f32 0.0, %v2466
      %v2468 = vpop.f32.mrb[0].mxu0
      %v2469 = vpop.f32.mrb[0].mxu0
      %v2470 = vadd.f32 0.0, %v2469
      %v2471 = vpop.f32.mrb[0].mxu0
      %2472 = vmatprep.mubr.bf16.mxu0 0
      %2473 = vmatmul.mubr.bf16.gmra.mrb[0].mxu0 %v2324
      %v2474 = vpop.f32.mrb[0].mxu0
      %v2475 = vadd.f32 0.0, %v2474
      %v2476 = vpop.f32.mrb[0].mxu0
      %v2477 = vpop.f32.mrb[0].mxu0
      %v2478 = vadd.f32 0.0, %v2477
      %v2479 = vpop.f32.mrb[0].mxu0
      %2480 = vmatprep.mubr.bf16.mxu0 0
      %2481 = vmatmul.mubr.bf16.gmra.mrb[0].mxu0 %v2327
      %v2482 = vpop.f32.mrb[0].mxu0
      %v2483 = vadd.f32 0.0, %v2482
      %v2484 = vpop.f32.mrb[0].mxu0
      %v2485 = vpop.f32.mrb[0].mxu0
      %v2486 = vadd.f32 0.0, %v2485
      %v2487 = vpop.f32.mrb[0].mxu0
      %2488 = vmatprep.mubr.bf16.mxu0 0
      %2489 = vmatmul.mubr.bf16.gmra.mrb[0].mxu0 %v2330
      %v2490 = vpop.f32.mrb[0].mxu0
      %v2491 = vadd.f32 0.0, %v2490
      %v2492 = vpop.f32.mrb[0].mxu0
      %v2493 = vpop.f32.mrb[0].mxu0
      %v2494 = vadd.f32 0.0, %v2493
      %v2495 = vpop.f32.mrb[0].mxu0
      %2496 = vmatprep.mubr.bf16.mxu0 0
      %2497 = vmatmul.mubr.bf16.gmra.mrb[0].mxu0 %v2333
      %v2498 = vpop.f32.mrb[0].mxu0
      %v2499 = vadd.f32 0.0, %v2498
      %v2500 = vpop.f32.mrb[0].mxu0
      %v2501 = vpop.f32.mrb[0].mxu0
      %v2502 = vadd.f32 0.0, %v2501
      %v2503 = vpop.f32.mrb[0].mxu0
      %2504 = vmatprep.mubr.bf16.mxu0 0
      %2505 = vmatmul.mubr.bf16.gmra.mrb[0].mxu0 %v2336
      %v2506 = vpop.f32.mrb[0].mxu0
      %v2507 = vadd.f32 0.0, %v2506
      %v2508 = vpop.f32.mrb[0].mxu0
      %v2509 = vpop.f32.mrb[0].mxu0
      %v2510 = vadd.f32 0.0, %v2509
      %v2511 = vpop.f32.mrb[0].mxu0
      %2512 = vmatprep.mubr.bf16.mxu0 0
      %2513 = vmatmul.mubr.bf16.gmra.mrb[0].mxu0 %v2339
      %v2514 = vpop.f32.mrb[0].mxu0
      %v2515 = vadd.f32 0.0, %v2514
      %v2516 = vpop.f32.mrb[0].mxu0
      %v2517 = vpop.f32.mrb[0].mxu0
      %v2518 = vadd.f32 0.0, %v2517
      %v2519 = vpop.f32.mrb[0].mxu0
      %2520 = vdwg.mxu0
      %v2521 = vadd.f32 %v2207, %v2379
      %v2522 = vadd.f32 %v2208, %v2382
      %v2523 = vadd.f32 %v2209, %v2387
      %v2524 = vadd.f32 %v2210, %v2390
      %v2525 = vadd.f32 %v2211, %v2395
      %v2526 = vadd.f32 %v2212, %v2398
      %v2527 = vadd.f32 %v2213, %v2403
      %v2528 = vadd.f32 %v2214, %v2406
      %v2529 = vadd.f32 %v2215, %v2411
      %v2530 = vadd.f32 %v2216, %v2414
      %v2531 = vadd.f32 %v2217, %v2419
      %v2532 = vadd.f32 %v2218, %v2422
      %v2533 = vadd.f32 %v2219, %v2427
      %v2534 = vadd.f32 %v2220, %v2430
      %v2535 = vadd.f32 %v2221, %v2435
      %v2536 = vadd.f32 %v2222, %v2438
      %v2537 = vadd.f32 %v2223, %v2443
      %v2538 = vadd.f32 %v2224, %v2446
      %v2539 = vadd.f32 %v2225, %v2451
      %v2540 = vadd.f32 %v2226, %v2454
      %v2541 = vadd.f32 %v2227, %v2459
      %v2542 = vadd.f32 %v2228, %v2462
      %v2543 = vadd.f32 %v2229, %v2467
      %v2544 = vadd.f32 %v2230, %v2470
      %v2545 = vadd.f32 %v2231, %v2475
      %v2546 = vadd.f32 %v2232, %v2478
      %v2547 = vadd.f32 %v2233, %v2483
      %v2548 = vadd.f32 %v2234, %v2486
      %v2549 = vadd.f32 %v2235, %v2491
      %v2550 = vadd.f32 %v2236, %v2494
      %v2551 = vadd.f32 %v2237, %v2499
      %v2552 = vadd.f32 %v2238, %v2502
      %v2553 = vadd.f32 %v2239, %v2507
      %v2554 = vadd.f32 %v2240, %v2510
      %v2555 = vadd.f32 %v2241, %v2515
      %v2556 = vadd.f32 %v2242, %v2518
      %v2557 = vld [vmem:[%s192 + $0x10] sm:$0xc]
      %v2558 = vld [vmem:[%s192 + $0x14] sm:$0xf]
      %v2559 = vld [vmem:[%s192 + $0x18] sm:$0xf]
      %v2560 = vld [vmem:[%s192 + $0x1c] sm:$0xf]
      %v2561 = vld [vmem:[%s192 + $0x20] sm:$0xf]
      %v2562 = vld [vmem:[%s192 + $0x24] sm:$0xf]
      %v2563 = vld [vmem:[%s192 + $0x28] sm:$0xf]
      %v2564 = vld [vmem:[%s192 + $0x2c] sm:$0xf]
      %v2565 = vld [vmem:[%s192 + $0x30] sm:$0xf]
      %v2566 = vld [vmem:[%s192 + $0x34] sm:$0xf]
      %v2567 = vld [vmem:[%s192 + $0x38] sm:$0xf]
      %v2568 = vld [vmem:[%s192 + $0x3c] sm:$0xf]
      %v2569 = vld [vmem:[%s192 + $0x40] sm:$0xf]
      %v2570 = vld [vmem:[%s192 + $0x44] sm:$0xf]
      %v2571 = vld [vmem:[%s192 + $0x48] sm:$0xf]
      %v2572 = vld [vmem:[%s192 + $0x4c] sm:$0xf]
      %v2573 = vld [vmem:[%s192 + $0x50] sm:$0xf]
      %v2574 = vld [vmem:[%s192 + $0x54] sm:$0xf]
      %v2575 = vld [vmem:[%s192 + $0x58] sm:$0xf]
      %v2576 = vld [vmem:[%s192 + $0x5c] sm:$0xf]
      %v2577 = vld [vmem:[%s192 + $0x60] sm:$0xf]
      %v2578 = vld [vmem:[%s192 + $0x64] sm:$0xf]
      %v2579 = vld [vmem:[%s192 + $0x68] sm:$0xf]
      %v2580 = vld [vmem:[%s192 + $0x6c] sm:$0xf]
      %v2581 = vld [vmem:[%s192 + $0x70] sm:$0xf]
      %v2582 = vld [vmem:[%s192 + $0x74] sm:$0xf]
      %v2583 = vld [vmem:[%s192 + $0x78] sm:$0xf]
      %v2584 = vld [vmem:[%s192 + $0x7c] sm:$0xf]
      %v2585 = vld [vmem:[%s192 + $0x80] sm:$0xf]
      %v2586 = vld [vmem:[%s192 + $0x84] sm:$0xf]
      %v2587 = vld [vmem:[%s192 + $0x88] sm:$0xf]
      %v2588 = vld [vmem:[%s192 + $0x8c] sm:$0xf]
      %v2589 = vld [vmem:[%s192 + $0x90] sm:$0xf]
      %v2590 = vld [vmem:[%s192 + $0x94] sm:$0xf]
      %v2591 = vld [vmem:[%s192 + $0x98] sm:$0xf]
      %v2592 = vld [vmem:[%s192 + $0x9c] sm:$0xf]
      %v2593 = vld [vmem:[%s192 + $0xa0] sm:$0x1]
      %s2594 = scalar_lea.vmem %s1, 12
      %v2595 = vld [vmem:[%s2594] sm:$0x3]
      %v2633 = vunpack.c.l.b16 %v2557
      %v2634 = vunpack.c.l.b16 %v2558
      %v2635 = vunpack.c.l.b16 %v2559
      %v2636 = vunpack.c.l.b16 %v2560
      %v2637 = vunpack.c.l.b16 %v2561
      %v2638 = vunpack.c.l.b16 %v2562
      %v2639 = vunpack.c.l.b16 %v2563
      %v2640 = vunpack.c.l.b16 %v2564
      %v2641 = vunpack.c.l.b16 %v2565
      %v2642 = vunpack.c.l.b16 %v2566
      %v2643 = vunpack.c.l.b16 %v2567
      %v2644 = vunpack.c.l.b16 %v2568
      %v2645 = vunpack.c.l.b16 %v2569
      %v2646 = vunpack.c.l.b16 %v2570
      %v2647 = vunpack.c.l.b16 %v2571
      %v2648 = vunpack.c.l.b16 %v2572
      %v2649 = vunpack.c.l.b16 %v2573
      %v2650 = vunpack.c.l.b16 %v2574
      %v2651 = vunpack.c.l.b16 %v2575
      %v2652 = vunpack.c.l.b16 %v2576
      %v2653 = vunpack.c.l.b16 %v2577
      %v2654 = vunpack.c.l.b16 %v2578
      %v2655 = vunpack.c.l.b16 %v2579
      %v2656 = vunpack.c.l.b16 %v2580
      %v2657 = vunpack.c.l.b16 %v2581
      %v2658 = vunpack.c.l.b16 %v2582
      %v2659 = vunpack.c.l.b16 %v2583
      %v2660 = vunpack.c.l.b16 %v2584
      %v2661 = vunpack.c.l.b16 %v2585
      %v2662 = vunpack.c.l.b16 %v2586
      %v2663 = vunpack.c.l.b16 %v2587
      %v2664 = vunpack.c.l.b16 %v2588
      %v2665 = vunpack.c.l.b16 %v2589
      %v2666 = vunpack.c.l.b16 %v2590
      %v2667 = vunpack.c.l.b16 %v2591
      %v2668 = vunpack.c.l.b16 %v2592
      %v2669 = vunpack.c.l.b16 %v2593
      %v2670 = vpack.c.b16 %v2634, %v2633
      %v2671 = vpack.c.b16 %v2636, %v2635
      %v2672 = vpack.c.b16 %v2638, %v2637
      %v2673 = vpack.c.b16 %v2640, %v2639
      %v2674 = vpack.c.b16 %v2642, %v2641
      %v2675 = vpack.c.b16 %v2644, %v2643
      %v2676 = vpack.c.b16 %v2646, %v2645
      %v2677 = vpack.c.b16 %v2648, %v2647
      %v2678 = vpack.c.b16 %v2650, %v2649
      %v2679 = vpack.c.b16 %v2652, %v2651
      %v2680 = vpack.c.b16 %v2654, %v2653
      %v2681 = vpack.c.b16 %v2656, %v2655
      %v2682 = vpack.c.b16 %v2658, %v2657
      %v2683 = vpack.c.b16 %v2660, %v2659
      %v2684 = vpack.c.b16 %v2662, %v2661
      %v2685 = vpack.c.b16 %v2664, %v2663
      %v2686 = vpack.c.b16 %v2666, %v2665
      %v2687 = vpack.c.b16 %v2668, %v2667
      %v2688 = vpack.c.b16 %v2669, %v2669
      %v2689 = vrot.slane %v2670, 2
      %v2690 = vrot.slane %v2671, 2
      %v2691 = vsel %vm2249, %v2689, %v2690
      %v2692 = vrot.slane %v2672, 2
      %v2693 = vsel %vm2249, %v2690, %v2692
      %v2694 = vrot.slane %v2673, 2
      %v2695 = vsel %vm2249, %v2692, %v2694
      %v2696 = vrot.slane %v2674, 2
      %v2697 = vsel %vm2249, %v2694, %v2696
      %v2698 = vrot.slane %v2675, 2
      %v2699 = vsel %vm2249, %v2696, %v2698
      %v2700 = vrot.slane %v2676, 2
      %v2701 = vsel %vm2249, %v2698, %v2700
      %v2702 = vrot.slane %v2677, 2
      %v2703 = vsel %vm2249, %v2700, %v2702
      %v2704 = vrot.slane %v2678, 2
      %v2705 = vsel %vm2249, %v2702, %v2704
      %v2706 = vrot.slane %v2679, 2
      %v2707 = vsel %vm2249, %v2704, %v2706
      %v2708 = vrot.slane %v2680, 2
      %v2709 = vsel %vm2249, %v2706, %v2708
      %v2710 = vrot.slane %v2681, 2
      %v2711 = vsel %vm2249, %v2708, %v2710
      %v2712 = vrot.slane %v2682, 2
      %v2713 = vsel %vm2249, %v2710, %v2712
      %v2714 = vrot.slane %v2683, 2
      %v2715 = vsel %vm2249, %v2712, %v2714
      %v2716 = vrot.slane %v2684, 2
      %v2717 = vsel %vm2249, %v2714, %v2716
      %v2718 = vrot.slane %v2685, 2
      %v2719 = vsel %vm2249, %v2716, %v2718
      %v2720 = vrot.slane %v2686, 2
      %v2721 = vsel %vm2249, %v2718, %v2720
      %v2722 = vrot.slane %v2687, 2
      %v2723 = vsel %vm2249, %v2720, %v2722
      %v2724 = vrot.slane %v2688, 2
      %v2725 = vsel %vm2249, %v2722, %v2724
      %v2727 = vsel %vm473, %v2691, 0
      %v2730 = vsel %vm473, %v2693, 0
      %v2733 = vsel %vm473, %v2695, 0
      %v2736 = vsel %vm473, %v2697, 0
      %v2739 = vsel %vm473, %v2699, 0
      %v2742 = vsel %vm473, %v2701, 0
      %v2745 = vsel %vm473, %v2703, 0
      %v2748 = vsel %vm473, %v2705, 0
      %v2751 = vsel %vm473, %v2707, 0
      %v2754 = vsel %vm473, %v2709, 0
      %v2757 = vsel %vm473, %v2711, 0
      %v2760 = vsel %vm473, %v2713, 0
      %v2763 = vsel %vm473, %v2715, 0
      %v2766 = vsel %vm473, %v2717, 0
      %v2769 = vsel %vm473, %v2719, 0
      %v2772 = vsel %vm473, %v2721, 0
      %v2775 = vsel %vm473, %v2723, 0
      %v2778 = vsel %vm473, %v2725, 0
      %v2781 = vsel %vm528, %v2595, 0
      %2783 = vmatprep.subr.bf16.mxu0 0
      %2784 = vmatpush1.bf16.msra.mxu0 %v2781
      %2785 = vmatprep.subr.bf16.mxu0 0
      %2786 = vmatpush1.bf16.msra.mxu0 0
      %2787 = vmatprep.subr.bf16.mxu0 0
      %2788 = vmatpush1.bf16.msra.mxu0 0
      %2789 = vmatprep.subr.bf16.mxu0 0
      %2790 = vmatpush1.bf16.msra.mxu0 0
      %2791 = vmatprep.subr.bf16.mxu0 0
      %2792 = vmatpush1.bf16.msra.mxu0 0
      %2793 = vmatprep.subr.bf16.mxu0 0
      %2794 = vmatpush1.bf16.msra.mxu0 0
      %2795 = vmatprep.subr.bf16.mxu0 0
      %2796 = vmatpush1.bf16.msra.mxu0 0
      %2797 = vmatprep.subr.bf16.mxu0 0
      %2798 = vmatpush1.bf16.msra.mxu0 0
      %2799 = vmatprep.subr.bf16.mxu0 0
      %2800 = vmatpush1.bf16.msra.mxu0 0
      %2801 = vmatprep.subr.bf16.mxu0 0
      %2802 = vmatpush1.bf16.msra.mxu0 0
      %2803 = vmatprep.subr.bf16.mxu0 0
      %2804 = vmatpush1.bf16.msra.mxu0 0
      %2805 = vmatprep.subr.bf16.mxu0 0
      %2806 = vmatpush1.bf16.msra.mxu0 0
      %2807 = vmatprep.subr.bf16.mxu0 0
      %2808 = vmatpush1.bf16.msra.mxu0 0
      %2809 = vmatprep.subr.bf16.mxu0 0
      %2810 = vmatpush1.bf16.msra.mxu0 0
      %2811 = vmatprep.subr.bf16.mxu0 0
      %2812 = vmatpush1.bf16.msra.mxu0 0
      %2813 = vmatprep.subr.bf16.mxu0 0
      %2814 = vmatpush1.bf16.msra.mxu0 0
      %2815 = vmatprep.mubr.bf16.mxu0 0
      %2816 = vmatmul.mubr.bf16.gmra.mrb[0].mxu0 %v2727
      %v2817 = vpop.f32.mrb[0].mxu0
      %v2818 = vadd.f32 0.0, %v2817
      %v2819 = vpop.f32.mrb[0].mxu0
      %v2820 = vpop.f32.mrb[0].mxu0
      %v2821 = vadd.f32 0.0, %v2820
      %v2822 = vpop.f32.mrb[0].mxu0
      %2823 = vmatprep.mubr.bf16.mxu0 0
      %2824 = vmatmul.mubr.bf16.gmra.mrb[0].mxu0 %v2730
      %v2825 = vpop.f32.mrb[0].mxu0
      %v2826 = vadd.f32 0.0, %v2825
      %v2827 = vpop.f32.mrb[0].mxu0
      %v2828 = vpop.f32.mrb[0].mxu0
      %v2829 = vadd.f32 0.0, %v2828
      %v2830 = vpop.f32.mrb[0].mxu0
      %2831 = vmatprep.mubr.bf16.mxu0 0
      %2832 = vmatmul.mubr.bf16.gmra.mrb[0].mxu0 %v2733
      %v2833 = vpop.f32.mrb[0].mxu0
      %v2834 = vadd.f32 0.0, %v2833
      %v2835 = vpop.f32.mrb[0].mxu0
      %v2836 = vpop.f32.mrb[0].mxu0
      %v2837 = vadd.f32 0.0, %v2836
      %v2838 = vpop.f32.mrb[0].mxu0
      %2839 = vmatprep.mubr.bf16.mxu0 0
      %2840 = vmatmul.mubr.bf16.gmra.mrb[0].mxu0 %v2736
      %v2841 = vpop.f32.mrb[0].mxu0
      %v2842 = vadd.f32 0.0, %v2841
      %v2843 = vpop.f32.mrb[0].mxu0
      %v2844 = vpop.f32.mrb[0].mxu0
      %v2845 = vadd.f32 0.0, %v2844
      %v2846 = vpop.f32.mrb[0].mxu0
      %2847 = vmatprep.mubr.bf16.mxu0 0
      %2848 = vmatmul.mubr.bf16.gmra.mrb[0].mxu0 %v2739
      %v2849 = vpop.f32.mrb[0].mxu0
      %v2850 = vadd.f32 0.0, %v2849
      %v2851 = vpop.f32.mrb[0].mxu0
      %v2852 = vpop.f32.mrb[0].mxu0
      %v2853 = vadd.f32 0.0, %v2852
      %v2854 = vpop.f32.mrb[0].mxu0
      %2855 = vmatprep.mubr.bf16.mxu0 0
      %2856 = vmatmul.mubr.bf16.gmra.mrb[0].mxu0 %v2742
      %v2857 = vpop.f32.mrb[0].mxu0
      %v2858 = vadd.f32 0.0, %v2857
      %v2859 = vpop.f32.mrb[0].mxu0
      %v2860 = vpop.f32.mrb[0].mxu0
      %v2861 = vadd.f32 0.0, %v2860
      %v2862 = vpop.f32.mrb[0].mxu0
      %2863 = vmatprep.mubr.bf16.mxu0 0
      %2864 = vmatmul.mubr.bf16.gmra.mrb[0].mxu0 %v2745
      %v2865 = vpop.f32.mrb[0].mxu0
      %v2866 = vadd.f32 0.0, %v2865
      %v2867 = vpop.f32.mrb[0].mxu0
      %v2868 = vpop.f32.mrb[0].mxu0
      %v2869 = vadd.f32 0.0, %v2868
      %v2870 = vpop.f32.mrb[0].mxu0
      %2871 = vmatprep.mubr.bf16.mxu0 0
      %2872 = vmatmul.mubr.bf16.gmra.mrb[0].mxu0 %v2748
      %v2873 = vpop.f32.mrb[0].mxu0
      %v2874 = vadd.f32 0.0, %v2873
      %v2875 = vpop.f32.mrb[0].mxu0
      %v2876 = vpop.f32.mrb[0].mxu0
      %v2877 = vadd.f32 0.0, %v2876
      %v2878 = vpop.f32.mrb[0].mxu0
      %2879 = vmatprep.mubr.bf16.mxu0 0
      %2880 = vmatmul.mubr.bf16.gmra.mrb[0].mxu0 %v2751
      %v2881 = vpop.f32.mrb[0].mxu0
      %v2882 = vadd.f32 0.0, %v2881
      %v2883 = vpop.f32.mrb[0].mxu0
      %v2884 = vpop.f32.mrb[0].mxu0
      %v2885 = vadd.f32 0.0, %v2884
      %v2886 = vpop.f32.mrb[0].mxu0
      %2887 = vmatprep.mubr.bf16.mxu0 0
      %2888 = vmatmul.mubr.bf16.gmra.mrb[0].mxu0 %v2754
      %v2889 = vpop.f32.mrb[0].mxu0
      %v2890 = vadd.f32 0.0, %v2889
      %v2891 = vpop.f32.mrb[0].mxu0
      %v2892 = vpop.f32.mrb[0].mxu0
      %v2893 = vadd.f32 0.0, %v2892
      %v2894 = vpop.f32.mrb[0].mxu0
      %2895 = vmatprep.mubr.bf16.mxu0 0
      %2896 = vmatmul.mubr.bf16.gmra.mrb[0].mxu0 %v2757
      %v2897 = vpop.f32.mrb[0].mxu0
      %v2898 = vadd.f32 0.0, %v2897
      %v2899 = vpop.f32.mrb[0].mxu0
      %v2900 = vpop.f32.mrb[0].mxu0
      %v2901 = vadd.f32 0.0, %v2900
      %v2902 = vpop.f32.mrb[0].mxu0
      %2903 = vmatprep.mubr.bf16.mxu0 0
      %2904 = vmatmul.mubr.bf16.gmra.mrb[0].mxu0 %v2760
      %v2905 = vpop.f32.mrb[0].mxu0
      %v2906 = vadd.f32 0.0, %v2905
      %v2907 = vpop.f32.mrb[0].mxu0
      %v2908 = vpop.f32.mrb[0].mxu0
      %v2909 = vadd.f32 0.0, %v2908
      %v2910 = vpop.f32.mrb[0].mxu0
      %2911 = vmatprep.mubr.bf16.mxu0 0
      %2912 = vmatmul.mubr.bf16.gmra.mrb[0].mxu0 %v2763
      %v2913 = vpop.f32.mrb[0].mxu0
      %v2914 = vadd.f32 0.0, %v2913
      %v2915 = vpop.f32.mrb[0].mxu0
      %v2916 = vpop.f32.mrb[0].mxu0
      %v2917 = vadd.f32 0.0, %v2916
      %v2918 = vpop.f32.mrb[0].mxu0
      %2919 = vmatprep.mubr.bf16.mxu0 0
      %2920 = vmatmul.mubr.bf16.gmra.mrb[0].mxu0 %v2766
      %v2921 = vpop.f32.mrb[0].mxu0
      %v2922 = vadd.f32 0.0, %v2921
      %v2923 = vpop.f32.mrb[0].mxu0
      %v2924 = vpop.f32.mrb[0].mxu0
      %v2925 = vadd.f32 0.0, %v2924
      %v2926 = vpop.f32.mrb[0].mxu0
      %2927 = vmatprep.mubr.bf16.mxu0 0
      %2928 = vmatmul.mubr.bf16.gmra.mrb[0].mxu0 %v2769
      %v2929 = vpop.f32.mrb[0].mxu0
      %v2930 = vadd.f32 0.0, %v2929
      %v2931 = vpop.f32.mrb[0].mxu0
      %v2932 = vpop.f32.mrb[0].mxu0
      %v2933 = vadd.f32 0.0, %v2932
      %v2934 = vpop.f32.mrb[0].mxu0
      %2935 = vmatprep.mubr.bf16.mxu0 0
      %2936 = vmatmul.mubr.bf16.gmra.mrb[0].mxu0 %v2772
      %v2937 = vpop.f32.mrb[0].mxu0
      %v2938 = vadd.f32 0.0, %v2937
      %v2939 = vpop.f32.mrb[0].mxu0
      %v2940 = vpop.f32.mrb[0].mxu0
      %v2941 = vadd.f32 0.0, %v2940
      %v2942 = vpop.f32.mrb[0].mxu0
      %2943 = vmatprep.mubr.bf16.mxu0 0
      %2944 = vmatmul.mubr.bf16.gmra.mrb[0].mxu0 %v2775
      %v2945 = vpop.f32.mrb[0].mxu0
      %v2946 = vadd.f32 0.0, %v2945
      %v2947 = vpop.f32.mrb[0].mxu0
      %v2948 = vpop.f32.mrb[0].mxu0
      %v2949 = vadd.f32 0.0, %v2948
      %v2950 = vpop.f32.mrb[0].mxu0
      %2951 = vmatprep.mubr.bf16.mxu0 0
      %2952 = vmatmul.mubr.bf16.gmra.mrb[0].mxu0 %v2778
      %v2953 = vpop.f32.mrb[0].mxu0
      %v2954 = vadd.f32 0.0, %v2953
      %v2955 = vpop.f32.mrb[0].mxu0
      %v2956 = vpop.f32.mrb[0].mxu0
      %v2957 = vadd.f32 0.0, %v2956
      %v2958 = vpop.f32.mrb[0].mxu0
      %2959 = vdwg.mxu0
      %v2960 = vadd.f32 %v2521, %v2818
      %v2961 = vadd.f32 %v2522, %v2821
      %v2962 = vadd.f32 %v2523, %v2826
      %v2963 = vadd.f32 %v2524, %v2829
      %v2964 = vadd.f32 %v2525, %v2834
      %v2965 = vadd.f32 %v2526, %v2837
      %v2966 = vadd.f32 %v2527, %v2842
      %v2967 = vadd.f32 %v2528, %v2845
      %v2968 = vadd.f32 %v2529, %v2850
      %v2969 = vadd.f32 %v2530, %v2853
      %v2970 = vadd.f32 %v2531, %v2858
      %v2971 = vadd.f32 %v2532, %v2861
      %v2972 = vadd.f32 %v2533, %v2866
      %v2973 = vadd.f32 %v2534, %v2869
      %v2974 = vadd.f32 %v2535, %v2874
      %v2975 = vadd.f32 %v2536, %v2877
      %v2976 = vadd.f32 %v2537, %v2882
      %v2977 = vadd.f32 %v2538, %v2885
      %v2978 = vadd.f32 %v2539, %v2890
      %v2979 = vadd.f32 %v2540, %v2893
      %v2980 = vadd.f32 %v2541, %v2898
      %v2981 = vadd.f32 %v2542, %v2901
      %v2982 = vadd.f32 %v2543, %v2906
      %v2983 = vadd.f32 %v2544, %v2909
      %v2984 = vadd.f32 %v2545, %v2914
      %v2985 = vadd.f32 %v2546, %v2917
      %v2986 = vadd.f32 %v2547, %v2922
      %v2987 = vadd.f32 %v2548, %v2925
      %v2988 = vadd.f32 %v2549, %v2930
      %v2989 = vadd.f32 %v2550, %v2933
      %v2990 = vadd.f32 %v2551, %v2938
      %v2991 = vadd.f32 %v2552, %v2941
      %v2992 = vadd.f32 %v2553, %v2946
      %v2993 = vadd.f32 %v2554, %v2949
      %v2994 = vadd.f32 %v2555, %v2954
      %v2995 = vadd.f32 %v2556, %v2957
      %v2996 = vld [vmem:[%s192 + $0xa0] sm:$0x3]
      %s2997 = scalar_lea.vmem %s1, 14
      %v2998 = vld [vmem:[%s2997] sm:$0x3]
      %v3000 = vunpack.c.l.b16 %v2996
      %v3001 = vpack.c.b16 %v3000, %v3000
      %vm3002 = vsmask.f32 5376
      %v3004 = vshrl.u32 %v2670, 16
      %v3006 = vrot.slane %v3004, 2
      %v3007 = vshll.u32 %v2670, 16
      %v3009 = vrot.slane %v3007, 3
      %v3010 = vor.u32 %v3006, %v3009
      %v3012 = vshrl.u32 %v2671, 16
      %v3014 = vrot.slane %v3012, 2
      %v3015 = vshll.u32 %v2671, 16
      %v3017 = vrot.slane %v3015, 3
      %v3018 = vor.u32 %v3014, %v3017
      %v3019 = vsel %vm3002, %v3010, %v3018
      %v3021 = vshrl.u32 %v2672, 16
      %v3023 = vrot.slane %v3021, 2
      %v3024 = vshll.u32 %v2672, 16
      %v3026 = vrot.slane %v3024, 3
      %v3027 = vor.u32 %v3023, %v3026
      %v3028 = vsel %vm3002, %v3018, %v3027
      %v3030 = vshrl.u32 %v2673, 16
      %v3032 = vrot.slane %v3030, 2
      %v3033 = vshll.u32 %v2673, 16
      %v3035 = vrot.slane %v3033, 3
      %v3036 = vor.u32 %v3032, %v3035
      %v3037 = vsel %vm3002, %v3027, %v3036
      %v3039 = vshrl.u32 %v2674, 16
      %v3041 = vrot.slane %v3039, 2
      %v3042 = vshll.u32 %v2674, 16
      %v3044 = vrot.slane %v3042, 3
      %v3045 = vor.u32 %v3041, %v3044
      %v3046 = vsel %vm3002, %v3036, %v3045
      %v3048 = vshrl.u32 %v2675, 16
      %v3050 = vrot.slane %v3048, 2
      %v3051 = vshll.u32 %v2675, 16
      %v3053 = vrot.slane %v3051, 3
      %v3054 = vor.u32 %v3050, %v3053
      %v3055 = vsel %vm3002, %v3045, %v3054
      %v3057 = vshrl.u32 %v2676, 16
      %v3059 = vrot.slane %v3057, 2
      %v3060 = vshll.u32 %v2676, 16
      %v3062 = vrot.slane %v3060, 3
      %v3063 = vor.u32 %v3059, %v3062
      %v3064 = vsel %vm3002, %v3054, %v3063
      %v3066 = vshrl.u32 %v2677, 16
      %v3068 = vrot.slane %v3066, 2
      %v3069 = vshll.u32 %v2677, 16
      %v3071 = vrot.slane %v3069, 3
      %v3072 = vor.u32 %v3068, %v3071
      %v3073 = vsel %vm3002, %v3063, %v3072
      %v3075 = vshrl.u32 %v2678, 16
      %v3077 = vrot.slane %v3075, 2
      %v3078 = vshll.u32 %v2678, 16
      %v3080 = vrot.slane %v3078, 3
      %v3081 = vor.u32 %v3077, %v3080
      %v3082 = vsel %vm3002, %v3072, %v3081
      %v3084 = vshrl.u32 %v2679, 16
      %v3086 = vrot.slane %v3084, 2
      %v3087 = vshll.u32 %v2679, 16
      %v3089 = vrot.slane %v3087, 3
      %v3090 = vor.u32 %v3086, %v3089
      %v3091 = vsel %vm3002, %v3081, %v3090
      %v3093 = vshrl.u32 %v2680, 16
      %v3095 = vrot.slane %v3093, 2
      %v3096 = vshll.u32 %v2680, 16
      %v3098 = vrot.slane %v3096, 3
      %v3099 = vor.u32 %v3095, %v3098
      %v3100 = vsel %vm3002, %v3090, %v3099
      %v3102 = vshrl.u32 %v2681, 16
      %v3104 = vrot.slane %v3102, 2
      %v3105 = vshll.u32 %v2681, 16
      %v3107 = vrot.slane %v3105, 3
      %v3108 = vor.u32 %v3104, %v3107
      %v3109 = vsel %vm3002, %v3099, %v3108
      %v3111 = vshrl.u32 %v2682, 16
      %v3113 = vrot.slane %v3111, 2
      %v3114 = vshll.u32 %v2682, 16
      %v3116 = vrot.slane %v3114, 3
      %v3117 = vor.u32 %v3113, %v3116
      %v3118 = vsel %vm3002, %v3108, %v3117
      %v3120 = vshrl.u32 %v2683, 16
      %v3122 = vrot.slane %v3120, 2
      %v3123 = vshll.u32 %v2683, 16
      %v3125 = vrot.slane %v3123, 3
      %v3126 = vor.u32 %v3122, %v3125
      %v3127 = vsel %vm3002, %v3117, %v3126
      %v3129 = vshrl.u32 %v2684, 16
      %v3131 = vrot.slane %v3129, 2
      %v3132 = vshll.u32 %v2684, 16
      %v3134 = vrot.slane %v3132, 3
      %v3135 = vor.u32 %v3131, %v3134
      %v3136 = vsel %vm3002, %v3126, %v3135
      %v3138 = vshrl.u32 %v2685, 16
      %v3140 = vrot.slane %v3138, 2
      %v3141 = vshll.u32 %v2685, 16
      %v3143 = vrot.slane %v3141, 3
      %v3144 = vor.u32 %v3140, %v3143
      %v3145 = vsel %vm3002, %v3135, %v3144
      %v3147 = vshrl.u32 %v2686, 16
      %v3149 = vrot.slane %v3147, 2
      %v3150 = vshll.u32 %v2686, 16
      %v3152 = vrot.slane %v3150, 3
      %v3153 = vor.u32 %v3149, %v3152
      %v3154 = vsel %vm3002, %v3144, %v3153
      %v3156 = vshrl.u32 %v2687, 16
      %v3158 = vrot.slane %v3156, 2
      %v3159 = vshll.u32 %v2687, 16
      %v3161 = vrot.slane %v3159, 3
      %v3162 = vor.u32 %v3158, %v3161
      %v3163 = vsel %vm3002, %v3153, %v3162
      %v3165 = vshrl.u32 %v3001, 16
      %v3167 = vrot.slane %v3165, 2
      %v3168 = vshll.u32 %v3001, 16
      %v3170 = vrot.slane %v3168, 3
      %v3171 = vor.u32 %v3167, %v3170
      %v3172 = vsel %vm3002, %v3162, %v3171
      %v3174 = vsel %vm473, %v3019, 0
      %v3177 = vsel %vm473, %v3028, 0
      %v3180 = vsel %vm473, %v3037, 0
      %v3183 = vsel %vm473, %v3046, 0
      %v3186 = vsel %vm473, %v3055, 0
      %v3189 = vsel %vm473, %v3064, 0
      %v3192 = vsel %vm473, %v3073, 0
      %v3195 = vsel %vm473, %v3082, 0
      %v3198 = vsel %vm473, %v3091, 0
      %v3201 = vsel %vm473, %v3100, 0
      %v3204 = vsel %vm473, %v3109, 0
      %v3207 = vsel %vm473, %v3118, 0
      %v3210 = vsel %vm473, %v3127, 0
      %v3213 = vsel %vm473, %v3136, 0
      %v3216 = vsel %vm473, %v3145, 0
      %v3219 = vsel %vm473, %v3154, 0
      %v3222 = vsel %vm473, %v3163, 0
      %v3225 = vsel %vm473, %v3172, 0
      %v3228 = vsel %vm528, %v2998, 0
      %3230 = vmatprep.subr.bf16.mxu0 0
      %3231 = vmatpush1.bf16.msra.mxu0 %v3228
      %3232 = vmatprep.subr.bf16.mxu0 0
      %3233 = vmatpush1.bf16.msra.mxu0 0
      %3234 = vmatprep.subr.bf16.mxu0 0
      %3235 = vmatpush1.bf16.msra.mxu0 0
      %3236 = vmatprep.subr.bf16.mxu0 0
      %3237 = vmatpush1.bf16.msra.mxu0 0
      %3238 = vmatprep.subr.bf16.mxu0 0
      %3239 = vmatpush1.bf16.msra.mxu0 0
      %3240 = vmatprep.subr.bf16.mxu0 0
      %3241 = vmatpush1.bf16.msra.mxu0 0
      %3242 = vmatprep.subr.bf16.mxu0 0
      %3243 = vmatpush1.bf16.msra.mxu0 0
      %3244 = vmatprep.subr.bf16.mxu0 0
      %3245 = vmatpush1.bf16.msra.mxu0 0
      %3246 = vmatprep.subr.bf16.mxu0 0
      %3247 = vmatpush1.bf16.msra.mxu0 0
      %3248 = vmatprep.subr.bf16.mxu0 0
      %3249 = vmatpush1.bf16.msra.mxu0 0
      %3250 = vmatprep.subr.bf16.mxu0 0
      %3251 = vmatpush1.bf16.msra.mxu0 0
      %3252 = vmatprep.subr.bf16.mxu0 0
      %3253 = vmatpush1.bf16.msra.mxu0 0
      %3254 = vmatprep.subr.bf16.mxu0 0
      %3255 = vmatpush1.bf16.msra.mxu0 0
      %3256 = vmatprep.subr.bf16.mxu0 0
      %3257 = vmatpush1.bf16.msra.mxu0 0
      %3258 = vmatprep.subr.bf16.mxu0 0
      %3259 = vmatpush1.bf16.msra.mxu0 0
      %3260 = vmatprep.subr.bf16.mxu0 0
      %3261 = vmatpush1.bf16.msra.mxu0 0
      %3262 = vmatprep.mubr.bf16.mxu0 0
      %3263 = vmatmul.mubr.bf16.gmra.mrb[0].mxu0 %v3174
      %v3264 = vpop.f32.mrb[0].mxu0
      %v3265 = vadd.f32 0.0, %v3264
      %v3266 = vpop.f32.mrb[0].mxu0
      %v3267 = vpop.f32.mrb[0].mxu0
      %v3268 = vadd.f32 0.0, %v3267
      %v3269 = vpop.f32.mrb[0].mxu0
      %3270 = vmatprep.mubr.bf16.mxu0 0
      %3271 = vmatmul.mubr.bf16.gmra.mrb[0].mxu0 %v3177
      %v3272 = vpop.f32.mrb[0].mxu0
      %v3273 = vadd.f32 0.0, %v3272
      %v3274 = vpop.f32.mrb[0].mxu0
      %v3275 = vpop.f32.mrb[0].mxu0
      %v3276 = vadd.f32 0.0, %v3275
      %v3277 = vpop.f32.mrb[0].mxu0
      %3278 = vmatprep.mubr.bf16.mxu0 0
      %3279 = vmatmul.mubr.bf16.gmra.mrb[0].mxu0 %v3180
      %v3280 = vpop.f32.mrb[0].mxu0
      %v3281 = vadd.f32 0.0, %v3280
      %v3282 = vpop.f32.mrb[0].mxu0
      %v3283 = vpop.f32.mrb[0].mxu0
      %v3284 = vadd.f32 0.0, %v3283
      %v3285 = vpop.f32.mrb[0].mxu0
      %3286 = vmatprep.mubr.bf16.mxu0 0
      %3287 = vmatmul.mubr.bf16.gmra.mrb[0].mxu0 %v3183
      %v3288 = vpop.f32.mrb[0].mxu0
      %v3289 = vadd.f32 0.0, %v3288
      %v3290 = vpop.f32.mrb[0].mxu0
      %v3291 = vpop.f32.mrb[0].mxu0
      %v3292 = vadd.f32 0.0, %v3291
      %v3293 = vpop.f32.mrb[0].mxu0
      %3294 = vmatprep.mubr.bf16.mxu0 0
      %3295 = vmatmul.mubr.bf16.gmra.mrb[0].mxu0 %v3186
      %v3296 = vpop.f32.mrb[0].mxu0
      %v3297 = vadd.f32 0.0, %v3296
      %v3298 = vpop.f32.mrb[0].mxu0
      %v3299 = vpop.f32.mrb[0].mxu0
      %v3300 = vadd.f32 0.0, %v3299
      %v3301 = vpop.f32.mrb[0].mxu0
      %3302 = vmatprep.mubr.bf16.mxu0 0
      %3303 = vmatmul.mubr.bf16.gmra.mrb[0].mxu0 %v3189
      %v3304 = vpop.f32.mrb[0].mxu0
      %v3305 = vadd.f32 0.0, %v3304
      %v3306 = vpop.f32.mrb[0].mxu0
      %v3307 = vpop.f32.mrb[0].mxu0
      %v3308 = vadd.f32 0.0, %v3307
      %v3309 = vpop.f32.mrb[0].mxu0
      %3310 = vmatprep.mubr.bf16.mxu0 0
      %3311 = vmatmul.mubr.bf16.gmra.mrb[0].mxu0 %v3192
      %v3312 = vpop.f32.mrb[0].mxu0
      %v3313 = vadd.f32 0.0, %v3312
      %v3314 = vpop.f32.mrb[0].mxu0
      %v3315 = vpop.f32.mrb[0].mxu0
      %v3316 = vadd.f32 0.0, %v3315
      %v3317 = vpop.f32.mrb[0].mxu0
      %3318 = vmatprep.mubr.bf16.mxu0 0
      %3319 = vmatmul.mubr.bf16.gmra.mrb[0].mxu0 %v3195
      %v3320 = vpop.f32.mrb[0].mxu0
      %v3321 = vadd.f32 0.0, %v3320
      %v3322 = vpop.f32.mrb[0].mxu0
      %v3323 = vpop.f32.mrb[0].mxu0
      %v3324 = vadd.f32 0.0, %v3323
      %v3325 = vpop.f32.mrb[0].mxu0
      %3326 = vmatprep.mubr.bf16.mxu0 0
      %3327 = vmatmul.mubr.bf16.gmra.mrb[0].mxu0 %v3198
      %v3328 = vpop.f32.mrb[0].mxu0
      %v3329 = vadd.f32 0.0, %v3328
      %v3330 = vpop.f32.mrb[0].mxu0
      %v3331 = vpop.f32.mrb[0].mxu0
      %v3332 = vadd.f32 0.0, %v3331
      %v3333 = vpop.f32.mrb[0].mxu0
      %3334 = vmatprep.mubr.bf16.mxu0 0
      %3335 = vmatmul.mubr.bf16.gmra.mrb[0].mxu0 %v3201
      %v3336 = vpop.f32.mrb[0].mxu0
      %v3337 = vadd.f32 0.0, %v3336
      %v3338 = vpop.f32.mrb[0].mxu0
      %v3339 = vpop.f32.mrb[0].mxu0
      %v3340 = vadd.f32 0.0, %v3339
      %v3341 = vpop.f32.mrb[0].mxu0
      %3342 = vmatprep.mubr.bf16.mxu0 0
      %3343 = vmatmul.mubr.bf16.gmra.mrb[0].mxu0 %v3204
      %v3344 = vpop.f32.mrb[0].mxu0
      %v3345 = vadd.f32 0.0, %v3344
      %v3346 = vpop.f32.mrb[0].mxu0
      %v3347 = vpop.f32.mrb[0].mxu0
      %v3348 = vadd.f32 0.0, %v3347
      %v3349 = vpop.f32.mrb[0].mxu0
      %3350 = vmatprep.mubr.bf16.mxu0 0
      %3351 = vmatmul.mubr.bf16.gmra.mrb[0].mxu0 %v3207
      %v3352 = vpop.f32.mrb[0].mxu0
      %v3353 = vadd.f32 0.0, %v3352
      %v3354 = vpop.f32.mrb[0].mxu0
      %v3355 = vpop.f32.mrb[0].mxu0
      %v3356 = vadd.f32 0.0, %v3355
      %v3357 = vpop.f32.mrb[0].mxu0
      %3358 = vmatprep.mubr.bf16.mxu0 0
      %3359 = vmatmul.mubr.bf16.gmra.mrb[0].mxu0 %v3210
      %v3360 = vpop.f32.mrb[0].mxu0
      %v3361 = vadd.f32 0.0, %v3360
      %v3362 = vpop.f32.mrb[0].mxu0
      %v3363 = vpop.f32.mrb[0].mxu0
      %v3364 = vadd.f32 0.0, %v3363
      %v3365 = vpop.f32.mrb[0].mxu0
      %3366 = vmatprep.mubr.bf16.mxu0 0
      %3367 = vmatmul.mubr.bf16.gmra.mrb[0].mxu0 %v3213
      %v3368 = vpop.f32.mrb[0].mxu0
      %v3369 = vadd.f32 0.0, %v3368
      %v3370 = vpop.f32.mrb[0].mxu0
      %v3371 = vpop.f32.mrb[0].mxu0
      %v3372 = vadd.f32 0.0, %v3371
      %v3373 = vpop.f32.mrb[0].mxu0
      %3374 = vmatprep.mubr.bf16.mxu0 0
      %3375 = vmatmul.mubr.bf16.gmra.mrb[0].mxu0 %v3216
      %v3376 = vpop.f32.mrb[0].mxu0
      %v3377 = vadd.f32 0.0, %v3376
      %v3378 = vpop.f32.mrb[0].mxu0
      %v3379 = vpop.f32.mrb[0].mxu0
      %v3380 = vadd.f32 0.0, %v3379
      %v3381 = vpop.f32.mrb[0].mxu0
      %3382 = vmatprep.mubr.bf16.mxu0 0
      %3383 = vmatmul.mubr.bf16.gmra.mrb[0].mxu0 %v3219
      %v3384 = vpop.f32.mrb[0].mxu0
      %v3385 = vadd.f32 0.0, %v3384
      %v3386 = vpop.f32.mrb[0].mxu0
      %v3387 = vpop.f32.mrb[0].mxu0
      %v3388 = vadd.f32 0.0, %v3387
      %v3389 = vpop.f32.mrb[0].mxu0
      %3390 = vmatprep.mubr.bf16.mxu0 0
      %3391 = vmatmul.mubr.bf16.gmra.mrb[0].mxu0 %v3222
      %v3392 = vpop.f32.mrb[0].mxu0
      %v3393 = vadd.f32 0.0, %v3392
      %v3394 = vpop.f32.mrb[0].mxu0
      %v3395 = vpop.f32.mrb[0].mxu0
      %v3396 = vadd.f32 0.0, %v3395
      %v3397 = vpop.f32.mrb[0].mxu0
      %3398 = vmatprep.mubr.bf16.mxu0 0
      %3399 = vmatmul.mubr.bf16.gmra.mrb[0].mxu0 %v3225
      %v3400 = vpop.f32.mrb[0].mxu0
      %v3401 = vadd.f32 0.0, %v3400
      %v3402 = vpop.f32.mrb[0].mxu0
      %v3403 = vpop.f32.mrb[0].mxu0
      %v3404 = vadd.f32 0.0, %v3403
      %v3405 = vpop.f32.mrb[0].mxu0
      %3406 = vdwg.mxu0
      %v3407 = vadd.f32 %v2960, %v3265
      %v3408 = vadd.f32 %v2961, %v3268
      %v3409 = vadd.f32 %v2962, %v3273
      %v3410 = vadd.f32 %v2963, %v3276
      %v3411 = vadd.f32 %v2964, %v3281
      %v3412 = vadd.f32 %v2965, %v3284
      %v3413 = vadd.f32 %v2966, %v3289
      %v3414 = vadd.f32 %v2967, %v3292
      %v3415 = vadd.f32 %v2968, %v3297
      %v3416 = vadd.f32 %v2969, %v3300
      %v3417 = vadd.f32 %v2970, %v3305
      %v3418 = vadd.f32 %v2971, %v3308
      %v3419 = vadd.f32 %v2972, %v3313
      %v3420 = vadd.f32 %v2973, %v3316
      %v3421 = vadd.f32 %v2974, %v3321
      %v3422 = vadd.f32 %v2975, %v3324
      %v3423 = vadd.f32 %v2976, %v3329
      %v3424 = vadd.f32 %v2977, %v3332
      %v3425 = vadd.f32 %v2978, %v3337
      %v3426 = vadd.f32 %v2979, %v3340
      %v3427 = vadd.f32 %v2980, %v3345
      %v3428 = vadd.f32 %v2981, %v3348
      %v3429 = vadd.f32 %v2982, %v3353
      %v3430 = vadd.f32 %v2983, %v3356
      %v3431 = vadd.f32 %v2984, %v3361
      %v3432 = vadd.f32 %v2985, %v3364
      %v3433 = vadd.f32 %v2986, %v3369
      %v3434 = vadd.f32 %v2987, %v3372
      %v3435 = vadd.f32 %v2988, %v3377
      %v3436 = vadd.f32 %v2989, %v3380
      %v3437 = vadd.f32 %v2990, %v3385
      %v3438 = vadd.f32 %v2991, %v3388
      %v3439 = vadd.f32 %v2992, %v3393
      %v3440 = vadd.f32 %v2993, %v3396
      %v3441 = vadd.f32 %v2994, %v3401
      %v3442 = vadd.f32 %v2995, %v3404
      %v3443 = vld [vmem:[%s192 + $0x10] sm:$0x8]
      %s3444 = scalar_lea.vmem %s1, 16
      %v3445 = vld [vmem:[%s3444] sm:$0x3]
      %v3447 = vunpack.c.l.b16 %v3443
      %v3448 = vpack.c.b16 %v2634, %v3447
      %vm3449 = vcmask 1044480
      %v3450 = vrot.slane %v3448, 3
      %v3451 = vrot.slane %v2671, 3
      %v3452 = vsel %vm3449, %v3450, %v3451
      %v3453 = vrot.slane %v2672, 3
      %v3454 = vsel %vm3449, %v3451, %v3453
      %v3455 = vrot.slane %v2673, 3
      %v3456 = vsel %vm3449, %v3453, %v3455
      %v3457 = vrot.slane %v2674, 3
      %v3458 = vsel %vm3449, %v3455, %v3457
      %v3459 = vrot.slane %v2675, 3
      %v3460 = vsel %vm3449, %v3457, %v3459
      %v3461 = vrot.slane %v2676, 3
      %v3462 = vsel %vm3449, %v3459, %v3461
      %v3463 = vrot.slane %v2677, 3
      %v3464 = vsel %vm3449, %v3461, %v3463
      %v3465 = vrot.slane %v2678, 3
      %v3466 = vsel %vm3449, %v3463, %v3465
      %v3467 = vrot.slane %v2679, 3
      %v3468 = vsel %vm3449, %v3465, %v3467
      %v3469 = vrot.slane %v2680, 3
      %v3470 = vsel %vm3449, %v3467, %v3469
      %v3471 = vrot.slane %v2681, 3
      %v3472 = vsel %vm3449, %v3469, %v3471
      %v3473 = vrot.slane %v2682, 3
      %v3474 = vsel %vm3449, %v3471, %v3473
      %v3475 = vrot.slane %v2683, 3
      %v3476 = vsel %vm3449, %v3473, %v3475
      %v3477 = vrot.slane %v2684, 3
      %v3478 = vsel %vm3449, %v3475, %v3477
      %v3479 = vrot.slane %v2685, 3
      %v3480 = vsel %vm3449, %v3477, %v3479
      %v3481 = vrot.slane %v2686, 3
      %v3482 = vsel %vm3449, %v3479, %v3481
      %v3483 = vrot.slane %v2687, 3
      %v3484 = vsel %vm3449, %v3481, %v3483
      %v3485 = vrot.slane %v3001, 3
      %v3486 = vsel %vm3449, %v3483, %v3485
      %v3488 = vsel %vm473, %v3452, 0
      %v3491 = vsel %vm473, %v3454, 0
      %v3494 = vsel %vm473, %v3456, 0
      %v3497 = vsel %vm473, %v3458, 0
      %v3500 = vsel %vm473, %v3460, 0
      %v3503 = vsel %vm473, %v3462, 0
      %v3506 = vsel %vm473, %v3464, 0
      %v3509 = vsel %vm473, %v3466, 0
      %v3512 = vsel %vm473, %v3468, 0
      %v3515 = vsel %vm473, %v3470, 0
      %v3518 = vsel %vm473, %v3472, 0
      %v3521 = vsel %vm473, %v3474, 0
      %v3524 = vsel %vm473, %v3476, 0
      %v3527 = vsel %vm473, %v3478, 0
      %v3530 = vsel %vm473, %v3480, 0
      %v3533 = vsel %vm473, %v3482, 0
      %v3536 = vsel %vm473, %v3484, 0
      %v3539 = vsel %vm473, %v3486, 0
      %v3542 = vsel %vm528, %v3445, 0
      %3544 = vmatprep.subr.bf16.mxu0 0
      %3545 = vmatpush1.bf16.msra.mxu0 %v3542
      %3546 = vmatprep.subr.bf16.mxu0 0
      %3547 = vmatpush1.bf16.msra.mxu0 0
      %3548 = vmatprep.subr.bf16.mxu0 0
      %3549 = vmatpush1.bf16.msra.mxu0 0
      %3550 = vmatprep.subr.bf16.mxu0 0
      %3551 = vmatpush1.bf16.msra.mxu0 0
      %3552 = vmatprep.subr.bf16.mxu0 0
      %3553 = vmatpush1.bf16.msra.mxu0 0
      %3554 = vmatprep.subr.bf16.mxu0 0
      %3555 = vmatpush1.bf16.msra.mxu0 0
      %3556 = vmatprep.subr.bf16.mxu0 0
      %3557 = vmatpush1.bf16.msra.mxu0 0
      %3558 = vmatprep.subr.bf16.mxu0 0
      %3559 = vmatpush1.bf16.msra.mxu0 0
      %3560 = vmatprep.subr.bf16.mxu0 0
      %3561 = vmatpush1.bf16.msra.mxu0 0
      %3562 = vmatprep.subr.bf16.mxu0 0
      %3563 = vmatpush1.bf16.msra.mxu0 0
      %3564 = vmatprep.subr.bf16.mxu0 0
      %3565 = vmatpush1.bf16.msra.mxu0 0
      %3566 = vmatprep.subr.bf16.mxu0 0
      %3567 = vmatpush1.bf16.msra.mxu0 0
      %3568 = vmatprep.subr.bf16.mxu0 0
      %3569 = vmatpush1.bf16.msra.mxu0 0
      %3570 = vmatprep.subr.bf16.mxu0 0
      %3571 = vmatpush1.bf16.msra.mxu0 0
      %3572 = vmatprep.subr.bf16.mxu0 0
      %3573 = vmatpush1.bf16.msra.mxu0 0
      %3574 = vmatprep.subr.bf16.mxu0 0
      %3575 = vmatpush1.bf16.msra.mxu0 0
      %3576 = vmatprep.mubr.bf16.mxu0 0
      %3577 = vmatmul.mubr.bf16.gmra.mrb[0].mxu0 %v3488
      %v3578 = vpop.f32.mrb[0].mxu0
      %v3579 = vadd.f32 0.0, %v3578
      %v3580 = vpop.f32.mrb[0].mxu0
      %v3581 = vpop.f32.mrb[0].mxu0
      %v3582 = vadd.f32 0.0, %v3581
      %v3583 = vpop.f32.mrb[0].mxu0
      %3584 = vmatprep.mubr.bf16.mxu0 0
      %3585 = vmatmul.mubr.bf16.gmra.mrb[0].mxu0 %v3491
      %v3586 = vpop.f32.mrb[0].mxu0
      %v3587 = vadd.f32 0.0, %v3586
      %v3588 = vpop.f32.mrb[0].mxu0
      %v3589 = vpop.f32.mrb[0].mxu0
      %v3590 = vadd.f32 0.0, %v3589
      %v3591 = vpop.f32.mrb[0].mxu0
      %3592 = vmatprep.mubr.bf16.mxu0 0
      %3593 = vmatmul.mubr.bf16.gmra.mrb[0].mxu0 %v3494
      %v3594 = vpop.f32.mrb[0].mxu0
      %v3595 = vadd.f32 0.0, %v3594
      %v3596 = vpop.f32.mrb[0].mxu0
      %v3597 = vpop.f32.mrb[0].mxu0
      %v3598 = vadd.f32 0.0, %v3597
      %v3599 = vpop.f32.mrb[0].mxu0
      %3600 = vmatprep.mubr.bf16.mxu0 0
      %3601 = vmatmul.mubr.bf16.gmra.mrb[0].mxu0 %v3497
      %v3602 = vpop.f32.mrb[0].mxu0
      %v3603 = vadd.f32 0.0, %v3602
      %v3604 = vpop.f32.mrb[0].mxu0
      %v3605 = vpop.f32.mrb[0].mxu0
      %v3606 = vadd.f32 0.0, %v3605
      %v3607 = vpop.f32.mrb[0].mxu0
      %3608 = vmatprep.mubr.bf16.mxu0 0
      %3609 = vmatmul.mubr.bf16.gmra.mrb[0].mxu0 %v3500
      %v3610 = vpop.f32.mrb[0].mxu0
      %v3611 = vadd.f32 0.0, %v3610
      %v3612 = vpop.f32.mrb[0].mxu0
      %v3613 = vpop.f32.mrb[0].mxu0
      %v3614 = vadd.f32 0.0, %v3613
      %v3615 = vpop.f32.mrb[0].mxu0
      %3616 = vmatprep.mubr.bf16.mxu0 0
      %3617 = vmatmul.mubr.bf16.gmra.mrb[0].mxu0 %v3503
      %v3618 = vpop.f32.mrb[0].mxu0
      %v3619 = vadd.f32 0.0, %v3618
      %v3620 = vpop.f32.mrb[0].mxu0
      %v3621 = vpop.f32.mrb[0].mxu0
      %v3622 = vadd.f32 0.0, %v3621
      %v3623 = vpop.f32.mrb[0].mxu0
      %3624 = vmatprep.mubr.bf16.mxu0 0
      %3625 = vmatmul.mubr.bf16.gmra.mrb[0].mxu0 %v3506
      %v3626 = vpop.f32.mrb[0].mxu0
      %v3627 = vadd.f32 0.0, %v3626
      %v3628 = vpop.f32.mrb[0].mxu0
      %v3629 = vpop.f32.mrb[0].mxu0
      %v3630 = vadd.f32 0.0, %v3629
      %v3631 = vpop.f32.mrb[0].mxu0
      %3632 = vmatprep.mubr.bf16.mxu0 0
      %3633 = vmatmul.mubr.bf16.gmra.mrb[0].mxu0 %v3509
      %v3634 = vpop.f32.mrb[0].mxu0
      %v3635 = vadd.f32 0.0, %v3634
      %v3636 = vpop.f32.mrb[0].mxu0
      %v3637 = vpop.f32.mrb[0].mxu0
      %v3638 = vadd.f32 0.0, %v3637
      %v3639 = vpop.f32.mrb[0].mxu0
      %3640 = vmatprep.mubr.bf16.mxu0 0
      %3641 = vmatmul.mubr.bf16.gmra.mrb[0].mxu0 %v3512
      %v3642 = vpop.f32.mrb[0].mxu0
      %v3643 = vadd.f32 0.0, %v3642
      %v3644 = vpop.f32.mrb[0].mxu0
      %v3645 = vpop.f32.mrb[0].mxu0
      %v3646 = vadd.f32 0.0, %v3645
      %v3647 = vpop.f32.mrb[0].mxu0
      %3648 = vmatprep.mubr.bf16.mxu0 0
      %3649 = vmatmul.mubr.bf16.gmra.mrb[0].mxu0 %v3515
      %v3650 = vpop.f32.mrb[0].mxu0
      %v3651 = vadd.f32 0.0, %v3650
      %v3652 = vpop.f32.mrb[0].mxu0
      %v3653 = vpop.f32.mrb[0].mxu0
      %v3654 = vadd.f32 0.0, %v3653
      %v3655 = vpop.f32.mrb[0].mxu0
      %3656 = vmatprep.mubr.bf16.mxu0 0
      %3657 = vmatmul.mubr.bf16.gmra.mrb[0].mxu0 %v3518
      %v3658 = vpop.f32.mrb[0].mxu0
      %v3659 = vadd.f32 0.0, %v3658
      %v3660 = vpop.f32.mrb[0].mxu0
      %v3661 = vpop.f32.mrb[0].mxu0
      %v3662 = vadd.f32 0.0, %v3661
      %v3663 = vpop.f32.mrb[0].mxu0
      %3664 = vmatprep.mubr.bf16.mxu0 0
      %3665 = vmatmul.mubr.bf16.gmra.mrb[0].mxu0 %v3521
      %v3666 = vpop.f32.mrb[0].mxu0
      %v3667 = vadd.f32 0.0, %v3666
      %v3668 = vpop.f32.mrb[0].mxu0
      %v3669 = vpop.f32.mrb[0].mxu0
      %v3670 = vadd.f32 0.0, %v3669
      %v3671 = vpop.f32.mrb[0].mxu0
      %3672 = vmatprep.mubr.bf16.mxu0 0
      %3673 = vmatmul.mubr.bf16.gmra.mrb[0].mxu0 %v3524
      %v3674 = vpop.f32.mrb[0].mxu0
      %v3675 = vadd.f32 0.0, %v3674
      %v3676 = vpop.f32.mrb[0].mxu0
      %v3677 = vpop.f32.mrb[0].mxu0
      %v3678 = vadd.f32 0.0, %v3677
      %v3679 = vpop.f32.mrb[0].mxu0
      %3680 = vmatprep.mubr.bf16.mxu0 0
      %3681 = vmatmul.mubr.bf16.gmra.mrb[0].mxu0 %v3527
      %v3682 = vpop.f32.mrb[0].mxu0
      %v3683 = vadd.f32 0.0, %v3682
      %v3684 = vpop.f32.mrb[0].mxu0
      %v3685 = vpop.f32.mrb[0].mxu0
      %v3686 = vadd.f32 0.0, %v3685
      %v3687 = vpop.f32.mrb[0].mxu0
      %3688 = vmatprep.mubr.bf16.mxu0 0
      %3689 = vmatmul.mubr.bf16.gmra.mrb[0].mxu0 %v3530
      %v3690 = vpop.f32.mrb[0].mxu0
      %v3691 = vadd.f32 0.0, %v3690
      %v3692 = vpop.f32.mrb[0].mxu0
      %v3693 = vpop.f32.mrb[0].mxu0
      %v3694 = vadd.f32 0.0, %v3693
      %v3695 = vpop.f32.mrb[0].mxu0
      %3696 = vmatprep.mubr.bf16.mxu0 0
      %3697 = vmatmul.mubr.bf16.gmra.mrb[0].mxu0 %v3533
      %v3698 = vpop.f32.mrb[0].mxu0
      %v3699 = vadd.f32 0.0, %v3698
      %v3700 = vpop.f32.mrb[0].mxu0
      %v3701 = vpop.f32.mrb[0].mxu0
      %v3702 = vadd.f32 0.0, %v3701
      %v3703 = vpop.f32.mrb[0].mxu0
      %3704 = vmatprep.mubr.bf16.mxu0 0
      %3705 = vmatmul.mubr.bf16.gmra.mrb[0].mxu0 %v3536
      %v3706 = vpop.f32.mrb[0].mxu0
      %v3707 = vadd.f32 0.0, %v3706
      %v3708 = vpop.f32.mrb[0].mxu0
      %v3709 = vpop.f32.mrb[0].mxu0
      %v3710 = vadd.f32 0.0, %v3709
      %v3711 = vpop.f32.mrb[0].mxu0
      %3712 = vmatprep.mubr.bf16.mxu0 0
      %3713 = vmatmul.mubr.bf16.gmra.mrb[0].mxu0 %v3539
      %v3714 = vpop.f32.mrb[0].mxu0
      %v3715 = vadd.f32 0.0, %v3714
      %v3716 = vpop.f32.mrb[0].mxu0
      %v3717 = vpop.f32.mrb[0].mxu0
      %v3718 = vadd.f32 0.0, %v3717
      %v3719 = vpop.f32.mrb[0].mxu0
      %3720 = vdwg.mxu0
      %v3721 = vadd.f32 %v3407, %v3579
      %v3722 = vadd.f32 %v3408, %v3582
      %v3723 = vadd.f32 %v3409, %v3587
      %v3724 = vadd.f32 %v3410, %v3590
      %v3725 = vadd.f32 %v3411, %v3595
      %v3726 = vadd.f32 %v3412, %v3598
      %v3727 = vadd.f32 %v3413, %v3603
      %v3728 = vadd.f32 %v3414, %v3606
      %v3729 = vadd.f32 %v3415, %v3611
      %v3730 = vadd.f32 %v3416, %v3614
      %v3731 = vadd.f32 %v3417, %v3619
      %v3732 = vadd.f32 %v3418, %v3622
      %v3733 = vadd.f32 %v3419, %v3627
      %v3734 = vadd.f32 %v3420, %v3630
      %v3735 = vadd.f32 %v3421, %v3635
      %v3736 = vadd.f32 %v3422, %v3638
      %v3737 = vadd.f32 %v3423, %v3643
      %v3738 = vadd.f32 %v3424, %v3646
      %v3739 = vadd.f32 %v3425, %v3651
      %v3740 = vadd.f32 %v3426, %v3654
      %v3741 = vadd.f32 %v3427, %v3659
      %v3742 = vadd.f32 %v3428, %v3662
      %v3743 = vadd.f32 %v3429, %v3667
      %v3744 = vadd.f32 %v3430, %v3670
      %v3745 = vadd.f32 %v3431, %v3675
      %v3746 = vadd.f32 %v3432, %v3678
      %v3747 = vadd.f32 %v3433, %v3683
      %v3748 = vadd.f32 %v3434, %v3686
      %v3749 = vadd.f32 %v3435, %v3691
      %v3750 = vadd.f32 %v3436, %v3694
      %v3751 = vadd.f32 %v3437, %v3699
      %v3752 = vadd.f32 %v3438, %v3702
      %v3753 = vadd.f32 %v3439, %v3707
      %v3754 = vadd.f32 %v3440, %v3710
      %v3755 = vadd.f32 %v3441, %v3715
      %v3756 = vadd.f32 %v3442, %v3718
      %v3757 = vld [vmem:[%s2] sm:$0x1]
      %v3759 = vlaneseq
      %v3760 = vshrl.u32 %v3759, 7
      %v3761 = vsub.s32 0, %v3760
      %v3762 = vrot.slane %v3757, %v3761
      %v3764 = vmul.f32 %v3721, %v3762
      %v3765 = vmul.f32 %v3722, %v3762
      %v3766 = vmul.f32 %v3723, %v3762
      %v3767 = vmul.f32 %v3724, %v3762
      %v3768 = vmul.f32 %v3725, %v3762
      %v3769 = vmul.f32 %v3726, %v3762
      %v3770 = vmul.f32 %v3727, %v3762
      %v3771 = vmul.f32 %v3728, %v3762
      %v3772 = vmul.f32 %v3729, %v3762
      %v3773 = vmul.f32 %v3730, %v3762
      %v3774 = vmul.f32 %v3731, %v3762
      %v3775 = vmul.f32 %v3732, %v3762
      %v3776 = vmul.f32 %v3733, %v3762
      %v3777 = vmul.f32 %v3734, %v3762
      %v3778 = vmul.f32 %v3735, %v3762
      %v3779 = vmul.f32 %v3736, %v3762
      %v3780 = vmul.f32 %v3737, %v3762
      %v3781 = vmul.f32 %v3738, %v3762
      %v3782 = vmul.f32 %v3739, %v3762
      %v3783 = vmul.f32 %v3740, %v3762
      %v3784 = vmul.f32 %v3741, %v3762
      %v3785 = vmul.f32 %v3742, %v3762
      %v3786 = vmul.f32 %v3743, %v3762
      %v3787 = vmul.f32 %v3744, %v3762
      %v3788 = vmul.f32 %v3745, %v3762
      %v3789 = vmul.f32 %v3746, %v3762
      %v3790 = vmul.f32 %v3747, %v3762
      %v3791 = vmul.f32 %v3748, %v3762
      %v3792 = vmul.f32 %v3749, %v3762
      %v3793 = vmul.f32 %v3750, %v3762
      %v3794 = vmul.f32 %v3751, %v3762
      %v3795 = vmul.f32 %v3752, %v3762
      %v3796 = vmul.f32 %v3753, %v3762
      %v3797 = vmul.f32 %v3754, %v3762
      %v3798 = vmul.f32 %v3755, %v3762
      %v3799 = vmul.f32 %v3756, %v3762
      %v3800 = vld [vmem:[%s3] sm:$0x1]
      %v3802 = vlaneseq
      %v3803 = vshrl.u32 %v3802, 7
      %v3804 = vsub.s32 0, %v3803
      %v3805 = vrot.slane %v3800, %v3804
      %v3807 = vadd.f32 %v3764, %v3805
      %v3808 = vadd.f32 %v3765, %v3805
      %v3809 = vadd.f32 %v3766, %v3805
      %v3810 = vadd.f32 %v3767, %v3805
      %v3811 = vadd.f32 %v3768, %v3805
      %v3812 = vadd.f32 %v3769, %v3805
      %v3813 = vadd.f32 %v3770, %v3805
      %v3814 = vadd.f32 %v3771, %v3805
      %v3815 = vadd.f32 %v3772, %v3805
      %v3816 = vadd.f32 %v3773, %v3805
      %v3817 = vadd.f32 %v3774, %v3805
      %v3818 = vadd.f32 %v3775, %v3805
      %v3819 = vadd.f32 %v3776, %v3805
      %v3820 = vadd.f32 %v3777, %v3805
      %v3821 = vadd.f32 %v3778, %v3805
      %v3822 = vadd.f32 %v3779, %v3805
      %v3823 = vadd.f32 %v3780, %v3805
      %v3824 = vadd.f32 %v3781, %v3805
      %v3825 = vadd.f32 %v3782, %v3805
      %v3826 = vadd.f32 %v3783, %v3805
      %v3827 = vadd.f32 %v3784, %v3805
      %v3828 = vadd.f32 %v3785, %v3805
      %v3829 = vadd.f32 %v3786, %v3805
      %v3830 = vadd.f32 %v3787, %v3805
      %v3831 = vadd.f32 %v3788, %v3805
      %v3832 = vadd.f32 %v3789, %v3805
      %v3833 = vadd.f32 %v3790, %v3805
      %v3834 = vadd.f32 %v3791, %v3805
      %v3835 = vadd.f32 %v3792, %v3805
      %v3836 = vadd.f32 %v3793, %v3805
      %v3837 = vadd.f32 %v3794, %v3805
      %v3838 = vadd.f32 %v3795, %v3805
      %v3839 = vadd.f32 %v3796, %v3805
      %v3840 = vadd.f32 %v3797, %v3805
      %v3841 = vadd.f32 %v3798, %v3805
      %v3842 = vadd.f32 %v3799, %v3805
      %v3843 = vmax.f32 %v3807, 0.0
      %v3844 = vmax.f32 %v3808, 0.0
      %v3845 = vmax.f32 %v3809, 0.0
      %v3846 = vmax.f32 %v3810, 0.0
      %v3847 = vmax.f32 %v3811, 0.0
      %v3848 = vmax.f32 %v3812, 0.0
      %v3849 = vmax.f32 %v3813, 0.0
      %v3850 = vmax.f32 %v3814, 0.0
      %v3851 = vmax.f32 %v3815, 0.0
      %v3852 = vmax.f32 %v3816, 0.0
      %v3853 = vmax.f32 %v3817, 0.0
      %v3854 = vmax.f32 %v3818, 0.0
      %v3855 = vmax.f32 %v3819, 0.0
      %v3856 = vmax.f32 %v3820, 0.0
      %v3857 = vmax.f32 %v3821, 0.0
      %v3858 = vmax.f32 %v3822, 0.0
      %v3859 = vmax.f32 %v3823, 0.0
      %v3860 = vmax.f32 %v3824, 0.0
      %v3861 = vmax.f32 %v3825, 0.0
      %v3862 = vmax.f32 %v3826, 0.0
      %v3863 = vmax.f32 %v3827, 0.0
      %v3864 = vmax.f32 %v3828, 0.0
      %v3865 = vmax.f32 %v3829, 0.0
      %v3866 = vmax.f32 %v3830, 0.0
      %v3867 = vmax.f32 %v3831, 0.0
      %v3868 = vmax.f32 %v3832, 0.0
      %v3869 = vmax.f32 %v3833, 0.0
      %v3870 = vmax.f32 %v3834, 0.0
      %v3871 = vmax.f32 %v3835, 0.0
      %v3872 = vmax.f32 %v3836, 0.0
      %v3873 = vmax.f32 %v3837, 0.0
      %v3874 = vmax.f32 %v3838, 0.0
      %v3875 = vmax.f32 %v3839, 0.0
      %v3876 = vmax.f32 %v3840, 0.0
      %v3877 = vmax.f32 %v3841, 0.0
      %v3878 = vmax.f32 %v3842, 0.0
      %3879 = vst [vmem:[%s197] sm:$0xff] %v3843
      %3880 = vst [vmem:[%s197 + $0x8] sm:$0xff] %v3844
      %3881 = vst [vmem:[%s197 + $0x10] sm:$0xff] %v3845
      %3882 = vst [vmem:[%s197 + $0x18] sm:$0xff] %v3846
      %3883 = vst [vmem:[%s197 + $0x20] sm:$0xff] %v3847
      %3884 = vst [vmem:[%s197 + $0x28] sm:$0xff] %v3848
      %3885 = vst [vmem:[%s197 + $0x30] sm:$0xff] %v3849
      %3886 = vst [vmem:[%s197 + $0x38] sm:$0xff] %v3850
      %3887 = vst [vmem:[%s197 + $0x40] sm:$0xff] %v3851
      %3888 = vst [vmem:[%s197 + $0x48] sm:$0xff] %v3852
      %3889 = vst [vmem:[%s197 + $0x50] sm:$0xff] %v3853
      %3890 = vst [vmem:[%s197 + $0x58] sm:$0xff] %v3854
      %3891 = vst [vmem:[%s197 + $0x60] sm:$0xff] %v3855
      %3892 = vst [vmem:[%s197 + $0x68] sm:$0xff] %v3856
      %3893 = vst [vmem:[%s197 + $0x70] sm:$0xff] %v3857
      %3894 = vst [vmem:[%s197 + $0x78] sm:$0xff] %v3858
      %3895 = vst [vmem:[%s197 + $0x80] sm:$0xff] %v3859
      %3896 = vst [vmem:[%s197 + $0x88] sm:$0xff] %v3860
      %3897 = vst [vmem:[%s197 + $0x90] sm:$0xff] %v3861
      %3898 = vst [vmem:[%s197 + $0x98] sm:$0xff] %v3862
      %3899 = vst [vmem:[%s197 + $0xa0] sm:$0xff] %v3863
      %3900 = vst [vmem:[%s197 + $0xa8] sm:$0xff] %v3864
      %3901 = vst [vmem:[%s197 + $0xb0] sm:$0xff] %v3865
      %3902 = vst [vmem:[%s197 + $0xb8] sm:$0xff] %v3866
      %3903 = vst [vmem:[%s197 + $0xc0] sm:$0xff] %v3867
      %3904 = vst [vmem:[%s197 + $0xc8] sm:$0xff] %v3868
      %3905 = vst [vmem:[%s197 + $0xd0] sm:$0xff] %v3869
      %3906 = vst [vmem:[%s197 + $0xd8] sm:$0xff] %v3870
      %3907 = vst [vmem:[%s197 + $0xe0] sm:$0xff] %v3871
      %3908 = vst [vmem:[%s197 + $0xe8] sm:$0xff] %v3872
      %3909 = vst [vmem:[%s197 + $0xf0] sm:$0xff] %v3873
      %3910 = vst [vmem:[%s197 + $0xf8] sm:$0xff] %v3874
      %3911 = vst [vmem:[%s197 + $0x100] sm:$0xff] %v3875
      %3912 = vst [vmem:[%s197 + $0x108] sm:$0xff] %v3876
      %3913 = vst [vmem:[%s197 + $0x110] sm:$0xff] %v3877
      %3914 = vst [vmem:[%s197 + $0x118] sm:$0x3f] %v3878
      %p3915 = scmp.lt.s32.totalorder %s15, 1
      %s3916 = scalar_select %p3915, %s15, 1
      %s3917 = smul.addr %s3916, 36
      %s3918 = smul.addr %s3917, 8
      %s3919 = scalar_lea.vmem %s4, %s3918
      // Predicated region
      $region37: #{skeleton_block_forward.3} parent=35 // pred_check
        %p3920 = pneg %p122
      $region38: #{skeleton_block_forward.3} parent=35 // pred_check_branch
        %3922 = sbr.rel (%p3920) target = $region40
      $region39: #{skeleton_block_forward.3} parent=35 // pred_region
        _
      $region40: #{skeleton_block_forward.3} parent=35 // pred_fallthru
        _
    $region36: #{skeleton_block_forward.3} parent=5 // pred_fallthru
      _
    %p3923 = scmp.le.s32.totalorder 2, %s10
    // Predicated region
    $region41: #{skeleton_block_forward.3} parent=5 // pred_check
      %p3924 = pneg %p3923
    $region42: #{skeleton_block_forward.3} parent=5 // pred_check_branch
      %3926 = sbr.rel (%p3924) target = $region44
    $region43: #{skeleton_block_forward.3} parent=5 // pred_region
      %s3927 = ssub.s32 %s10, 2
      // Predicated region
      $region45: #{skeleton_block_forward.3} parent=43 // pred_check
        %p3928 = pneg %p128
      $region46: #{skeleton_block_forward.3} parent=43 // pred_check_branch
        %3930 = sbr.rel (%p3928) target = $region48
      $region47: #{skeleton_block_forward.3} parent=43 // pred_region
        %p3931 = scmp.lt.s32.totalorder %s16, 1
        %s3932 = scalar_select %p3931, %s16, 1
        %s3933 = smul.addr %s3932, 36
        %s3934 = smul.addr %s3933, 8
        %s3935 = scalar_lea.vmem %s4, %s3934
      $region48: #{skeleton_block_forward.3} parent=43 // pred_fallthru
        _
    $region44: #{skeleton_block_forward.3} parent=5 // pred_fallthru
      _
  $region6: #{skeleton_block_forward.3} parent=0 // loop_footer
    %s14 = sadd.s32 1, %s10
  $region7: #{skeleton_block_forward.3} parent=0 // loop_footer_branch
    %9 = sbr.rel target = $region3
  $region8: #{skeleton_block_forward.3} parent=0 // loop_exit
    _

</llo_original>
